<compile_context>
chip_gen: v7x
topology: tpu7x:2x2x1
jax: 0.10.0
libtpu: 0.0.40
codegen_flags: <defaults>
</compile_context>

<pallas_src>
import functools

import jax
import jax.numpy as jnp
import numpy as np
from jax import lax
from jax.experimental import pallas as pl
from jax.experimental.pallas import tpu as pltpu

_VMEM_LIMIT = 64 * 1024 * 1024  # raise scoped VMEM above the 16/32 MiB default


# ----------------------------------------------------------------------------
# Tile-size helpers (keep blocks (8,128)-legal; K tiles must divide K exactly)
# ----------------------------------------------------------------------------
def _m_tile(m, target=512):
    if m <= 256:
        return m
    half = max(8, (m // 2) // 8 * 8)  # prefer >=2 grid steps (v7x has 2 TCs)
    return min(target, half)


def _k_tile(k, target=512):
    if k <= target:
        return k
    for t in (target, 256, 128):
        if k % t == 0:
            return t
    return k


def _n_tile(n, target=256):
    if n <= target:
        return n
    for t in (target, 128):
        if n % t == 0:
            return t
    return n


# ----------------------------------------------------------------------------
# Fused (matmul -> BN scale/bias -> [+residual] -> ReLU) kernels
# ----------------------------------------------------------------------------
def _mm_bn_oneshot_kernel(x_ref, w_ref, s_ref, b_ref, o_ref, *, relu):
    """Whole K in one step: no scratch accumulator round-trip."""
    y = jnp.dot(x_ref[...], w_ref[...], preferred_element_type=jnp.float32)
    y = y * s_ref[...] + b_ref[...]
    if relu:
        y = jnp.maximum(y, 0.0)
    o_ref[...] = y.astype(o_ref.dtype)


def _mm_bn_res_oneshot_kernel(x_ref, w_ref, s_ref, b_ref, r_ref, o_ref, *,
                              relu):
    y = jnp.dot(x_ref[...], w_ref[...], preferred_element_type=jnp.float32)
    y = y * s_ref[...] + b_ref[...] + r_ref[...].astype(jnp.float32)
    if relu:
        y = jnp.maximum(y, 0.0)
    o_ref[...] = y.astype(o_ref.dtype)


def _mm_bn_kernel(x_ref, w_ref, s_ref, b_ref, o_ref, acc_ref, *, relu):
    @pl.when(pl.program_id(2) == 0)
    def _():
        acc_ref[...] = jnp.zeros_like(acc_ref)

    acc_ref[...] += jnp.dot(x_ref[...], w_ref[...],
                            preferred_element_type=jnp.float32)

    @pl.when(pl.program_id(2) == pl.num_programs(2) - 1)
    def _():
        y = acc_ref[...] * s_ref[...] + b_ref[...]
        if relu:
            y = jnp.maximum(y, 0.0)
        o_ref[...] = y.astype(o_ref.dtype)


def _mm_bn_res_kernel(x_ref, w_ref, s_ref, b_ref, r_ref, o_ref, acc_ref, *,
                      relu):
    @pl.when(pl.program_id(2) == 0)
    def _():
        acc_ref[...] = jnp.zeros_like(acc_ref)

    acc_ref[...] += jnp.dot(x_ref[...], w_ref[...],
                            preferred_element_type=jnp.float32)

    @pl.when(pl.program_id(2) == pl.num_programs(2) - 1)
    def _():
        y = (acc_ref[...] * s_ref[...] + b_ref[...]
             + r_ref[...].astype(jnp.float32))
        if relu:
            y = jnp.maximum(y, 0.0)
        o_ref[...] = y.astype(o_ref.dtype)


def matmul_bn_act(x, w, scale, bias, residual=None, relu=True,
                  out_dtype=jnp.bfloat16, tm=512, tn=256, tk=512):
    """y = act((x @ w) * scale + bias [+ residual]) with bf16 in, f32 acc."""
    m, k = x.shape
    k2, n = w.shape
    assert k == k2
    tm = _m_tile(m, tm)
    tk = _k_tile(k, tk)
    tn = _n_tile(n, tn)
    gm, gn = pl.cdiv(m, tm), pl.cdiv(n, tn)

    x = x.astype(jnp.bfloat16)
    w = w.astype(jnp.bfloat16)
    scale2 = scale.reshape(1, n).astype(jnp.float32)
    bias2 = bias.reshape(1, n).astype(jnp.float32)

    if tk == k:
        # --- single K step: one-shot kernel, no scratch accumulator ---------
        in_specs = [
            pl.BlockSpec((tm, k), lambda i, j: (i, 0)),   # activation tile
            pl.BlockSpec((k, tn), lambda i, j: (0, j)),   # weight tile
            pl.BlockSpec((1, tn), lambda i, j: (0, j)),   # folded BN scale
            pl.BlockSpec((1, tn), lambda i, j: (0, j)),   # folded BN bias
        ]
        args = [x, w, scale2, bias2]
        if residual is None:
            kernel = functools.partial(_mm_bn_oneshot_kernel, relu=relu)
        else:
            kernel = functools.partial(_mm_bn_res_oneshot_kernel, relu=relu)
            in_specs.append(pl.BlockSpec((tm, tn), lambda i, j: (i, j)))
            args.append(residual.astype(jnp.bfloat16))

        return pl.pallas_call(
            kernel,
            out_shape=jax.ShapeDtypeStruct((m, n), out_dtype),
            grid_spec=pltpu.PrefetchScalarGridSpec(
                num_scalar_prefetch=0,
                grid=(gm, gn),
                in_specs=in_specs,
                out_specs=pl.BlockSpec((tm, tn), lambda i, j: (i, j)),
            ),
            compiler_params=pltpu.CompilerParams(
                dimension_semantics=("parallel", "parallel"),
                vmem_limit_bytes=_VMEM_LIMIT),
        )(*args)

    # --- multi K step: f32 VMEM accumulator, K innermost --------------------
    assert k % tk == 0
    gk = k // tk
    in_specs = [
        pl.BlockSpec((tm, tk), lambda i, j, q: (i, q)),   # activation tile
        pl.BlockSpec((tk, tn), lambda i, j, q: (q, j)),   # weight tile
        pl.BlockSpec((1, tn), lambda i, j, q: (0, j)),    # folded BN scale
        pl.BlockSpec((1, tn), lambda i, j, q: (0, j)),    # folded BN bias
    ]
    args = [x, w, scale2, bias2]
    if residual is None:
        kernel = functools.partial(_mm_bn_kernel, relu=relu)
    else:
        kernel = functools.partial(_mm_bn_res_kernel, relu=relu)
        in_specs.append(pl.BlockSpec((tm, tn), lambda i, j, q: (i, j)))
        args.append(residual.astype(jnp.bfloat16))

    return pl.pallas_call(
        kernel,
        out_shape=jax.ShapeDtypeStruct((m, n), out_dtype),
        grid_spec=pltpu.PrefetchScalarGridSpec(
            num_scalar_prefetch=0,
            grid=(gm, gn, gk),
            in_specs=in_specs,
            out_specs=pl.BlockSpec((tm, tn), lambda i, j, q: (i, j)),
            scratch_shapes=[pltpu.VMEM((tm, tn), jnp.float32)],
        ),
        compiler_params=pltpu.CompilerParams(
            dimension_semantics=("parallel", "parallel", "arbitrary"),
            vmem_limit_bytes=_VMEM_LIMIT),
    )(*args)


# ----------------------------------------------------------------------------
# Fused 3x3 conv + BN + ReLU: in-kernel 9-tap shifted-window reduction
# (no HBM im2col — only a 1-px spatial pad of the activation is materialized)
# ----------------------------------------------------------------------------
def _conv3x3_bn_relu_kernel(x_ref, w_ref, s_ref, b_ref, o_ref, *,
                            stride, ho, wo):
    c_in = x_ref.shape[-1]
    c_out = o_ref.shape[-1]
    acc = jnp.zeros((ho * wo, c_out), jnp.float32)

    if stride == 1:
        def window(kh, kw):
            return x_ref[0, kh:kh + ho, kw:kw + wo, :]
    else:
        x = x_ref[0]

        def window(kh, kw):
            return lax.slice(
                x, (kh, kw, 0),
                (kh + (ho - 1) * stride + 1, kw + (wo - 1) * stride + 1, c_in),
                (stride, stride, 1))

    for kh in range(3):
        for kw in range(3):
            win = window(kh, kw).reshape(ho * wo, c_in)
            acc = acc + jnp.dot(win, w_ref[kh * 3 + kw],
                                preferred_element_type=jnp.float32)

    y = acc * s_ref[...] + b_ref[...]
    y = jnp.maximum(y, 0.0)
    o_ref[0] = y.astype(o_ref.dtype)


def conv3x3_bn_relu(x_nhwc, w_oihw, scale, bias, stride):
    n, h, w, c = x_nhwc.shape
    c_out = w_oihw.shape[0]
    ho = (h + 2 - 3) // stride + 1
    wo = (w + 2 - 3) // stride + 1
    hp, wp = h + 2, w + 2

    xp = jnp.pad(x_nhwc.astype(jnp.bfloat16), ((0, 0), (1, 1), (1, 1), (0, 0)))
    w9 = (jnp.transpose(w_oihw, (2, 3, 1, 0))        # (kh, kw, Cin, Cout)
          .reshape(9, c, c_out).astype(jnp.bfloat16))
    scale2 = scale.reshape(1, c_out).astype(jnp.float32)
    bias2 = bias.reshape(1, c_out).astype(jnp.float32)

    kernel = functools.partial(_conv3x3_bn_relu_kernel,
                               stride=stride, ho=ho, wo=wo)
    out = pl.pallas_call(
        kernel,
        out_shape=jax.ShapeDtypeStruct((n, ho * wo, c_out), jnp.bfloat16),
        grid_spec=pltpu.PrefetchScalarGridSpec(
            num_scalar_prefetch=0,
            grid=(n,),
            in_specs=[
                pl.BlockSpec((1, hp, wp, c), lambda i: (i, 0, 0, 0)),
                pl.BlockSpec((9, c, c_out), lambda i: (0, 0, 0)),
                pl.BlockSpec((1, c_out), lambda i: (0, 0)),
                pl.BlockSpec((1, c_out), lambda i: (0, 0)),
            ],
            out_specs=pl.BlockSpec((1, ho * wo, c_out), lambda i: (i, 0, 0)),
        ),
        compiler_params=pltpu.CompilerParams(
            dimension_semantics=("parallel",),
            vmem_limit_bytes=_VMEM_LIMIT),
    )(xp, w9, scale2, bias2)
    return out.reshape(n, ho, wo, c_out)


# ----------------------------------------------------------------------------
# Glue: BN folding, parameter init, full block forward (jitted end-to-end)
# ----------------------------------------------------------------------------
def _fold_bn(gamma, beta, mean, var, eps=1e-5):
    scale = gamma / jnp.sqrt(var + eps)
    bias = beta - mean * scale
    return scale, bias


def init_bottleneck_params(key, in_planes, planes, stride=1):
    """Deterministic synthetic parameters, shapes match the PyTorch module."""
    expansion = 4
    ks = jax.random.split(key, 16)

    def conv_w(k, shape):
        return jax.random.normal(k, shape, jnp.float32) * 0.1

    def bn_p(k, c):
        k1, k2, k3, k4 = jax.random.split(k, 4)
        gamma = jax.random.uniform(k1, (c,), jnp.float32, 0.5, 1.5)
        beta = jax.random.normal(k2, (c,), jnp.float32) * 0.1
        mean = jax.random.normal(k3, (c,), jnp.float32) * 0.1
        var = jax.random.uniform(k4, (c,), jnp.float32, 0.5, 1.5)
        return gamma, beta, mean, var

    params = {
        "w1": conv_w(ks[0], (planes, in_planes, 1, 1)),          # OIHW
        "bn1": bn_p(ks[1], planes),
        "w2": conv_w(ks[2], (planes, planes, 3, 3)),
        "bn2": bn_p(ks[3], planes),
        "w3": conv_w(ks[4], (expansion * planes, planes, 1, 1)),
        "bn3": bn_p(ks[5], expansion * planes),
        "stride": stride,
        "has_shortcut": (stride != 1 or in_planes != expansion * planes),
    }
    if params["has_shortcut"]:
        params["w_sc"] = conv_w(ks[6], (expansion * planes, in_planes, 1, 1))
        params["bn_sc"] = bn_p(ks[7], expansion * planes)
    return params


@functools.partial(jax.jit, static_argnames=("stride", "has_shortcut"))
def _bottleneck_forward_impl(x_nchw, weights, *, stride, has_shortcut):
    n, c_in, h, w = x_nchw.shape
    x = jnp.transpose(x_nchw, (0, 2, 3, 1)).astype(jnp.bfloat16)  # NHWC bf16

    # conv1 (1x1) + bn1 + relu
    w1 = jnp.transpose(weights["w1"][:, :, 0, 0], (1, 0))         # (Cin, planes)
    planes = w1.shape[1]
    s1, b1 = _fold_bn(*weights["bn1"])
    out = matmul_bn_act(x.reshape(-1, c_in), w1, s1, b1, relu=True)
    out = out.reshape(n, h, w, planes)

    # conv2 (3x3, stride, pad=1) + bn2 + relu — in-kernel 9-tap reduction
    s2, b2 = _fold_bn(*weights["bn2"])
    out = conv3x3_bn_relu(out, weights["w2"], s2, b2, stride)
    _, ho, wo, _ = out.shape

    # shortcut path
    c_out = weights["w3"].shape[0]
    x_s = x[:, ::stride, ::stride, :].reshape(-1, c_in)
    if has_shortcut:
        w_sc = jnp.transpose(weights["w_sc"][:, :, 0, 0], (1, 0))
        s_sc, b_sc = _fold_bn(*weights["bn_sc"])
        shortcut = matmul_bn_act(x_s, w_sc, s_sc, b_sc, relu=False)
    else:
        assert stride == 1 and c_in == c_out, \
            "identity shortcut requires stride==1 and in_planes==4*planes"
        shortcut = x_s

    # conv3 (1x1) + bn3 + residual add + relu (all fused in one kernel)
    w3 = jnp.transpose(weights["w3"][:, :, 0, 0], (1, 0))         # (planes, 4p)
    s3, b3 = _fold_bn(*weights["bn3"])
    out = matmul_bn_act(out.reshape(-1, planes), w3, s3, b3,
                        residual=shortcut, relu=True,
                        out_dtype=jnp.float32)

    out = out.reshape(n, ho, wo, c_out)
    return jnp.transpose(out, (0, 3, 1, 2))                       # NCHW


def bottleneck_forward(x_nchw, params):
    """Forward pass of the Bottleneck block. Input/output are NCHW float32."""
    weights = {k: v for k, v in params.items()
               if k not in ("stride", "has_shortcut")}
    return _bottleneck_forward_impl(x_nchw, weights,
                                    stride=params["stride"],
                                    has_shortcut=params["has_shortcut"])


# ----------------------------------------------------------------------------
# Pure-JAX reference (lax.conv, f32) for the correctness assert
# ----------------------------------------------------------------------------
def bottleneck_reference(x, params):
    dn = ("NCHW", "OIHW", "NCHW")

    def conv(x, w, stride, pad):
        return lax.conv_general_dilated(x, w, (stride, stride),
                                        [(pad, pad), (pad, pad)],
                                        dimension_numbers=dn)

    def bn(x, p):
        s, b = _fold_bn(*p)
        return x * s[None, :, None, None] + b[None, :, None, None]

    stride = params["stride"]
    out = jax.nn.relu(bn(conv(x, params["w1"], 1, 0), params["bn1"]))
    out = jax.nn.relu(bn(conv(out, params["w2"], stride, 1), params["bn2"]))
    out = bn(conv(out, params["w3"], 1, 0), params["bn3"])
    if params["has_shortcut"]:
        sc = bn(conv(x, params["w_sc"], stride, 0), params["bn_sc"])
    else:
        sc = x[:, :, ::stride, ::stride]
    return jax.nn.relu(out + sc)


if __name__ == "__main__":
    key = jax.random.PRNGKey(0)
    k_x, k_p = jax.random.split(key)

    # Small shapes consistent with the module: batch=2, in_planes=4, 16x16.
    in_planes, planes, stride = 4, 4, 1
    x = jax.random.normal(k_x, (2, in_planes, 16, 16), jnp.float32)
    params = init_bottleneck_params(k_p, in_planes, planes, stride)

    y = jax.block_until_ready(bottleneck_forward(x, params))

    y_ref = jax.block_until_ready(bottleneck_reference(x, params))
    # bf16 activations/weights with f32 accumulation vs. f32 reference.
    np.testing.assert_allclose(np.asarray(y), np.asarray(y_ref),
                               rtol=2e-2, atol=2e-2)
    print("KERNEL_OK")
</pallas_src>

<mosaic_0001>
module attributes {stable_mosaic.version = 11 : i64} {
  func.func @_mm_bn_oneshot_kernel(%arg0: i32, %arg1: i32, %arg2: memref<256x4xbf16, #tpu.memory_space<vmem>>, %arg3: memref<4x16xbf16, #tpu.memory_space<vmem>>, %arg4: memref<1x16xf32, #tpu.memory_space<vmem>>, %arg5: memref<1x16xf32, #tpu.memory_space<vmem>>, %arg6: memref<256x16xbf16, #tpu.memory_space<vmem>>) attributes {dimension_semantics = [#tpu.dimension_semantics<parallel>, #tpu.dimension_semantics<parallel>], iteration_bounds = array<i64: 2, 1>, scalar_prefetch = 0 : i64, scratch_operands = 0 : i64, tpu.core_type = #tpu.core_type<tc>, window_params = [{transform_indices = @transform_0, window_bounds = array<i64: 256, 4>}, {transform_indices = @transform_1, window_bounds = array<i64: 4, 16>}, {transform_indices = @transform_2, window_bounds = array<i64: 1, 16>}, {transform_indices = @transform_3, window_bounds = array<i64: 1, 16>}, {transform_indices = @transform_4, window_bounds = array<i64: 256, 16>}]} {
    %c0 = arith.constant 0 : index
    %c0_0 = arith.constant 0 : index
    %0 = vector.load %arg2[%c0, %c0_0] : memref<256x4xbf16, #tpu.memory_space<vmem>>, vector<256x4xbf16>
    %c0_1 = arith.constant 0 : index
    %c0_2 = arith.constant 0 : index
    %1 = vector.load %arg3[%c0_1, %c0_2] : memref<4x16xbf16, #tpu.memory_space<vmem>>, vector<4x16xbf16>
    %cst = arith.constant dense<0.000000e+00> : vector<256x16xf32>
    %2 = tpu.matmul %0, %1, %cst {dimension_numbers = #tpu.dot_dimension_numbers<[1], [0], [0], [1], [0, 0, 1, 1], [], []>} : vector<256x4xbf16>, vector<4x16xbf16>, vector<256x16xf32> -> vector<256x16xf32>
    %c0_3 = arith.constant 0 : index
    %c0_4 = arith.constant 0 : index
    %3 = vector.load %arg4[%c0_3, %c0_4] : memref<1x16xf32, #tpu.memory_space<vmem>>, vector<1x16xf32>
    %4 = vector.broadcast %3 : vector<1x16xf32> to vector<256x16xf32>
    %5 = arith.mulf %2, %4 : vector<256x16xf32>
    %c0_5 = arith.constant 0 : index
    %c0_6 = arith.constant 0 : index
    %6 = vector.load %arg5[%c0_5, %c0_6] : memref<1x16xf32, #tpu.memory_space<vmem>>, vector<1x16xf32>
    %7 = vector.broadcast %6 : vector<1x16xf32> to vector<256x16xf32>
    %8 = arith.addf %5, %7 : vector<256x16xf32>
    %9 = arith.truncf %8 : vector<256x16xf32> to vector<256x16xbf16>
    %c0_7 = arith.constant 0 : index
    %c0_8 = arith.constant 0 : index
    %10 = vector.load %arg6[%c0_7, %c0_8] : memref<256x16xbf16, #tpu.memory_space<vmem>>, vector<256x16xbf16>
    tpu.vector_store %arg6[%c0_7, %c0_8], %9 {strides = array<i32>} : memref<256x16xbf16, #tpu.memory_space<vmem>>, vector<256x16xbf16>,
    return
  }
  func.func @transform_0(%arg0: i32, %arg1: i32) -> (i32, i32) {
    %c0_i32 = arith.constant 0 : i32
    %c0_i32_0 = arith.constant 0 : i32
    return %arg0, %c0_i32 : i32, i32
  }
  func.func @transform_1(%arg0: i32, %arg1: i32) -> (i32, i32) {
    %c0_i32 = arith.constant 0 : i32
    %c0_i32_0 = arith.constant 0 : i32
    return %c0_i32, %arg1 : i32, i32
  }
  func.func @transform_2(%arg0: i32, %arg1: i32) -> (i32, i32) {
    %c0_i32 = arith.constant 0 : i32
    %c0_i32_0 = arith.constant 0 : i32
    return %c0_i32, %arg1 : i32, i32
  }
  func.func @transform_3(%arg0: i32, %arg1: i32) -> (i32, i32) {
    %c0_i32 = arith.constant 0 : i32
    %c0_i32_0 = arith.constant 0 : i32
    return %c0_i32, %arg1 : i32, i32
  }
  func.func @transform_4(%arg0: i32, %arg1: i32) -> (i32, i32) {
    %c0_i32 = arith.constant 0 : i32
    return %arg0, %arg1 : i32, i32
  }
}

module attributes {stable_mosaic.version = 11 : i64} {
  func.func @_mm_bn_oneshot_kernel(%arg0: i32, %arg1: i32, %arg2: memref<256x4xbf16, #tpu.memory_space<vmem>>, %arg3: memref<4x4xbf16, #tpu.memory_space<vmem>>, %arg4: memref<1x4xf32, #tpu.memory_space<vmem>>, %arg5: memref<1x4xf32, #tpu.memory_space<vmem>>, %arg6: memref<256x4xbf16, #tpu.memory_space<vmem>>) attributes {dimension_semantics = [#tpu.dimension_semantics<parallel>, #tpu.dimension_semantics<parallel>], iteration_bounds = array<i64: 2, 1>, scalar_prefetch = 0 : i64, scratch_operands = 0 : i64, tpu.core_type = #tpu.core_type<tc>, window_params = [{transform_indices = @transform_0, window_bounds = array<i64: 256, 4>}, {transform_indices = @transform_1, window_bounds = array<i64: 4, 4>}, {transform_indices = @transform_2, window_bounds = array<i64: 1, 4>}, {transform_indices = @transform_3, window_bounds = array<i64: 1, 4>}, {transform_indices = @transform_4, window_bounds = array<i64: 256, 4>}]} {
    %c0 = arith.constant 0 : index
    %c0_0 = arith.constant 0 : index
    %0 = vector.load %arg2[%c0, %c0_0] : memref<256x4xbf16, #tpu.memory_space<vmem>>, vector<256x4xbf16>
    %c0_1 = arith.constant 0 : index
    %c0_2 = arith.constant 0 : index
    %1 = vector.load %arg3[%c0_1, %c0_2] : memref<4x4xbf16, #tpu.memory_space<vmem>>, vector<4x4xbf16>
    %cst = arith.constant dense<0.000000e+00> : vector<256x4xf32>
    %2 = tpu.matmul %0, %1, %cst {dimension_numbers = #tpu.dot_dimension_numbers<[1], [0], [0], [1], [0, 0, 1, 1], [], []>} : vector<256x4xbf16>, vector<4x4xbf16>, vector<256x4xf32> -> vector<256x4xf32>
    %c0_3 = arith.constant 0 : index
    %c0_4 = arith.constant 0 : index
    %3 = vector.load %arg4[%c0_3, %c0_4] : memref<1x4xf32, #tpu.memory_space<vmem>>, vector<1x4xf32>
    %4 = vector.broadcast %3 : vector<1x4xf32> to vector<256x4xf32>
    %5 = arith.mulf %2, %4 : vector<256x4xf32>
    %c0_5 = arith.constant 0 : index
    %c0_6 = arith.constant 0 : index
    %6 = vector.load %arg5[%c0_5, %c0_6] : memref<1x4xf32, #tpu.memory_space<vmem>>, vector<1x4xf32>
    %7 = vector.broadcast %6 : vector<1x4xf32> to vector<256x4xf32>
    %8 = arith.addf %5, %7 : vector<256x4xf32>
    %cst_7 = arith.constant 0.000000e+00 : f32
    %9 = vector.broadcast %cst_7 : f32 to vector<256x4xf32>
    %10 = arith.maximumf %8, %9 : vector<256x4xf32>
    %11 = arith.truncf %10 : vector<256x4xf32> to vector<256x4xbf16>
    %c0_8 = arith.constant 0 : index
    %c0_9 = arith.constant 0 : index
    %12 = vector.load %arg6[%c0_8, %c0_9] : memref<256x4xbf16, #tpu.memory_space<vmem>>, vector<256x4xbf16>
    tpu.vector_store %arg6[%c0_8, %c0_9], %11 {strides = array<i32>} : memref<256x4xbf16, #tpu.memory_space<vmem>>, vector<256x4xbf16>,
    return
  }
  func.func @transform_0(%arg0: i32, %arg1: i32) -> (i32, i32) {
    %c0_i32 = arith.constant 0 : i32
    %c0_i32_0 = arith.constant 0 : i32
    return %arg0, %c0_i32 : i32, i32
  }
  func.func @transform_1(%arg0: i32, %arg1: i32) -> (i32, i32) {
    %c0_i32 = arith.constant 0 : i32
    %c0_i32_0 = arith.constant 0 : i32
    return %c0_i32, %arg1 : i32, i32
  }
  func.func @transform_2(%arg0: i32, %arg1: i32) -> (i32, i32) {
    %c0_i32 = arith.constant 0 : i32
    %c0_i32_0 = arith.constant 0 : i32
    return %c0_i32, %arg1 : i32, i32
  }
  func.func @transform_3(%arg0: i32, %arg1: i32) -> (i32, i32) {
    %c0_i32 = arith.constant 0 : i32
    %c0_i32_0 = arith.constant 0 : i32
    return %c0_i32, %arg1 : i32, i32
  }
  func.func @transform_4(%arg0: i32, %arg1: i32) -> (i32, i32) {
    %c0_i32 = arith.constant 0 : i32
    return %arg0, %arg1 : i32, i32
  }
}

module attributes {stable_mosaic.version = 11 : i64} {
  func.func @_conv3x3_bn_relu_kernel(%arg0: i32, %arg1: memref<1x18x18x4xbf16, #tpu.memory_space<vmem>>, %arg2: memref<9x4x4xbf16, #tpu.memory_space<vmem>>, %arg3: memref<1x4xf32, #tpu.memory_space<vmem>>, %arg4: memref<1x4xf32, #tpu.memory_space<vmem>>, %arg5: memref<1x256x4xbf16, #tpu.memory_space<vmem>>) attributes {dimension_semantics = [#tpu.dimension_semantics<parallel>], iteration_bounds = array<i64: 2>, scalar_prefetch = 0 : i64, scratch_operands = 0 : i64, tpu.core_type = #tpu.core_type<tc>, window_params = [{transform_indices = @transform_0, window_bounds = array<i64: 1, 18, 18, 4>}, {pipeline_mode = #tpu.pipeline_mode<synchronous>, transform_indices = @transform_1, window_bounds = array<i64: 9, 4, 4>}, {pipeline_mode = #tpu.pipeline_mode<synchronous>, transform_indices = @transform_2, window_bounds = array<i64: 1, 4>}, {pipeline_mode = #tpu.pipeline_mode<synchronous>, transform_indices = @transform_3, window_bounds = array<i64: 1, 4>}, {transform_indices = @transform_4, window_bounds = array<i64: 1, 256, 4>}]} {
    %cst = arith.constant 0.000000e+00 : f32
    %0 = vector.broadcast %cst : f32 to vector<256x4xf32>
    %c0 = arith.constant 0 : index
    %c0_0 = arith.constant 0 : index
    %c0_1 = arith.constant 0 : index
    %c0_2 = arith.constant 0 : index
    %1 = vector.load %arg1[%c0, %c0_0, %c0_1, %c0_2] : memref<1x18x18x4xbf16, #tpu.memory_space<vmem>>, vector<1x16x16x4xbf16>
    %2 = vector.shape_cast %1 : vector<1x16x16x4xbf16> to vector<16x16x4xbf16>
    %3 = vector.shape_cast %2 : vector<16x16x4xbf16> to vector<256x4xbf16>
    %c0_3 = arith.constant 0 : index
    %c0_4 = arith.constant 0 : index
    %c0_5 = arith.constant 0 : index
    %4 = vector.load %arg2[%c0_3, %c0_4, %c0_5] : memref<9x4x4xbf16, #tpu.memory_space<vmem>>, vector<1x4x4xbf16>
    %5 = vector.shape_cast %4 : vector<1x4x4xbf16> to vector<4x4xbf16>
    %cst_6 = arith.constant dense<0.000000e+00> : vector<256x4xf32>
    %6 = tpu.matmul %3, %5, %cst_6 {dimension_numbers = #tpu.dot_dimension_numbers<[1], [0], [0], [1], [0, 0, 1, 1], [], []>} : vector<256x4xbf16>, vector<4x4xbf16>, vector<256x4xf32> -> vector<256x4xf32>
    %7 = arith.addf %0, %6 : vector<256x4xf32>
    %c0_7 = arith.constant 0 : index
    %c0_8 = arith.constant 0 : index
    %c1 = arith.constant 1 : index
    %c0_9 = arith.constant 0 : index
    %8 = vector.load %arg1[%c0_7, %c0_8, %c1, %c0_9] : memref<1x18x18x4xbf16, #tpu.memory_space<vmem>>, vector<1x16x16x4xbf16>
    %9 = vector.shape_cast %8 : vector<1x16x16x4xbf16> to vector<16x16x4xbf16>
    %10 = vector.shape_cast %9 : vector<16x16x4xbf16> to vector<256x4xbf16>
    %c1_10 = arith.constant 1 : index
    %c0_11 = arith.constant 0 : index
    %c0_12 = arith.constant 0 : index
    %11 = vector.load %arg2[%c1_10, %c0_11, %c0_12] : memref<9x4x4xbf16, #tpu.memory_space<vmem>>, vector<1x4x4xbf16>
    %12 = vector.shape_cast %11 : vector<1x4x4xbf16> to vector<4x4xbf16>
    %cst_13 = arith.constant dense<0.000000e+00> : vector<256x4xf32>
    %13 = tpu.matmul %10, %12, %cst_13 {dimension_numbers = #tpu.dot_dimension_numbers<[1], [0], [0], [1], [0, 0, 1, 1], [], []>} : vector<256x4xbf16>, vector<4x4xbf16>, vector<256x4xf32> -> vector<256x4xf32>
    %14 = arith.addf %7, %13 : vector<256x4xf32>
    %c0_14 = arith.constant 0 : index
    %c0_15 = arith.constant 0 : index
    %c2 = arith.constant 2 : index
    %c0_16 = arith.constant 0 : index
    %15 = vector.load %arg1[%c0_14, %c0_15, %c2, %c0_16] : memref<1x18x18x4xbf16, #tpu.memory_space<vmem>>, vector<1x16x16x4xbf16>
    %16 = vector.shape_cast %15 : vector<1x16x16x4xbf16> to vector<16x16x4xbf16>
    %17 = vector.shape_cast %16 : vector<16x16x4xbf16> to vector<256x4xbf16>
    %c2_17 = arith.constant 2 : index
    %c0_18 = arith.constant 0 : index
    %c0_19 = arith.constant 0 : index
    %18 = vector.load %arg2[%c2_17, %c0_18, %c0_19] : memref<9x4x4xbf16, #tpu.memory_space<vmem>>, vector<1x4x4xbf16>
    %19 = vector.shape_cast %18 : vector<1x4x4xbf16> to vector<4x4xbf16>
    %cst_20 = arith.constant dense<0.000000e+00> : vector<256x4xf32>
    %20 = tpu.matmul %17, %19, %cst_20 {dimension_numbers = #tpu.dot_dimension_numbers<[1], [0], [0], [1], [0, 0, 1, 1], [], []>} : vector<256x4xbf16>, vector<4x4xbf16>, vector<256x4xf32> -> vector<256x4xf32>
    %21 = arith.addf %14, %20 : vector<256x4xf32>
    %c0_21 = arith.constant 0 : index
    %c1_22 = arith.constant 1 : index
    %c0_23 = arith.constant 0 : index
    %c0_24 = arith.constant 0 : index
    %22 = vector.load %arg1[%c0_21, %c1_22, %c0_23, %c0_24] : memref<1x18x18x4xbf16, #tpu.memory_space<vmem>>, vector<1x16x16x4xbf16>
    %23 = vector.shape_cast %22 : vector<1x16x16x4xbf16> to vector<16x16x4xbf16>
    %24 = vector.shape_cast %23 : vector<16x16x4xbf16> to vector<256x4xbf16>
    %c3 = arith.constant 3 : index
    %c0_25 = arith.constant 0 : index
    %c0_26 = arith.constant 0 : index
    %25 = vector.load %arg2[%c3, %c0_25, %c0_26] : memref<9x4x4xbf16, #tpu.memory_space<vmem>>, vector<1x4x4xbf16>
    %26 = vector.shape_cast %25 : vector<1x4x4xbf16> to vector<4x4xbf16>
    %cst_27 = arith.constant dense<0.000000e+00> : vector<256x4xf32>
    %27 = tpu.matmul %24, %26, %cst_27 {dimension_numbers = #tpu.dot_dimension_numbers<[1], [0], [0], [1], [0, 0, 1, 1], [], []>} : vector<256x4xbf16>, vector<4x4xbf16>, vector<256x4xf32> -> vector<256x4xf32>
    %28 = arith.addf %21, %27 : vector<256x4xf32>
    %c0_28 = arith.constant 0 : index
    %c1_29 = arith.constant 1 : index
    %c1_30 = arith.constant 1 : index
    %c0_31 = arith.constant 0 : index
    %29 = vector.load %arg1[%c0_28, %c1_29, %c1_30, %c0_31] : memref<1x18x18x4xbf16, #tpu.memory_space<vmem>>, vector<1x16x16x4xbf16>
    %30 = vector.shape_cast %29 : vector<1x16x16x4xbf16> to vector<16x16x4xbf16>
    %31 = vector.shape_cast %30 : vector<16x16x4xbf16> to vector<256x4xbf16>
    %c4 = arith.constant 4 : index
    %c0_32 = arith.constant 0 : index
    %c0_33 = arith.constant 0 : index
    %32 = vector.load %arg2[%c4, %c0_32, %c0_33] : memref<9x4x4xbf16, #tpu.memory_space<vmem>>, vector<1x4x4xbf16>
    %33 = vector.shape_cast %32 : vector<1x4x4xbf16> to vector<4x4xbf16>
    %cst_34 = arith.constant dense<0.000000e+00> : vector<256x4xf32>
    %34 = tpu.matmul %31, %33, %cst_34 {dimension_numbers = #tpu.dot_dimension_numbers<[1], [0], [0], [1], [0, 0, 1, 1], [], []>} : vector<256x4xbf16>, vector<4x4xbf16>, vector<256x4xf32> -> vector<256x4xf32>
    %35 = arith.addf %28, %34 : vector<256x4xf32>
    %c0_35 = arith.constant 0 : index
    %c1_36 = arith.constant 1 : index
    %c2_37 = arith.constant 2 : index
    %c0_38 = arith.constant 0 : index
    %36 = vector.load %arg1[%c0_35, %c1_36, %c2_37, %c0_38] : memref<1x18x18x4xbf16, #tpu.memory_space<vmem>>, vector<1x16x16x4xbf16>
    %37 = vector.shape_cast %36 : vector<1x16x16x4xbf16> to vector<16x16x4xbf16>
    %38 = vector.shape_cast %37 : vector<16x16x4xbf16> to vector<256x4xbf16>
    %c5 = arith.constant 5 : index
    %c0_39 = arith.constant 0 : index
    %c0_40 = arith.constant 0 : index
    %39 = vector.load %arg2[%c5, %c0_39, %c0_40] : memref<9x4x4xbf16, #tpu.memory_space<vmem>>, vector<1x4x4xbf16>
    %40 = vector.shape_cast %39 : vector<1x4x4xbf16> to vector<4x4xbf16>
    %cst_41 = arith.constant dense<0.000000e+00> : vector<256x4xf32>
    %41 = tpu.matmul %38, %40, %cst_41 {dimension_numbers = #tpu.dot_dimension_numbers<[1], [0], [0], [1], [0, 0, 1, 1], [], []>} : vector<256x4xbf16>, vector<4x4xbf16>, vector<256x4xf32> -> vector<256x4xf32>
    %42 = arith.addf %35, %41 : vector<256x4xf32>
    %c0_42 = arith.constant 0 : index
    %c2_43 = arith.constant 2 : index
    %c0_44 = arith.constant 0 : index
    %c0_45 = arith.constant 0 : index
    %43 = vector.load %arg1[%c0_42, %c2_43, %c0_44, %c0_45] : memref<1x18x18x4xbf16, #tpu.memory_space<vmem>>, vector<1x16x16x4xbf16>
    %44 = vector.shape_cast %43 : vector<1x16x16x4xbf16> to vector<16x16x4xbf16>
    %45 = vector.shape_cast %44 : vector<16x16x4xbf16> to vector<256x4xbf16>
    %c6 = arith.constant 6 : index
    %c0_46 = arith.constant 0 : index
    %c0_47 = arith.constant 0 : index
    %46 = vector.load %arg2[%c6, %c0_46, %c0_47] : memref<9x4x4xbf16, #tpu.memory_space<vmem>>, vector<1x4x4xbf16>
    %47 = vector.shape_cast %46 : vector<1x4x4xbf16> to vector<4x4xbf16>
    %cst_48 = arith.constant dense<0.000000e+00> : vector<256x4xf32>
    %48 = tpu.matmul %45, %47, %cst_48 {dimension_numbers = #tpu.dot_dimension_numbers<[1], [0], [0], [1], [0, 0, 1, 1], [], []>} : vector<256x4xbf16>, vector<4x4xbf16>, vector<256x4xf32> -> vector<256x4xf32>
    %49 = arith.addf %42, %48 : vector<256x4xf32>
    %c0_49 = arith.constant 0 : index
    %c2_50 = arith.constant 2 : index
    %c1_51 = arith.constant 1 : index
    %c0_52 = arith.constant 0 : index
    %50 = vector.load %arg1[%c0_49, %c2_50, %c1_51, %c0_52] : memref<1x18x18x4xbf16, #tpu.memory_space<vmem>>, vector<1x16x16x4xbf16>
    %51 = vector.shape_cast %50 : vector<1x16x16x4xbf16> to vector<16x16x4xbf16>
    %52 = vector.shape_cast %51 : vector<16x16x4xbf16> to vector<256x4xbf16>
    %c7 = arith.constant 7 : index
    %c0_53 = arith.constant 0 : index
    %c0_54 = arith.constant 0 : index
    %53 = vector.load %arg2[%c7, %c0_53, %c0_54] : memref<9x4x4xbf16, #tpu.memory_space<vmem>>, vector<1x4x4xbf16>
    %54 = vector.shape_cast %53 : vector<1x4x4xbf16> to vector<4x4xbf16>
    %cst_55 = arith.constant dense<0.000000e+00> : vector<256x4xf32>
    %55 = tpu.matmul %52, %54, %cst_55 {dimension_numbers = #tpu.dot_dimension_numbers<[1], [0], [0], [1], [0, 0, 1, 1], [], []>} : vector<256x4xbf16>, vector<4x4xbf16>, vector<256x4xf32> -> vector<256x4xf32>
    %56 = arith.addf %49, %55 : vector<256x4xf32>
    %c0_56 = arith.constant 0 : index
    %c2_57 = arith.constant 2 : index
    %c2_58 = arith.constant 2 : index
    %c0_59 = arith.constant 0 : index
    %57 = vector.load %arg1[%c0_56, %c2_57, %c2_58, %c0_59] : memref<1x18x18x4xbf16, #tpu.memory_space<vmem>>, vector<1x16x16x4xbf16>
    %58 = vector.shape_cast %57 : vector<1x16x16x4xbf16> to vector<16x16x4xbf16>
    %59 = vector.shape_cast %58 : vector<16x16x4xbf16> to vector<256x4xbf16>
    %c8 = arith.constant 8 : index
    %c0_60 = arith.constant 0 : index
    %c0_61 = arith.constant 0 : index
    %60 = vector.load %arg2[%c8, %c0_60, %c0_61] : memref<9x4x4xbf16, #tpu.memory_space<vmem>>, vector<1x4x4xbf16>
    %61 = vector.shape_cast %60 : vector<1x4x4xbf16> to vector<4x4xbf16>
    %cst_62 = arith.constant dense<0.000000e+00> : vector<256x4xf32>
    %62 = tpu.matmul %59, %61, %cst_62 {dimension_numbers = #tpu.dot_dimension_numbers<[1], [0], [0], [1], [0, 0, 1, 1], [], []>} : vector<256x4xbf16>, vector<4x4xbf16>, vector<256x4xf32> -> vector<256x4xf32>
    %63 = arith.addf %56, %62 : vector<256x4xf32>
    %c0_63 = arith.constant 0 : index
    %c0_64 = arith.constant 0 : index
    %64 = vector.load %arg3[%c0_63, %c0_64] : memref<1x4xf32, #tpu.memory_space<vmem>>, vector<1x4xf32>
    %65 = vector.broadcast %64 : vector<1x4xf32> to vector<256x4xf32>
    %66 = arith.mulf %63, %65 : vector<256x4xf32>
    %c0_65 = arith.constant 0 : index
    %c0_66 = arith.constant 0 : index
    %67 = vector.load %arg4[%c0_65, %c0_66] : memref<1x4xf32, #tpu.memory_space<vmem>>, vector<1x4xf32>
    %68 = vector.broadcast %67 : vector<1x4xf32> to vector<256x4xf32>
    %69 = arith.addf %66, %68 : vector<256x4xf32>
    %cst_67 = arith.constant 0.000000e+00 : f32
    %70 = vector.broadcast %cst_67 : f32 to vector<256x4xf32>
    %71 = arith.maximumf %69, %70 : vector<256x4xf32>
    %72 = arith.truncf %71 : vector<256x4xf32> to vector<256x4xbf16>
    %c0_68 = arith.constant 0 : index
    %c0_69 = arith.constant 0 : index
    %c0_70 = arith.constant 0 : index
    %73 = vector.load %arg5[%c0_68, %c0_69, %c0_70] : memref<1x256x4xbf16, #tpu.memory_space<vmem>>, vector<1x256x4xbf16>
    %74 = vector.shape_cast %73 : vector<1x256x4xbf16> to vector<256x4xbf16>
    %75 = vector.shape_cast %72 : vector<256x4xbf16> to vector<1x256x4xbf16>
    tpu.vector_store %arg5[%c0_68, %c0_69, %c0_70], %75 {strides = array<i32>} : memref<1x256x4xbf16, #tpu.memory_space<vmem>>, vector<1x256x4xbf16>,
    return
  }
  func.func @transform_0(%arg0: i32) -> (i32, i32, i32, i32) {
    %c0_i32 = arith.constant 0 : i32
    %c0_i32_0 = arith.constant 0 : i32
    %c0_i32_1 = arith.constant 0 : i32
    %c0_i32_2 = arith.constant 0 : i32
    return %arg0, %c0_i32, %c0_i32_0, %c0_i32_1 : i32, i32, i32, i32
  }
  func.func @transform_1(%arg0: i32) -> (i32, i32, i32) {
    %c0_i32 = arith.constant 0 : i32
    %c0_i32_0 = arith.constant 0 : i32
    %c0_i32_1 = arith.constant 0 : i32
    %c0_i32_2 = arith.constant 0 : i32
    return %c0_i32, %c0_i32_0, %c0_i32_1 : i32, i32, i32
  }
  func.func @transform_2(%arg0: i32) -> (i32, i32) {
    %c0_i32 = arith.constant 0 : i32
    %c0_i32_0 = arith.constant 0 : i32
    %c0_i32_1 = arith.constant 0 : i32
    return %c0_i32, %c0_i32_0 : i32, i32
  }
  func.func @transform_3(%arg0: i32) -> (i32, i32) {
    %c0_i32 = arith.constant 0 : i32
    %c0_i32_0 = arith.constant 0 : i32
    %c0_i32_1 = arith.constant 0 : i32
    return %c0_i32, %c0_i32_0 : i32, i32
  }
  func.func @transform_4(%arg0: i32) -> (i32, i32, i32) {
    %c0_i32 = arith.constant 0 : i32
    %c0_i32_0 = arith.constant 0 : i32
    %c0_i32_1 = arith.constant 0 : i32
    return %arg0, %c0_i32, %c0_i32_0 : i32, i32, i32
  }
}

module attributes {stable_mosaic.version = 11 : i64} {
  func.func @_mm_bn_res_oneshot_kernel(%arg0: i32, %arg1: i32, %arg2: memref<256x4xbf16, #tpu.memory_space<vmem>>, %arg3: memref<4x16xbf16, #tpu.memory_space<vmem>>, %arg4: memref<1x16xf32, #tpu.memory_space<vmem>>, %arg5: memref<1x16xf32, #tpu.memory_space<vmem>>, %arg6: memref<256x16xbf16, #tpu.memory_space<vmem>>, %arg7: memref<256x16xf32, #tpu.memory_space<vmem>>) attributes {dimension_semantics = [#tpu.dimension_semantics<parallel>, #tpu.dimension_semantics<parallel>], iteration_bounds = array<i64: 2, 1>, scalar_prefetch = 0 : i64, scratch_operands = 0 : i64, tpu.core_type = #tpu.core_type<tc>, window_params = [{transform_indices = @transform_0, window_bounds = array<i64: 256, 4>}, {transform_indices = @transform_1, window_bounds = array<i64: 4, 16>}, {transform_indices = @transform_2, window_bounds = array<i64: 1, 16>}, {transform_indices = @transform_3, window_bounds = array<i64: 1, 16>}, {transform_indices = @transform_4, window_bounds = array<i64: 256, 16>}, {transform_indices = @transform_5, window_bounds = array<i64: 256, 16>}]} {
    %c0 = arith.constant 0 : index
    %c0_0 = arith.constant 0 : index
    %0 = vector.load %arg2[%c0, %c0_0] : memref<256x4xbf16, #tpu.memory_space<vmem>>, vector<256x4xbf16>
    %c0_1 = arith.constant 0 : index
    %c0_2 = arith.constant 0 : index
    %1 = vector.load %arg3[%c0_1, %c0_2] : memref<4x16xbf16, #tpu.memory_space<vmem>>, vector<4x16xbf16>
    %cst = arith.constant dense<0.000000e+00> : vector<256x16xf32>
    %2 = tpu.matmul %0, %1, %cst {dimension_numbers = #tpu.dot_dimension_numbers<[1], [0], [0], [1], [0, 0, 1, 1], [], []>} : vector<256x4xbf16>, vector<4x16xbf16>, vector<256x16xf32> -> vector<256x16xf32>
    %c0_3 = arith.constant 0 : index
    %c0_4 = arith.constant 0 : index
    %3 = vector.load %arg4[%c0_3, %c0_4] : memref<1x16xf32, #tpu.memory_space<vmem>>, vector<1x16xf32>
    %4 = vector.broadcast %3 : vector<1x16xf32> to vector<256x16xf32>
    %5 = arith.mulf %2, %4 : vector<256x16xf32>
    %c0_5 = arith.constant 0 : index
    %c0_6 = arith.constant 0 : index
    %6 = vector.load %arg5[%c0_5, %c0_6] : memref<1x16xf32, #tpu.memory_space<vmem>>, vector<1x16xf32>
    %7 = vector.broadcast %6 : vector<1x16xf32> to vector<256x16xf32>
    %8 = arith.addf %5, %7 : vector<256x16xf32>
    %c0_7 = arith.constant 0 : index
    %c0_8 = arith.constant 0 : index
    %9 = vector.load %arg6[%c0_7, %c0_8] : memref<256x16xbf16, #tpu.memory_space<vmem>>, vector<256x16xbf16>
    %10 = arith.extf %9 : vector<256x16xbf16> to vector<256x16xf32>
    %11 = arith.addf %8, %10 : vector<256x16xf32>
    %cst_9 = arith.constant 0.000000e+00 : f32
    %12 = vector.broadcast %cst_9 : f32 to vector<256x16xf32>
    %13 = arith.maximumf %11, %12 : vector<256x16xf32>
    %c0_10 = arith.constant 0 : index
    %c0_11 = arith.constant 0 : index
    %14 = vector.load %arg7[%c0_10, %c0_11] : memref<256x16xf32, #tpu.memory_space<vmem>>, vector<256x16xf32>
    tpu.vector_store %arg7[%c0_10, %c0_11], %13 {strides = array<i32>} : memref<256x16xf32, #tpu.memory_space<vmem>>, vector<256x16xf32>,
    return
  }
  func.func @transform_0(%arg0: i32, %arg1: i32) -> (i32, i32) {
    %c0_i32 = arith.constant 0 : i32
    %c0_i32_0 = arith.constant 0 : i32
    return %arg0, %c0_i32 : i32, i32
  }
  func.func @transform_1(%arg0: i32, %arg1: i32) -> (i32, i32) {
    %c0_i32 = arith.constant 0 : i32
    %c0_i32_0 = arith.constant 0 : i32
    return %c0_i32, %arg1 : i32, i32
  }
  func.func @transform_2(%arg0: i32, %arg1: i32) -> (i32, i32) {
    %c0_i32 = arith.constant 0 : i32
    %c0_i32_0 = arith.constant 0 : i32
    return %c0_i32, %arg1 : i32, i32
  }
  func.func @transform_3(%arg0: i32, %arg1: i32) -> (i32, i32) {
    %c0_i32 = arith.constant 0 : i32
    %c0_i32_0 = arith.constant 0 : i32
    return %c0_i32, %arg1 : i32, i32
  }
  func.func @transform_4(%arg0: i32, %arg1: i32) -> (i32, i32) {
    %c0_i32 = arith.constant 0 : i32
    return %arg0, %arg1 : i32, i32
  }
  func.func @transform_5(%arg0: i32, %arg1: i32) -> (i32, i32) {
    %c0_i32 = arith.constant 0 : i32
    return %arg0, %arg1 : i32, i32
  }
}

</mosaic_0001>

<llo_original>
// kernel: _bottleneck_forward_impl.4
$region0: #{_bottleneck_forward_impl.4}
  #allocation0 [shape = 'u32[]', space=smem, size = 0x4, offset = 0x4, fixed_abs, tag = 'smem constant byte address 0x4 - core index']
  #allocation1 [shape = 'u32[144,128]{1,0:T(1,128)}', space=vmem, size = 0x12000, scoped, tag = 'internal scratch']
  %s0 = inlined_call_operand.hbm [shape: bf16[512,4], index: 0, kind: input, shape index: {}]
  %s1 = inlined_call_operand.hbm [shape: bf16[4,4], index: 1, kind: input, shape index: {}]
  %s2 = inlined_call_operand.hbm [shape: f32[1,4], index: 2, kind: input, shape index: {}]
  %s3 = inlined_call_operand.hbm [shape: f32[1,4], index: 3, kind: input, shape index: {}]
  %s4 = inlined_call_operand.hbm [shape: bf16[512,4], index: 4, kind: output, shape index: {}]
  %s5 = sld [smem:[#allocation0]]
  $region65: #{_bottleneck_forward_impl.4} parent=0
    _
  %s7 = ssub.s32 1, %s5
  %s8 = scalar_select 0, %s7, %s5
  $region1: #{_bottleneck_forward_impl.4} parent=0
    #allocation2 [shape = 'u8[131072]{0}', space=vmem, size = 0x20000, scoped, tag = 'input window, operand 0']
    #allocation3 [shape = 's32[2]{0}', space=sflag, size = 0x8, scoped, tag = 'scoped memory for _bottleneck_forward_impl.4']
    #allocation4 [shape = 's32[2]{0}', space=sflag, size = 0x8, scoped, tag = 'scoped memory for _bottleneck_forward_impl.4']
    #allocation5 [shape = 'u8[1024]{0}', space=vmem, size = 0x400, scoped, tag = 'input window, operand 1, single buffered']
    #allocation6 [shape = 's32[1]{0}', space=sflag, size = 0x4, scoped, tag = 'scoped memory for _bottleneck_forward_impl.4']
    #allocation7 [shape = 'u8[512]{0}', space=vmem, size = 0x400, scoped, tag = 'input window, operand 2, single buffered']
    #allocation8 [shape = 'u8[512]{0}', space=vmem, size = 0x400, scoped, tag = 'input window, operand 3, single buffered']
    #allocation9 [shape = 's32[1]{0}', space=sflag, size = 0x4, scoped, tag = 'scoped memory for _bottleneck_forward_impl.4']
    #allocation10 [shape = 'u8[131072]{0}', space=vmem, size = 0x20000, scoped, tag = 'output window, operand 0']
    %9 = vsyncpa [#allocation3], 0
    %s10 = scalar_lea.sflag [#allocation3], 1
    %11 = vsyncpa %s10, 0
    %12 = vsyncpa [#allocation6], 0
    %13 = vsyncpa [#allocation9], 0
    %14 = vsyncpa [#allocation4], 0
    %s15 = scalar_lea.sflag [#allocation4], 1
    %16 = vsyncpa %s15, 0
    loop: start=0, step=1, limit=4
    $region2: #{_bottleneck_forward_impl.4} parent=1 // loop_pre_header
      _
    $region3: #{_bottleneck_forward_impl.4} parent=1 // loop_header
      %s18 = sphi 0, %s22
      %p19 = scmp.ge.s32.totalorder %s18, 4
      %s25 = sphi 0, %s37
      %s26 = sphi 0, %s33
      %s27 = sphi 0, %s25
      %s28 = sphi 0, %s26
      %s29 = sphi 0, %s27
      %s30 = sphi 0, %s28
      %s40 = sphi 0, %s42
      %s43 = sphi 0, %s40
      %s44 = sphi 0, %s43
      %s60 = sphi 0, %s44
      %s66 = sphi 0, %s68
      %s69 = sphi 0, %s66
      %s70 = sphi 0, %s69
      %s86 = sphi 0, %s70
      %s92 = sphi 0, %s94
      %s95 = sphi 0, %s92
      %s96 = sphi 0, %s95
      %s112 = sphi 0, %s96
      %s118 = sphi 0, %s120
      %s121 = sphi 0, %s118
      %s122 = sphi 0, %s121
      %s138 = sphi 0, %s122
      %s146 = sphi 0, %s148
      %s149 = sphi 0, %s146
      %s150 = sphi 0, %s149
      %s166 = sphi 0, %s150
    $region4: #{_bottleneck_forward_impl.4} parent=1 // loop_header_branch
      %21 = sbr.rel (%p19) target = $region8
    $region5: #{_bottleneck_forward_impl.4} parent=1 // loop_body
      %s23 = ssub.s32 %s18, 1
      %s24 = ssub.s32 %s18, 2
      %s31 = sadd.s32 1, %s26
      %p32 = scmp.ge.s32.totalorder %s31, 1
      %s33 = scalar_select %p32, 0, %s31
      %s34 = sadd.s32 1, %s25
      %s35 = scalar_select %p32, %s34, %s25
      %p36 = scmp.ge.s32.totalorder %s35, 2
      %s37 = scalar_select %p36, 0, %s35
      %s38 = ssub.s32 %s25, %s37
      %p39 = scmp.eq.s32.totalorder %s38, 0
      %s41 = sadd.s32 %s40, 1
      %s42 = scalar_select %p39, %s40, %s41
      %p45 = pneg %p39
      %p46 = scmp.eq.s32.totalorder %s18, 1
      %p47 = por %p45, %p46
      %p48 = scmp.ne.s32.totalorder %s40, %s43
      %p49 = scmp.eq.s32.totalorder %s18, 0
      %p50 = por %p48, %p49
      %p51 = scmp.ne.s32.totalorder %s40, %s43
      %p52 = scmp.eq.s32.totalorder %s23, 1
      %p53 = por %p51, %p52
      %p54 = scmp.ne.s32.totalorder %s43, %s44
      %p55 = scmp.eq.s32.totalorder %s23, 0
      %p56 = por %p54, %p55
      %p57 = scmp.ne.s32.totalorder %s43, %s44
      %p58 = scmp.eq.s32.totalorder %s24, 1
      %p59 = por %p57, %p58
      %p61 = scmp.ne.s32.totalorder %s44, %s60
      %p62 = scmp.eq.s32.totalorder %s24, 0
      %p63 = por %p61, %p62
      %s64 = ssub.s32 %s26, %s33
      %p65 = scmp.eq.s32.totalorder %s64, 0
      %s67 = sadd.s32 %s66, 1
      %s68 = scalar_select %p65, %s66, %s67
      %p71 = pneg %p65
      %p72 = scmp.eq.s32.totalorder %s18, 1
      %p73 = por %p71, %p72
      %p74 = scmp.ne.s32.totalorder %s66, %s69
      %p75 = scmp.eq.s32.totalorder %s18, 0
      %p76 = por %p74, %p75
      %p77 = scmp.ne.s32.totalorder %s66, %s69
      %p78 = scmp.eq.s32.totalorder %s23, 1
      %p79 = por %p77, %p78
      %p80 = scmp.ne.s32.totalorder %s69, %s70
      %p81 = scmp.eq.s32.totalorder %s23, 0
      %p82 = por %p80, %p81
      %p83 = scmp.ne.s32.totalorder %s69, %s70
      %p84 = scmp.eq.s32.totalorder %s24, 1
      %p85 = por %p83, %p84
      %p87 = scmp.ne.s32.totalorder %s70, %s86
      %p88 = scmp.eq.s32.totalorder %s24, 0
      %p89 = por %p87, %p88
      %s90 = ssub.s32 %s26, %s33
      %p91 = scmp.eq.s32.totalorder %s90, 0
      %s93 = sadd.s32 %s92, 1
      %s94 = scalar_select %p91, %s92, %s93
      %p97 = pneg %p91
      %p98 = scmp.eq.s32.totalorder %s18, 1
      %p99 = por %p97, %p98
      %p100 = scmp.ne.s32.totalorder %s92, %s95
      %p101 = scmp.eq.s32.totalorder %s18, 0
      %p102 = por %p100, %p101
      %p103 = scmp.ne.s32.totalorder %s92, %s95
      %p104 = scmp.eq.s32.totalorder %s23, 1
      %p105 = por %p103, %p104
      %p106 = scmp.ne.s32.totalorder %s95, %s96
      %p107 = scmp.eq.s32.totalorder %s23, 0
      %p108 = por %p106, %p107
      %p109 = scmp.ne.s32.totalorder %s95, %s96
      %p110 = scmp.eq.s32.totalorder %s24, 1
      %p111 = por %p109, %p110
      %p113 = scmp.ne.s32.totalorder %s96, %s112
      %p114 = scmp.eq.s32.totalorder %s24, 0
      %p115 = por %p113, %p114
      %s116 = ssub.s32 %s26, %s33
      %p117 = scmp.eq.s32.totalorder %s116, 0
      %s119 = sadd.s32 %s118, 1
      %s120 = scalar_select %p117, %s118, %s119
      %p123 = pneg %p117
      %p124 = scmp.eq.s32.totalorder %s18, 1
      %p125 = por %p123, %p124
      %p126 = scmp.ne.s32.totalorder %s118, %s121
      %p127 = scmp.eq.s32.totalorder %s18, 0
      %p128 = por %p126, %p127
      %p129 = scmp.ne.s32.totalorder %s118, %s121
      %p130 = scmp.eq.s32.totalorder %s23, 1
      %p131 = por %p129, %p130
      %p132 = scmp.ne.s32.totalorder %s121, %s122
      %p133 = scmp.eq.s32.totalorder %s23, 0
      %p134 = por %p132, %p133
      %p135 = scmp.ne.s32.totalorder %s121, %s122
      %p136 = scmp.eq.s32.totalorder %s24, 1
      %p137 = por %p135, %p136
      %p139 = scmp.ne.s32.totalorder %s122, %s138
      %p140 = scmp.eq.s32.totalorder %s24, 0
      %p141 = por %p139, %p140
      %s142 = ssub.s32 %s25, %s37
      %s143 = ssub.s32 %s26, %s33
      %s144 = sor.u32 %s142, %s143
      %p145 = scmp.eq.s32.totalorder %s144, 0
      %s147 = sadd.s32 %s146, 1
      %s148 = scalar_select %p145, %s146, %s147
      %p151 = pneg %p145
      %p152 = scmp.eq.s32.totalorder %s18, 1
      %p153 = por %p151, %p152
      %p154 = scmp.ne.s32.totalorder %s146, %s149
      %p155 = scmp.eq.s32.totalorder %s18, 0
      %p156 = por %p154, %p155
      %p157 = scmp.ne.s32.totalorder %s146, %s149
      %p158 = scmp.eq.s32.totalorder %s23, 1
      %p159 = por %p157, %p158
      %p160 = scmp.ne.s32.totalorder %s149, %s150
      %p161 = scmp.eq.s32.totalorder %s23, 0
      %p162 = por %p160, %p161
      %p163 = scmp.ne.s32.totalorder %s149, %s150
      %p164 = scmp.eq.s32.totalorder %s24, 1
      %p165 = por %p163, %p164
      %p167 = scmp.ne.s32.totalorder %s150, %s166
      %p168 = scmp.eq.s32.totalorder %s24, 0
      %p169 = por %p167, %p168
      %p170 = scmp.le.s32.totalorder 1, %s18
      %p171 = scmp.lt.s32.totalorder %s18, 3
      %p172 = pnand %p170, %p171
      %p173 = pneg %p172
      // Predicated region
      $region9: #{_bottleneck_forward_impl.4} parent=5 // pred_check
        _
      $region10: #{_bottleneck_forward_impl.4} parent=5 // pred_check_branch
        %175 = sbr.rel (%p172) target = $region12
      $region11: #{_bottleneck_forward_impl.4} parent=5 // pred_region
        %s176 = ssub.s32 %s18, 1
        // Predicated region
        $region13: #{_bottleneck_forward_impl.4} parent=11 // pred_check
          %p177 = pneg %p82
        $region14: #{_bottleneck_forward_impl.4} parent=11 // pred_check_branch
          %179 = sbr.rel (%p177) target = $region16
        $region15: #{_bottleneck_forward_impl.4} parent=11 // pred_region
          %s181 = ssub.s32 32, 32
          %182 = vsyncadd [#allocation6], %s181
          %s183 = smul.addr %s28, 32
          %s184 = scalar_lea.hbm %s1, %s183
          %s186 = sshll.u32 [#allocation5], 4
          %s187 = int_to_ptr.vmem [resolvable:$true] %s186
          %189 = dma.hbm_to_vmem [thread:$0]  %s184, 32, %s187, [#allocation6]
        $region16: #{_bottleneck_forward_impl.4} parent=11 // pred_fallthru
          _
        // Predicated region
        $region17: #{_bottleneck_forward_impl.4} parent=11 // pred_check
          %p190 = pneg %p108
        $region18: #{_bottleneck_forward_impl.4} parent=11 // pred_check_branch
          %192 = sbr.rel (%p190) target = $region20
        $region19: #{_bottleneck_forward_impl.4} parent=11 // pred_region
          %s194 = ssub.s32 16, 16
          %195 = vsyncadd [#allocation6], %s194
          %s196 = smul.addr %s28, 16
          %s197 = scalar_lea.hbm %s2, %s196
          %s199 = sshll.u32 [#allocation7], 4
          %s200 = int_to_ptr.vmem [resolvable:$true] %s199
          %202 = dma.hbm_to_vmem [thread:$0]  %s197, 16, %s200, [#allocation6]
        $region20: #{_bottleneck_forward_impl.4} parent=11 // pred_fallthru
          _
        // Predicated region
        $region21: #{_bottleneck_forward_impl.4} parent=11 // pred_check
          %p203 = pneg %p134
        $region22: #{_bottleneck_forward_impl.4} parent=11 // pred_check_branch
          %205 = sbr.rel (%p203) target = $region24
        $region23: #{_bottleneck_forward_impl.4} parent=11 // pred_region
          %s207 = ssub.s32 16, 16
          %208 = vsyncadd [#allocation9], %s207
          %s209 = smul.addr %s28, 16
          %s210 = scalar_lea.hbm %s3, %s209
          %s212 = sshll.u32 [#allocation8], 4
          %s213 = int_to_ptr.vmem [resolvable:$true] %s212
          %215 = dma.hbm_to_vmem [thread:$0]  %s210, 16, %s213, [#allocation9]
        $region24: #{_bottleneck_forward_impl.4} parent=11 // pred_fallthru
          _
      $region12: #{_bottleneck_forward_impl.4} parent=5 // pred_fallthru
        _
      %p216 = scmp.lt.s32.totalorder %s18, 2
      // Predicated region
      $region25: #{_bottleneck_forward_impl.4} parent=5 // pred_check
        %p217 = pneg %p216
      $region26: #{_bottleneck_forward_impl.4} parent=5 // pred_check_branch
        %219 = sbr.rel (%p217) target = $region28
      $region27: #{_bottleneck_forward_impl.4} parent=5 // pred_region
        // Predicated region
        $region29: #{_bottleneck_forward_impl.4} parent=27 // pred_check
          %p220 = pneg %p50
        $region30: #{_bottleneck_forward_impl.4} parent=27 // pred_check_branch
          %222 = sbr.rel (%p220) target = $region32
        $region31: #{_bottleneck_forward_impl.4} parent=27 // pred_region
          %s223 = sand.u32 %s40, 1
          %s224 = scalar_lea.sflag [#allocation3], %s223
          %s225 = sand.u32 %s40, 1
          %s226 = smul.addr %s225, 128
          %s227 = scalar_lea.vmem [#allocation2], %s226
          %s228 = smul.u32 32, %s25
          %s230 = ssub.s32 2048, 2048
          %231 = vsyncadd %s224, %s230
          %s232 = smul.addr %s228, 64
          %s233 = scalar_lea.hbm %s0, %s232
          %s234 = sshll.u32 %s227, 4
          %s235 = int_to_ptr.vmem [resolvable:$true] %s234
          %240 = dma.hbm_to_vmem [thread:$0]  %s233, 2048, %s235, %s224, 64, 64, 4
        $region32: #{_bottleneck_forward_impl.4} parent=27 // pred_fallthru
          _
      $region28: #{_bottleneck_forward_impl.4} parent=5 // pred_fallthru
        _
      %p241 = scmp.le.s32.totalorder 1, %s18
      %p242 = scmp.lt.s32.totalorder %s18, 3
      %p243 = pnand %p241, %p242
      %p244 = pneg %p243
      // Predicated region
      $region33: #{_bottleneck_forward_impl.4} parent=5 // pred_check
        _
      $region34: #{_bottleneck_forward_impl.4} parent=5 // pred_check_branch
        %246 = sbr.rel (%p243) target = $region36
      $region35: #{_bottleneck_forward_impl.4} parent=5 // pred_region
        %s247 = ssub.s32 %s18, 1
        %s248 = sand.u32 %s43, 1
        %s249 = scalar_lea.sflag [#allocation3], %s248
        %s250 = sand.u32 %s43, 1
        %s251 = smul.addr %s250, 128
        %s252 = scalar_lea.vmem [#allocation2], %s251
        // Predicated region
        $region37: #{_bottleneck_forward_impl.4} parent=35 // pred_check
          %p253 = pneg %p56
        $region38: #{_bottleneck_forward_impl.4} parent=35 // pred_check_branch
          %255 = sbr.rel (%p253) target = $region40
        $region39: #{_bottleneck_forward_impl.4} parent=35 // pred_region
          %256 = dma.done %s249, 2048
        $region40: #{_bottleneck_forward_impl.4} parent=35 // pred_fallthru
          _
        // Predicated region
        $region41: #{_bottleneck_forward_impl.4} parent=35 // pred_check
          %p257 = pneg %p82
        $region42: #{_bottleneck_forward_impl.4} parent=35 // pred_check_branch
          %259 = sbr.rel (%p257) target = $region44
        $region43: #{_bottleneck_forward_impl.4} parent=35 // pred_region
          %260 = dma.done [#allocation6], 32
        $region44: #{_bottleneck_forward_impl.4} parent=35 // pred_fallthru
          _
        // Predicated region
        $region45: #{_bottleneck_forward_impl.4} parent=35 // pred_check
          %p261 = pneg %p108
        $region46: #{_bottleneck_forward_impl.4} parent=35 // pred_check_branch
          %263 = sbr.rel (%p261) target = $region48
        $region47: #{_bottleneck_forward_impl.4} parent=35 // pred_region
          %264 = dma.done [#allocation6], 16
        $region48: #{_bottleneck_forward_impl.4} parent=35 // pred_fallthru
          _
        // Predicated region
        $region49: #{_bottleneck_forward_impl.4} parent=35 // pred_check
          %p265 = pneg %p134
        $region50: #{_bottleneck_forward_impl.4} parent=35 // pred_check_branch
          %267 = sbr.rel (%p265) target = $region52
        $region51: #{_bottleneck_forward_impl.4} parent=35 // pred_region
          %268 = dma.done [#allocation9], 16
        $region52: #{_bottleneck_forward_impl.4} parent=35 // pred_fallthru
          _
        %s269 = sand.u32 %s43, 1
        %s270 = scalar_lea.sflag [#allocation3], %s269
        %s271 = sand.u32 %s43, 1
        %s272 = smul.addr %s271, 128
        %s273 = scalar_lea.vmem [#allocation2], %s272
        %p274 = pneg %p56
        %p275 = pneg %p53
        %p276 = pneg %p82
        %p277 = pneg %p79
        %p278 = pneg %p108
        %p279 = pneg %p105
        %p280 = pneg %p134
        %p281 = pneg %p131
        %p282 = pneg %p162
        %p283 = pneg %p159
        %s284 = sand.u32 %s149, 1
        %s285 = scalar_lea.sflag [#allocation4], %s284
        %s286 = sand.u32 %s149, 1
        %s287 = smul.addr %s286, 128
        %s288 = scalar_lea.vmem [#allocation10], %s287
        %s289 = smul.u32 32, %s27
        %s290 = smul.u32 32, %s27
        %v292 = vld [vmem:[%s252] sm:$0xf]
        %v293 = vld [vmem:[%s252 + $0x4] sm:$0xf]
        %v294 = vld [vmem:[%s252 + $0x8] sm:$0xf]
        %v295 = vld [vmem:[%s252 + $0xc] sm:$0xf]
        %v296 = vld [vmem:[%s252 + $0x10] sm:$0xf]
        %v297 = vld [vmem:[%s252 + $0x14] sm:$0xf]
        %v298 = vld [vmem:[%s252 + $0x18] sm:$0xf]
        %v299 = vld [vmem:[%s252 + $0x1c] sm:$0xf]
        %v300 = vld [vmem:[%s252 + $0x20] sm:$0xf]
        %v301 = vld [vmem:[%s252 + $0x24] sm:$0xf]
        %v302 = vld [vmem:[%s252 + $0x28] sm:$0xf]
        %v303 = vld [vmem:[%s252 + $0x2c] sm:$0xf]
        %v304 = vld [vmem:[%s252 + $0x30] sm:$0xf]
        %v305 = vld [vmem:[%s252 + $0x34] sm:$0xf]
        %v306 = vld [vmem:[%s252 + $0x38] sm:$0xf]
        %v307 = vld [vmem:[%s252 + $0x3c] sm:$0xf]
        %v308 = vld [vmem:[%s252 + $0x40] sm:$0xf]
        %v309 = vld [vmem:[%s252 + $0x44] sm:$0xf]
        %v310 = vld [vmem:[%s252 + $0x48] sm:$0xf]
        %v311 = vld [vmem:[%s252 + $0x4c] sm:$0xf]
        %v312 = vld [vmem:[%s252 + $0x50] sm:$0xf]
        %v313 = vld [vmem:[%s252 + $0x54] sm:$0xf]
        %v314 = vld [vmem:[%s252 + $0x58] sm:$0xf]
        %v315 = vld [vmem:[%s252 + $0x5c] sm:$0xf]
        %v316 = vld [vmem:[%s252 + $0x60] sm:$0xf]
        %v317 = vld [vmem:[%s252 + $0x64] sm:$0xf]
        %v318 = vld [vmem:[%s252 + $0x68] sm:$0xf]
        %v319 = vld [vmem:[%s252 + $0x6c] sm:$0xf]
        %v320 = vld [vmem:[%s252 + $0x70] sm:$0xf]
        %v321 = vld [vmem:[%s252 + $0x74] sm:$0xf]
        %v322 = vld [vmem:[%s252 + $0x78] sm:$0xf]
        %v323 = vld [vmem:[%s252 + $0x7c] sm:$0xf]
        %v324 = vld [vmem:[#allocation5] sm:$0x3]
        %v357 = vunpack.c.l.b16 %v292
        %v358 = vunpack.c.l.b16 %v293
        %v359 = vunpack.c.l.b16 %v294
        %v360 = vunpack.c.l.b16 %v295
        %v361 = vunpack.c.l.b16 %v296
        %v362 = vunpack.c.l.b16 %v297
        %v363 = vunpack.c.l.b16 %v298
        %v364 = vunpack.c.l.b16 %v299
        %v365 = vunpack.c.l.b16 %v300
        %v366 = vunpack.c.l.b16 %v301
        %v367 = vunpack.c.l.b16 %v302
        %v368 = vunpack.c.l.b16 %v303
        %v369 = vunpack.c.l.b16 %v304
        %v370 = vunpack.c.l.b16 %v305
        %v371 = vunpack.c.l.b16 %v306
        %v372 = vunpack.c.l.b16 %v307
        %v373 = vunpack.c.l.b16 %v308
        %v374 = vunpack.c.l.b16 %v309
        %v375 = vunpack.c.l.b16 %v310
        %v376 = vunpack.c.l.b16 %v311
        %v377 = vunpack.c.l.b16 %v312
        %v378 = vunpack.c.l.b16 %v313
        %v379 = vunpack.c.l.b16 %v314
        %v380 = vunpack.c.l.b16 %v315
        %v381 = vunpack.c.l.b16 %v316
        %v382 = vunpack.c.l.b16 %v317
        %v383 = vunpack.c.l.b16 %v318
        %v384 = vunpack.c.l.b16 %v319
        %v385 = vunpack.c.l.b16 %v320
        %v386 = vunpack.c.l.b16 %v321
        %v387 = vunpack.c.l.b16 %v322
        %v388 = vunpack.c.l.b16 %v323
        %v389 = vpack.c.b16 %v358, %v357
        %v390 = vpack.c.b16 %v360, %v359
        %v391 = vpack.c.b16 %v362, %v361
        %v392 = vpack.c.b16 %v364, %v363
        %v393 = vpack.c.b16 %v366, %v365
        %v394 = vpack.c.b16 %v368, %v367
        %v395 = vpack.c.b16 %v370, %v369
        %v396 = vpack.c.b16 %v372, %v371
        %v397 = vpack.c.b16 %v374, %v373
        %v398 = vpack.c.b16 %v376, %v375
        %v399 = vpack.c.b16 %v378, %v377
        %v400 = vpack.c.b16 %v380, %v379
        %v401 = vpack.c.b16 %v382, %v381
        %v402 = vpack.c.b16 %v384, %v383
        %v403 = vpack.c.b16 %v386, %v385
        %v404 = vpack.c.b16 %v388, %v387
        %vm405 = vcmask 31744
        %v407 = vsel %vm405, %v389, 0
        %v410 = vsel %vm405, %v390, 0
        %v413 = vsel %vm405, %v391, 0
        %v416 = vsel %vm405, %v392, 0
        %v419 = vsel %vm405, %v393, 0
        %v422 = vsel %vm405, %v394, 0
        %v425 = vsel %vm405, %v395, 0
        %v428 = vsel %vm405, %v396, 0
        %v431 = vsel %vm405, %v397, 0
        %v434 = vsel %vm405, %v398, 0
        %v437 = vsel %vm405, %v399, 0
        %v440 = vsel %vm405, %v400, 0
        %v443 = vsel %vm405, %v401, 0
        %v446 = vsel %vm405, %v402, 0
        %v449 = vsel %vm405, %v403, 0
        %v452 = vsel %vm405, %v404, 0
        %vm454 = vcmask 1041408
        %v456 = vsel %vm454, %v324, 0
        %458 = vmatprep.subr.bf16.mxu0 0
        %459 = vmatpush1.bf16.msra.mxu0 %v456
        %460 = vmatprep.subr.bf16.mxu0 0
        %461 = vmatpush1.bf16.msra.mxu0 0
        %462 = vmatprep.subr.bf16.mxu0 0
        %463 = vmatpush1.bf16.msra.mxu0 0
        %464 = vmatprep.subr.bf16.mxu0 0
        %465 = vmatpush1.bf16.msra.mxu0 0
        %466 = vmatprep.subr.bf16.mxu0 0
        %467 = vmatpush1.bf16.msra.mxu0 0
        %468 = vmatprep.subr.bf16.mxu0 0
        %469 = vmatpush1.bf16.msra.mxu0 0
        %470 = vmatprep.subr.bf16.mxu0 0
        %471 = vmatpush1.bf16.msra.mxu0 0
        %472 = vmatprep.subr.bf16.mxu0 0
        %473 = vmatpush1.bf16.msra.mxu0 0
        %474 = vmatprep.subr.bf16.mxu0 0
        %475 = vmatpush1.bf16.msra.mxu0 0
        %476 = vmatprep.subr.bf16.mxu0 0
        %477 = vmatpush1.bf16.msra.mxu0 0
        %478 = vmatprep.subr.bf16.mxu0 0
        %479 = vmatpush1.bf16.msra.mxu0 0
        %480 = vmatprep.subr.bf16.mxu0 0
        %481 = vmatpush1.bf16.msra.mxu0 0
        %482 = vmatprep.subr.bf16.mxu0 0
        %483 = vmatpush1.bf16.msra.mxu0 0
        %484 = vmatprep.subr.bf16.mxu0 0
        %485 = vmatpush1.bf16.msra.mxu0 0
        %486 = vmatprep.subr.bf16.mxu0 0
        %487 = vmatpush1.bf16.msra.mxu0 0
        %488 = vmatprep.subr.bf16.mxu0 0
        %489 = vmatpush1.bf16.msra.mxu0 0
        %490 = vmatprep.mubr.bf16.mxu0 0
        %491 = vmatmul.mubr.bf16.gmra.mrb[0].mxu0 %v407
        %v492 = vpop.f32.mrb[0].mxu0
        %v493 = vadd.f32 0.0, %v492
        %v494 = vpop.f32.mrb[0].mxu0
        %v495 = vpop.f32.mrb[0].mxu0
        %v496 = vadd.f32 0.0, %v495
        %v497 = vpop.f32.mrb[0].mxu0
        %498 = vmatprep.mubr.bf16.mxu0 0
        %499 = vmatmul.mubr.bf16.gmra.mrb[0].mxu0 %v410
        %v500 = vpop.f32.mrb[0].mxu0
        %v501 = vadd.f32 0.0, %v500
        %v502 = vpop.f32.mrb[0].mxu0
        %v503 = vpop.f32.mrb[0].mxu0
        %v504 = vadd.f32 0.0, %v503
        %v505 = vpop.f32.mrb[0].mxu0
        %506 = vmatprep.mubr.bf16.mxu0 0
        %507 = vmatmul.mubr.bf16.gmra.mrb[0].mxu0 %v413
        %v508 = vpop.f32.mrb[0].mxu0
        %v509 = vadd.f32 0.0, %v508
        %v510 = vpop.f32.mrb[0].mxu0
        %v511 = vpop.f32.mrb[0].mxu0
        %v512 = vadd.f32 0.0, %v511
        %v513 = vpop.f32.mrb[0].mxu0
        %514 = vmatprep.mubr.bf16.mxu0 0
        %515 = vmatmul.mubr.bf16.gmra.mrb[0].mxu0 %v416
        %v516 = vpop.f32.mrb[0].mxu0
        %v517 = vadd.f32 0.0, %v516
        %v518 = vpop.f32.mrb[0].mxu0
        %v519 = vpop.f32.mrb[0].mxu0
        %v520 = vadd.f32 0.0, %v519
        %v521 = vpop.f32.mrb[0].mxu0
        %522 = vmatprep.mubr.bf16.mxu0 0
        %523 = vmatmul.mubr.bf16.gmra.mrb[0].mxu0 %v419
        %v524 = vpop.f32.mrb[0].mxu0
        %v525 = vadd.f32 0.0, %v524
        %v526 = vpop.f32.mrb[0].mxu0
        %v527 = vpop.f32.mrb[0].mxu0
        %v528 = vadd.f32 0.0, %v527
        %v529 = vpop.f32.mrb[0].mxu0
        %530 = vmatprep.mubr.bf16.mxu0 0
        %531 = vmatmul.mubr.bf16.gmra.mrb[0].mxu0 %v422
        %v532 = vpop.f32.mrb[0].mxu0
        %v533 = vadd.f32 0.0, %v532
        %v534 = vpop.f32.mrb[0].mxu0
        %v535 = vpop.f32.mrb[0].mxu0
        %v536 = vadd.f32 0.0, %v535
        %v537 = vpop.f32.mrb[0].mxu0
        %538 = vmatprep.mubr.bf16.mxu0 0
        %539 = vmatmul.mubr.bf16.gmra.mrb[0].mxu0 %v425
        %v540 = vpop.f32.mrb[0].mxu0
        %v541 = vadd.f32 0.0, %v540
        %v542 = vpop.f32.mrb[0].mxu0
        %v543 = vpop.f32.mrb[0].mxu0
        %v544 = vadd.f32 0.0, %v543
        %v545 = vpop.f32.mrb[0].mxu0
        %546 = vmatprep.mubr.bf16.mxu0 0
        %547 = vmatmul.mubr.bf16.gmra.mrb[0].mxu0 %v428
        %v548 = vpop.f32.mrb[0].mxu0
        %v549 = vadd.f32 0.0, %v548
        %v550 = vpop.f32.mrb[0].mxu0
        %v551 = vpop.f32.mrb[0].mxu0
        %v552 = vadd.f32 0.0, %v551
        %v553 = vpop.f32.mrb[0].mxu0
        %554 = vmatprep.mubr.bf16.mxu0 0
        %555 = vmatmul.mubr.bf16.gmra.mrb[0].mxu0 %v431
        %v556 = vpop.f32.mrb[0].mxu0
        %v557 = vadd.f32 0.0, %v556
        %v558 = vpop.f32.mrb[0].mxu0
        %v559 = vpop.f32.mrb[0].mxu0
        %v560 = vadd.f32 0.0, %v559
        %v561 = vpop.f32.mrb[0].mxu0
        %562 = vmatprep.mubr.bf16.mxu0 0
        %563 = vmatmul.mubr.bf16.gmra.mrb[0].mxu0 %v434
        %v564 = vpop.f32.mrb[0].mxu0
        %v565 = vadd.f32 0.0, %v564
        %v566 = vpop.f32.mrb[0].mxu0
        %v567 = vpop.f32.mrb[0].mxu0
        %v568 = vadd.f32 0.0, %v567
        %v569 = vpop.f32.mrb[0].mxu0
        %570 = vmatprep.mubr.bf16.mxu0 0
        %571 = vmatmul.mubr.bf16.gmra.mrb[0].mxu0 %v437
        %v572 = vpop.f32.mrb[0].mxu0
        %v573 = vadd.f32 0.0, %v572
        %v574 = vpop.f32.mrb[0].mxu0
        %v575 = vpop.f32.mrb[0].mxu0
        %v576 = vadd.f32 0.0, %v575
        %v577 = vpop.f32.mrb[0].mxu0
        %578 = vmatprep.mubr.bf16.mxu0 0
        %579 = vmatmul.mubr.bf16.gmra.mrb[0].mxu0 %v440
        %v580 = vpop.f32.mrb[0].mxu0
        %v581 = vadd.f32 0.0, %v580
        %v582 = vpop.f32.mrb[0].mxu0
        %v583 = vpop.f32.mrb[0].mxu0
        %v584 = vadd.f32 0.0, %v583
        %v585 = vpop.f32.mrb[0].mxu0
        %586 = vmatprep.mubr.bf16.mxu0 0
        %587 = vmatmul.mubr.bf16.gmra.mrb[0].mxu0 %v443
        %v588 = vpop.f32.mrb[0].mxu0
        %v589 = vadd.f32 0.0, %v588
        %v590 = vpop.f32.mrb[0].mxu0
        %v591 = vpop.f32.mrb[0].mxu0
        %v592 = vadd.f32 0.0, %v591
        %v593 = vpop.f32.mrb[0].mxu0
        %594 = vmatprep.mubr.bf16.mxu0 0
        %595 = vmatmul.mubr.bf16.gmra.mrb[0].mxu0 %v446
        %v596 = vpop.f32.mrb[0].mxu0
        %v597 = vadd.f32 0.0, %v596
        %v598 = vpop.f32.mrb[0].mxu0
        %v599 = vpop.f32.mrb[0].mxu0
        %v600 = vadd.f32 0.0, %v599
        %v601 = vpop.f32.mrb[0].mxu0
        %602 = vmatprep.mubr.bf16.mxu0 0
        %603 = vmatmul.mubr.bf16.gmra.mrb[0].mxu0 %v449
        %v604 = vpop.f32.mrb[0].mxu0
        %v605 = vadd.f32 0.0, %v604
        %v606 = vpop.f32.mrb[0].mxu0
        %v607 = vpop.f32.mrb[0].mxu0
        %v608 = vadd.f32 0.0, %v607
        %v609 = vpop.f32.mrb[0].mxu0
        %610 = vmatprep.mubr.bf16.mxu0 0
        %611 = vmatmul.mubr.bf16.gmra.mrb[0].mxu0 %v452
        %v612 = vpop.f32.mrb[0].mxu0
        %v613 = vadd.f32 0.0, %v612
        %v614 = vpop.f32.mrb[0].mxu0
        %v615 = vpop.f32.mrb[0].mxu0
        %v616 = vadd.f32 0.0, %v615
        %v617 = vpop.f32.mrb[0].mxu0
        %618 = vdwg.mxu0
        %v619 = vld [vmem:[#allocation7] sm:$0x1]
        %v621 = vlaneseq
        %v622 = vshrl.u32 %v621, 7
        %v623 = vsub.s32 0, %v622
        %v624 = vrot.slane %v619, %v623
        %v626 = vmul.f32 %v493, %v624
        %v627 = vmul.f32 %v496, %v624
        %v628 = vmul.f32 %v501, %v624
        %v629 = vmul.f32 %v504, %v624
        %v630 = vmul.f32 %v509, %v624
        %v631 = vmul.f32 %v512, %v624
        %v632 = vmul.f32 %v517, %v624
        %v633 = vmul.f32 %v520, %v624
        %v634 = vmul.f32 %v525, %v624
        %v635 = vmul.f32 %v528, %v624
        %v636 = vmul.f32 %v533, %v624
        %v637 = vmul.f32 %v536, %v624
        %v638 = vmul.f32 %v541, %v624
        %v639 = vmul.f32 %v544, %v624
        %v640 = vmul.f32 %v549, %v624
        %v641 = vmul.f32 %v552, %v624
        %v642 = vmul.f32 %v557, %v624
        %v643 = vmul.f32 %v560, %v624
        %v644 = vmul.f32 %v565, %v624
        %v645 = vmul.f32 %v568, %v624
        %v646 = vmul.f32 %v573, %v624
        %v647 = vmul.f32 %v576, %v624
        %v648 = vmul.f32 %v581, %v624
        %v649 = vmul.f32 %v584, %v624
        %v650 = vmul.f32 %v589, %v624
        %v651 = vmul.f32 %v592, %v624
        %v652 = vmul.f32 %v597, %v624
        %v653 = vmul.f32 %v600, %v624
        %v654 = vmul.f32 %v605, %v624
        %v655 = vmul.f32 %v608, %v624
        %v656 = vmul.f32 %v613, %v624
        %v657 = vmul.f32 %v616, %v624
        %v658 = vld [vmem:[#allocation8] sm:$0x1]
        %v660 = vlaneseq
        %v661 = vshrl.u32 %v660, 7
        %v662 = vsub.s32 0, %v661
        %v663 = vrot.slane %v658, %v662
        %v665 = vadd.f32 %v626, %v663
        %v666 = vadd.f32 %v627, %v663
        %v667 = vadd.f32 %v628, %v663
        %v668 = vadd.f32 %v629, %v663
        %v669 = vadd.f32 %v630, %v663
        %v670 = vadd.f32 %v631, %v663
        %v671 = vadd.f32 %v632, %v663
        %v672 = vadd.f32 %v633, %v663
        %v673 = vadd.f32 %v634, %v663
        %v674 = vadd.f32 %v635, %v663
        %v675 = vadd.f32 %v636, %v663
        %v676 = vadd.f32 %v637, %v663
        %v677 = vadd.f32 %v638, %v663
        %v678 = vadd.f32 %v639, %v663
        %v679 = vadd.f32 %v640, %v663
        %v680 = vadd.f32 %v641, %v663
        %v681 = vadd.f32 %v642, %v663
        %v682 = vadd.f32 %v643, %v663
        %v683 = vadd.f32 %v644, %v663
        %v684 = vadd.f32 %v645, %v663
        %v685 = vadd.f32 %v646, %v663
        %v686 = vadd.f32 %v647, %v663
        %v687 = vadd.f32 %v648, %v663
        %v688 = vadd.f32 %v649, %v663
        %v689 = vadd.f32 %v650, %v663
        %v690 = vadd.f32 %v651, %v663
        %v691 = vadd.f32 %v652, %v663
        %v692 = vadd.f32 %v653, %v663
        %v693 = vadd.f32 %v654, %v663
        %v694 = vadd.f32 %v655, %v663
        %v695 = vadd.f32 %v656, %v663
        %v696 = vadd.f32 %v657, %v663
        %v697 = vmax.f32 %v665, 0.0
        %v698 = vmax.f32 %v666, 0.0
        %v699 = vmax.f32 %v667, 0.0
        %v700 = vmax.f32 %v668, 0.0
        %v701 = vmax.f32 %v669, 0.0
        %v702 = vmax.f32 %v670, 0.0
        %v703 = vmax.f32 %v671, 0.0
        %v704 = vmax.f32 %v672, 0.0
        %v705 = vmax.f32 %v673, 0.0
        %v706 = vmax.f32 %v674, 0.0
        %v707 = vmax.f32 %v675, 0.0
        %v708 = vmax.f32 %v676, 0.0
        %v709 = vmax.f32 %v677, 0.0
        %v710 = vmax.f32 %v678, 0.0
        %v711 = vmax.f32 %v679, 0.0
        %v712 = vmax.f32 %v680, 0.0
        %v713 = vmax.f32 %v681, 0.0
        %v714 = vmax.f32 %v682, 0.0
        %v715 = vmax.f32 %v683, 0.0
        %v716 = vmax.f32 %v684, 0.0
        %v717 = vmax.f32 %v685, 0.0
        %v718 = vmax.f32 %v686, 0.0
        %v719 = vmax.f32 %v687, 0.0
        %v720 = vmax.f32 %v688, 0.0
        %v721 = vmax.f32 %v689, 0.0
        %v722 = vmax.f32 %v690, 0.0
        %v723 = vmax.f32 %v691, 0.0
        %v724 = vmax.f32 %v692, 0.0
        %v725 = vmax.f32 %v693, 0.0
        %v726 = vmax.f32 %v694, 0.0
        %v727 = vmax.f32 %v695, 0.0
        %v728 = vmax.f32 %v696, 0.0
        %v729 = vpack.c.bf16 %v698, %v697
        %v730 = vpack.c.bf16 %v700, %v699
        %v731 = vpack.c.bf16 %v702, %v701
        %v732 = vpack.c.bf16 %v704, %v703
        %v733 = vpack.c.bf16 %v706, %v705
        %v734 = vpack.c.bf16 %v708, %v707
        %v735 = vpack.c.bf16 %v710, %v709
        %v736 = vpack.c.bf16 %v712, %v711
        %v737 = vpack.c.bf16 %v714, %v713
        %v738 = vpack.c.bf16 %v716, %v715
        %v739 = vpack.c.bf16 %v718, %v717
        %v740 = vpack.c.bf16 %v720, %v719
        %v741 = vpack.c.bf16 %v722, %v721
        %v742 = vpack.c.bf16 %v724, %v723
        %v743 = vpack.c.bf16 %v726, %v725
        %v744 = vpack.c.bf16 %v728, %v727
        %v761 = vunpack.c.l.b16 %v729
        %v762 = vunpack.c.h.b16 %v729
        %v763 = vunpack.c.l.b16 %v730
        %v764 = vunpack.c.h.b16 %v730
        %v765 = vunpack.c.l.b16 %v731
        %v766 = vunpack.c.h.b16 %v731
        %v767 = vunpack.c.l.b16 %v732
        %v768 = vunpack.c.h.b16 %v732
        %v769 = vunpack.c.l.b16 %v733
        %v770 = vunpack.c.h.b16 %v733
        %v771 = vunpack.c.l.b16 %v734
        %v772 = vunpack.c.h.b16 %v734
        %v773 = vunpack.c.l.b16 %v735
        %v774 = vunpack.c.h.b16 %v735
        %v775 = vunpack.c.l.b16 %v736
        %v776 = vunpack.c.h.b16 %v736
        %v777 = vunpack.c.l.b16 %v737
        %v778 = vunpack.c.h.b16 %v737
        %v779 = vunpack.c.l.b16 %v738
        %v780 = vunpack.c.h.b16 %v738
        %v781 = vunpack.c.l.b16 %v739
        %v782 = vunpack.c.h.b16 %v739
        %v783 = vunpack.c.l.b16 %v740
        %v784 = vunpack.c.h.b16 %v740
        %v785 = vunpack.c.l.b16 %v741
        %v786 = vunpack.c.h.b16 %v741
        %v787 = vunpack.c.l.b16 %v742
        %v788 = vunpack.c.h.b16 %v742
        %v789 = vunpack.c.l.b16 %v743
        %v790 = vunpack.c.h.b16 %v743
        %v791 = vunpack.c.l.b16 %v744
        %v792 = vunpack.c.h.b16 %v744
        %v793 = vpack.c.b16 %v761, %v761
        %v794 = vpack.c.b16 %v762, %v762
        %v795 = vpack.c.b16 %v763, %v763
        %v796 = vpack.c.b16 %v764, %v764
        %v797 = vpack.c.b16 %v765, %v765
        %v798 = vpack.c.b16 %v766, %v766
        %v799 = vpack.c.b16 %v767, %v767
        %v800 = vpack.c.b16 %v768, %v768
        %v801 = vpack.c.b16 %v769, %v769
        %v802 = vpack.c.b16 %v770, %v770
        %v803 = vpack.c.b16 %v771, %v771
        %v804 = vpack.c.b16 %v772, %v772
        %v805 = vpack.c.b16 %v773, %v773
        %v806 = vpack.c.b16 %v774, %v774
        %v807 = vpack.c.b16 %v775, %v775
        %v808 = vpack.c.b16 %v776, %v776
        %v809 = vpack.c.b16 %v777, %v777
        %v810 = vpack.c.b16 %v778, %v778
        %v811 = vpack.c.b16 %v779, %v779
        %v812 = vpack.c.b16 %v780, %v780
        %v813 = vpack.c.b16 %v781, %v781
        %v814 = vpack.c.b16 %v782, %v782
        %v815 = vpack.c.b16 %v783, %v783
        %v816 = vpack.c.b16 %v784, %v784
        %v817 = vpack.c.b16 %v785, %v785
        %v818 = vpack.c.b16 %v786, %v786
        %v819 = vpack.c.b16 %v787, %v787
        %v820 = vpack.c.b16 %v788, %v788
        %v821 = vpack.c.b16 %v789, %v789
        %v822 = vpack.c.b16 %v790, %v790
        %v823 = vpack.c.b16 %v791, %v791
        %v824 = vpack.c.b16 %v792, %v792
        %vm857 = vcmask 27648
        %858 = vst.msk [vmem:[%s288] sm:$0xf] %vm857, %v793
        %859 = vst.msk [vmem:[%s288 + $0x4] sm:$0xf] %vm857, %v794
        %860 = vst.msk [vmem:[%s288 + $0x8] sm:$0xf] %vm857, %v795
        %861 = vst.msk [vmem:[%s288 + $0xc] sm:$0xf] %vm857, %v796
        %862 = vst.msk [vmem:[%s288 + $0x10] sm:$0xf] %vm857, %v797
        %863 = vst.msk [vmem:[%s288 + $0x14] sm:$0xf] %vm857, %v798
        %864 = vst.msk [vmem:[%s288 + $0x18] sm:$0xf] %vm857, %v799
        %865 = vst.msk [vmem:[%s288 + $0x1c] sm:$0xf] %vm857, %v800
        %866 = vst.msk [vmem:[%s288 + $0x20] sm:$0xf] %vm857, %v801
        %867 = vst.msk [vmem:[%s288 + $0x24] sm:$0xf] %vm857, %v802
        %868 = vst.msk [vmem:[%s288 + $0x28] sm:$0xf] %vm857, %v803
        %869 = vst.msk [vmem:[%s288 + $0x2c] sm:$0xf] %vm857, %v804
        %870 = vst.msk [vmem:[%s288 + $0x30] sm:$0xf] %vm857, %v805
        %871 = vst.msk [vmem:[%s288 + $0x34] sm:$0xf] %vm857, %v806
        %872 = vst.msk [vmem:[%s288 + $0x38] sm:$0xf] %vm857, %v807
        %873 = vst.msk [vmem:[%s288 + $0x3c] sm:$0xf] %vm857, %v808
        %874 = vst.msk [vmem:[%s288 + $0x40] sm:$0xf] %vm857, %v809
        %875 = vst.msk [vmem:[%s288 + $0x44] sm:$0xf] %vm857, %v810
        %876 = vst.msk [vmem:[%s288 + $0x48] sm:$0xf] %vm857, %v811
        %877 = vst.msk [vmem:[%s288 + $0x4c] sm:$0xf] %vm857, %v812
        %878 = vst.msk [vmem:[%s288 + $0x50] sm:$0xf] %vm857, %v813
        %879 = vst.msk [vmem:[%s288 + $0x54] sm:$0xf] %vm857, %v814
        %880 = vst.msk [vmem:[%s288 + $0x58] sm:$0xf] %vm857, %v815
        %881 = vst.msk [vmem:[%s288 + $0x5c] sm:$0xf] %vm857, %v816
        %882 = vst.msk [vmem:[%s288 + $0x60] sm:$0xf] %vm857, %v817
        %883 = vst.msk [vmem:[%s288 + $0x64] sm:$0xf] %vm857, %v818
        %884 = vst.msk [vmem:[%s288 + $0x68] sm:$0xf] %vm857, %v819
        %885 = vst.msk [vmem:[%s288 + $0x6c] sm:$0xf] %vm857, %v820
        %886 = vst.msk [vmem:[%s288 + $0x70] sm:$0xf] %vm857, %v821
        %887 = vst.msk [vmem:[%s288 + $0x74] sm:$0xf] %vm857, %v822
        %888 = vst.msk [vmem:[%s288 + $0x78] sm:$0xf] %vm857, %v823
        %889 = vst.msk [vmem:[%s288 + $0x7c] sm:$0xf] %vm857, %v824
        %s890 = sand.u32 %s149, 1
        %s891 = scalar_lea.sflag [#allocation4], %s890
        %s892 = sand.u32 %s149, 1
        %s893 = smul.addr %s892, 128
        %s894 = scalar_lea.vmem [#allocation10], %s893
        // Predicated region
        $region53: #{_bottleneck_forward_impl.4} parent=35 // pred_check
          %p895 = pneg %p159
        $region54: #{_bottleneck_forward_impl.4} parent=35 // pred_check_branch
          %897 = sbr.rel (%p895) target = $region56
        $region55: #{_bottleneck_forward_impl.4} parent=35 // pred_region
          %s898 = smul.u32 32, %s27
          %s900 = ssub.s32 2048, 2048
          %901 = vsyncadd %s891, %s900
          %s902 = sadd.s32 %s28, %s898
          %s903 = smul.addr %s902, 64
          %s904 = scalar_lea.hbm %s4, %s903
          %s905 = sshll.u32 %s894, 4
          %s906 = int_to_ptr.vmem [resolvable:$true] %s905
          %911 = dma.vmem_to_hbm [thread:$0]  %s906, 2048, %s904, %s891, 64, 64, 4
        $region56: #{_bottleneck_forward_impl.4} parent=35 // pred_fallthru
          _
      $region36: #{_bottleneck_forward_impl.4} parent=5 // pred_fallthru
        _
      %p912 = scmp.le.s32.totalorder 2, %s18
      // Predicated region
      $region57: #{_bottleneck_forward_impl.4} parent=5 // pred_check
        %p913 = pneg %p912
      $region58: #{_bottleneck_forward_impl.4} parent=5 // pred_check_branch
        %915 = sbr.rel (%p913) target = $region60
      $region59: #{_bottleneck_forward_impl.4} parent=5 // pred_region
        %s916 = ssub.s32 %s18, 2
        // Predicated region
        $region61: #{_bottleneck_forward_impl.4} parent=59 // pred_check
          %p917 = pneg %p165
        $region62: #{_bottleneck_forward_impl.4} parent=59 // pred_check_branch
          %919 = sbr.rel (%p917) target = $region64
        $region63: #{_bottleneck_forward_impl.4} parent=59 // pred_region
          %s920 = sand.u32 %s150, 1
          %s921 = scalar_lea.sflag [#allocation4], %s920
          %s922 = sand.u32 %s150, 1
          %s923 = smul.addr %s922, 128
          %s924 = scalar_lea.vmem [#allocation10], %s923
          %925 = dma.done %s921, 2048
        $region64: #{_bottleneck_forward_impl.4} parent=59 // pred_fallthru
          _
      $region60: #{_bottleneck_forward_impl.4} parent=5 // pred_fallthru
        _
    $region6: #{_bottleneck_forward_impl.4} parent=1 // loop_footer
      %s22 = sadd.s32 1, %s18
    $region7: #{_bottleneck_forward_impl.4} parent=1 // loop_footer_branch
      %17 = sbr.rel target = $region3
    $region8: #{_bottleneck_forward_impl.4} parent=1 // loop_exit
      _
    %926 = vsyncpa [#allocation3], 1
    %s927 = scalar_lea.sflag [#allocation3], 1
    %928 = vsyncpa %s927, 1
    %929 = vsyncpa [#allocation6], 1
    %930 = vsyncpa [#allocation9], 1
    %931 = vsyncpa [#allocation4], 1
    %s932 = scalar_lea.sflag [#allocation4], 1
    %933 = vsyncpa %s932, 1

// kernel: _bottleneck_forward_impl.6
$region0: #{_bottleneck_forward_impl.6}
  #allocation0 [shape = 'u32[]', space=smem, size = 0x4, offset = 0x4, fixed_abs, tag = 'smem constant byte address 0x4 - core index']
  #allocation1 [shape = 'u32[144,128]{1,0:T(1,128)}', space=vmem, size = 0x12000, scoped, tag = 'internal scratch']
  %s0 = inlined_call_operand.hbm [shape: bf16[512,4], index: 0, kind: input, shape index: {}]
  %s1 = inlined_call_operand.hbm [shape: bf16[4,16], index: 1, kind: input, shape index: {}]
  %s2 = inlined_call_operand.hbm [shape: f32[1,16], index: 2, kind: input, shape index: {}]
  %s3 = inlined_call_operand.hbm [shape: f32[1,16], index: 3, kind: input, shape index: {}]
  %s4 = inlined_call_operand.hbm [shape: bf16[512,16], index: 4, kind: output, shape index: {}]
  %s5 = sld [smem:[#allocation0]]
  $region65: #{_bottleneck_forward_impl.6} parent=0
    _
  %s7 = ssub.s32 1, %s5
  %s8 = scalar_select 0, %s7, %s5
  $region1: #{_bottleneck_forward_impl.6} parent=0
    #allocation2 [shape = 'u8[131072]{0}', space=vmem, size = 0x20000, scoped, tag = 'input window, operand 0']
    #allocation3 [shape = 's32[2]{0}', space=sflag, size = 0x8, scoped, tag = 'scoped memory for _bottleneck_forward_impl.6']
    #allocation4 [shape = 's32[2]{0}', space=sflag, size = 0x8, scoped, tag = 'scoped memory for _bottleneck_forward_impl.6']
    #allocation5 [shape = 'u8[1024]{0}', space=vmem, size = 0x400, scoped, tag = 'input window, operand 1, single buffered']
    #allocation6 [shape = 's32[1]{0}', space=sflag, size = 0x4, scoped, tag = 'scoped memory for _bottleneck_forward_impl.6']
    #allocation7 [shape = 'u8[512]{0}', space=vmem, size = 0x400, scoped, tag = 'input window, operand 2, single buffered']
    #allocation8 [shape = 'u8[512]{0}', space=vmem, size = 0x400, scoped, tag = 'input window, operand 3, single buffered']
    #allocation9 [shape = 's32[1]{0}', space=sflag, size = 0x4, scoped, tag = 'scoped memory for _bottleneck_forward_impl.6']
    #allocation10 [shape = 'u8[131072]{0}', space=vmem, size = 0x20000, scoped, tag = 'output window, operand 0']
    %9 = vsyncpa [#allocation3], 0
    %s10 = scalar_lea.sflag [#allocation3], 1
    %11 = vsyncpa %s10, 0
    %12 = vsyncpa [#allocation6], 0
    %13 = vsyncpa [#allocation9], 0
    %14 = vsyncpa [#allocation4], 0
    %s15 = scalar_lea.sflag [#allocation4], 1
    %16 = vsyncpa %s15, 0
    loop: start=0, step=1, limit=4
    $region2: #{_bottleneck_forward_impl.6} parent=1 // loop_pre_header
      _
    $region3: #{_bottleneck_forward_impl.6} parent=1 // loop_header
      %s18 = sphi 0, %s22
      %p19 = scmp.ge.s32.totalorder %s18, 4
      %s25 = sphi 0, %s37
      %s26 = sphi 0, %s33
      %s27 = sphi 0, %s25
      %s28 = sphi 0, %s26
      %s29 = sphi 0, %s27
      %s30 = sphi 0, %s28
      %s40 = sphi 0, %s42
      %s43 = sphi 0, %s40
      %s44 = sphi 0, %s43
      %s60 = sphi 0, %s44
      %s66 = sphi 0, %s68
      %s69 = sphi 0, %s66
      %s70 = sphi 0, %s69
      %s86 = sphi 0, %s70
      %s92 = sphi 0, %s94
      %s95 = sphi 0, %s92
      %s96 = sphi 0, %s95
      %s112 = sphi 0, %s96
      %s118 = sphi 0, %s120
      %s121 = sphi 0, %s118
      %s122 = sphi 0, %s121
      %s138 = sphi 0, %s122
      %s146 = sphi 0, %s148
      %s149 = sphi 0, %s146
      %s150 = sphi 0, %s149
      %s166 = sphi 0, %s150
    $region4: #{_bottleneck_forward_impl.6} parent=1 // loop_header_branch
      %21 = sbr.rel (%p19) target = $region8
    $region5: #{_bottleneck_forward_impl.6} parent=1 // loop_body
      %s23 = ssub.s32 %s18, 1
      %s24 = ssub.s32 %s18, 2
      %s31 = sadd.s32 1, %s26
      %p32 = scmp.ge.s32.totalorder %s31, 1
      %s33 = scalar_select %p32, 0, %s31
      %s34 = sadd.s32 1, %s25
      %s35 = scalar_select %p32, %s34, %s25
      %p36 = scmp.ge.s32.totalorder %s35, 2
      %s37 = scalar_select %p36, 0, %s35
      %s38 = ssub.s32 %s25, %s37
      %p39 = scmp.eq.s32.totalorder %s38, 0
      %s41 = sadd.s32 %s40, 1
      %s42 = scalar_select %p39, %s40, %s41
      %p45 = pneg %p39
      %p46 = scmp.eq.s32.totalorder %s18, 1
      %p47 = por %p45, %p46
      %p48 = scmp.ne.s32.totalorder %s40, %s43
      %p49 = scmp.eq.s32.totalorder %s18, 0
      %p50 = por %p48, %p49
      %p51 = scmp.ne.s32.totalorder %s40, %s43
      %p52 = scmp.eq.s32.totalorder %s23, 1
      %p53 = por %p51, %p52
      %p54 = scmp.ne.s32.totalorder %s43, %s44
      %p55 = scmp.eq.s32.totalorder %s23, 0
      %p56 = por %p54, %p55
      %p57 = scmp.ne.s32.totalorder %s43, %s44
      %p58 = scmp.eq.s32.totalorder %s24, 1
      %p59 = por %p57, %p58
      %p61 = scmp.ne.s32.totalorder %s44, %s60
      %p62 = scmp.eq.s32.totalorder %s24, 0
      %p63 = por %p61, %p62
      %s64 = ssub.s32 %s26, %s33
      %p65 = scmp.eq.s32.totalorder %s64, 0
      %s67 = sadd.s32 %s66, 1
      %s68 = scalar_select %p65, %s66, %s67
      %p71 = pneg %p65
      %p72 = scmp.eq.s32.totalorder %s18, 1
      %p73 = por %p71, %p72
      %p74 = scmp.ne.s32.totalorder %s66, %s69
      %p75 = scmp.eq.s32.totalorder %s18, 0
      %p76 = por %p74, %p75
      %p77 = scmp.ne.s32.totalorder %s66, %s69
      %p78 = scmp.eq.s32.totalorder %s23, 1
      %p79 = por %p77, %p78
      %p80 = scmp.ne.s32.totalorder %s69, %s70
      %p81 = scmp.eq.s32.totalorder %s23, 0
      %p82 = por %p80, %p81
      %p83 = scmp.ne.s32.totalorder %s69, %s70
      %p84 = scmp.eq.s32.totalorder %s24, 1
      %p85 = por %p83, %p84
      %p87 = scmp.ne.s32.totalorder %s70, %s86
      %p88 = scmp.eq.s32.totalorder %s24, 0
      %p89 = por %p87, %p88
      %s90 = ssub.s32 %s26, %s33
      %p91 = scmp.eq.s32.totalorder %s90, 0
      %s93 = sadd.s32 %s92, 1
      %s94 = scalar_select %p91, %s92, %s93
      %p97 = pneg %p91
      %p98 = scmp.eq.s32.totalorder %s18, 1
      %p99 = por %p97, %p98
      %p100 = scmp.ne.s32.totalorder %s92, %s95
      %p101 = scmp.eq.s32.totalorder %s18, 0
      %p102 = por %p100, %p101
      %p103 = scmp.ne.s32.totalorder %s92, %s95
      %p104 = scmp.eq.s32.totalorder %s23, 1
      %p105 = por %p103, %p104
      %p106 = scmp.ne.s32.totalorder %s95, %s96
      %p107 = scmp.eq.s32.totalorder %s23, 0
      %p108 = por %p106, %p107
      %p109 = scmp.ne.s32.totalorder %s95, %s96
      %p110 = scmp.eq.s32.totalorder %s24, 1
      %p111 = por %p109, %p110
      %p113 = scmp.ne.s32.totalorder %s96, %s112
      %p114 = scmp.eq.s32.totalorder %s24, 0
      %p115 = por %p113, %p114
      %s116 = ssub.s32 %s26, %s33
      %p117 = scmp.eq.s32.totalorder %s116, 0
      %s119 = sadd.s32 %s118, 1
      %s120 = scalar_select %p117, %s118, %s119
      %p123 = pneg %p117
      %p124 = scmp.eq.s32.totalorder %s18, 1
      %p125 = por %p123, %p124
      %p126 = scmp.ne.s32.totalorder %s118, %s121
      %p127 = scmp.eq.s32.totalorder %s18, 0
      %p128 = por %p126, %p127
      %p129 = scmp.ne.s32.totalorder %s118, %s121
      %p130 = scmp.eq.s32.totalorder %s23, 1
      %p131 = por %p129, %p130
      %p132 = scmp.ne.s32.totalorder %s121, %s122
      %p133 = scmp.eq.s32.totalorder %s23, 0
      %p134 = por %p132, %p133
      %p135 = scmp.ne.s32.totalorder %s121, %s122
      %p136 = scmp.eq.s32.totalorder %s24, 1
      %p137 = por %p135, %p136
      %p139 = scmp.ne.s32.totalorder %s122, %s138
      %p140 = scmp.eq.s32.totalorder %s24, 0
      %p141 = por %p139, %p140
      %s142 = ssub.s32 %s25, %s37
      %s143 = ssub.s32 %s26, %s33
      %s144 = sor.u32 %s142, %s143
      %p145 = scmp.eq.s32.totalorder %s144, 0
      %s147 = sadd.s32 %s146, 1
      %s148 = scalar_select %p145, %s146, %s147
      %p151 = pneg %p145
      %p152 = scmp.eq.s32.totalorder %s18, 1
      %p153 = por %p151, %p152
      %p154 = scmp.ne.s32.totalorder %s146, %s149
      %p155 = scmp.eq.s32.totalorder %s18, 0
      %p156 = por %p154, %p155
      %p157 = scmp.ne.s32.totalorder %s146, %s149
      %p158 = scmp.eq.s32.totalorder %s23, 1
      %p159 = por %p157, %p158
      %p160 = scmp.ne.s32.totalorder %s149, %s150
      %p161 = scmp.eq.s32.totalorder %s23, 0
      %p162 = por %p160, %p161
      %p163 = scmp.ne.s32.totalorder %s149, %s150
      %p164 = scmp.eq.s32.totalorder %s24, 1
      %p165 = por %p163, %p164
      %p167 = scmp.ne.s32.totalorder %s150, %s166
      %p168 = scmp.eq.s32.totalorder %s24, 0
      %p169 = por %p167, %p168
      %p170 = scmp.le.s32.totalorder 1, %s18
      %p171 = scmp.lt.s32.totalorder %s18, 3
      %p172 = pnand %p170, %p171
      %p173 = pneg %p172
      // Predicated region
      $region9: #{_bottleneck_forward_impl.6} parent=5 // pred_check
        _
      $region10: #{_bottleneck_forward_impl.6} parent=5 // pred_check_branch
        %175 = sbr.rel (%p172) target = $region12
      $region11: #{_bottleneck_forward_impl.6} parent=5 // pred_region
        %s176 = ssub.s32 %s18, 1
        // Predicated region
        $region13: #{_bottleneck_forward_impl.6} parent=11 // pred_check
          %p177 = pneg %p82
        $region14: #{_bottleneck_forward_impl.6} parent=11 // pred_check_branch
          %179 = sbr.rel (%p177) target = $region16
        $region15: #{_bottleneck_forward_impl.6} parent=11 // pred_region
          %s181 = ssub.s32 32, 32
          %182 = vsyncadd [#allocation6], %s181
          %s183 = smul.addr %s28, 32
          %s184 = scalar_lea.hbm %s1, %s183
          %s186 = sshll.u32 [#allocation5], 4
          %s187 = int_to_ptr.vmem [resolvable:$true] %s186
          %189 = dma.hbm_to_vmem [thread:$0]  %s184, 32, %s187, [#allocation6]
        $region16: #{_bottleneck_forward_impl.6} parent=11 // pred_fallthru
          _
        // Predicated region
        $region17: #{_bottleneck_forward_impl.6} parent=11 // pred_check
          %p190 = pneg %p108
        $region18: #{_bottleneck_forward_impl.6} parent=11 // pred_check_branch
          %192 = sbr.rel (%p190) target = $region20
        $region19: #{_bottleneck_forward_impl.6} parent=11 // pred_region
          %s194 = ssub.s32 16, 16
          %195 = vsyncadd [#allocation6], %s194
          %s196 = smul.addr %s28, 16
          %s197 = scalar_lea.hbm %s2, %s196
          %s199 = sshll.u32 [#allocation7], 4
          %s200 = int_to_ptr.vmem [resolvable:$true] %s199
          %202 = dma.hbm_to_vmem [thread:$0]  %s197, 16, %s200, [#allocation6]
        $region20: #{_bottleneck_forward_impl.6} parent=11 // pred_fallthru
          _
        // Predicated region
        $region21: #{_bottleneck_forward_impl.6} parent=11 // pred_check
          %p203 = pneg %p134
        $region22: #{_bottleneck_forward_impl.6} parent=11 // pred_check_branch
          %205 = sbr.rel (%p203) target = $region24
        $region23: #{_bottleneck_forward_impl.6} parent=11 // pred_region
          %s207 = ssub.s32 16, 16
          %208 = vsyncadd [#allocation9], %s207
          %s209 = smul.addr %s28, 16
          %s210 = scalar_lea.hbm %s3, %s209
          %s212 = sshll.u32 [#allocation8], 4
          %s213 = int_to_ptr.vmem [resolvable:$true] %s212
          %215 = dma.hbm_to_vmem [thread:$0]  %s210, 16, %s213, [#allocation9]
        $region24: #{_bottleneck_forward_impl.6} parent=11 // pred_fallthru
          _
      $region12: #{_bottleneck_forward_impl.6} parent=5 // pred_fallthru
        _
      %p216 = scmp.lt.s32.totalorder %s18, 2
      // Predicated region
      $region25: #{_bottleneck_forward_impl.6} parent=5 // pred_check
        %p217 = pneg %p216
      $region26: #{_bottleneck_forward_impl.6} parent=5 // pred_check_branch
        %219 = sbr.rel (%p217) target = $region28
      $region27: #{_bottleneck_forward_impl.6} parent=5 // pred_region
        // Predicated region
        $region29: #{_bottleneck_forward_impl.6} parent=27 // pred_check
          %p220 = pneg %p50
        $region30: #{_bottleneck_forward_impl.6} parent=27 // pred_check_branch
          %222 = sbr.rel (%p220) target = $region32
        $region31: #{_bottleneck_forward_impl.6} parent=27 // pred_region
          %s223 = sand.u32 %s40, 1
          %s224 = scalar_lea.sflag [#allocation3], %s223
          %s225 = sand.u32 %s40, 1
          %s226 = smul.addr %s225, 128
          %s227 = scalar_lea.vmem [#allocation2], %s226
          %s228 = smul.u32 32, %s25
          %s230 = ssub.s32 2048, 2048
          %231 = vsyncadd %s224, %s230
          %s232 = smul.addr %s228, 64
          %s233 = scalar_lea.hbm %s0, %s232
          %s234 = sshll.u32 %s227, 4
          %s235 = int_to_ptr.vmem [resolvable:$true] %s234
          %240 = dma.hbm_to_vmem [thread:$0]  %s233, 2048, %s235, %s224, 64, 64, 4
        $region32: #{_bottleneck_forward_impl.6} parent=27 // pred_fallthru
          _
      $region28: #{_bottleneck_forward_impl.6} parent=5 // pred_fallthru
        _
      %p241 = scmp.le.s32.totalorder 1, %s18
      %p242 = scmp.lt.s32.totalorder %s18, 3
      %p243 = pnand %p241, %p242
      %p244 = pneg %p243
      // Predicated region
      $region33: #{_bottleneck_forward_impl.6} parent=5 // pred_check
        _
      $region34: #{_bottleneck_forward_impl.6} parent=5 // pred_check_branch
        %246 = sbr.rel (%p243) target = $region36
      $region35: #{_bottleneck_forward_impl.6} parent=5 // pred_region
        %s247 = ssub.s32 %s18, 1
        %s248 = sand.u32 %s43, 1
        %s249 = scalar_lea.sflag [#allocation3], %s248
        %s250 = sand.u32 %s43, 1
        %s251 = smul.addr %s250, 128
        %s252 = scalar_lea.vmem [#allocation2], %s251
        // Predicated region
        $region37: #{_bottleneck_forward_impl.6} parent=35 // pred_check
          %p253 = pneg %p56
        $region38: #{_bottleneck_forward_impl.6} parent=35 // pred_check_branch
          %255 = sbr.rel (%p253) target = $region40
        $region39: #{_bottleneck_forward_impl.6} parent=35 // pred_region
          %256 = dma.done %s249, 2048
        $region40: #{_bottleneck_forward_impl.6} parent=35 // pred_fallthru
          _
        // Predicated region
        $region41: #{_bottleneck_forward_impl.6} parent=35 // pred_check
          %p257 = pneg %p82
        $region42: #{_bottleneck_forward_impl.6} parent=35 // pred_check_branch
          %259 = sbr.rel (%p257) target = $region44
        $region43: #{_bottleneck_forward_impl.6} parent=35 // pred_region
          %260 = dma.done [#allocation6], 32
        $region44: #{_bottleneck_forward_impl.6} parent=35 // pred_fallthru
          _
        // Predicated region
        $region45: #{_bottleneck_forward_impl.6} parent=35 // pred_check
          %p261 = pneg %p108
        $region46: #{_bottleneck_forward_impl.6} parent=35 // pred_check_branch
          %263 = sbr.rel (%p261) target = $region48
        $region47: #{_bottleneck_forward_impl.6} parent=35 // pred_region
          %264 = dma.done [#allocation6], 16
        $region48: #{_bottleneck_forward_impl.6} parent=35 // pred_fallthru
          _
        // Predicated region
        $region49: #{_bottleneck_forward_impl.6} parent=35 // pred_check
          %p265 = pneg %p134
        $region50: #{_bottleneck_forward_impl.6} parent=35 // pred_check_branch
          %267 = sbr.rel (%p265) target = $region52
        $region51: #{_bottleneck_forward_impl.6} parent=35 // pred_region
          %268 = dma.done [#allocation9], 16
        $region52: #{_bottleneck_forward_impl.6} parent=35 // pred_fallthru
          _
        %s269 = sand.u32 %s43, 1
        %s270 = scalar_lea.sflag [#allocation3], %s269
        %s271 = sand.u32 %s43, 1
        %s272 = smul.addr %s271, 128
        %s273 = scalar_lea.vmem [#allocation2], %s272
        %p274 = pneg %p56
        %p275 = pneg %p53
        %p276 = pneg %p82
        %p277 = pneg %p79
        %p278 = pneg %p108
        %p279 = pneg %p105
        %p280 = pneg %p134
        %p281 = pneg %p131
        %p282 = pneg %p162
        %p283 = pneg %p159
        %s284 = sand.u32 %s149, 1
        %s285 = scalar_lea.sflag [#allocation4], %s284
        %s286 = sand.u32 %s149, 1
        %s287 = smul.addr %s286, 128
        %s288 = scalar_lea.vmem [#allocation10], %s287
        %s289 = smul.u32 32, %s27
        %s290 = smul.u32 32, %s27
        %v292 = vld [vmem:[%s252] sm:$0xf]
        %v293 = vld [vmem:[%s252 + $0x4] sm:$0xf]
        %v294 = vld [vmem:[%s252 + $0x8] sm:$0xf]
        %v295 = vld [vmem:[%s252 + $0xc] sm:$0xf]
        %v296 = vld [vmem:[%s252 + $0x10] sm:$0xf]
        %v297 = vld [vmem:[%s252 + $0x14] sm:$0xf]
        %v298 = vld [vmem:[%s252 + $0x18] sm:$0xf]
        %v299 = vld [vmem:[%s252 + $0x1c] sm:$0xf]
        %v300 = vld [vmem:[%s252 + $0x20] sm:$0xf]
        %v301 = vld [vmem:[%s252 + $0x24] sm:$0xf]
        %v302 = vld [vmem:[%s252 + $0x28] sm:$0xf]
        %v303 = vld [vmem:[%s252 + $0x2c] sm:$0xf]
        %v304 = vld [vmem:[%s252 + $0x30] sm:$0xf]
        %v305 = vld [vmem:[%s252 + $0x34] sm:$0xf]
        %v306 = vld [vmem:[%s252 + $0x38] sm:$0xf]
        %v307 = vld [vmem:[%s252 + $0x3c] sm:$0xf]
        %v308 = vld [vmem:[%s252 + $0x40] sm:$0xf]
        %v309 = vld [vmem:[%s252 + $0x44] sm:$0xf]
        %v310 = vld [vmem:[%s252 + $0x48] sm:$0xf]
        %v311 = vld [vmem:[%s252 + $0x4c] sm:$0xf]
        %v312 = vld [vmem:[%s252 + $0x50] sm:$0xf]
        %v313 = vld [vmem:[%s252 + $0x54] sm:$0xf]
        %v314 = vld [vmem:[%s252 + $0x58] sm:$0xf]
        %v315 = vld [vmem:[%s252 + $0x5c] sm:$0xf]
        %v316 = vld [vmem:[%s252 + $0x60] sm:$0xf]
        %v317 = vld [vmem:[%s252 + $0x64] sm:$0xf]
        %v318 = vld [vmem:[%s252 + $0x68] sm:$0xf]
        %v319 = vld [vmem:[%s252 + $0x6c] sm:$0xf]
        %v320 = vld [vmem:[%s252 + $0x70] sm:$0xf]
        %v321 = vld [vmem:[%s252 + $0x74] sm:$0xf]
        %v322 = vld [vmem:[%s252 + $0x78] sm:$0xf]
        %v323 = vld [vmem:[%s252 + $0x7c] sm:$0xf]
        %v324 = vld [vmem:[#allocation5] sm:$0x3]
        %v357 = vunpack.c.l.b16 %v292
        %v358 = vunpack.c.l.b16 %v293
        %v359 = vunpack.c.l.b16 %v294
        %v360 = vunpack.c.l.b16 %v295
        %v361 = vunpack.c.l.b16 %v296
        %v362 = vunpack.c.l.b16 %v297
        %v363 = vunpack.c.l.b16 %v298
        %v364 = vunpack.c.l.b16 %v299
        %v365 = vunpack.c.l.b16 %v300
        %v366 = vunpack.c.l.b16 %v301
        %v367 = vunpack.c.l.b16 %v302
        %v368 = vunpack.c.l.b16 %v303
        %v369 = vunpack.c.l.b16 %v304
        %v370 = vunpack.c.l.b16 %v305
        %v371 = vunpack.c.l.b16 %v306
        %v372 = vunpack.c.l.b16 %v307
        %v373 = vunpack.c.l.b16 %v308
        %v374 = vunpack.c.l.b16 %v309
        %v375 = vunpack.c.l.b16 %v310
        %v376 = vunpack.c.l.b16 %v311
        %v377 = vunpack.c.l.b16 %v312
        %v378 = vunpack.c.l.b16 %v313
        %v379 = vunpack.c.l.b16 %v314
        %v380 = vunpack.c.l.b16 %v315
        %v381 = vunpack.c.l.b16 %v316
        %v382 = vunpack.c.l.b16 %v317
        %v383 = vunpack.c.l.b16 %v318
        %v384 = vunpack.c.l.b16 %v319
        %v385 = vunpack.c.l.b16 %v320
        %v386 = vunpack.c.l.b16 %v321
        %v387 = vunpack.c.l.b16 %v322
        %v388 = vunpack.c.l.b16 %v323
        %v389 = vpack.c.b16 %v358, %v357
        %v390 = vpack.c.b16 %v360, %v359
        %v391 = vpack.c.b16 %v362, %v361
        %v392 = vpack.c.b16 %v364, %v363
        %v393 = vpack.c.b16 %v366, %v365
        %v394 = vpack.c.b16 %v368, %v367
        %v395 = vpack.c.b16 %v370, %v369
        %v396 = vpack.c.b16 %v372, %v371
        %v397 = vpack.c.b16 %v374, %v373
        %v398 = vpack.c.b16 %v376, %v375
        %v399 = vpack.c.b16 %v378, %v377
        %v400 = vpack.c.b16 %v380, %v379
        %v401 = vpack.c.b16 %v382, %v381
        %v402 = vpack.c.b16 %v384, %v383
        %v403 = vpack.c.b16 %v386, %v385
        %v404 = vpack.c.b16 %v388, %v387
        %vm405 = vcmask 31744
        %v407 = vsel %vm405, %v389, 0
        %v410 = vsel %vm405, %v390, 0
        %v413 = vsel %vm405, %v391, 0
        %v416 = vsel %vm405, %v392, 0
        %v419 = vsel %vm405, %v393, 0
        %v422 = vsel %vm405, %v394, 0
        %v425 = vsel %vm405, %v395, 0
        %v428 = vsel %vm405, %v396, 0
        %v431 = vsel %vm405, %v397, 0
        %v434 = vsel %vm405, %v398, 0
        %v437 = vsel %vm405, %v399, 0
        %v440 = vsel %vm405, %v400, 0
        %v443 = vsel %vm405, %v401, 0
        %v446 = vsel %vm405, %v402, 0
        %v449 = vsel %vm405, %v403, 0
        %v452 = vsel %vm405, %v404, 0
        %vm454 = vcmask 1041408
        %v456 = vsel %vm454, %v324, 0
        %458 = vmatprep.subr.bf16.mxu0 0
        %459 = vmatpush1.bf16.msra.mxu0 %v456
        %460 = vmatprep.subr.bf16.mxu0 0
        %461 = vmatpush1.bf16.msra.mxu0 0
        %462 = vmatprep.subr.bf16.mxu0 0
        %463 = vmatpush1.bf16.msra.mxu0 0
        %464 = vmatprep.subr.bf16.mxu0 0
        %465 = vmatpush1.bf16.msra.mxu0 0
        %466 = vmatprep.subr.bf16.mxu0 0
        %467 = vmatpush1.bf16.msra.mxu0 0
        %468 = vmatprep.subr.bf16.mxu0 0
        %469 = vmatpush1.bf16.msra.mxu0 0
        %470 = vmatprep.subr.bf16.mxu0 0
        %471 = vmatpush1.bf16.msra.mxu0 0
        %472 = vmatprep.subr.bf16.mxu0 0
        %473 = vmatpush1.bf16.msra.mxu0 0
        %474 = vmatprep.subr.bf16.mxu0 0
        %475 = vmatpush1.bf16.msra.mxu0 0
        %476 = vmatprep.subr.bf16.mxu0 0
        %477 = vmatpush1.bf16.msra.mxu0 0
        %478 = vmatprep.subr.bf16.mxu0 0
        %479 = vmatpush1.bf16.msra.mxu0 0
        %480 = vmatprep.subr.bf16.mxu0 0
        %481 = vmatpush1.bf16.msra.mxu0 0
        %482 = vmatprep.subr.bf16.mxu0 0
        %483 = vmatpush1.bf16.msra.mxu0 0
        %484 = vmatprep.subr.bf16.mxu0 0
        %485 = vmatpush1.bf16.msra.mxu0 0
        %486 = vmatprep.subr.bf16.mxu0 0
        %487 = vmatpush1.bf16.msra.mxu0 0
        %488 = vmatprep.subr.bf16.mxu0 0
        %489 = vmatpush1.bf16.msra.mxu0 0
        %490 = vmatprep.mubr.bf16.mxu0 0
        %491 = vmatmul.mubr.bf16.gmra.mrb[0].mxu0 %v407
        %v492 = vpop.f32.mrb[0].mxu0
        %v493 = vadd.f32 0.0, %v492
        %v494 = vpop.f32.mrb[0].mxu0
        %v495 = vpop.f32.mrb[0].mxu0
        %v496 = vadd.f32 0.0, %v495
        %v497 = vpop.f32.mrb[0].mxu0
        %498 = vmatprep.mubr.bf16.mxu0 0
        %499 = vmatmul.mubr.bf16.gmra.mrb[0].mxu0 %v410
        %v500 = vpop.f32.mrb[0].mxu0
        %v501 = vadd.f32 0.0, %v500
        %v502 = vpop.f32.mrb[0].mxu0
        %v503 = vpop.f32.mrb[0].mxu0
        %v504 = vadd.f32 0.0, %v503
        %v505 = vpop.f32.mrb[0].mxu0
        %506 = vmatprep.mubr.bf16.mxu0 0
        %507 = vmatmul.mubr.bf16.gmra.mrb[0].mxu0 %v413
        %v508 = vpop.f32.mrb[0].mxu0
        %v509 = vadd.f32 0.0, %v508
        %v510 = vpop.f32.mrb[0].mxu0
        %v511 = vpop.f32.mrb[0].mxu0
        %v512 = vadd.f32 0.0, %v511
        %v513 = vpop.f32.mrb[0].mxu0
        %514 = vmatprep.mubr.bf16.mxu0 0
        %515 = vmatmul.mubr.bf16.gmra.mrb[0].mxu0 %v416
        %v516 = vpop.f32.mrb[0].mxu0
        %v517 = vadd.f32 0.0, %v516
        %v518 = vpop.f32.mrb[0].mxu0
        %v519 = vpop.f32.mrb[0].mxu0
        %v520 = vadd.f32 0.0, %v519
        %v521 = vpop.f32.mrb[0].mxu0
        %522 = vmatprep.mubr.bf16.mxu0 0
        %523 = vmatmul.mubr.bf16.gmra.mrb[0].mxu0 %v419
        %v524 = vpop.f32.mrb[0].mxu0
        %v525 = vadd.f32 0.0, %v524
        %v526 = vpop.f32.mrb[0].mxu0
        %v527 = vpop.f32.mrb[0].mxu0
        %v528 = vadd.f32 0.0, %v527
        %v529 = vpop.f32.mrb[0].mxu0
        %530 = vmatprep.mubr.bf16.mxu0 0
        %531 = vmatmul.mubr.bf16.gmra.mrb[0].mxu0 %v422
        %v532 = vpop.f32.mrb[0].mxu0
        %v533 = vadd.f32 0.0, %v532
        %v534 = vpop.f32.mrb[0].mxu0
        %v535 = vpop.f32.mrb[0].mxu0
        %v536 = vadd.f32 0.0, %v535
        %v537 = vpop.f32.mrb[0].mxu0
        %538 = vmatprep.mubr.bf16.mxu0 0
        %539 = vmatmul.mubr.bf16.gmra.mrb[0].mxu0 %v425
        %v540 = vpop.f32.mrb[0].mxu0
        %v541 = vadd.f32 0.0, %v540
        %v542 = vpop.f32.mrb[0].mxu0
        %v543 = vpop.f32.mrb[0].mxu0
        %v544 = vadd.f32 0.0, %v543
        %v545 = vpop.f32.mrb[0].mxu0
        %546 = vmatprep.mubr.bf16.mxu0 0
        %547 = vmatmul.mubr.bf16.gmra.mrb[0].mxu0 %v428
        %v548 = vpop.f32.mrb[0].mxu0
        %v549 = vadd.f32 0.0, %v548
        %v550 = vpop.f32.mrb[0].mxu0
        %v551 = vpop.f32.mrb[0].mxu0
        %v552 = vadd.f32 0.0, %v551
        %v553 = vpop.f32.mrb[0].mxu0
        %554 = vmatprep.mubr.bf16.mxu0 0
        %555 = vmatmul.mubr.bf16.gmra.mrb[0].mxu0 %v431
        %v556 = vpop.f32.mrb[0].mxu0
        %v557 = vadd.f32 0.0, %v556
        %v558 = vpop.f32.mrb[0].mxu0
        %v559 = vpop.f32.mrb[0].mxu0
        %v560 = vadd.f32 0.0, %v559
        %v561 = vpop.f32.mrb[0].mxu0
        %562 = vmatprep.mubr.bf16.mxu0 0
        %563 = vmatmul.mubr.bf16.gmra.mrb[0].mxu0 %v434
        %v564 = vpop.f32.mrb[0].mxu0
        %v565 = vadd.f32 0.0, %v564
        %v566 = vpop.f32.mrb[0].mxu0
        %v567 = vpop.f32.mrb[0].mxu0
        %v568 = vadd.f32 0.0, %v567
        %v569 = vpop.f32.mrb[0].mxu0
        %570 = vmatprep.mubr.bf16.mxu0 0
        %571 = vmatmul.mubr.bf16.gmra.mrb[0].mxu0 %v437
        %v572 = vpop.f32.mrb[0].mxu0
        %v573 = vadd.f32 0.0, %v572
        %v574 = vpop.f32.mrb[0].mxu0
        %v575 = vpop.f32.mrb[0].mxu0
        %v576 = vadd.f32 0.0, %v575
        %v577 = vpop.f32.mrb[0].mxu0
        %578 = vmatprep.mubr.bf16.mxu0 0
        %579 = vmatmul.mubr.bf16.gmra.mrb[0].mxu0 %v440
        %v580 = vpop.f32.mrb[0].mxu0
        %v581 = vadd.f32 0.0, %v580
        %v582 = vpop.f32.mrb[0].mxu0
        %v583 = vpop.f32.mrb[0].mxu0
        %v584 = vadd.f32 0.0, %v583
        %v585 = vpop.f32.mrb[0].mxu0
        %586 = vmatprep.mubr.bf16.mxu0 0
        %587 = vmatmul.mubr.bf16.gmra.mrb[0].mxu0 %v443
        %v588 = vpop.f32.mrb[0].mxu0
        %v589 = vadd.f32 0.0, %v588
        %v590 = vpop.f32.mrb[0].mxu0
        %v591 = vpop.f32.mrb[0].mxu0
        %v592 = vadd.f32 0.0, %v591
        %v593 = vpop.f32.mrb[0].mxu0
        %594 = vmatprep.mubr.bf16.mxu0 0
        %595 = vmatmul.mubr.bf16.gmra.mrb[0].mxu0 %v446
        %v596 = vpop.f32.mrb[0].mxu0
        %v597 = vadd.f32 0.0, %v596
        %v598 = vpop.f32.mrb[0].mxu0
        %v599 = vpop.f32.mrb[0].mxu0
        %v600 = vadd.f32 0.0, %v599
        %v601 = vpop.f32.mrb[0].mxu0
        %602 = vmatprep.mubr.bf16.mxu0 0
        %603 = vmatmul.mubr.bf16.gmra.mrb[0].mxu0 %v449
        %v604 = vpop.f32.mrb[0].mxu0
        %v605 = vadd.f32 0.0, %v604
        %v606 = vpop.f32.mrb[0].mxu0
        %v607 = vpop.f32.mrb[0].mxu0
        %v608 = vadd.f32 0.0, %v607
        %v609 = vpop.f32.mrb[0].mxu0
        %610 = vmatprep.mubr.bf16.mxu0 0
        %611 = vmatmul.mubr.bf16.gmra.mrb[0].mxu0 %v452
        %v612 = vpop.f32.mrb[0].mxu0
        %v613 = vadd.f32 0.0, %v612
        %v614 = vpop.f32.mrb[0].mxu0
        %v615 = vpop.f32.mrb[0].mxu0
        %v616 = vadd.f32 0.0, %v615
        %v617 = vpop.f32.mrb[0].mxu0
        %618 = vdwg.mxu0
        %v619 = vld [vmem:[#allocation7] sm:$0x1]
        %v621 = vlaneseq
        %v622 = vshrl.u32 %v621, 7
        %v623 = vsub.s32 0, %v622
        %v624 = vrot.slane %v619, %v623
        %v626 = vmul.f32 %v493, %v624
        %v627 = vmul.f32 %v496, %v624
        %v628 = vmul.f32 %v501, %v624
        %v629 = vmul.f32 %v504, %v624
        %v630 = vmul.f32 %v509, %v624
        %v631 = vmul.f32 %v512, %v624
        %v632 = vmul.f32 %v517, %v624
        %v633 = vmul.f32 %v520, %v624
        %v634 = vmul.f32 %v525, %v624
        %v635 = vmul.f32 %v528, %v624
        %v636 = vmul.f32 %v533, %v624
        %v637 = vmul.f32 %v536, %v624
        %v638 = vmul.f32 %v541, %v624
        %v639 = vmul.f32 %v544, %v624
        %v640 = vmul.f32 %v549, %v624
        %v641 = vmul.f32 %v552, %v624
        %v642 = vmul.f32 %v557, %v624
        %v643 = vmul.f32 %v560, %v624
        %v644 = vmul.f32 %v565, %v624
        %v645 = vmul.f32 %v568, %v624
        %v646 = vmul.f32 %v573, %v624
        %v647 = vmul.f32 %v576, %v624
        %v648 = vmul.f32 %v581, %v624
        %v649 = vmul.f32 %v584, %v624
        %v650 = vmul.f32 %v589, %v624
        %v651 = vmul.f32 %v592, %v624
        %v652 = vmul.f32 %v597, %v624
        %v653 = vmul.f32 %v600, %v624
        %v654 = vmul.f32 %v605, %v624
        %v655 = vmul.f32 %v608, %v624
        %v656 = vmul.f32 %v613, %v624
        %v657 = vmul.f32 %v616, %v624
        %v658 = vld [vmem:[#allocation8] sm:$0x1]
        %v660 = vlaneseq
        %v661 = vshrl.u32 %v660, 7
        %v662 = vsub.s32 0, %v661
        %v663 = vrot.slane %v658, %v662
        %v665 = vadd.f32 %v626, %v663
        %v666 = vadd.f32 %v627, %v663
        %v667 = vadd.f32 %v628, %v663
        %v668 = vadd.f32 %v629, %v663
        %v669 = vadd.f32 %v630, %v663
        %v670 = vadd.f32 %v631, %v663
        %v671 = vadd.f32 %v632, %v663
        %v672 = vadd.f32 %v633, %v663
        %v673 = vadd.f32 %v634, %v663
        %v674 = vadd.f32 %v635, %v663
        %v675 = vadd.f32 %v636, %v663
        %v676 = vadd.f32 %v637, %v663
        %v677 = vadd.f32 %v638, %v663
        %v678 = vadd.f32 %v639, %v663
        %v679 = vadd.f32 %v640, %v663
        %v680 = vadd.f32 %v641, %v663
        %v681 = vadd.f32 %v642, %v663
        %v682 = vadd.f32 %v643, %v663
        %v683 = vadd.f32 %v644, %v663
        %v684 = vadd.f32 %v645, %v663
        %v685 = vadd.f32 %v646, %v663
        %v686 = vadd.f32 %v647, %v663
        %v687 = vadd.f32 %v648, %v663
        %v688 = vadd.f32 %v649, %v663
        %v689 = vadd.f32 %v650, %v663
        %v690 = vadd.f32 %v651, %v663
        %v691 = vadd.f32 %v652, %v663
        %v692 = vadd.f32 %v653, %v663
        %v693 = vadd.f32 %v654, %v663
        %v694 = vadd.f32 %v655, %v663
        %v695 = vadd.f32 %v656, %v663
        %v696 = vadd.f32 %v657, %v663
        %v697 = vpack.c.bf16 %v666, %v665
        %v698 = vpack.c.bf16 %v668, %v667
        %v699 = vpack.c.bf16 %v670, %v669
        %v700 = vpack.c.bf16 %v672, %v671
        %v701 = vpack.c.bf16 %v674, %v673
        %v702 = vpack.c.bf16 %v676, %v675
        %v703 = vpack.c.bf16 %v678, %v677
        %v704 = vpack.c.bf16 %v680, %v679
        %v705 = vpack.c.bf16 %v682, %v681
        %v706 = vpack.c.bf16 %v684, %v683
        %v707 = vpack.c.bf16 %v686, %v685
        %v708 = vpack.c.bf16 %v688, %v687
        %v709 = vpack.c.bf16 %v690, %v689
        %v710 = vpack.c.bf16 %v692, %v691
        %v711 = vpack.c.bf16 %v694, %v693
        %v712 = vpack.c.bf16 %v696, %v695
        %v729 = vunpack.c.l.b16 %v697
        %v730 = vunpack.c.h.b16 %v697
        %v731 = vunpack.c.l.b16 %v698
        %v732 = vunpack.c.h.b16 %v698
        %v733 = vunpack.c.l.b16 %v699
        %v734 = vunpack.c.h.b16 %v699
        %v735 = vunpack.c.l.b16 %v700
        %v736 = vunpack.c.h.b16 %v700
        %v737 = vunpack.c.l.b16 %v701
        %v738 = vunpack.c.h.b16 %v701
        %v739 = vunpack.c.l.b16 %v702
        %v740 = vunpack.c.h.b16 %v702
        %v741 = vunpack.c.l.b16 %v703
        %v742 = vunpack.c.h.b16 %v703
        %v743 = vunpack.c.l.b16 %v704
        %v744 = vunpack.c.h.b16 %v704
        %v745 = vunpack.c.l.b16 %v705
        %v746 = vunpack.c.h.b16 %v705
        %v747 = vunpack.c.l.b16 %v706
        %v748 = vunpack.c.h.b16 %v706
        %v749 = vunpack.c.l.b16 %v707
        %v750 = vunpack.c.h.b16 %v707
        %v751 = vunpack.c.l.b16 %v708
        %v752 = vunpack.c.h.b16 %v708
        %v753 = vunpack.c.l.b16 %v709
        %v754 = vunpack.c.h.b16 %v709
        %v755 = vunpack.c.l.b16 %v710
        %v756 = vunpack.c.h.b16 %v710
        %v757 = vunpack.c.l.b16 %v711
        %v758 = vunpack.c.h.b16 %v711
        %v759 = vunpack.c.l.b16 %v712
        %v760 = vunpack.c.h.b16 %v712
        %v761 = vpack.c.b16 %v729, %v729
        %v762 = vpack.c.b16 %v730, %v730
        %v763 = vpack.c.b16 %v731, %v731
        %v764 = vpack.c.b16 %v732, %v732
        %v765 = vpack.c.b16 %v733, %v733
        %v766 = vpack.c.b16 %v734, %v734
        %v767 = vpack.c.b16 %v735, %v735
        %v768 = vpack.c.b16 %v736, %v736
        %v769 = vpack.c.b16 %v737, %v737
        %v770 = vpack.c.b16 %v738, %v738
        %v771 = vpack.c.b16 %v739, %v739
        %v772 = vpack.c.b16 %v740, %v740
        %v773 = vpack.c.b16 %v741, %v741
        %v774 = vpack.c.b16 %v742, %v742
        %v775 = vpack.c.b16 %v743, %v743
        %v776 = vpack.c.b16 %v744, %v744
        %v777 = vpack.c.b16 %v745, %v745
        %v778 = vpack.c.b16 %v746, %v746
        %v779 = vpack.c.b16 %v747, %v747
        %v780 = vpack.c.b16 %v748, %v748
        %v781 = vpack.c.b16 %v749, %v749
        %v782 = vpack.c.b16 %v750, %v750
        %v783 = vpack.c.b16 %v751, %v751
        %v784 = vpack.c.b16 %v752, %v752
        %v785 = vpack.c.b16 %v753, %v753
        %v786 = vpack.c.b16 %v754, %v754
        %v787 = vpack.c.b16 %v755, %v755
        %v788 = vpack.c.b16 %v756, %v756
        %v789 = vpack.c.b16 %v757, %v757
        %v790 = vpack.c.b16 %v758, %v758
        %v791 = vpack.c.b16 %v759, %v759
        %v792 = vpack.c.b16 %v760, %v760
        %vm825 = vcmask 125952
        %826 = vst.msk [vmem:[%s288] sm:$0xf] %vm825, %v761
        %827 = vst.msk [vmem:[%s288 + $0x4] sm:$0xf] %vm825, %v762
        %828 = vst.msk [vmem:[%s288 + $0x8] sm:$0xf] %vm825, %v763
        %829 = vst.msk [vmem:[%s288 + $0xc] sm:$0xf] %vm825, %v764
        %830 = vst.msk [vmem:[%s288 + $0x10] sm:$0xf] %vm825, %v765
        %831 = vst.msk [vmem:[%s288 + $0x14] sm:$0xf] %vm825, %v766
        %832 = vst.msk [vmem:[%s288 + $0x18] sm:$0xf] %vm825, %v767
        %833 = vst.msk [vmem:[%s288 + $0x1c] sm:$0xf] %vm825, %v768
        %834 = vst.msk [vmem:[%s288 + $0x20] sm:$0xf] %vm825, %v769
        %835 = vst.msk [vmem:[%s288 + $0x24] sm:$0xf] %vm825, %v770
        %836 = vst.msk [vmem:[%s288 + $0x28] sm:$0xf] %vm825, %v771
        %837 = vst.msk [vmem:[%s288 + $0x2c] sm:$0xf] %vm825, %v772
        %838 = vst.msk [vmem:[%s288 + $0x30] sm:$0xf] %vm825, %v773
        %839 = vst.msk [vmem:[%s288 + $0x34] sm:$0xf] %vm825, %v774
        %840 = vst.msk [vmem:[%s288 + $0x38] sm:$0xf] %vm825, %v775
        %841 = vst.msk [vmem:[%s288 + $0x3c] sm:$0xf] %vm825, %v776
        %842 = vst.msk [vmem:[%s288 + $0x40] sm:$0xf] %vm825, %v777
        %843 = vst.msk [vmem:[%s288 + $0x44] sm:$0xf] %vm825, %v778
        %844 = vst.msk [vmem:[%s288 + $0x48] sm:$0xf] %vm825, %v779
        %845 = vst.msk [vmem:[%s288 + $0x4c] sm:$0xf] %vm825, %v780
        %846 = vst.msk [vmem:[%s288 + $0x50] sm:$0xf] %vm825, %v781
        %847 = vst.msk [vmem:[%s288 + $0x54] sm:$0xf] %vm825, %v782
        %848 = vst.msk [vmem:[%s288 + $0x58] sm:$0xf] %vm825, %v783
        %849 = vst.msk [vmem:[%s288 + $0x5c] sm:$0xf] %vm825, %v784
        %850 = vst.msk [vmem:[%s288 + $0x60] sm:$0xf] %vm825, %v785
        %851 = vst.msk [vmem:[%s288 + $0x64] sm:$0xf] %vm825, %v786
        %852 = vst.msk [vmem:[%s288 + $0x68] sm:$0xf] %vm825, %v787
        %853 = vst.msk [vmem:[%s288 + $0x6c] sm:$0xf] %vm825, %v788
        %854 = vst.msk [vmem:[%s288 + $0x70] sm:$0xf] %vm825, %v789
        %855 = vst.msk [vmem:[%s288 + $0x74] sm:$0xf] %vm825, %v790
        %856 = vst.msk [vmem:[%s288 + $0x78] sm:$0xf] %vm825, %v791
        %857 = vst.msk [vmem:[%s288 + $0x7c] sm:$0xf] %vm825, %v792
        %s858 = sand.u32 %s149, 1
        %s859 = scalar_lea.sflag [#allocation4], %s858
        %s860 = sand.u32 %s149, 1
        %s861 = smul.addr %s860, 128
        %s862 = scalar_lea.vmem [#allocation10], %s861
        // Predicated region
        $region53: #{_bottleneck_forward_impl.6} parent=35 // pred_check
          %p863 = pneg %p159
        $region54: #{_bottleneck_forward_impl.6} parent=35 // pred_check_branch
          %865 = sbr.rel (%p863) target = $region56
        $region55: #{_bottleneck_forward_impl.6} parent=35 // pred_region
          %s866 = smul.u32 32, %s27
          %s868 = ssub.s32 2048, 2048
          %869 = vsyncadd %s859, %s868
          %s870 = sadd.s32 %s28, %s866
          %s871 = smul.addr %s870, 64
          %s872 = scalar_lea.hbm %s4, %s871
          %s873 = sshll.u32 %s862, 4
          %s874 = int_to_ptr.vmem [resolvable:$true] %s873
          %879 = dma.vmem_to_hbm [thread:$0]  %s874, 2048, %s872, %s859, 64, 64, 4
        $region56: #{_bottleneck_forward_impl.6} parent=35 // pred_fallthru
          _
      $region36: #{_bottleneck_forward_impl.6} parent=5 // pred_fallthru
        _
      %p880 = scmp.le.s32.totalorder 2, %s18
      // Predicated region
      $region57: #{_bottleneck_forward_impl.6} parent=5 // pred_check
        %p881 = pneg %p880
      $region58: #{_bottleneck_forward_impl.6} parent=5 // pred_check_branch
        %883 = sbr.rel (%p881) target = $region60
      $region59: #{_bottleneck_forward_impl.6} parent=5 // pred_region
        %s884 = ssub.s32 %s18, 2
        // Predicated region
        $region61: #{_bottleneck_forward_impl.6} parent=59 // pred_check
          %p885 = pneg %p165
        $region62: #{_bottleneck_forward_impl.6} parent=59 // pred_check_branch
          %887 = sbr.rel (%p885) target = $region64
        $region63: #{_bottleneck_forward_impl.6} parent=59 // pred_region
          %s888 = sand.u32 %s150, 1
          %s889 = scalar_lea.sflag [#allocation4], %s888
          %s890 = sand.u32 %s150, 1
          %s891 = smul.addr %s890, 128
          %s892 = scalar_lea.vmem [#allocation10], %s891
          %893 = dma.done %s889, 2048
        $region64: #{_bottleneck_forward_impl.6} parent=59 // pred_fallthru
          _
      $region60: #{_bottleneck_forward_impl.6} parent=5 // pred_fallthru
        _
    $region6: #{_bottleneck_forward_impl.6} parent=1 // loop_footer
      %s22 = sadd.s32 1, %s18
    $region7: #{_bottleneck_forward_impl.6} parent=1 // loop_footer_branch
      %17 = sbr.rel target = $region3
    $region8: #{_bottleneck_forward_impl.6} parent=1 // loop_exit
      _
    %894 = vsyncpa [#allocation3], 1
    %s895 = scalar_lea.sflag [#allocation3], 1
    %896 = vsyncpa %s895, 1
    %897 = vsyncpa [#allocation6], 1
    %898 = vsyncpa [#allocation9], 1
    %899 = vsyncpa [#allocation4], 1
    %s900 = scalar_lea.sflag [#allocation4], 1
    %901 = vsyncpa %s900, 1

// kernel: _bottleneck_forward_impl.7
$region0: #{_bottleneck_forward_impl.7}
  #allocation0 [shape = 'u32[]', space=smem, size = 0x4, offset = 0x4, fixed_abs, tag = 'smem constant byte address 0x4 - core index']
  #allocation1 [shape = 'u32[144,128]{1,0:T(1,128)}', space=vmem, size = 0x12000, scoped, tag = 'internal scratch']
  %s0 = inlined_call_operand.hbm [shape: bf16[512,4], index: 0, kind: input, shape index: {}]
  %s1 = inlined_call_operand.hbm [shape: bf16[4,16], index: 1, kind: input, shape index: {}]
  %s2 = inlined_call_operand.hbm [shape: f32[1,16], index: 2, kind: input, shape index: {}]
  %s3 = inlined_call_operand.hbm [shape: f32[1,16], index: 3, kind: input, shape index: {}]
  %s4 = inlined_call_operand.hbm [shape: bf16[512,16], index: 4, kind: input, shape index: {}]
  %s5 = inlined_call_operand.hbm [shape: f32[512,16], index: 5, kind: output, shape index: {}]
  %s6 = sld [smem:[#allocation0]]
  $region73: #{_bottleneck_forward_impl.7} parent=0
    _
  %s8 = ssub.s32 1, %s6
  %s9 = scalar_select 0, %s8, %s6
  $region1: #{_bottleneck_forward_impl.7} parent=0
    #allocation2 [shape = 'u8[131072]{0}', space=vmem, size = 0x20000, scoped, tag = 'input window, operand 0']
    #allocation3 [shape = 's32[2]{0}', space=sflag, size = 0x8, scoped, tag = 'scoped memory for _bottleneck_forward_impl.7']
    #allocation4 [shape = 's32[2]{0}', space=sflag, size = 0x8, scoped, tag = 'scoped memory for _bottleneck_forward_impl.7']
    #allocation5 [shape = 'u8[1024]{0}', space=vmem, size = 0x400, scoped, tag = 'input window, operand 1, single buffered']
    #allocation6 [shape = 's32[1]{0}', space=sflag, size = 0x4, scoped, tag = 'scoped memory for _bottleneck_forward_impl.7']
    #allocation7 [shape = 'u8[512]{0}', space=vmem, size = 0x400, scoped, tag = 'input window, operand 2, single buffered']
    #allocation8 [shape = 'u8[512]{0}', space=vmem, size = 0x400, scoped, tag = 'input window, operand 3, single buffered']
    #allocation9 [shape = 's32[1]{0}', space=sflag, size = 0x4, scoped, tag = 'scoped memory for _bottleneck_forward_impl.7']
    #allocation10 [shape = 'u8[131072]{0}', space=vmem, size = 0x20000, scoped, tag = 'input window, operand 4']
    #allocation11 [shape = 'u8[262144]{0}', space=vmem, size = 0x40000, scoped, tag = 'output window, operand 0']
    %10 = vsyncpa [#allocation3], 0
    %s11 = scalar_lea.sflag [#allocation3], 1
    %12 = vsyncpa %s11, 0
    %13 = vsyncpa [#allocation6], 0
    %14 = vsyncpa [#allocation9], 0
    %15 = vsyncpa [#allocation4], 0
    %s16 = scalar_lea.sflag [#allocation4], 1
    %17 = vsyncpa %s16, 0
    loop: start=0, step=1, limit=4
    $region2: #{_bottleneck_forward_impl.7} parent=1 // loop_pre_header
      _
    $region3: #{_bottleneck_forward_impl.7} parent=1 // loop_header
      %s19 = sphi 0, %s23
      %p20 = scmp.ge.s32.totalorder %s19, 4
      %s26 = sphi 0, %s38
      %s27 = sphi 0, %s34
      %s28 = sphi 0, %s26
      %s29 = sphi 0, %s27
      %s30 = sphi 0, %s28
      %s31 = sphi 0, %s29
      %s41 = sphi 0, %s43
      %s44 = sphi 0, %s41
      %s45 = sphi 0, %s44
      %s61 = sphi 0, %s45
      %s67 = sphi 0, %s69
      %s70 = sphi 0, %s67
      %s71 = sphi 0, %s70
      %s87 = sphi 0, %s71
      %s93 = sphi 0, %s95
      %s96 = sphi 0, %s93
      %s97 = sphi 0, %s96
      %s113 = sphi 0, %s97
      %s119 = sphi 0, %s121
      %s122 = sphi 0, %s119
      %s123 = sphi 0, %s122
      %s139 = sphi 0, %s123
      %s147 = sphi 0, %s149
      %s150 = sphi 0, %s147
      %s151 = sphi 0, %s150
      %s167 = sphi 0, %s151
      %s175 = sphi 0, %s177
      %s178 = sphi 0, %s175
      %s179 = sphi 0, %s178
      %s195 = sphi 0, %s179
    $region4: #{_bottleneck_forward_impl.7} parent=1 // loop_header_branch
      %22 = sbr.rel (%p20) target = $region8
    $region5: #{_bottleneck_forward_impl.7} parent=1 // loop_body
      %s24 = ssub.s32 %s19, 1
      %s25 = ssub.s32 %s19, 2
      %s32 = sadd.s32 1, %s27
      %p33 = scmp.ge.s32.totalorder %s32, 1
      %s34 = scalar_select %p33, 0, %s32
      %s35 = sadd.s32 1, %s26
      %s36 = scalar_select %p33, %s35, %s26
      %p37 = scmp.ge.s32.totalorder %s36, 2
      %s38 = scalar_select %p37, 0, %s36
      %s39 = ssub.s32 %s26, %s38
      %p40 = scmp.eq.s32.totalorder %s39, 0
      %s42 = sadd.s32 %s41, 1
      %s43 = scalar_select %p40, %s41, %s42
      %p46 = pneg %p40
      %p47 = scmp.eq.s32.totalorder %s19, 1
      %p48 = por %p46, %p47
      %p49 = scmp.ne.s32.totalorder %s41, %s44
      %p50 = scmp.eq.s32.totalorder %s19, 0
      %p51 = por %p49, %p50
      %p52 = scmp.ne.s32.totalorder %s41, %s44
      %p53 = scmp.eq.s32.totalorder %s24, 1
      %p54 = por %p52, %p53
      %p55 = scmp.ne.s32.totalorder %s44, %s45
      %p56 = scmp.eq.s32.totalorder %s24, 0
      %p57 = por %p55, %p56
      %p58 = scmp.ne.s32.totalorder %s44, %s45
      %p59 = scmp.eq.s32.totalorder %s25, 1
      %p60 = por %p58, %p59
      %p62 = scmp.ne.s32.totalorder %s45, %s61
      %p63 = scmp.eq.s32.totalorder %s25, 0
      %p64 = por %p62, %p63
      %s65 = ssub.s32 %s27, %s34
      %p66 = scmp.eq.s32.totalorder %s65, 0
      %s68 = sadd.s32 %s67, 1
      %s69 = scalar_select %p66, %s67, %s68
      %p72 = pneg %p66
      %p73 = scmp.eq.s32.totalorder %s19, 1
      %p74 = por %p72, %p73
      %p75 = scmp.ne.s32.totalorder %s67, %s70
      %p76 = scmp.eq.s32.totalorder %s19, 0
      %p77 = por %p75, %p76
      %p78 = scmp.ne.s32.totalorder %s67, %s70
      %p79 = scmp.eq.s32.totalorder %s24, 1
      %p80 = por %p78, %p79
      %p81 = scmp.ne.s32.totalorder %s70, %s71
      %p82 = scmp.eq.s32.totalorder %s24, 0
      %p83 = por %p81, %p82
      %p84 = scmp.ne.s32.totalorder %s70, %s71
      %p85 = scmp.eq.s32.totalorder %s25, 1
      %p86 = por %p84, %p85
      %p88 = scmp.ne.s32.totalorder %s71, %s87
      %p89 = scmp.eq.s32.totalorder %s25, 0
      %p90 = por %p88, %p89
      %s91 = ssub.s32 %s27, %s34
      %p92 = scmp.eq.s32.totalorder %s91, 0
      %s94 = sadd.s32 %s93, 1
      %s95 = scalar_select %p92, %s93, %s94
      %p98 = pneg %p92
      %p99 = scmp.eq.s32.totalorder %s19, 1
      %p100 = por %p98, %p99
      %p101 = scmp.ne.s32.totalorder %s93, %s96
      %p102 = scmp.eq.s32.totalorder %s19, 0
      %p103 = por %p101, %p102
      %p104 = scmp.ne.s32.totalorder %s93, %s96
      %p105 = scmp.eq.s32.totalorder %s24, 1
      %p106 = por %p104, %p105
      %p107 = scmp.ne.s32.totalorder %s96, %s97
      %p108 = scmp.eq.s32.totalorder %s24, 0
      %p109 = por %p107, %p108
      %p110 = scmp.ne.s32.totalorder %s96, %s97
      %p111 = scmp.eq.s32.totalorder %s25, 1
      %p112 = por %p110, %p111
      %p114 = scmp.ne.s32.totalorder %s97, %s113
      %p115 = scmp.eq.s32.totalorder %s25, 0
      %p116 = por %p114, %p115
      %s117 = ssub.s32 %s27, %s34
      %p118 = scmp.eq.s32.totalorder %s117, 0
      %s120 = sadd.s32 %s119, 1
      %s121 = scalar_select %p118, %s119, %s120
      %p124 = pneg %p118
      %p125 = scmp.eq.s32.totalorder %s19, 1
      %p126 = por %p124, %p125
      %p127 = scmp.ne.s32.totalorder %s119, %s122
      %p128 = scmp.eq.s32.totalorder %s19, 0
      %p129 = por %p127, %p128
      %p130 = scmp.ne.s32.totalorder %s119, %s122
      %p131 = scmp.eq.s32.totalorder %s24, 1
      %p132 = por %p130, %p131
      %p133 = scmp.ne.s32.totalorder %s122, %s123
      %p134 = scmp.eq.s32.totalorder %s24, 0
      %p135 = por %p133, %p134
      %p136 = scmp.ne.s32.totalorder %s122, %s123
      %p137 = scmp.eq.s32.totalorder %s25, 1
      %p138 = por %p136, %p137
      %p140 = scmp.ne.s32.totalorder %s123, %s139
      %p141 = scmp.eq.s32.totalorder %s25, 0
      %p142 = por %p140, %p141
      %s143 = ssub.s32 %s26, %s38
      %s144 = ssub.s32 %s27, %s34
      %s145 = sor.u32 %s143, %s144
      %p146 = scmp.eq.s32.totalorder %s145, 0
      %s148 = sadd.s32 %s147, 1
      %s149 = scalar_select %p146, %s147, %s148
      %p152 = pneg %p146
      %p153 = scmp.eq.s32.totalorder %s19, 1
      %p154 = por %p152, %p153
      %p155 = scmp.ne.s32.totalorder %s147, %s150
      %p156 = scmp.eq.s32.totalorder %s19, 0
      %p157 = por %p155, %p156
      %p158 = scmp.ne.s32.totalorder %s147, %s150
      %p159 = scmp.eq.s32.totalorder %s24, 1
      %p160 = por %p158, %p159
      %p161 = scmp.ne.s32.totalorder %s150, %s151
      %p162 = scmp.eq.s32.totalorder %s24, 0
      %p163 = por %p161, %p162
      %p164 = scmp.ne.s32.totalorder %s150, %s151
      %p165 = scmp.eq.s32.totalorder %s25, 1
      %p166 = por %p164, %p165
      %p168 = scmp.ne.s32.totalorder %s151, %s167
      %p169 = scmp.eq.s32.totalorder %s25, 0
      %p170 = por %p168, %p169
      %s171 = ssub.s32 %s26, %s38
      %s172 = ssub.s32 %s27, %s34
      %s173 = sor.u32 %s171, %s172
      %p174 = scmp.eq.s32.totalorder %s173, 0
      %s176 = sadd.s32 %s175, 1
      %s177 = scalar_select %p174, %s175, %s176
      %p180 = pneg %p174
      %p181 = scmp.eq.s32.totalorder %s19, 1
      %p182 = por %p180, %p181
      %p183 = scmp.ne.s32.totalorder %s175, %s178
      %p184 = scmp.eq.s32.totalorder %s19, 0
      %p185 = por %p183, %p184
      %p186 = scmp.ne.s32.totalorder %s175, %s178
      %p187 = scmp.eq.s32.totalorder %s24, 1
      %p188 = por %p186, %p187
      %p189 = scmp.ne.s32.totalorder %s178, %s179
      %p190 = scmp.eq.s32.totalorder %s24, 0
      %p191 = por %p189, %p190
      %p192 = scmp.ne.s32.totalorder %s178, %s179
      %p193 = scmp.eq.s32.totalorder %s25, 1
      %p194 = por %p192, %p193
      %p196 = scmp.ne.s32.totalorder %s179, %s195
      %p197 = scmp.eq.s32.totalorder %s25, 0
      %p198 = por %p196, %p197
      %p199 = scmp.le.s32.totalorder 1, %s19
      %p200 = scmp.lt.s32.totalorder %s19, 3
      %p201 = pnand %p199, %p200
      %p202 = pneg %p201
      // Predicated region
      $region9: #{_bottleneck_forward_impl.7} parent=5 // pred_check
        _
      $region10: #{_bottleneck_forward_impl.7} parent=5 // pred_check_branch
        %204 = sbr.rel (%p201) target = $region12
      $region11: #{_bottleneck_forward_impl.7} parent=5 // pred_region
        %s205 = ssub.s32 %s19, 1
        // Predicated region
        $region13: #{_bottleneck_forward_impl.7} parent=11 // pred_check
          %p206 = pneg %p83
        $region14: #{_bottleneck_forward_impl.7} parent=11 // pred_check_branch
          %208 = sbr.rel (%p206) target = $region16
        $region15: #{_bottleneck_forward_impl.7} parent=11 // pred_region
          %s210 = ssub.s32 32, 32
          %211 = vsyncadd [#allocation6], %s210
          %s212 = smul.addr %s29, 32
          %s213 = scalar_lea.hbm %s1, %s212
          %s215 = sshll.u32 [#allocation5], 4
          %s216 = int_to_ptr.vmem [resolvable:$true] %s215
          %218 = dma.hbm_to_vmem [thread:$0]  %s213, 32, %s216, [#allocation6]
        $region16: #{_bottleneck_forward_impl.7} parent=11 // pred_fallthru
          _
        // Predicated region
        $region17: #{_bottleneck_forward_impl.7} parent=11 // pred_check
          %p219 = pneg %p109
        $region18: #{_bottleneck_forward_impl.7} parent=11 // pred_check_branch
          %221 = sbr.rel (%p219) target = $region20
        $region19: #{_bottleneck_forward_impl.7} parent=11 // pred_region
          %s223 = ssub.s32 16, 16
          %224 = vsyncadd [#allocation6], %s223
          %s225 = smul.addr %s29, 16
          %s226 = scalar_lea.hbm %s2, %s225
          %s228 = sshll.u32 [#allocation7], 4
          %s229 = int_to_ptr.vmem [resolvable:$true] %s228
          %231 = dma.hbm_to_vmem [thread:$0]  %s226, 16, %s229, [#allocation6]
        $region20: #{_bottleneck_forward_impl.7} parent=11 // pred_fallthru
          _
        // Predicated region
        $region21: #{_bottleneck_forward_impl.7} parent=11 // pred_check
          %p232 = pneg %p135
        $region22: #{_bottleneck_forward_impl.7} parent=11 // pred_check_branch
          %234 = sbr.rel (%p232) target = $region24
        $region23: #{_bottleneck_forward_impl.7} parent=11 // pred_region
          %s236 = ssub.s32 16, 16
          %237 = vsyncadd [#allocation9], %s236
          %s238 = smul.addr %s29, 16
          %s239 = scalar_lea.hbm %s3, %s238
          %s241 = sshll.u32 [#allocation8], 4
          %s242 = int_to_ptr.vmem [resolvable:$true] %s241
          %244 = dma.hbm_to_vmem [thread:$0]  %s239, 16, %s242, [#allocation9]
        $region24: #{_bottleneck_forward_impl.7} parent=11 // pred_fallthru
          _
      $region12: #{_bottleneck_forward_impl.7} parent=5 // pred_fallthru
        _
      %p245 = scmp.lt.s32.totalorder %s19, 2
      // Predicated region
      $region25: #{_bottleneck_forward_impl.7} parent=5 // pred_check
        %p246 = pneg %p245
      $region26: #{_bottleneck_forward_impl.7} parent=5 // pred_check_branch
        %248 = sbr.rel (%p246) target = $region28
      $region27: #{_bottleneck_forward_impl.7} parent=5 // pred_region
        // Predicated region
        $region29: #{_bottleneck_forward_impl.7} parent=27 // pred_check
          %p249 = pneg %p51
        $region30: #{_bottleneck_forward_impl.7} parent=27 // pred_check_branch
          %251 = sbr.rel (%p249) target = $region32
        $region31: #{_bottleneck_forward_impl.7} parent=27 // pred_region
          %s252 = sand.u32 %s19, 1
          %s253 = scalar_lea.sflag [#allocation3], %s252
          %s254 = sand.u32 %s41, 1
          %s255 = smul.addr %s254, 128
          %s256 = scalar_lea.vmem [#allocation2], %s255
          %s257 = smul.u32 32, %s26
          %s259 = ssub.s32 2048, 2048
          %260 = vsyncadd %s253, %s259
          %s261 = smul.addr %s257, 64
          %s262 = scalar_lea.hbm %s0, %s261
          %s263 = sshll.u32 %s256, 4
          %s264 = int_to_ptr.vmem [resolvable:$true] %s263
          %269 = dma.hbm_to_vmem [thread:$0]  %s262, 2048, %s264, %s253, 64, 64, 4
        $region32: #{_bottleneck_forward_impl.7} parent=27 // pred_fallthru
          _
        // Predicated region
        $region33: #{_bottleneck_forward_impl.7} parent=27 // pred_check
          %p270 = pneg %p157
        $region34: #{_bottleneck_forward_impl.7} parent=27 // pred_check_branch
          %272 = sbr.rel (%p270) target = $region36
        $region35: #{_bottleneck_forward_impl.7} parent=27 // pred_region
          %s273 = sand.u32 %s19, 1
          %s274 = scalar_lea.sflag [#allocation3], %s273
          %s275 = sand.u32 %s147, 1
          %s276 = smul.addr %s275, 128
          %s277 = scalar_lea.vmem [#allocation10], %s276
          %s278 = smul.u32 32, %s26
          %s280 = ssub.s32 2048, 2048
          %281 = vsyncadd %s274, %s280
          %s282 = sadd.s32 %s27, %s278
          %s283 = smul.addr %s282, 64
          %s284 = scalar_lea.hbm %s4, %s283
          %s285 = sshll.u32 %s277, 4
          %s286 = int_to_ptr.vmem [resolvable:$true] %s285
          %291 = dma.hbm_to_vmem [thread:$0]  %s284, 2048, %s286, %s274, 64, 64, 4
        $region36: #{_bottleneck_forward_impl.7} parent=27 // pred_fallthru
          _
      $region28: #{_bottleneck_forward_impl.7} parent=5 // pred_fallthru
        _
      %p292 = scmp.le.s32.totalorder 1, %s19
      %p293 = scmp.lt.s32.totalorder %s19, 3
      %p294 = pnand %p292, %p293
      %p295 = pneg %p294
      // Predicated region
      $region37: #{_bottleneck_forward_impl.7} parent=5 // pred_check
        _
      $region38: #{_bottleneck_forward_impl.7} parent=5 // pred_check_branch
        %297 = sbr.rel (%p294) target = $region40
      $region39: #{_bottleneck_forward_impl.7} parent=5 // pred_region
        %s298 = ssub.s32 %s19, 1
        %s299 = sand.u32 %s24, 1
        %s300 = scalar_lea.sflag [#allocation3], %s299
        %s301 = sand.u32 %s44, 1
        %s302 = smul.addr %s301, 128
        %s303 = scalar_lea.vmem [#allocation2], %s302
        // Predicated region
        $region41: #{_bottleneck_forward_impl.7} parent=39 // pred_check
          %p304 = pneg %p57
        $region42: #{_bottleneck_forward_impl.7} parent=39 // pred_check_branch
          %306 = sbr.rel (%p304) target = $region44
        $region43: #{_bottleneck_forward_impl.7} parent=39 // pred_region
          %307 = dma.done %s300, 2048
        $region44: #{_bottleneck_forward_impl.7} parent=39 // pred_fallthru
          _
        // Predicated region
        $region45: #{_bottleneck_forward_impl.7} parent=39 // pred_check
          %p308 = pneg %p83
        $region46: #{_bottleneck_forward_impl.7} parent=39 // pred_check_branch
          %310 = sbr.rel (%p308) target = $region48
        $region47: #{_bottleneck_forward_impl.7} parent=39 // pred_region
          %311 = dma.done [#allocation6], 32
        $region48: #{_bottleneck_forward_impl.7} parent=39 // pred_fallthru
          _
        // Predicated region
        $region49: #{_bottleneck_forward_impl.7} parent=39 // pred_check
          %p312 = pneg %p109
        $region50: #{_bottleneck_forward_impl.7} parent=39 // pred_check_branch
          %314 = sbr.rel (%p312) target = $region52
        $region51: #{_bottleneck_forward_impl.7} parent=39 // pred_region
          %315 = dma.done [#allocation6], 16
        $region52: #{_bottleneck_forward_impl.7} parent=39 // pred_fallthru
          _
        // Predicated region
        $region53: #{_bottleneck_forward_impl.7} parent=39 // pred_check
          %p316 = pneg %p135
        $region54: #{_bottleneck_forward_impl.7} parent=39 // pred_check_branch
          %318 = sbr.rel (%p316) target = $region56
        $region55: #{_bottleneck_forward_impl.7} parent=39 // pred_region
          %319 = dma.done [#allocation9], 16
        $region56: #{_bottleneck_forward_impl.7} parent=39 // pred_fallthru
          _
        %s320 = sand.u32 %s24, 1
        %s321 = scalar_lea.sflag [#allocation3], %s320
        %s322 = sand.u32 %s150, 1
        %s323 = smul.addr %s322, 128
        %s324 = scalar_lea.vmem [#allocation10], %s323
        // Predicated region
        $region57: #{_bottleneck_forward_impl.7} parent=39 // pred_check
          %p325 = pneg %p163
        $region58: #{_bottleneck_forward_impl.7} parent=39 // pred_check_branch
          %327 = sbr.rel (%p325) target = $region60
        $region59: #{_bottleneck_forward_impl.7} parent=39 // pred_region
          %328 = dma.done %s321, 2048
        $region60: #{_bottleneck_forward_impl.7} parent=39 // pred_fallthru
          _
        %s329 = sand.u32 %s24, 1
        %s330 = scalar_lea.sflag [#allocation3], %s329
        %s331 = sand.u32 %s44, 1
        %s332 = smul.addr %s331, 128
        %s333 = scalar_lea.vmem [#allocation2], %s332
        %p334 = pneg %p57
        %p335 = pneg %p54
        %p336 = pneg %p83
        %p337 = pneg %p80
        %p338 = pneg %p109
        %p339 = pneg %p106
        %p340 = pneg %p135
        %p341 = pneg %p132
        %s342 = sand.u32 %s24, 1
        %s343 = scalar_lea.sflag [#allocation3], %s342
        %s344 = sand.u32 %s150, 1
        %s345 = smul.addr %s344, 128
        %s346 = scalar_lea.vmem [#allocation10], %s345
        %p347 = pneg %p163
        %p348 = pneg %p160
        %p349 = pneg %p191
        %p350 = pneg %p188
        %s351 = sand.u32 %s178, 1
        %s352 = scalar_lea.sflag [#allocation4], %s351
        %s353 = sand.u32 %s178, 1
        %s354 = smul.addr %s353, 256
        %s355 = scalar_lea.vmem [#allocation11], %s354
        %s356 = smul.u32 32, %s28
        %s357 = smul.u32 32, %s28
        %s358 = smul.u32 32, %s28
        %v360 = vld [vmem:[%s303] sm:$0xf]
        %v361 = vld [vmem:[%s303 + $0x4] sm:$0xf]
        %v362 = vld [vmem:[%s303 + $0x8] sm:$0xf]
        %v363 = vld [vmem:[%s303 + $0xc] sm:$0xf]
        %v364 = vld [vmem:[%s303 + $0x10] sm:$0xf]
        %v365 = vld [vmem:[%s303 + $0x14] sm:$0xf]
        %v366 = vld [vmem:[%s303 + $0x18] sm:$0xf]
        %v367 = vld [vmem:[%s303 + $0x1c] sm:$0xf]
        %v368 = vld [vmem:[%s303 + $0x20] sm:$0xf]
        %v369 = vld [vmem:[%s303 + $0x24] sm:$0xf]
        %v370 = vld [vmem:[%s303 + $0x28] sm:$0xf]
        %v371 = vld [vmem:[%s303 + $0x2c] sm:$0xf]
        %v372 = vld [vmem:[%s303 + $0x30] sm:$0xf]
        %v373 = vld [vmem:[%s303 + $0x34] sm:$0xf]
        %v374 = vld [vmem:[%s303 + $0x38] sm:$0xf]
        %v375 = vld [vmem:[%s303 + $0x3c] sm:$0xf]
        %v376 = vld [vmem:[%s303 + $0x40] sm:$0xf]
        %v377 = vld [vmem:[%s303 + $0x44] sm:$0xf]
        %v378 = vld [vmem:[%s303 + $0x48] sm:$0xf]
        %v379 = vld [vmem:[%s303 + $0x4c] sm:$0xf]
        %v380 = vld [vmem:[%s303 + $0x50] sm:$0xf]
        %v381 = vld [vmem:[%s303 + $0x54] sm:$0xf]
        %v382 = vld [vmem:[%s303 + $0x58] sm:$0xf]
        %v383 = vld [vmem:[%s303 + $0x5c] sm:$0xf]
        %v384 = vld [vmem:[%s303 + $0x60] sm:$0xf]
        %v385 = vld [vmem:[%s303 + $0x64] sm:$0xf]
        %v386 = vld [vmem:[%s303 + $0x68] sm:$0xf]
        %v387 = vld [vmem:[%s303 + $0x6c] sm:$0xf]
        %v388 = vld [vmem:[%s303 + $0x70] sm:$0xf]
        %v389 = vld [vmem:[%s303 + $0x74] sm:$0xf]
        %v390 = vld [vmem:[%s303 + $0x78] sm:$0xf]
        %v391 = vld [vmem:[%s303 + $0x7c] sm:$0xf]
        %v392 = vld [vmem:[#allocation5] sm:$0x3]
        %v425 = vunpack.c.l.b16 %v360
        %v426 = vunpack.c.l.b16 %v361
        %v427 = vunpack.c.l.b16 %v362
        %v428 = vunpack.c.l.b16 %v363
        %v429 = vunpack.c.l.b16 %v364
        %v430 = vunpack.c.l.b16 %v365
        %v431 = vunpack.c.l.b16 %v366
        %v432 = vunpack.c.l.b16 %v367
        %v433 = vunpack.c.l.b16 %v368
        %v434 = vunpack.c.l.b16 %v369
        %v435 = vunpack.c.l.b16 %v370
        %v436 = vunpack.c.l.b16 %v371
        %v437 = vunpack.c.l.b16 %v372
        %v438 = vunpack.c.l.b16 %v373
        %v439 = vunpack.c.l.b16 %v374
        %v440 = vunpack.c.l.b16 %v375
        %v441 = vunpack.c.l.b16 %v376
        %v442 = vunpack.c.l.b16 %v377
        %v443 = vunpack.c.l.b16 %v378
        %v444 = vunpack.c.l.b16 %v379
        %v445 = vunpack.c.l.b16 %v380
        %v446 = vunpack.c.l.b16 %v381
        %v447 = vunpack.c.l.b16 %v382
        %v448 = vunpack.c.l.b16 %v383
        %v449 = vunpack.c.l.b16 %v384
        %v450 = vunpack.c.l.b16 %v385
        %v451 = vunpack.c.l.b16 %v386
        %v452 = vunpack.c.l.b16 %v387
        %v453 = vunpack.c.l.b16 %v388
        %v454 = vunpack.c.l.b16 %v389
        %v455 = vunpack.c.l.b16 %v390
        %v456 = vunpack.c.l.b16 %v391
        %v457 = vpack.c.b16 %v426, %v425
        %v458 = vpack.c.b16 %v428, %v427
        %v459 = vpack.c.b16 %v430, %v429
        %v460 = vpack.c.b16 %v432, %v431
        %v461 = vpack.c.b16 %v434, %v433
        %v462 = vpack.c.b16 %v436, %v435
        %v463 = vpack.c.b16 %v438, %v437
        %v464 = vpack.c.b16 %v440, %v439
        %v465 = vpack.c.b16 %v442, %v441
        %v466 = vpack.c.b16 %v444, %v443
        %v467 = vpack.c.b16 %v446, %v445
        %v468 = vpack.c.b16 %v448, %v447
        %v469 = vpack.c.b16 %v450, %v449
        %v470 = vpack.c.b16 %v452, %v451
        %v471 = vpack.c.b16 %v454, %v453
        %v472 = vpack.c.b16 %v456, %v455
        %vm473 = vcmask 31744
        %v475 = vsel %vm473, %v457, 0
        %v478 = vsel %vm473, %v458, 0
        %v481 = vsel %vm473, %v459, 0
        %v484 = vsel %vm473, %v460, 0
        %v487 = vsel %vm473, %v461, 0
        %v490 = vsel %vm473, %v462, 0
        %v493 = vsel %vm473, %v463, 0
        %v496 = vsel %vm473, %v464, 0
        %v499 = vsel %vm473, %v465, 0
        %v502 = vsel %vm473, %v466, 0
        %v505 = vsel %vm473, %v467, 0
        %v508 = vsel %vm473, %v468, 0
        %v511 = vsel %vm473, %v469, 0
        %v514 = vsel %vm473, %v470, 0
        %v517 = vsel %vm473, %v471, 0
        %v520 = vsel %vm473, %v472, 0
        %vm522 = vcmask 1041408
        %v524 = vsel %vm522, %v392, 0
        %526 = vmatprep.subr.bf16.mxu0 0
        %527 = vmatpush1.bf16.msra.mxu0 %v524
        %528 = vmatprep.subr.bf16.mxu0 0
        %529 = vmatpush1.bf16.msra.mxu0 0
        %530 = vmatprep.subr.bf16.mxu0 0
        %531 = vmatpush1.bf16.msra.mxu0 0
        %532 = vmatprep.subr.bf16.mxu0 0
        %533 = vmatpush1.bf16.msra.mxu0 0
        %534 = vmatprep.subr.bf16.mxu0 0
        %535 = vmatpush1.bf16.msra.mxu0 0
        %536 = vmatprep.subr.bf16.mxu0 0
        %537 = vmatpush1.bf16.msra.mxu0 0
        %538 = vmatprep.subr.bf16.mxu0 0
        %539 = vmatpush1.bf16.msra.mxu0 0
        %540 = vmatprep.subr.bf16.mxu0 0
        %541 = vmatpush1.bf16.msra.mxu0 0
        %542 = vmatprep.subr.bf16.mxu0 0
        %543 = vmatpush1.bf16.msra.mxu0 0
        %544 = vmatprep.subr.bf16.mxu0 0
        %545 = vmatpush1.bf16.msra.mxu0 0
        %546 = vmatprep.subr.bf16.mxu0 0
        %547 = vmatpush1.bf16.msra.mxu0 0
        %548 = vmatprep.subr.bf16.mxu0 0
        %549 = vmatpush1.bf16.msra.mxu0 0
        %550 = vmatprep.subr.bf16.mxu0 0
        %551 = vmatpush1.bf16.msra.mxu0 0
        %552 = vmatprep.subr.bf16.mxu0 0
        %553 = vmatpush1.bf16.msra.mxu0 0
        %554 = vmatprep.subr.bf16.mxu0 0
        %555 = vmatpush1.bf16.msra.mxu0 0
        %556 = vmatprep.subr.bf16.mxu0 0
        %557 = vmatpush1.bf16.msra.mxu0 0
        %558 = vmatprep.mubr.bf16.mxu0 0
        %559 = vmatmul.mubr.bf16.gmra.mrb[0].mxu0 %v475
        %v560 = vpop.f32.mrb[0].mxu0
        %v561 = vadd.f32 0.0, %v560
        %v562 = vpop.f32.mrb[0].mxu0
        %v563 = vpop.f32.mrb[0].mxu0
        %v564 = vadd.f32 0.0, %v563
        %v565 = vpop.f32.mrb[0].mxu0
        %566 = vmatprep.mubr.bf16.mxu0 0
        %567 = vmatmul.mubr.bf16.gmra.mrb[0].mxu0 %v478
        %v568 = vpop.f32.mrb[0].mxu0
        %v569 = vadd.f32 0.0, %v568
        %v570 = vpop.f32.mrb[0].mxu0
        %v571 = vpop.f32.mrb[0].mxu0
        %v572 = vadd.f32 0.0, %v571
        %v573 = vpop.f32.mrb[0].mxu0
        %574 = vmatprep.mubr.bf16.mxu0 0
        %575 = vmatmul.mubr.bf16.gmra.mrb[0].mxu0 %v481
        %v576 = vpop.f32.mrb[0].mxu0
        %v577 = vadd.f32 0.0, %v576
        %v578 = vpop.f32.mrb[0].mxu0
        %v579 = vpop.f32.mrb[0].mxu0
        %v580 = vadd.f32 0.0, %v579
        %v581 = vpop.f32.mrb[0].mxu0
        %582 = vmatprep.mubr.bf16.mxu0 0
        %583 = vmatmul.mubr.bf16.gmra.mrb[0].mxu0 %v484
        %v584 = vpop.f32.mrb[0].mxu0
        %v585 = vadd.f32 0.0, %v584
        %v586 = vpop.f32.mrb[0].mxu0
        %v587 = vpop.f32.mrb[0].mxu0
        %v588 = vadd.f32 0.0, %v587
        %v589 = vpop.f32.mrb[0].mxu0
        %590 = vmatprep.mubr.bf16.mxu0 0
        %591 = vmatmul.mubr.bf16.gmra.mrb[0].mxu0 %v487
        %v592 = vpop.f32.mrb[0].mxu0
        %v593 = vadd.f32 0.0, %v592
        %v594 = vpop.f32.mrb[0].mxu0
        %v595 = vpop.f32.mrb[0].mxu0
        %v596 = vadd.f32 0.0, %v595
        %v597 = vpop.f32.mrb[0].mxu0
        %598 = vmatprep.mubr.bf16.mxu0 0
        %599 = vmatmul.mubr.bf16.gmra.mrb[0].mxu0 %v490
        %v600 = vpop.f32.mrb[0].mxu0
        %v601 = vadd.f32 0.0, %v600
        %v602 = vpop.f32.mrb[0].mxu0
        %v603 = vpop.f32.mrb[0].mxu0
        %v604 = vadd.f32 0.0, %v603
        %v605 = vpop.f32.mrb[0].mxu0
        %606 = vmatprep.mubr.bf16.mxu0 0
        %607 = vmatmul.mubr.bf16.gmra.mrb[0].mxu0 %v493
        %v608 = vpop.f32.mrb[0].mxu0
        %v609 = vadd.f32 0.0, %v608
        %v610 = vpop.f32.mrb[0].mxu0
        %v611 = vpop.f32.mrb[0].mxu0
        %v612 = vadd.f32 0.0, %v611
        %v613 = vpop.f32.mrb[0].mxu0
        %614 = vmatprep.mubr.bf16.mxu0 0
        %615 = vmatmul.mubr.bf16.gmra.mrb[0].mxu0 %v496
        %v616 = vpop.f32.mrb[0].mxu0
        %v617 = vadd.f32 0.0, %v616
        %v618 = vpop.f32.mrb[0].mxu0
        %v619 = vpop.f32.mrb[0].mxu0
        %v620 = vadd.f32 0.0, %v619
        %v621 = vpop.f32.mrb[0].mxu0
        %622 = vmatprep.mubr.bf16.mxu0 0
        %623 = vmatmul.mubr.bf16.gmra.mrb[0].mxu0 %v499
        %v624 = vpop.f32.mrb[0].mxu0
        %v625 = vadd.f32 0.0, %v624
        %v626 = vpop.f32.mrb[0].mxu0
        %v627 = vpop.f32.mrb[0].mxu0
        %v628 = vadd.f32 0.0, %v627
        %v629 = vpop.f32.mrb[0].mxu0
        %630 = vmatprep.mubr.bf16.mxu0 0
        %631 = vmatmul.mubr.bf16.gmra.mrb[0].mxu0 %v502
        %v632 = vpop.f32.mrb[0].mxu0
        %v633 = vadd.f32 0.0, %v632
        %v634 = vpop.f32.mrb[0].mxu0
        %v635 = vpop.f32.mrb[0].mxu0
        %v636 = vadd.f32 0.0, %v635
        %v637 = vpop.f32.mrb[0].mxu0
        %638 = vmatprep.mubr.bf16.mxu0 0
        %639 = vmatmul.mubr.bf16.gmra.mrb[0].mxu0 %v505
        %v640 = vpop.f32.mrb[0].mxu0
        %v641 = vadd.f32 0.0, %v640
        %v642 = vpop.f32.mrb[0].mxu0
        %v643 = vpop.f32.mrb[0].mxu0
        %v644 = vadd.f32 0.0, %v643
        %v645 = vpop.f32.mrb[0].mxu0
        %646 = vmatprep.mubr.bf16.mxu0 0
        %647 = vmatmul.mubr.bf16.gmra.mrb[0].mxu0 %v508
        %v648 = vpop.f32.mrb[0].mxu0
        %v649 = vadd.f32 0.0, %v648
        %v650 = vpop.f32.mrb[0].mxu0
        %v651 = vpop.f32.mrb[0].mxu0
        %v652 = vadd.f32 0.0, %v651
        %v653 = vpop.f32.mrb[0].mxu0
        %654 = vmatprep.mubr.bf16.mxu0 0
        %655 = vmatmul.mubr.bf16.gmra.mrb[0].mxu0 %v511
        %v656 = vpop.f32.mrb[0].mxu0
        %v657 = vadd.f32 0.0, %v656
        %v658 = vpop.f32.mrb[0].mxu0
        %v659 = vpop.f32.mrb[0].mxu0
        %v660 = vadd.f32 0.0, %v659
        %v661 = vpop.f32.mrb[0].mxu0
        %662 = vmatprep.mubr.bf16.mxu0 0
        %663 = vmatmul.mubr.bf16.gmra.mrb[0].mxu0 %v514
        %v664 = vpop.f32.mrb[0].mxu0
        %v665 = vadd.f32 0.0, %v664
        %v666 = vpop.f32.mrb[0].mxu0
        %v667 = vpop.f32.mrb[0].mxu0
        %v668 = vadd.f32 0.0, %v667
        %v669 = vpop.f32.mrb[0].mxu0
        %670 = vmatprep.mubr.bf16.mxu0 0
        %671 = vmatmul.mubr.bf16.gmra.mrb[0].mxu0 %v517
        %v672 = vpop.f32.mrb[0].mxu0
        %v673 = vadd.f32 0.0, %v672
        %v674 = vpop.f32.mrb[0].mxu0
        %v675 = vpop.f32.mrb[0].mxu0
        %v676 = vadd.f32 0.0, %v675
        %v677 = vpop.f32.mrb[0].mxu0
        %678 = vmatprep.mubr.bf16.mxu0 0
        %679 = vmatmul.mubr.bf16.gmra.mrb[0].mxu0 %v520
        %v680 = vpop.f32.mrb[0].mxu0
        %v681 = vadd.f32 0.0, %v680
        %v682 = vpop.f32.mrb[0].mxu0
        %v683 = vpop.f32.mrb[0].mxu0
        %v684 = vadd.f32 0.0, %v683
        %v685 = vpop.f32.mrb[0].mxu0
        %686 = vdwg.mxu0
        %v687 = vld [vmem:[#allocation7] sm:$0x1]
        %v689 = vlaneseq
        %v690 = vshrl.u32 %v689, 7
        %v691 = vsub.s32 0, %v690
        %v692 = vrot.slane %v687, %v691
        %v694 = vmul.f32 %v561, %v692
        %v695 = vmul.f32 %v564, %v692
        %v696 = vmul.f32 %v569, %v692
        %v697 = vmul.f32 %v572, %v692
        %v698 = vmul.f32 %v577, %v692
        %v699 = vmul.f32 %v580, %v692
        %v700 = vmul.f32 %v585, %v692
        %v701 = vmul.f32 %v588, %v692
        %v702 = vmul.f32 %v593, %v692
        %v703 = vmul.f32 %v596, %v692
        %v704 = vmul.f32 %v601, %v692
        %v705 = vmul.f32 %v604, %v692
        %v706 = vmul.f32 %v609, %v692
        %v707 = vmul.f32 %v612, %v692
        %v708 = vmul.f32 %v617, %v692
        %v709 = vmul.f32 %v620, %v692
        %v710 = vmul.f32 %v625, %v692
        %v711 = vmul.f32 %v628, %v692
        %v712 = vmul.f32 %v633, %v692
        %v713 = vmul.f32 %v636, %v692
        %v714 = vmul.f32 %v641, %v692
        %v715 = vmul.f32 %v644, %v692
        %v716 = vmul.f32 %v649, %v692
        %v717 = vmul.f32 %v652, %v692
        %v718 = vmul.f32 %v657, %v692
        %v719 = vmul.f32 %v660, %v692
        %v720 = vmul.f32 %v665, %v692
        %v721 = vmul.f32 %v668, %v692
        %v722 = vmul.f32 %v673, %v692
        %v723 = vmul.f32 %v676, %v692
        %v724 = vmul.f32 %v681, %v692
        %v725 = vmul.f32 %v684, %v692
        %v726 = vld [vmem:[#allocation8] sm:$0x1]
        %v728 = vlaneseq
        %v729 = vshrl.u32 %v728, 7
        %v730 = vsub.s32 0, %v729
        %v731 = vrot.slane %v726, %v730
        %v733 = vadd.f32 %v694, %v731
        %v734 = vadd.f32 %v695, %v731
        %v735 = vadd.f32 %v696, %v731
        %v736 = vadd.f32 %v697, %v731
        %v737 = vadd.f32 %v698, %v731
        %v738 = vadd.f32 %v699, %v731
        %v739 = vadd.f32 %v700, %v731
        %v740 = vadd.f32 %v701, %v731
        %v741 = vadd.f32 %v702, %v731
        %v742 = vadd.f32 %v703, %v731
        %v743 = vadd.f32 %v704, %v731
        %v744 = vadd.f32 %v705, %v731
        %v745 = vadd.f32 %v706, %v731
        %v746 = vadd.f32 %v707, %v731
        %v747 = vadd.f32 %v708, %v731
        %v748 = vadd.f32 %v709, %v731
        %v749 = vadd.f32 %v710, %v731
        %v750 = vadd.f32 %v711, %v731
        %v751 = vadd.f32 %v712, %v731
        %v752 = vadd.f32 %v713, %v731
        %v753 = vadd.f32 %v714, %v731
        %v754 = vadd.f32 %v715, %v731
        %v755 = vadd.f32 %v716, %v731
        %v756 = vadd.f32 %v717, %v731
        %v757 = vadd.f32 %v718, %v731
        %v758 = vadd.f32 %v719, %v731
        %v759 = vadd.f32 %v720, %v731
        %v760 = vadd.f32 %v721, %v731
        %v761 = vadd.f32 %v722, %v731
        %v762 = vadd.f32 %v723, %v731
        %v763 = vadd.f32 %v724, %v731
        %v764 = vadd.f32 %v725, %v731
        %v765 = vld [vmem:[%s324] sm:$0xf]
        %v766 = vld [vmem:[%s324 + $0x4] sm:$0xf]
        %v767 = vld [vmem:[%s324 + $0x8] sm:$0xf]
        %v768 = vld [vmem:[%s324 + $0xc] sm:$0xf]
        %v769 = vld [vmem:[%s324 + $0x10] sm:$0xf]
        %v770 = vld [vmem:[%s324 + $0x14] sm:$0xf]
        %v771 = vld [vmem:[%s324 + $0x18] sm:$0xf]
        %v772 = vld [vmem:[%s324 + $0x1c] sm:$0xf]
        %v773 = vld [vmem:[%s324 + $0x20] sm:$0xf]
        %v774 = vld [vmem:[%s324 + $0x24] sm:$0xf]
        %v775 = vld [vmem:[%s324 + $0x28] sm:$0xf]
        %v776 = vld [vmem:[%s324 + $0x2c] sm:$0xf]
        %v777 = vld [vmem:[%s324 + $0x30] sm:$0xf]
        %v778 = vld [vmem:[%s324 + $0x34] sm:$0xf]
        %v779 = vld [vmem:[%s324 + $0x38] sm:$0xf]
        %v780 = vld [vmem:[%s324 + $0x3c] sm:$0xf]
        %v781 = vld [vmem:[%s324 + $0x40] sm:$0xf]
        %v782 = vld [vmem:[%s324 + $0x44] sm:$0xf]
        %v783 = vld [vmem:[%s324 + $0x48] sm:$0xf]
        %v784 = vld [vmem:[%s324 + $0x4c] sm:$0xf]
        %v785 = vld [vmem:[%s324 + $0x50] sm:$0xf]
        %v786 = vld [vmem:[%s324 + $0x54] sm:$0xf]
        %v787 = vld [vmem:[%s324 + $0x58] sm:$0xf]
        %v788 = vld [vmem:[%s324 + $0x5c] sm:$0xf]
        %v789 = vld [vmem:[%s324 + $0x60] sm:$0xf]
        %v790 = vld [vmem:[%s324 + $0x64] sm:$0xf]
        %v791 = vld [vmem:[%s324 + $0x68] sm:$0xf]
        %v792 = vld [vmem:[%s324 + $0x6c] sm:$0xf]
        %v793 = vld [vmem:[%s324 + $0x70] sm:$0xf]
        %v794 = vld [vmem:[%s324 + $0x74] sm:$0xf]
        %v795 = vld [vmem:[%s324 + $0x78] sm:$0xf]
        %v796 = vld [vmem:[%s324 + $0x7c] sm:$0xf]
        %v797 = vunpack.c.l.bf16 %v765
        %v798 = vunpack.c.l.bf16 %v766
        %v799 = vunpack.c.l.bf16 %v767
        %v800 = vunpack.c.l.bf16 %v768
        %v801 = vunpack.c.l.bf16 %v769
        %v802 = vunpack.c.l.bf16 %v770
        %v803 = vunpack.c.l.bf16 %v771
        %v804 = vunpack.c.l.bf16 %v772
        %v805 = vunpack.c.l.bf16 %v773
        %v806 = vunpack.c.l.bf16 %v774
        %v807 = vunpack.c.l.bf16 %v775
        %v808 = vunpack.c.l.bf16 %v776
        %v809 = vunpack.c.l.bf16 %v777
        %v810 = vunpack.c.l.bf16 %v778
        %v811 = vunpack.c.l.bf16 %v779
        %v812 = vunpack.c.l.bf16 %v780
        %v813 = vunpack.c.l.bf16 %v781
        %v814 = vunpack.c.l.bf16 %v782
        %v815 = vunpack.c.l.bf16 %v783
        %v816 = vunpack.c.l.bf16 %v784
        %v817 = vunpack.c.l.bf16 %v785
        %v818 = vunpack.c.l.bf16 %v786
        %v819 = vunpack.c.l.bf16 %v787
        %v820 = vunpack.c.l.bf16 %v788
        %v821 = vunpack.c.l.bf16 %v789
        %v822 = vunpack.c.l.bf16 %v790
        %v823 = vunpack.c.l.bf16 %v791
        %v824 = vunpack.c.l.bf16 %v792
        %v825 = vunpack.c.l.bf16 %v793
        %v826 = vunpack.c.l.bf16 %v794
        %v827 = vunpack.c.l.bf16 %v795
        %v828 = vunpack.c.l.bf16 %v796
        %v829 = vadd.f32 %v733, %v797
        %v830 = vadd.f32 %v734, %v798
        %v831 = vadd.f32 %v735, %v799
        %v832 = vadd.f32 %v736, %v800
        %v833 = vadd.f32 %v737, %v801
        %v834 = vadd.f32 %v738, %v802
        %v835 = vadd.f32 %v739, %v803
        %v836 = vadd.f32 %v740, %v804
        %v837 = vadd.f32 %v741, %v805
        %v838 = vadd.f32 %v742, %v806
        %v839 = vadd.f32 %v743, %v807
        %v840 = vadd.f32 %v744, %v808
        %v841 = vadd.f32 %v745, %v809
        %v842 = vadd.f32 %v746, %v810
        %v843 = vadd.f32 %v747, %v811
        %v844 = vadd.f32 %v748, %v812
        %v845 = vadd.f32 %v749, %v813
        %v846 = vadd.f32 %v750, %v814
        %v847 = vadd.f32 %v751, %v815
        %v848 = vadd.f32 %v752, %v816
        %v849 = vadd.f32 %v753, %v817
        %v850 = vadd.f32 %v754, %v818
        %v851 = vadd.f32 %v755, %v819
        %v852 = vadd.f32 %v756, %v820
        %v853 = vadd.f32 %v757, %v821
        %v854 = vadd.f32 %v758, %v822
        %v855 = vadd.f32 %v759, %v823
        %v856 = vadd.f32 %v760, %v824
        %v857 = vadd.f32 %v761, %v825
        %v858 = vadd.f32 %v762, %v826
        %v859 = vadd.f32 %v763, %v827
        %v860 = vadd.f32 %v764, %v828
        %v861 = vmax.f32 %v829, 0.0
        %v862 = vmax.f32 %v830, 0.0
        %v863 = vmax.f32 %v831, 0.0
        %v864 = vmax.f32 %v832, 0.0
        %v865 = vmax.f32 %v833, 0.0
        %v866 = vmax.f32 %v834, 0.0
        %v867 = vmax.f32 %v835, 0.0
        %v868 = vmax.f32 %v836, 0.0
        %v869 = vmax.f32 %v837, 0.0
        %v870 = vmax.f32 %v838, 0.0
        %v871 = vmax.f32 %v839, 0.0
        %v872 = vmax.f32 %v840, 0.0
        %v873 = vmax.f32 %v841, 0.0
        %v874 = vmax.f32 %v842, 0.0
        %v875 = vmax.f32 %v843, 0.0
        %v876 = vmax.f32 %v844, 0.0
        %v877 = vmax.f32 %v845, 0.0
        %v878 = vmax.f32 %v846, 0.0
        %v879 = vmax.f32 %v847, 0.0
        %v880 = vmax.f32 %v848, 0.0
        %v881 = vmax.f32 %v849, 0.0
        %v882 = vmax.f32 %v850, 0.0
        %v883 = vmax.f32 %v851, 0.0
        %v884 = vmax.f32 %v852, 0.0
        %v885 = vmax.f32 %v853, 0.0
        %v886 = vmax.f32 %v854, 0.0
        %v887 = vmax.f32 %v855, 0.0
        %v888 = vmax.f32 %v856, 0.0
        %v889 = vmax.f32 %v857, 0.0
        %v890 = vmax.f32 %v858, 0.0
        %v891 = vmax.f32 %v859, 0.0
        %v892 = vmax.f32 %v860, 0.0
        %vm893 = vcmask 130048
        %894 = vst.msk [vmem:[%s355] sm:$0xff] %vm893, %v861
        %895 = vst.msk [vmem:[%s355 + $0x8] sm:$0xff] %vm893, %v862
        %896 = vst.msk [vmem:[%s355 + $0x10] sm:$0xff] %vm893, %v863
        %897 = vst.msk [vmem:[%s355 + $0x18] sm:$0xff] %vm893, %v864
        %898 = vst.msk [vmem:[%s355 + $0x20] sm:$0xff] %vm893, %v865
        %899 = vst.msk [vmem:[%s355 + $0x28] sm:$0xff] %vm893, %v866
        %900 = vst.msk [vmem:[%s355 + $0x30] sm:$0xff] %vm893, %v867
        %901 = vst.msk [vmem:[%s355 + $0x38] sm:$0xff] %vm893, %v868
        %902 = vst.msk [vmem:[%s355 + $0x40] sm:$0xff] %vm893, %v869
        %903 = vst.msk [vmem:[%s355 + $0x48] sm:$0xff] %vm893, %v870
        %904 = vst.msk [vmem:[%s355 + $0x50] sm:$0xff] %vm893, %v871
        %905 = vst.msk [vmem:[%s355 + $0x58] sm:$0xff] %vm893, %v872
        %906 = vst.msk [vmem:[%s355 + $0x60] sm:$0xff] %vm893, %v873
        %907 = vst.msk [vmem:[%s355 + $0x68] sm:$0xff] %vm893, %v874
        %908 = vst.msk [vmem:[%s355 + $0x70] sm:$0xff] %vm893, %v875
        %909 = vst.msk [vmem:[%s355 + $0x78] sm:$0xff] %vm893, %v876
        %910 = vst.msk [vmem:[%s355 + $0x80] sm:$0xff] %vm893, %v877
        %911 = vst.msk [vmem:[%s355 + $0x88] sm:$0xff] %vm893, %v878
        %912 = vst.msk [vmem:[%s355 + $0x90] sm:$0xff] %vm893, %v879
        %913 = vst.msk [vmem:[%s355 + $0x98] sm:$0xff] %vm893, %v880
        %914 = vst.msk [vmem:[%s355 + $0xa0] sm:$0xff] %vm893, %v881
        %915 = vst.msk [vmem:[%s355 + $0xa8] sm:$0xff] %vm893, %v882
        %916 = vst.msk [vmem:[%s355 + $0xb0] sm:$0xff] %vm893, %v883
        %917 = vst.msk [vmem:[%s355 + $0xb8] sm:$0xff] %vm893, %v884
        %918 = vst.msk [vmem:[%s355 + $0xc0] sm:$0xff] %vm893, %v885
        %919 = vst.msk [vmem:[%s355 + $0xc8] sm:$0xff] %vm893, %v886
        %920 = vst.msk [vmem:[%s355 + $0xd0] sm:$0xff] %vm893, %v887
        %921 = vst.msk [vmem:[%s355 + $0xd8] sm:$0xff] %vm893, %v888
        %922 = vst.msk [vmem:[%s355 + $0xe0] sm:$0xff] %vm893, %v889
        %923 = vst.msk [vmem:[%s355 + $0xe8] sm:$0xff] %vm893, %v890
        %924 = vst.msk [vmem:[%s355 + $0xf0] sm:$0xff] %vm893, %v891
        %925 = vst.msk [vmem:[%s355 + $0xf8] sm:$0xff] %vm893, %v892
        %s926 = sand.u32 %s178, 1
        %s927 = scalar_lea.sflag [#allocation4], %s926
        %s928 = sand.u32 %s178, 1
        %s929 = smul.addr %s928, 256
        %s930 = scalar_lea.vmem [#allocation11], %s929
        // Predicated region
        $region61: #{_bottleneck_forward_impl.7} parent=39 // pred_check
          %p931 = pneg %p188
        $region62: #{_bottleneck_forward_impl.7} parent=39 // pred_check_branch
          %933 = sbr.rel (%p931) target = $region64
        $region63: #{_bottleneck_forward_impl.7} parent=39 // pred_region
          %s934 = smul.u32 32, %s28
          %s936 = ssub.s32 4096, 4096
          %937 = vsyncadd %s927, %s936
          %s938 = sadd.s32 %s29, %s934
          %s939 = smul.addr %s938, 128
          %s940 = scalar_lea.hbm %s5, %s939
          %s941 = sshll.u32 %s930, 4
          %s942 = int_to_ptr.vmem [resolvable:$true] %s941
          %947 = dma.vmem_to_hbm [thread:$0]  %s942, 4096, %s940, %s927, 128, 128, 8
        $region64: #{_bottleneck_forward_impl.7} parent=39 // pred_fallthru
          _
      $region40: #{_bottleneck_forward_impl.7} parent=5 // pred_fallthru
        _
      %p948 = scmp.le.s32.totalorder 2, %s19
      // Predicated region
      $region65: #{_bottleneck_forward_impl.7} parent=5 // pred_check
        %p949 = pneg %p948
      $region66: #{_bottleneck_forward_impl.7} parent=5 // pred_check_branch
        %951 = sbr.rel (%p949) target = $region68
      $region67: #{_bottleneck_forward_impl.7} parent=5 // pred_region
        %s952 = ssub.s32 %s19, 2
        // Predicated region
        $region69: #{_bottleneck_forward_impl.7} parent=67 // pred_check
          %p953 = pneg %p194
        $region70: #{_bottleneck_forward_impl.7} parent=67 // pred_check_branch
          %955 = sbr.rel (%p953) target = $region72
        $region71: #{_bottleneck_forward_impl.7} parent=67 // pred_region
          %s956 = sand.u32 %s179, 1
          %s957 = scalar_lea.sflag [#allocation4], %s956
          %s958 = sand.u32 %s179, 1
          %s959 = smul.addr %s958, 256
          %s960 = scalar_lea.vmem [#allocation11], %s959
          %961 = dma.done %s957, 4096
        $region72: #{_bottleneck_forward_impl.7} parent=67 // pred_fallthru
          _
      $region68: #{_bottleneck_forward_impl.7} parent=5 // pred_fallthru
        _
    $region6: #{_bottleneck_forward_impl.7} parent=1 // loop_footer
      %s23 = sadd.s32 1, %s19
    $region7: #{_bottleneck_forward_impl.7} parent=1 // loop_footer_branch
      %18 = sbr.rel target = $region3
    $region8: #{_bottleneck_forward_impl.7} parent=1 // loop_exit
      _
    %962 = vsyncpa [#allocation3], 1
    %s963 = scalar_lea.sflag [#allocation3], 1
    %964 = vsyncpa %s963, 1
    %965 = vsyncpa [#allocation6], 1
    %966 = vsyncpa [#allocation9], 1
    %967 = vsyncpa [#allocation4], 1
    %s968 = scalar_lea.sflag [#allocation4], 1
    %969 = vsyncpa %s968, 1

// kernel: _bottleneck_forward_impl.5
$region0: #{_bottleneck_forward_impl.5}
  #allocation0 [shape = 'u32[]', space=smem, size = 0x4, offset = 0x4, fixed_abs, tag = 'smem constant byte address 0x4 - core index']
  #allocation1 [shape = 'u32[144,128]{1,0:T(1,128)}', space=vmem, size = 0x12000, scoped, tag = 'internal scratch']
  %s0 = inlined_call_operand.hbm [shape: bf16[2,18,18,4], index: 0, kind: input, shape index: {}]
  %s1 = inlined_call_operand.hbm [shape: bf16[9,4,4], index: 1, kind: input, shape index: {}]
  %s2 = inlined_call_operand.hbm [shape: f32[1,4], index: 2, kind: input, shape index: {}]
  %s3 = inlined_call_operand.hbm [shape: f32[1,4], index: 3, kind: input, shape index: {}]
  %s4 = inlined_call_operand.hbm [shape: bf16[2,256,4], index: 4, kind: output, shape index: {}]
  %s5 = sld [smem:[#allocation0]]
  $region65: #{_bottleneck_forward_impl.5} parent=0
    _
  %s7 = ssub.s32 1, %s5
  %s8 = scalar_select 0, %s7, %s5
  $region1: #{_bottleneck_forward_impl.5} parent=0
    #allocation2 [shape = 'u8[221184]{0}', space=vmem, size = 0x36000, scoped, tag = 'input window, operand 0']
    #allocation3 [shape = 's32[2]{0}', space=sflag, size = 0x8, scoped, tag = 'scoped memory for _bottleneck_forward_impl.5']
    #allocation4 [shape = 's32[2]{0}', space=sflag, size = 0x8, scoped, tag = 'scoped memory for _bottleneck_forward_impl.5']
    #allocation5 [shape = 'u8[9216]{0}', space=vmem, size = 0x2400, scoped, tag = 'input window, operand 1, single buffered']
    #allocation6 [shape = 's32[1]{0}', space=sflag, size = 0x4, scoped, tag = 'scoped memory for _bottleneck_forward_impl.5']
    #allocation7 [shape = 'u8[512]{0}', space=vmem, size = 0x400, scoped, tag = 'input window, operand 2, single buffered']
    #allocation8 [shape = 'u8[512]{0}', space=vmem, size = 0x400, scoped, tag = 'input window, operand 3, single buffered']
    #allocation9 [shape = 's32[1]{0}', space=sflag, size = 0x4, scoped, tag = 'scoped memory for _bottleneck_forward_impl.5']
    #allocation10 [shape = 'u8[131072]{0}', space=vmem, size = 0x20000, scoped, tag = 'output window, operand 0']
    %9 = vsyncpa [#allocation3], 0
    %s10 = scalar_lea.sflag [#allocation3], 1
    %11 = vsyncpa %s10, 0
    %12 = vsyncpa [#allocation6], 0
    %13 = vsyncpa [#allocation9], 0
    %14 = vsyncpa [#allocation4], 0
    %s15 = scalar_lea.sflag [#allocation4], 1
    %16 = vsyncpa %s15, 0
    loop: start=0, step=1, limit=4
    $region2: #{_bottleneck_forward_impl.5} parent=1 // loop_pre_header
      _
    $region3: #{_bottleneck_forward_impl.5} parent=1 // loop_header
      %s18 = sphi 0, %s22
      %p19 = scmp.ge.s32.totalorder %s18, 4
      %s28 = sphi 0, %s30
      %s31 = sphi 0, %s28
      %s32 = sphi 0, %s31
      %s48 = sphi 0, %s32
      %s52 = sphi 0, %s52
      %s54 = sphi 0, %s52
      %s55 = sphi 0, %s54
      %s69 = sphi 0, %s55
      %s73 = sphi 0, %s73
      %s75 = sphi 0, %s73
      %s76 = sphi 0, %s75
      %s90 = sphi 0, %s76
      %s94 = sphi 0, %s94
      %s96 = sphi 0, %s94
      %s97 = sphi 0, %s96
      %s111 = sphi 0, %s97
      %s117 = sphi 0, %s119
      %s120 = sphi 0, %s117
      %s121 = sphi 0, %s120
      %s137 = sphi 0, %s121
    $region4: #{_bottleneck_forward_impl.5} parent=1 // loop_header_branch
      %21 = sbr.rel (%p19) target = $region8
    $region5: #{_bottleneck_forward_impl.5} parent=1 // loop_body
      %s23 = ssub.s32 %s18, 1
      %s24 = ssub.s32 %s18, 2
      %s25 = sadd.s32 %s18, 1
      %s26 = ssub.s32 %s18, %s25
      %p27 = scmp.eq.s32.totalorder %s26, 0
      %s29 = sadd.s32 %s28, 1
      %s30 = scalar_select %p27, %s28, %s29
      %p33 = pneg %p27
      %p34 = scmp.eq.s32.totalorder %s18, 1
      %p35 = por %p33, %p34
      %p36 = scmp.ne.s32.totalorder %s28, %s31
      %p37 = scmp.eq.s32.totalorder %s18, 0
      %p38 = por %p36, %p37
      %p39 = scmp.ne.s32.totalorder %s28, %s31
      %p40 = scmp.eq.s32.totalorder %s23, 1
      %p41 = por %p39, %p40
      %p42 = scmp.ne.s32.totalorder %s31, %s32
      %p43 = scmp.eq.s32.totalorder %s23, 0
      %p44 = por %p42, %p43
      %p45 = scmp.ne.s32.totalorder %s31, %s32
      %p46 = scmp.eq.s32.totalorder %s24, 1
      %p47 = por %p45, %p46
      %p49 = scmp.ne.s32.totalorder %s32, %s48
      %p50 = scmp.eq.s32.totalorder %s24, 0
      %p51 = por %p49, %p50
      %s53 = sadd.s32 %s52, 1
      %p56 = scmp.eq.s32.totalorder %s18, 1
      %p57 = scmp.ne.s32.totalorder %s52, %s54
      %p58 = scmp.eq.s32.totalorder %s18, 0
      %p59 = por %p57, %p58
      %p60 = scmp.ne.s32.totalorder %s52, %s54
      %p61 = scmp.eq.s32.totalorder %s23, 1
      %p62 = por %p60, %p61
      %p63 = scmp.ne.s32.totalorder %s54, %s55
      %p64 = scmp.eq.s32.totalorder %s23, 0
      %p65 = por %p63, %p64
      %p66 = scmp.ne.s32.totalorder %s54, %s55
      %p67 = scmp.eq.s32.totalorder %s24, 1
      %p68 = por %p66, %p67
      %p70 = scmp.ne.s32.totalorder %s55, %s69
      %p71 = scmp.eq.s32.totalorder %s24, 0
      %p72 = por %p70, %p71
      %s74 = sadd.s32 %s73, 1
      %p77 = scmp.eq.s32.totalorder %s18, 1
      %p78 = scmp.ne.s32.totalorder %s73, %s75
      %p79 = scmp.eq.s32.totalorder %s18, 0
      %p80 = por %p78, %p79
      %p81 = scmp.ne.s32.totalorder %s73, %s75
      %p82 = scmp.eq.s32.totalorder %s23, 1
      %p83 = por %p81, %p82
      %p84 = scmp.ne.s32.totalorder %s75, %s76
      %p85 = scmp.eq.s32.totalorder %s23, 0
      %p86 = por %p84, %p85
      %p87 = scmp.ne.s32.totalorder %s75, %s76
      %p88 = scmp.eq.s32.totalorder %s24, 1
      %p89 = por %p87, %p88
      %p91 = scmp.ne.s32.totalorder %s76, %s90
      %p92 = scmp.eq.s32.totalorder %s24, 0
      %p93 = por %p91, %p92
      %s95 = sadd.s32 %s94, 1
      %p98 = scmp.eq.s32.totalorder %s18, 1
      %p99 = scmp.ne.s32.totalorder %s94, %s96
      %p100 = scmp.eq.s32.totalorder %s18, 0
      %p101 = por %p99, %p100
      %p102 = scmp.ne.s32.totalorder %s94, %s96
      %p103 = scmp.eq.s32.totalorder %s23, 1
      %p104 = por %p102, %p103
      %p105 = scmp.ne.s32.totalorder %s96, %s97
      %p106 = scmp.eq.s32.totalorder %s23, 0
      %p107 = por %p105, %p106
      %p108 = scmp.ne.s32.totalorder %s96, %s97
      %p109 = scmp.eq.s32.totalorder %s24, 1
      %p110 = por %p108, %p109
      %p112 = scmp.ne.s32.totalorder %s97, %s111
      %p113 = scmp.eq.s32.totalorder %s24, 0
      %p114 = por %p112, %p113
      %s115 = ssub.s32 %s18, %s25
      %p116 = scmp.eq.s32.totalorder %s115, 0
      %s118 = sadd.s32 %s117, 1
      %s119 = scalar_select %p116, %s117, %s118
      %p122 = pneg %p116
      %p123 = scmp.eq.s32.totalorder %s18, 1
      %p124 = por %p122, %p123
      %p125 = scmp.ne.s32.totalorder %s117, %s120
      %p126 = scmp.eq.s32.totalorder %s18, 0
      %p127 = por %p125, %p126
      %p128 = scmp.ne.s32.totalorder %s117, %s120
      %p129 = scmp.eq.s32.totalorder %s23, 1
      %p130 = por %p128, %p129
      %p131 = scmp.ne.s32.totalorder %s120, %s121
      %p132 = scmp.eq.s32.totalorder %s23, 0
      %p133 = por %p131, %p132
      %p134 = scmp.ne.s32.totalorder %s120, %s121
      %p135 = scmp.eq.s32.totalorder %s24, 1
      %p136 = por %p134, %p135
      %p138 = scmp.ne.s32.totalorder %s121, %s137
      %p139 = scmp.eq.s32.totalorder %s24, 0
      %p140 = por %p138, %p139
      %p141 = scmp.le.s32.totalorder 1, %s18
      %p142 = scmp.lt.s32.totalorder %s18, 3
      %p143 = pnand %p141, %p142
      %p144 = pneg %p143
      // Predicated region
      $region9: #{_bottleneck_forward_impl.5} parent=5 // pred_check
        _
      $region10: #{_bottleneck_forward_impl.5} parent=5 // pred_check_branch
        %146 = sbr.rel (%p143) target = $region12
      $region11: #{_bottleneck_forward_impl.5} parent=5 // pred_region
        %s147 = ssub.s32 %s18, 1
        // Predicated region
        $region13: #{_bottleneck_forward_impl.5} parent=11 // pred_check
          %p148 = pneg %p65
        $region14: #{_bottleneck_forward_impl.5} parent=11 // pred_check_branch
          %150 = sbr.rel (%p148) target = $region16
        $region15: #{_bottleneck_forward_impl.5} parent=11 // pred_region
          %s152 = ssub.s32 288, 288
          %153 = vsyncadd [#allocation6], %s152
          %s154 = sshll.u32 [#allocation5], 4
          %s155 = int_to_ptr.vmem [resolvable:$true] %s154
          %160 = dma.hbm_to_vmem [thread:$0]  %s1, 288, %s155, [#allocation6], 32, 32, 2
        $region16: #{_bottleneck_forward_impl.5} parent=11 // pred_fallthru
          _
        // Predicated region
        $region17: #{_bottleneck_forward_impl.5} parent=11 // pred_check
          %p161 = pneg %p86
        $region18: #{_bottleneck_forward_impl.5} parent=11 // pred_check_branch
          %163 = sbr.rel (%p161) target = $region20
        $region19: #{_bottleneck_forward_impl.5} parent=11 // pred_region
          %s165 = ssub.s32 16, 16
          %166 = vsyncadd [#allocation6], %s165
          %s168 = sshll.u32 [#allocation7], 4
          %s169 = int_to_ptr.vmem [resolvable:$true] %s168
          %171 = dma.hbm_to_vmem [thread:$0]  %s2, 16, %s169, [#allocation6]
        $region20: #{_bottleneck_forward_impl.5} parent=11 // pred_fallthru
          _
        // Predicated region
        $region21: #{_bottleneck_forward_impl.5} parent=11 // pred_check
          %p172 = pneg %p107
        $region22: #{_bottleneck_forward_impl.5} parent=11 // pred_check_branch
          %174 = sbr.rel (%p172) target = $region24
        $region23: #{_bottleneck_forward_impl.5} parent=11 // pred_region
          %s176 = ssub.s32 16, 16
          %177 = vsyncadd [#allocation9], %s176
          %s179 = sshll.u32 [#allocation8], 4
          %s180 = int_to_ptr.vmem [resolvable:$true] %s179
          %182 = dma.hbm_to_vmem [thread:$0]  %s3, 16, %s180, [#allocation9]
        $region24: #{_bottleneck_forward_impl.5} parent=11 // pred_fallthru
          _
      $region12: #{_bottleneck_forward_impl.5} parent=5 // pred_fallthru
        _
      %p183 = scmp.lt.s32.totalorder %s18, 2
      // Predicated region
      $region25: #{_bottleneck_forward_impl.5} parent=5 // pred_check
        %p184 = pneg %p183
      $region26: #{_bottleneck_forward_impl.5} parent=5 // pred_check_branch
        %186 = sbr.rel (%p184) target = $region28
      $region27: #{_bottleneck_forward_impl.5} parent=5 // pred_region
        // Predicated region
        $region29: #{_bottleneck_forward_impl.5} parent=27 // pred_check
          %p187 = pneg %p38
        $region30: #{_bottleneck_forward_impl.5} parent=27 // pred_check_branch
          %189 = sbr.rel (%p187) target = $region32
        $region31: #{_bottleneck_forward_impl.5} parent=27 // pred_region
          %s190 = sand.u32 %s28, 1
          %s191 = scalar_lea.sflag [#allocation3], %s190
          %s192 = sand.u32 %s28, 1
          %s193 = smul.addr %s192, 216
          %s194 = scalar_lea.vmem [#allocation2], %s193
          %s196 = ssub.s32 3456, 3456
          %197 = vsyncadd %s191, %s196
          %s198 = smul.addr %s18, 54
          %s199 = smul.addr %s198, 64
          %s200 = scalar_lea.hbm %s0, %s199
          %s201 = sshll.u32 %s194, 4
          %s202 = int_to_ptr.vmem [resolvable:$true] %s201
          %207 = dma.hbm_to_vmem [thread:$0]  %s200, 3456, %s202, %s191, 64, 64, 4
        $region32: #{_bottleneck_forward_impl.5} parent=27 // pred_fallthru
          _
      $region28: #{_bottleneck_forward_impl.5} parent=5 // pred_fallthru
        _
      %p208 = scmp.le.s32.totalorder 1, %s18
      %p209 = scmp.lt.s32.totalorder %s18, 3
      %p210 = pnand %p208, %p209
      %p211 = pneg %p210
      // Predicated region
      $region33: #{_bottleneck_forward_impl.5} parent=5 // pred_check
        _
      $region34: #{_bottleneck_forward_impl.5} parent=5 // pred_check_branch
        %213 = sbr.rel (%p210) target = $region36
      $region35: #{_bottleneck_forward_impl.5} parent=5 // pred_region
        %s214 = ssub.s32 %s18, 1
        %s215 = sand.u32 %s31, 1
        %s216 = scalar_lea.sflag [#allocation3], %s215
        %s217 = sand.u32 %s31, 1
        %s218 = smul.addr %s217, 216
        %s219 = scalar_lea.vmem [#allocation2], %s218
        // Predicated region
        $region37: #{_bottleneck_forward_impl.5} parent=35 // pred_check
          %p220 = pneg %p44
        $region38: #{_bottleneck_forward_impl.5} parent=35 // pred_check_branch
          %222 = sbr.rel (%p220) target = $region40
        $region39: #{_bottleneck_forward_impl.5} parent=35 // pred_region
          %223 = dma.done %s216, 3456
        $region40: #{_bottleneck_forward_impl.5} parent=35 // pred_fallthru
          _
        // Predicated region
        $region41: #{_bottleneck_forward_impl.5} parent=35 // pred_check
          %p224 = pneg %p65
        $region42: #{_bottleneck_forward_impl.5} parent=35 // pred_check_branch
          %226 = sbr.rel (%p224) target = $region44
        $region43: #{_bottleneck_forward_impl.5} parent=35 // pred_region
          %227 = dma.done [#allocation6], 288
        $region44: #{_bottleneck_forward_impl.5} parent=35 // pred_fallthru
          _
        // Predicated region
        $region45: #{_bottleneck_forward_impl.5} parent=35 // pred_check
          %p228 = pneg %p86
        $region46: #{_bottleneck_forward_impl.5} parent=35 // pred_check_branch
          %230 = sbr.rel (%p228) target = $region48
        $region47: #{_bottleneck_forward_impl.5} parent=35 // pred_region
          %231 = dma.done [#allocation6], 16
        $region48: #{_bottleneck_forward_impl.5} parent=35 // pred_fallthru
          _
        // Predicated region
        $region49: #{_bottleneck_forward_impl.5} parent=35 // pred_check
          %p232 = pneg %p107
        $region50: #{_bottleneck_forward_impl.5} parent=35 // pred_check_branch
          %234 = sbr.rel (%p232) target = $region52
        $region51: #{_bottleneck_forward_impl.5} parent=35 // pred_region
          %235 = dma.done [#allocation9], 16
        $region52: #{_bottleneck_forward_impl.5} parent=35 // pred_fallthru
          _
        %s236 = sand.u32 %s31, 1
        %s237 = scalar_lea.sflag [#allocation3], %s236
        %s238 = sand.u32 %s31, 1
        %s239 = smul.addr %s238, 216
        %s240 = scalar_lea.vmem [#allocation2], %s239
        %p241 = pneg %p44
        %p242 = pneg %p41
        %p243 = pneg %p65
        %p244 = pneg %p62
        %p245 = pneg %p86
        %p246 = pneg %p83
        %p247 = pneg %p107
        %p248 = pneg %p104
        %p249 = pneg %p133
        %p250 = pneg %p130
        %s251 = sand.u32 %s120, 1
        %s252 = scalar_lea.sflag [#allocation4], %s251
        %s253 = sand.u32 %s120, 1
        %s254 = smul.addr %s253, 128
        %s255 = scalar_lea.vmem [#allocation10], %s254
        %v257 = vld [vmem:[%s219] sm:$0xf]
        %v258 = vld [vmem:[%s219 + $0x4] sm:$0xf]
        %v259 = vld [vmem:[%s219 + $0xc] sm:$0xf]
        %v260 = vld [vmem:[%s219 + $0x10] sm:$0xf]
        %v261 = vld [vmem:[%s219 + $0x18] sm:$0xf]
        %v262 = vld [vmem:[%s219 + $0x1c] sm:$0xf]
        %v263 = vld [vmem:[%s219 + $0x24] sm:$0xf]
        %v264 = vld [vmem:[%s219 + $0x28] sm:$0xf]
        %v265 = vld [vmem:[%s219 + $0x30] sm:$0xf]
        %v266 = vld [vmem:[%s219 + $0x34] sm:$0xf]
        %v267 = vld [vmem:[%s219 + $0x3c] sm:$0xf]
        %v268 = vld [vmem:[%s219 + $0x40] sm:$0xf]
        %v269 = vld [vmem:[%s219 + $0x48] sm:$0xf]
        %v270 = vld [vmem:[%s219 + $0x4c] sm:$0xf]
        %v271 = vld [vmem:[%s219 + $0x54] sm:$0xf]
        %v272 = vld [vmem:[%s219 + $0x58] sm:$0xf]
        %v273 = vld [vmem:[%s219 + $0x60] sm:$0xf]
        %v274 = vld [vmem:[%s219 + $0x64] sm:$0xf]
        %v275 = vld [vmem:[%s219 + $0x6c] sm:$0xf]
        %v276 = vld [vmem:[%s219 + $0x70] sm:$0xf]
        %v277 = vld [vmem:[%s219 + $0x78] sm:$0xf]
        %v278 = vld [vmem:[%s219 + $0x7c] sm:$0xf]
        %v279 = vld [vmem:[%s219 + $0x84] sm:$0xf]
        %v280 = vld [vmem:[%s219 + $0x88] sm:$0xf]
        %v281 = vld [vmem:[%s219 + $0x90] sm:$0xf]
        %v282 = vld [vmem:[%s219 + $0x94] sm:$0xf]
        %v283 = vld [vmem:[%s219 + $0x9c] sm:$0xf]
        %v284 = vld [vmem:[%s219 + $0xa0] sm:$0xf]
        %v285 = vld [vmem:[%s219 + $0xa8] sm:$0xf]
        %v286 = vld [vmem:[%s219 + $0xac] sm:$0xf]
        %v287 = vld [vmem:[%s219 + $0xb4] sm:$0xf]
        %v288 = vld [vmem:[%s219 + $0xb8] sm:$0xf]
        %v289 = vld [vmem:[#allocation5] sm:$0x3]
        %v290 = vld [vmem:[%s219 + $0x8] sm:$0x1]
        %v291 = vld [vmem:[%s219 + $0x14] sm:$0x1]
        %v292 = vld [vmem:[%s219 + $0x20] sm:$0x1]
        %v293 = vld [vmem:[%s219 + $0x2c] sm:$0x1]
        %v294 = vld [vmem:[%s219 + $0x38] sm:$0x1]
        %v295 = vld [vmem:[%s219 + $0x44] sm:$0x1]
        %v296 = vld [vmem:[%s219 + $0x50] sm:$0x1]
        %v297 = vld [vmem:[%s219 + $0x5c] sm:$0x1]
        %v298 = vld [vmem:[%s219 + $0x68] sm:$0x1]
        %v299 = vld [vmem:[%s219 + $0x74] sm:$0x1]
        %v300 = vld [vmem:[%s219 + $0x80] sm:$0x1]
        %v301 = vld [vmem:[%s219 + $0x8c] sm:$0x1]
        %v302 = vld [vmem:[%s219 + $0x98] sm:$0x1]
        %v303 = vld [vmem:[%s219 + $0xa4] sm:$0x1]
        %v304 = vld [vmem:[%s219 + $0xb0] sm:$0x1]
        %v305 = vld [vmem:[%s219 + $0xbc] sm:$0x1]
        %vm306 = vsmask.f32 3328
        %vm307 = vsmask.f32 7440
        %vm308 = vmor %vm306, %vm307
        %v310 = vshrl.u32 %v257, 16
        %v312 = vrot.slane %v310, 4
        %v313 = vshll.u32 %v257, 16
        %v315 = vrot.slane %v313, 5
        %v316 = vor.u32 %v312, %v315
        %v317 = vrot.slane %v316, 4
        %v319 = vshll.u32 %v258, 16
        %v321 = vrot.slane %v319, 5
        %v322 = vsel %vm308, %v317, %v321
        %v323 = vshrl.u32 %v258, 16
        %v325 = vrot.slane %v323, 4
        %v326 = vor.u32 %v325, %v321
        %v327 = vrot.slane %v326, 4
        %v329 = vshll.u32 %v290, 16
        %v331 = vrot.slane %v329, 5
        %v332 = vsel %vm308, %v327, %v331
        %v334 = vshrl.u32 %v259, 16
        %v336 = vrot.slane %v334, 4
        %v337 = vshll.u32 %v259, 16
        %v339 = vrot.slane %v337, 5
        %v340 = vor.u32 %v336, %v339
        %v341 = vrot.slane %v340, 4
        %v343 = vshll.u32 %v260, 16
        %v345 = vrot.slane %v343, 5
        %v346 = vsel %vm308, %v341, %v345
        %v347 = vshrl.u32 %v260, 16
        %v349 = vrot.slane %v347, 4
        %v350 = vor.u32 %v349, %v345
        %v351 = vrot.slane %v350, 4
        %v353 = vshll.u32 %v291, 16
        %v355 = vrot.slane %v353, 5
        %v356 = vsel %vm308, %v351, %v355
        %v358 = vshrl.u32 %v261, 16
        %v360 = vrot.slane %v358, 4
        %v361 = vshll.u32 %v261, 16
        %v363 = vrot.slane %v361, 5
        %v364 = vor.u32 %v360, %v363
        %v365 = vrot.slane %v364, 4
        %v367 = vshll.u32 %v262, 16
        %v369 = vrot.slane %v367, 5
        %v370 = vsel %vm308, %v365, %v369
        %v371 = vshrl.u32 %v262, 16
        %v373 = vrot.slane %v371, 4
        %v374 = vor.u32 %v373, %v369
        %v375 = vrot.slane %v374, 4
        %v377 = vshll.u32 %v292, 16
        %v379 = vrot.slane %v377, 5
        %v380 = vsel %vm308, %v375, %v379
        %v382 = vshrl.u32 %v263, 16
        %v384 = vrot.slane %v382, 4
        %v385 = vshll.u32 %v263, 16
        %v387 = vrot.slane %v385, 5
        %v388 = vor.u32 %v384, %v387
        %v389 = vrot.slane %v388, 4
        %v391 = vshll.u32 %v264, 16
        %v393 = vrot.slane %v391, 5
        %v394 = vsel %vm308, %v389, %v393
        %v395 = vshrl.u32 %v264, 16
        %v397 = vrot.slane %v395, 4
        %v398 = vor.u32 %v397, %v393
        %v399 = vrot.slane %v398, 4
        %v401 = vshll.u32 %v293, 16
        %v403 = vrot.slane %v401, 5
        %v404 = vsel %vm308, %v399, %v403
        %v406 = vshrl.u32 %v265, 16
        %v408 = vrot.slane %v406, 4
        %v409 = vshll.u32 %v265, 16
        %v411 = vrot.slane %v409, 5
        %v412 = vor.u32 %v408, %v411
        %v413 = vrot.slane %v412, 4
        %v415 = vshll.u32 %v266, 16
        %v417 = vrot.slane %v415, 5
        %v418 = vsel %vm308, %v413, %v417
        %v419 = vshrl.u32 %v266, 16
        %v421 = vrot.slane %v419, 4
        %v422 = vor.u32 %v421, %v417
        %v423 = vrot.slane %v422, 4
        %v425 = vshll.u32 %v294, 16
        %v427 = vrot.slane %v425, 5
        %v428 = vsel %vm308, %v423, %v427
        %v430 = vshrl.u32 %v267, 16
        %v432 = vrot.slane %v430, 4
        %v433 = vshll.u32 %v267, 16
        %v435 = vrot.slane %v433, 5
        %v436 = vor.u32 %v432, %v435
        %v437 = vrot.slane %v436, 4
        %v439 = vshll.u32 %v268, 16
        %v441 = vrot.slane %v439, 5
        %v442 = vsel %vm308, %v437, %v441
        %v443 = vshrl.u32 %v268, 16
        %v445 = vrot.slane %v443, 4
        %v446 = vor.u32 %v445, %v441
        %v447 = vrot.slane %v446, 4
        %v449 = vshll.u32 %v295, 16
        %v451 = vrot.slane %v449, 5
        %v452 = vsel %vm308, %v447, %v451
        %v454 = vshrl.u32 %v269, 16
        %v456 = vrot.slane %v454, 4
        %v457 = vshll.u32 %v269, 16
        %v459 = vrot.slane %v457, 5
        %v460 = vor.u32 %v456, %v459
        %v461 = vrot.slane %v460, 4
        %v463 = vshll.u32 %v270, 16
        %v465 = vrot.slane %v463, 5
        %v466 = vsel %vm308, %v461, %v465
        %v467 = vshrl.u32 %v270, 16
        %v469 = vrot.slane %v467, 4
        %v470 = vor.u32 %v469, %v465
        %v471 = vrot.slane %v470, 4
        %v473 = vshll.u32 %v296, 16
        %v475 = vrot.slane %v473, 5
        %v476 = vsel %vm308, %v471, %v475
        %v478 = vshrl.u32 %v271, 16
        %v480 = vrot.slane %v478, 4
        %v481 = vshll.u32 %v271, 16
        %v483 = vrot.slane %v481, 5
        %v484 = vor.u32 %v480, %v483
        %v485 = vrot.slane %v484, 4
        %v487 = vshll.u32 %v272, 16
        %v489 = vrot.slane %v487, 5
        %v490 = vsel %vm308, %v485, %v489
        %v491 = vshrl.u32 %v272, 16
        %v493 = vrot.slane %v491, 4
        %v494 = vor.u32 %v493, %v489
        %v495 = vrot.slane %v494, 4
        %v497 = vshll.u32 %v297, 16
        %v499 = vrot.slane %v497, 5
        %v500 = vsel %vm308, %v495, %v499
        %v502 = vshrl.u32 %v273, 16
        %v504 = vrot.slane %v502, 4
        %v505 = vshll.u32 %v273, 16
        %v507 = vrot.slane %v505, 5
        %v508 = vor.u32 %v504, %v507
        %v509 = vrot.slane %v508, 4
        %v511 = vshll.u32 %v274, 16
        %v513 = vrot.slane %v511, 5
        %v514 = vsel %vm308, %v509, %v513
        %v515 = vshrl.u32 %v274, 16
        %v517 = vrot.slane %v515, 4
        %v518 = vor.u32 %v517, %v513
        %v519 = vrot.slane %v518, 4
        %v521 = vshll.u32 %v298, 16
        %v523 = vrot.slane %v521, 5
        %v524 = vsel %vm308, %v519, %v523
        %v526 = vshrl.u32 %v275, 16
        %v528 = vrot.slane %v526, 4
        %v529 = vshll.u32 %v275, 16
        %v531 = vrot.slane %v529, 5
        %v532 = vor.u32 %v528, %v531
        %v533 = vrot.slane %v532, 4
        %v535 = vshll.u32 %v276, 16
        %v537 = vrot.slane %v535, 5
        %v538 = vsel %vm308, %v533, %v537
        %v539 = vshrl.u32 %v276, 16
        %v541 = vrot.slane %v539, 4
        %v542 = vor.u32 %v541, %v537
        %v543 = vrot.slane %v542, 4
        %v545 = vshll.u32 %v299, 16
        %v547 = vrot.slane %v545, 5
        %v548 = vsel %vm308, %v543, %v547
        %v550 = vshrl.u32 %v277, 16
        %v552 = vrot.slane %v550, 4
        %v553 = vshll.u32 %v277, 16
        %v555 = vrot.slane %v553, 5
        %v556 = vor.u32 %v552, %v555
        %v557 = vrot.slane %v556, 4
        %v559 = vshll.u32 %v278, 16
        %v561 = vrot.slane %v559, 5
        %v562 = vsel %vm308, %v557, %v561
        %v563 = vshrl.u32 %v278, 16
        %v565 = vrot.slane %v563, 4
        %v566 = vor.u32 %v565, %v561
        %v567 = vrot.slane %v566, 4
        %v569 = vshll.u32 %v300, 16
        %v571 = vrot.slane %v569, 5
        %v572 = vsel %vm308, %v567, %v571
        %v574 = vshrl.u32 %v279, 16
        %v576 = vrot.slane %v574, 4
        %v577 = vshll.u32 %v279, 16
        %v579 = vrot.slane %v577, 5
        %v580 = vor.u32 %v576, %v579
        %v581 = vrot.slane %v580, 4
        %v583 = vshll.u32 %v280, 16
        %v585 = vrot.slane %v583, 5
        %v586 = vsel %vm308, %v581, %v585
        %v587 = vshrl.u32 %v280, 16
        %v589 = vrot.slane %v587, 4
        %v590 = vor.u32 %v589, %v585
        %v591 = vrot.slane %v590, 4
        %v593 = vshll.u32 %v301, 16
        %v595 = vrot.slane %v593, 5
        %v596 = vsel %vm308, %v591, %v595
        %v598 = vshrl.u32 %v281, 16
        %v600 = vrot.slane %v598, 4
        %v601 = vshll.u32 %v281, 16
        %v603 = vrot.slane %v601, 5
        %v604 = vor.u32 %v600, %v603
        %v605 = vrot.slane %v604, 4
        %v607 = vshll.u32 %v282, 16
        %v609 = vrot.slane %v607, 5
        %v610 = vsel %vm308, %v605, %v609
        %v611 = vshrl.u32 %v282, 16
        %v613 = vrot.slane %v611, 4
        %v614 = vor.u32 %v613, %v609
        %v615 = vrot.slane %v614, 4
        %v617 = vshll.u32 %v302, 16
        %v619 = vrot.slane %v617, 5
        %v620 = vsel %vm308, %v615, %v619
        %v622 = vshrl.u32 %v283, 16
        %v624 = vrot.slane %v622, 4
        %v625 = vshll.u32 %v283, 16
        %v627 = vrot.slane %v625, 5
        %v628 = vor.u32 %v624, %v627
        %v629 = vrot.slane %v628, 4
        %v631 = vshll.u32 %v284, 16
        %v633 = vrot.slane %v631, 5
        %v634 = vsel %vm308, %v629, %v633
        %v635 = vshrl.u32 %v284, 16
        %v637 = vrot.slane %v635, 4
        %v638 = vor.u32 %v637, %v633
        %v639 = vrot.slane %v638, 4
        %v641 = vshll.u32 %v303, 16
        %v643 = vrot.slane %v641, 5
        %v644 = vsel %vm308, %v639, %v643
        %v646 = vshrl.u32 %v285, 16
        %v648 = vrot.slane %v646, 4
        %v649 = vshll.u32 %v285, 16
        %v651 = vrot.slane %v649, 5
        %v652 = vor.u32 %v648, %v651
        %v653 = vrot.slane %v652, 4
        %v655 = vshll.u32 %v286, 16
        %v657 = vrot.slane %v655, 5
        %v658 = vsel %vm308, %v653, %v657
        %v659 = vshrl.u32 %v286, 16
        %v661 = vrot.slane %v659, 4
        %v662 = vor.u32 %v661, %v657
        %v663 = vrot.slane %v662, 4
        %v665 = vshll.u32 %v304, 16
        %v667 = vrot.slane %v665, 5
        %v668 = vsel %vm308, %v663, %v667
        %v670 = vshrl.u32 %v287, 16
        %v672 = vrot.slane %v670, 4
        %v673 = vshll.u32 %v287, 16
        %v675 = vrot.slane %v673, 5
        %v676 = vor.u32 %v672, %v675
        %v677 = vrot.slane %v676, 4
        %v679 = vshll.u32 %v288, 16
        %v681 = vrot.slane %v679, 5
        %v682 = vsel %vm308, %v677, %v681
        %v683 = vshrl.u32 %v288, 16
        %v685 = vrot.slane %v683, 4
        %v686 = vor.u32 %v685, %v681
        %v687 = vrot.slane %v686, 4
        %v689 = vshll.u32 %v305, 16
        %v691 = vrot.slane %v689, 5
        %v692 = vsel %vm308, %v687, %v691
        %s693 = scalar_lea.vmem [#allocation5], 2
        %v694 = vld [vmem:[%s693] sm:$0x3]
        %v695 = vunpack.c.l.b16 %v322
        %v696 = vunpack.c.l.b16 %v332
        %v697 = vunpack.c.l.b16 %v346
        %v698 = vunpack.c.l.b16 %v356
        %v699 = vunpack.c.l.b16 %v370
        %v700 = vunpack.c.l.b16 %v380
        %v701 = vunpack.c.l.b16 %v394
        %v702 = vunpack.c.l.b16 %v404
        %v703 = vunpack.c.l.b16 %v418
        %v704 = vunpack.c.l.b16 %v428
        %v705 = vunpack.c.l.b16 %v442
        %v706 = vunpack.c.l.b16 %v452
        %v707 = vunpack.c.l.b16 %v466
        %v708 = vunpack.c.l.b16 %v476
        %v709 = vunpack.c.l.b16 %v490
        %v710 = vunpack.c.l.b16 %v500
        %v711 = vunpack.c.l.b16 %v514
        %v712 = vunpack.c.l.b16 %v524
        %v713 = vunpack.c.l.b16 %v538
        %v714 = vunpack.c.l.b16 %v548
        %v715 = vunpack.c.l.b16 %v562
        %v716 = vunpack.c.l.b16 %v572
        %v717 = vunpack.c.l.b16 %v586
        %v718 = vunpack.c.l.b16 %v596
        %v719 = vunpack.c.l.b16 %v610
        %v720 = vunpack.c.l.b16 %v620
        %v721 = vunpack.c.l.b16 %v634
        %v722 = vunpack.c.l.b16 %v644
        %v723 = vunpack.c.l.b16 %v658
        %v724 = vunpack.c.l.b16 %v668
        %v725 = vunpack.c.l.b16 %v682
        %v726 = vunpack.c.l.b16 %v692
        %v727 = vpack.c.b16 %v696, %v695
        %v728 = vpack.c.b16 %v698, %v697
        %v729 = vpack.c.b16 %v700, %v699
        %v730 = vpack.c.b16 %v702, %v701
        %v731 = vpack.c.b16 %v704, %v703
        %v732 = vpack.c.b16 %v706, %v705
        %v733 = vpack.c.b16 %v708, %v707
        %v734 = vpack.c.b16 %v710, %v709
        %v735 = vpack.c.b16 %v712, %v711
        %v736 = vpack.c.b16 %v714, %v713
        %v737 = vpack.c.b16 %v716, %v715
        %v738 = vpack.c.b16 %v718, %v717
        %v739 = vpack.c.b16 %v720, %v719
        %v740 = vpack.c.b16 %v722, %v721
        %v741 = vpack.c.b16 %v724, %v723
        %v742 = vpack.c.b16 %v726, %v725
        %vm743 = vcmask 31744
        %v745 = vsel %vm743, %v727, 0
        %v748 = vsel %vm743, %v728, 0
        %v751 = vsel %vm743, %v729, 0
        %v754 = vsel %vm743, %v730, 0
        %v757 = vsel %vm743, %v731, 0
        %v760 = vsel %vm743, %v732, 0
        %v763 = vsel %vm743, %v733, 0
        %v766 = vsel %vm743, %v734, 0
        %v769 = vsel %vm743, %v735, 0
        %v772 = vsel %vm743, %v736, 0
        %v775 = vsel %vm743, %v737, 0
        %v778 = vsel %vm743, %v738, 0
        %v781 = vsel %vm743, %v739, 0
        %v784 = vsel %vm743, %v740, 0
        %v787 = vsel %vm743, %v741, 0
        %v790 = vsel %vm743, %v742, 0
        %vm792 = vcmask 1041408
        %v794 = vsel %vm792, %v694, 0
        %796 = vmatprep.subr.bf16.mxu0 0
        %797 = vmatpush1.bf16.msra.mxu0 %v794
        %798 = vmatprep.subr.bf16.mxu0 0
        %799 = vmatpush1.bf16.msra.mxu0 0
        %800 = vmatprep.subr.bf16.mxu0 0
        %801 = vmatpush1.bf16.msra.mxu0 0
        %802 = vmatprep.subr.bf16.mxu0 0
        %803 = vmatpush1.bf16.msra.mxu0 0
        %804 = vmatprep.subr.bf16.mxu0 0
        %805 = vmatpush1.bf16.msra.mxu0 0
        %806 = vmatprep.subr.bf16.mxu0 0
        %807 = vmatpush1.bf16.msra.mxu0 0
        %808 = vmatprep.subr.bf16.mxu0 0
        %809 = vmatpush1.bf16.msra.mxu0 0
        %810 = vmatprep.subr.bf16.mxu0 0
        %811 = vmatpush1.bf16.msra.mxu0 0
        %812 = vmatprep.subr.bf16.mxu0 0
        %813 = vmatpush1.bf16.msra.mxu0 0
        %814 = vmatprep.subr.bf16.mxu0 0
        %815 = vmatpush1.bf16.msra.mxu0 0
        %816 = vmatprep.subr.bf16.mxu0 0
        %817 = vmatpush1.bf16.msra.mxu0 0
        %818 = vmatprep.subr.bf16.mxu0 0
        %819 = vmatpush1.bf16.msra.mxu0 0
        %820 = vmatprep.subr.bf16.mxu0 0
        %821 = vmatpush1.bf16.msra.mxu0 0
        %822 = vmatprep.subr.bf16.mxu0 0
        %823 = vmatpush1.bf16.msra.mxu0 0
        %824 = vmatprep.subr.bf16.mxu0 0
        %825 = vmatpush1.bf16.msra.mxu0 0
        %826 = vmatprep.subr.bf16.mxu0 0
        %827 = vmatpush1.bf16.msra.mxu0 0
        %828 = vmatprep.mubr.bf16.mxu0 0
        %829 = vmatmul.mubr.bf16.gmra.mrb[0].mxu0 %v745
        %v830 = vpop.f32.mrb[0].mxu0
        %v831 = vadd.f32 0.0, %v830
        %v832 = vpop.f32.mrb[0].mxu0
        %v833 = vpop.f32.mrb[0].mxu0
        %v834 = vadd.f32 0.0, %v833
        %v835 = vpop.f32.mrb[0].mxu0
        %836 = vmatprep.mubr.bf16.mxu0 0
        %837 = vmatmul.mubr.bf16.gmra.mrb[0].mxu0 %v748
        %v838 = vpop.f32.mrb[0].mxu0
        %v839 = vadd.f32 0.0, %v838
        %v840 = vpop.f32.mrb[0].mxu0
        %v841 = vpop.f32.mrb[0].mxu0
        %v842 = vadd.f32 0.0, %v841
        %v843 = vpop.f32.mrb[0].mxu0
        %844 = vmatprep.mubr.bf16.mxu0 0
        %845 = vmatmul.mubr.bf16.gmra.mrb[0].mxu0 %v751
        %v846 = vpop.f32.mrb[0].mxu0
        %v847 = vadd.f32 0.0, %v846
        %v848 = vpop.f32.mrb[0].mxu0
        %v849 = vpop.f32.mrb[0].mxu0
        %v850 = vadd.f32 0.0, %v849
        %v851 = vpop.f32.mrb[0].mxu0
        %852 = vmatprep.mubr.bf16.mxu0 0
        %853 = vmatmul.mubr.bf16.gmra.mrb[0].mxu0 %v754
        %v854 = vpop.f32.mrb[0].mxu0
        %v855 = vadd.f32 0.0, %v854
        %v856 = vpop.f32.mrb[0].mxu0
        %v857 = vpop.f32.mrb[0].mxu0
        %v858 = vadd.f32 0.0, %v857
        %v859 = vpop.f32.mrb[0].mxu0
        %860 = vmatprep.mubr.bf16.mxu0 0
        %861 = vmatmul.mubr.bf16.gmra.mrb[0].mxu0 %v757
        %v862 = vpop.f32.mrb[0].mxu0
        %v863 = vadd.f32 0.0, %v862
        %v864 = vpop.f32.mrb[0].mxu0
        %v865 = vpop.f32.mrb[0].mxu0
        %v866 = vadd.f32 0.0, %v865
        %v867 = vpop.f32.mrb[0].mxu0
        %868 = vmatprep.mubr.bf16.mxu0 0
        %869 = vmatmul.mubr.bf16.gmra.mrb[0].mxu0 %v760
        %v870 = vpop.f32.mrb[0].mxu0
        %v871 = vadd.f32 0.0, %v870
        %v872 = vpop.f32.mrb[0].mxu0
        %v873 = vpop.f32.mrb[0].mxu0
        %v874 = vadd.f32 0.0, %v873
        %v875 = vpop.f32.mrb[0].mxu0
        %876 = vmatprep.mubr.bf16.mxu0 0
        %877 = vmatmul.mubr.bf16.gmra.mrb[0].mxu0 %v763
        %v878 = vpop.f32.mrb[0].mxu0
        %v879 = vadd.f32 0.0, %v878
        %v880 = vpop.f32.mrb[0].mxu0
        %v881 = vpop.f32.mrb[0].mxu0
        %v882 = vadd.f32 0.0, %v881
        %v883 = vpop.f32.mrb[0].mxu0
        %884 = vmatprep.mubr.bf16.mxu0 0
        %885 = vmatmul.mubr.bf16.gmra.mrb[0].mxu0 %v766
        %v886 = vpop.f32.mrb[0].mxu0
        %v887 = vadd.f32 0.0, %v886
        %v888 = vpop.f32.mrb[0].mxu0
        %v889 = vpop.f32.mrb[0].mxu0
        %v890 = vadd.f32 0.0, %v889
        %v891 = vpop.f32.mrb[0].mxu0
        %892 = vmatprep.mubr.bf16.mxu0 0
        %893 = vmatmul.mubr.bf16.gmra.mrb[0].mxu0 %v769
        %v894 = vpop.f32.mrb[0].mxu0
        %v895 = vadd.f32 0.0, %v894
        %v896 = vpop.f32.mrb[0].mxu0
        %v897 = vpop.f32.mrb[0].mxu0
        %v898 = vadd.f32 0.0, %v897
        %v899 = vpop.f32.mrb[0].mxu0
        %900 = vmatprep.mubr.bf16.mxu0 0
        %901 = vmatmul.mubr.bf16.gmra.mrb[0].mxu0 %v772
        %v902 = vpop.f32.mrb[0].mxu0
        %v903 = vadd.f32 0.0, %v902
        %v904 = vpop.f32.mrb[0].mxu0
        %v905 = vpop.f32.mrb[0].mxu0
        %v906 = vadd.f32 0.0, %v905
        %v907 = vpop.f32.mrb[0].mxu0
        %908 = vmatprep.mubr.bf16.mxu0 0
        %909 = vmatmul.mubr.bf16.gmra.mrb[0].mxu0 %v775
        %v910 = vpop.f32.mrb[0].mxu0
        %v911 = vadd.f32 0.0, %v910
        %v912 = vpop.f32.mrb[0].mxu0
        %v913 = vpop.f32.mrb[0].mxu0
        %v914 = vadd.f32 0.0, %v913
        %v915 = vpop.f32.mrb[0].mxu0
        %916 = vmatprep.mubr.bf16.mxu0 0
        %917 = vmatmul.mubr.bf16.gmra.mrb[0].mxu0 %v778
        %v918 = vpop.f32.mrb[0].mxu0
        %v919 = vadd.f32 0.0, %v918
        %v920 = vpop.f32.mrb[0].mxu0
        %v921 = vpop.f32.mrb[0].mxu0
        %v922 = vadd.f32 0.0, %v921
        %v923 = vpop.f32.mrb[0].mxu0
        %924 = vmatprep.mubr.bf16.mxu0 0
        %925 = vmatmul.mubr.bf16.gmra.mrb[0].mxu0 %v781
        %v926 = vpop.f32.mrb[0].mxu0
        %v927 = vadd.f32 0.0, %v926
        %v928 = vpop.f32.mrb[0].mxu0
        %v929 = vpop.f32.mrb[0].mxu0
        %v930 = vadd.f32 0.0, %v929
        %v931 = vpop.f32.mrb[0].mxu0
        %932 = vmatprep.mubr.bf16.mxu0 0
        %933 = vmatmul.mubr.bf16.gmra.mrb[0].mxu0 %v784
        %v934 = vpop.f32.mrb[0].mxu0
        %v935 = vadd.f32 0.0, %v934
        %v936 = vpop.f32.mrb[0].mxu0
        %v937 = vpop.f32.mrb[0].mxu0
        %v938 = vadd.f32 0.0, %v937
        %v939 = vpop.f32.mrb[0].mxu0
        %940 = vmatprep.mubr.bf16.mxu0 0
        %941 = vmatmul.mubr.bf16.gmra.mrb[0].mxu0 %v787
        %v942 = vpop.f32.mrb[0].mxu0
        %v943 = vadd.f32 0.0, %v942
        %v944 = vpop.f32.mrb[0].mxu0
        %v945 = vpop.f32.mrb[0].mxu0
        %v946 = vadd.f32 0.0, %v945
        %v947 = vpop.f32.mrb[0].mxu0
        %948 = vmatprep.mubr.bf16.mxu0 0
        %949 = vmatmul.mubr.bf16.gmra.mrb[0].mxu0 %v790
        %v950 = vpop.f32.mrb[0].mxu0
        %v951 = vadd.f32 0.0, %v950
        %v952 = vpop.f32.mrb[0].mxu0
        %v953 = vpop.f32.mrb[0].mxu0
        %v954 = vadd.f32 0.0, %v953
        %v955 = vpop.f32.mrb[0].mxu0
        %956 = vdwg.mxu0
        %v989 = vunpack.c.l.b16 %v257
        %v990 = vunpack.c.l.b16 %v258
        %v991 = vunpack.c.l.b16 %v259
        %v992 = vunpack.c.l.b16 %v260
        %v993 = vunpack.c.l.b16 %v261
        %v994 = vunpack.c.l.b16 %v262
        %v995 = vunpack.c.l.b16 %v263
        %v996 = vunpack.c.l.b16 %v264
        %v997 = vunpack.c.l.b16 %v265
        %v998 = vunpack.c.l.b16 %v266
        %v999 = vunpack.c.l.b16 %v267
        %v1000 = vunpack.c.l.b16 %v268
        %v1001 = vunpack.c.l.b16 %v269
        %v1002 = vunpack.c.l.b16 %v270
        %v1003 = vunpack.c.l.b16 %v271
        %v1004 = vunpack.c.l.b16 %v272
        %v1005 = vunpack.c.l.b16 %v273
        %v1006 = vunpack.c.l.b16 %v274
        %v1007 = vunpack.c.l.b16 %v275
        %v1008 = vunpack.c.l.b16 %v276
        %v1009 = vunpack.c.l.b16 %v277
        %v1010 = vunpack.c.l.b16 %v278
        %v1011 = vunpack.c.l.b16 %v279
        %v1012 = vunpack.c.l.b16 %v280
        %v1013 = vunpack.c.l.b16 %v281
        %v1014 = vunpack.c.l.b16 %v282
        %v1015 = vunpack.c.l.b16 %v283
        %v1016 = vunpack.c.l.b16 %v284
        %v1017 = vunpack.c.l.b16 %v285
        %v1018 = vunpack.c.l.b16 %v286
        %v1019 = vunpack.c.l.b16 %v287
        %v1020 = vunpack.c.l.b16 %v288
        %v1021 = vpack.c.b16 %v990, %v989
        %v1022 = vpack.c.b16 %v992, %v991
        %v1023 = vpack.c.b16 %v994, %v993
        %v1024 = vpack.c.b16 %v996, %v995
        %v1025 = vpack.c.b16 %v998, %v997
        %v1026 = vpack.c.b16 %v1000, %v999
        %v1027 = vpack.c.b16 %v1002, %v1001
        %v1028 = vpack.c.b16 %v1004, %v1003
        %v1029 = vpack.c.b16 %v1006, %v1005
        %v1030 = vpack.c.b16 %v1008, %v1007
        %v1031 = vpack.c.b16 %v1010, %v1009
        %v1032 = vpack.c.b16 %v1012, %v1011
        %v1033 = vpack.c.b16 %v1014, %v1013
        %v1034 = vpack.c.b16 %v1016, %v1015
        %v1035 = vpack.c.b16 %v1018, %v1017
        %v1036 = vpack.c.b16 %v1020, %v1019
        %v1038 = vsel %vm743, %v1021, 0
        %v1041 = vsel %vm743, %v1022, 0
        %v1044 = vsel %vm743, %v1023, 0
        %v1047 = vsel %vm743, %v1024, 0
        %v1050 = vsel %vm743, %v1025, 0
        %v1053 = vsel %vm743, %v1026, 0
        %v1056 = vsel %vm743, %v1027, 0
        %v1059 = vsel %vm743, %v1028, 0
        %v1062 = vsel %vm743, %v1029, 0
        %v1065 = vsel %vm743, %v1030, 0
        %v1068 = vsel %vm743, %v1031, 0
        %v1071 = vsel %vm743, %v1032, 0
        %v1074 = vsel %vm743, %v1033, 0
        %v1077 = vsel %vm743, %v1034, 0
        %v1080 = vsel %vm743, %v1035, 0
        %v1083 = vsel %vm743, %v1036, 0
        %v1086 = vsel %vm792, %v289, 0
        %1088 = vmatprep.subr.bf16.mxu0 0
        %1089 = vmatpush1.bf16.msra.mxu0 %v1086
        %1090 = vmatprep.subr.bf16.mxu0 0
        %1091 = vmatpush1.bf16.msra.mxu0 0
        %1092 = vmatprep.subr.bf16.mxu0 0
        %1093 = vmatpush1.bf16.msra.mxu0 0
        %1094 = vmatprep.subr.bf16.mxu0 0
        %1095 = vmatpush1.bf16.msra.mxu0 0
        %1096 = vmatprep.subr.bf16.mxu0 0
        %1097 = vmatpush1.bf16.msra.mxu0 0
        %1098 = vmatprep.subr.bf16.mxu0 0
        %1099 = vmatpush1.bf16.msra.mxu0 0
        %1100 = vmatprep.subr.bf16.mxu0 0
        %1101 = vmatpush1.bf16.msra.mxu0 0
        %1102 = vmatprep.subr.bf16.mxu0 0
        %1103 = vmatpush1.bf16.msra.mxu0 0
        %1104 = vmatprep.subr.bf16.mxu0 0
        %1105 = vmatpush1.bf16.msra.mxu0 0
        %1106 = vmatprep.subr.bf16.mxu0 0
        %1107 = vmatpush1.bf16.msra.mxu0 0
        %1108 = vmatprep.subr.bf16.mxu0 0
        %1109 = vmatpush1.bf16.msra.mxu0 0
        %1110 = vmatprep.subr.bf16.mxu0 0
        %1111 = vmatpush1.bf16.msra.mxu0 0
        %1112 = vmatprep.subr.bf16.mxu0 0
        %1113 = vmatpush1.bf16.msra.mxu0 0
        %1114 = vmatprep.subr.bf16.mxu0 0
        %1115 = vmatpush1.bf16.msra.mxu0 0
        %1116 = vmatprep.subr.bf16.mxu0 0
        %1117 = vmatpush1.bf16.msra.mxu0 0
        %1118 = vmatprep.subr.bf16.mxu0 0
        %1119 = vmatpush1.bf16.msra.mxu0 0
        %1120 = vmatprep.mubr.bf16.mxu0 0
        %1121 = vmatmul.mubr.bf16.gmra.mrb[0].mxu0 %v1038
        %v1122 = vpop.f32.mrb[0].mxu0
        %v1123 = vadd.f32 %v831, %v1122
        %v1124 = vpop.f32.mrb[0].mxu0
        %v1125 = vpop.f32.mrb[0].mxu0
        %v1126 = vadd.f32 %v834, %v1125
        %v1127 = vpop.f32.mrb[0].mxu0
        %1128 = vmatprep.mubr.bf16.mxu0 0
        %1129 = vmatmul.mubr.bf16.gmra.mrb[0].mxu0 %v1041
        %v1130 = vpop.f32.mrb[0].mxu0
        %v1131 = vadd.f32 %v839, %v1130
        %v1132 = vpop.f32.mrb[0].mxu0
        %v1133 = vpop.f32.mrb[0].mxu0
        %v1134 = vadd.f32 %v842, %v1133
        %v1135 = vpop.f32.mrb[0].mxu0
        %1136 = vmatprep.mubr.bf16.mxu0 0
        %1137 = vmatmul.mubr.bf16.gmra.mrb[0].mxu0 %v1044
        %v1138 = vpop.f32.mrb[0].mxu0
        %v1139 = vadd.f32 %v847, %v1138
        %v1140 = vpop.f32.mrb[0].mxu0
        %v1141 = vpop.f32.mrb[0].mxu0
        %v1142 = vadd.f32 %v850, %v1141
        %v1143 = vpop.f32.mrb[0].mxu0
        %1144 = vmatprep.mubr.bf16.mxu0 0
        %1145 = vmatmul.mubr.bf16.gmra.mrb[0].mxu0 %v1047
        %v1146 = vpop.f32.mrb[0].mxu0
        %v1147 = vadd.f32 %v855, %v1146
        %v1148 = vpop.f32.mrb[0].mxu0
        %v1149 = vpop.f32.mrb[0].mxu0
        %v1150 = vadd.f32 %v858, %v1149
        %v1151 = vpop.f32.mrb[0].mxu0
        %1152 = vmatprep.mubr.bf16.mxu0 0
        %1153 = vmatmul.mubr.bf16.gmra.mrb[0].mxu0 %v1050
        %v1154 = vpop.f32.mrb[0].mxu0
        %v1155 = vadd.f32 %v863, %v1154
        %v1156 = vpop.f32.mrb[0].mxu0
        %v1157 = vpop.f32.mrb[0].mxu0
        %v1158 = vadd.f32 %v866, %v1157
        %v1159 = vpop.f32.mrb[0].mxu0
        %1160 = vmatprep.mubr.bf16.mxu0 0
        %1161 = vmatmul.mubr.bf16.gmra.mrb[0].mxu0 %v1053
        %v1162 = vpop.f32.mrb[0].mxu0
        %v1163 = vadd.f32 %v871, %v1162
        %v1164 = vpop.f32.mrb[0].mxu0
        %v1165 = vpop.f32.mrb[0].mxu0
        %v1166 = vadd.f32 %v874, %v1165
        %v1167 = vpop.f32.mrb[0].mxu0
        %1168 = vmatprep.mubr.bf16.mxu0 0
        %1169 = vmatmul.mubr.bf16.gmra.mrb[0].mxu0 %v1056
        %v1170 = vpop.f32.mrb[0].mxu0
        %v1171 = vadd.f32 %v879, %v1170
        %v1172 = vpop.f32.mrb[0].mxu0
        %v1173 = vpop.f32.mrb[0].mxu0
        %v1174 = vadd.f32 %v882, %v1173
        %v1175 = vpop.f32.mrb[0].mxu0
        %1176 = vmatprep.mubr.bf16.mxu0 0
        %1177 = vmatmul.mubr.bf16.gmra.mrb[0].mxu0 %v1059
        %v1178 = vpop.f32.mrb[0].mxu0
        %v1179 = vadd.f32 %v887, %v1178
        %v1180 = vpop.f32.mrb[0].mxu0
        %v1181 = vpop.f32.mrb[0].mxu0
        %v1182 = vadd.f32 %v890, %v1181
        %v1183 = vpop.f32.mrb[0].mxu0
        %1184 = vmatprep.mubr.bf16.mxu0 0
        %1185 = vmatmul.mubr.bf16.gmra.mrb[0].mxu0 %v1062
        %v1186 = vpop.f32.mrb[0].mxu0
        %v1187 = vadd.f32 %v895, %v1186
        %v1188 = vpop.f32.mrb[0].mxu0
        %v1189 = vpop.f32.mrb[0].mxu0
        %v1190 = vadd.f32 %v898, %v1189
        %v1191 = vpop.f32.mrb[0].mxu0
        %1192 = vmatprep.mubr.bf16.mxu0 0
        %1193 = vmatmul.mubr.bf16.gmra.mrb[0].mxu0 %v1065
        %v1194 = vpop.f32.mrb[0].mxu0
        %v1195 = vadd.f32 %v903, %v1194
        %v1196 = vpop.f32.mrb[0].mxu0
        %v1197 = vpop.f32.mrb[0].mxu0
        %v1198 = vadd.f32 %v906, %v1197
        %v1199 = vpop.f32.mrb[0].mxu0
        %1200 = vmatprep.mubr.bf16.mxu0 0
        %1201 = vmatmul.mubr.bf16.gmra.mrb[0].mxu0 %v1068
        %v1202 = vpop.f32.mrb[0].mxu0
        %v1203 = vadd.f32 %v911, %v1202
        %v1204 = vpop.f32.mrb[0].mxu0
        %v1205 = vpop.f32.mrb[0].mxu0
        %v1206 = vadd.f32 %v914, %v1205
        %v1207 = vpop.f32.mrb[0].mxu0
        %1208 = vmatprep.mubr.bf16.mxu0 0
        %1209 = vmatmul.mubr.bf16.gmra.mrb[0].mxu0 %v1071
        %v1210 = vpop.f32.mrb[0].mxu0
        %v1211 = vadd.f32 %v919, %v1210
        %v1212 = vpop.f32.mrb[0].mxu0
        %v1213 = vpop.f32.mrb[0].mxu0
        %v1214 = vadd.f32 %v922, %v1213
        %v1215 = vpop.f32.mrb[0].mxu0
        %1216 = vmatprep.mubr.bf16.mxu0 0
        %1217 = vmatmul.mubr.bf16.gmra.mrb[0].mxu0 %v1074
        %v1218 = vpop.f32.mrb[0].mxu0
        %v1219 = vadd.f32 %v927, %v1218
        %v1220 = vpop.f32.mrb[0].mxu0
        %v1221 = vpop.f32.mrb[0].mxu0
        %v1222 = vadd.f32 %v930, %v1221
        %v1223 = vpop.f32.mrb[0].mxu0
        %1224 = vmatprep.mubr.bf16.mxu0 0
        %1225 = vmatmul.mubr.bf16.gmra.mrb[0].mxu0 %v1077
        %v1226 = vpop.f32.mrb[0].mxu0
        %v1227 = vadd.f32 %v935, %v1226
        %v1228 = vpop.f32.mrb[0].mxu0
        %v1229 = vpop.f32.mrb[0].mxu0
        %v1230 = vadd.f32 %v938, %v1229
        %v1231 = vpop.f32.mrb[0].mxu0
        %1232 = vmatprep.mubr.bf16.mxu0 0
        %1233 = vmatmul.mubr.bf16.gmra.mrb[0].mxu0 %v1080
        %v1234 = vpop.f32.mrb[0].mxu0
        %v1235 = vadd.f32 %v943, %v1234
        %v1236 = vpop.f32.mrb[0].mxu0
        %v1237 = vpop.f32.mrb[0].mxu0
        %v1238 = vadd.f32 %v946, %v1237
        %v1239 = vpop.f32.mrb[0].mxu0
        %1240 = vmatprep.mubr.bf16.mxu0 0
        %1241 = vmatmul.mubr.bf16.gmra.mrb[0].mxu0 %v1083
        %v1242 = vpop.f32.mrb[0].mxu0
        %v1243 = vadd.f32 %v951, %v1242
        %v1244 = vpop.f32.mrb[0].mxu0
        %v1245 = vpop.f32.mrb[0].mxu0
        %v1246 = vadd.f32 %v954, %v1245
        %v1247 = vpop.f32.mrb[0].mxu0
        %1248 = vdwg.mxu0
        %v1249 = vld [vmem:[%s219] sm:$0xe]
        %v1250 = vld [vmem:[%s219 + $0xc] sm:$0xe]
        %v1251 = vld [vmem:[%s219 + $0x18] sm:$0xe]
        %v1252 = vld [vmem:[%s219 + $0x24] sm:$0xe]
        %v1253 = vld [vmem:[%s219 + $0x30] sm:$0xe]
        %v1254 = vld [vmem:[%s219 + $0x3c] sm:$0xe]
        %v1255 = vld [vmem:[%s219 + $0x48] sm:$0xe]
        %v1256 = vld [vmem:[%s219 + $0x54] sm:$0xe]
        %v1257 = vld [vmem:[%s219 + $0x60] sm:$0xe]
        %v1258 = vld [vmem:[%s219 + $0x6c] sm:$0xe]
        %v1259 = vld [vmem:[%s219 + $0x78] sm:$0xe]
        %v1260 = vld [vmem:[%s219 + $0x84] sm:$0xe]
        %v1261 = vld [vmem:[%s219 + $0x90] sm:$0xe]
        %v1262 = vld [vmem:[%s219 + $0x9c] sm:$0xe]
        %v1263 = vld [vmem:[%s219 + $0xa8] sm:$0xe]
        %v1264 = vld [vmem:[%s219 + $0xb4] sm:$0xe]
        %vm1297 = vcmask 1042432
        %vm1298 = vcmask 1046532
        %vm1299 = vmor %vm1297, %vm1298
        %v1300 = vrot.slane %v1249, 5
        %v1301 = vrot.slane %v1300, 4
        %v1302 = vrot.slane %v258, 5
        %v1303 = vsel %vm1299, %v1301, %v1302
        %v1304 = vrot.slane %v1302, 4
        %v1305 = vrot.slane %v290, 5
        %v1306 = vsel %vm1299, %v1304, %v1305
        %v1307 = vrot.slane %v1250, 5
        %v1308 = vrot.slane %v1307, 4
        %v1309 = vrot.slane %v260, 5
        %v1310 = vsel %vm1299, %v1308, %v1309
        %v1311 = vrot.slane %v1309, 4
        %v1312 = vrot.slane %v291, 5
        %v1313 = vsel %vm1299, %v1311, %v1312
        %v1314 = vrot.slane %v1251, 5
        %v1315 = vrot.slane %v1314, 4
        %v1316 = vrot.slane %v262, 5
        %v1317 = vsel %vm1299, %v1315, %v1316
        %v1318 = vrot.slane %v1316, 4
        %v1319 = vrot.slane %v292, 5
        %v1320 = vsel %vm1299, %v1318, %v1319
        %v1321 = vrot.slane %v1252, 5
        %v1322 = vrot.slane %v1321, 4
        %v1323 = vrot.slane %v264, 5
        %v1324 = vsel %vm1299, %v1322, %v1323
        %v1325 = vrot.slane %v1323, 4
        %v1326 = vrot.slane %v293, 5
        %v1327 = vsel %vm1299, %v1325, %v1326
        %v1328 = vrot.slane %v1253, 5
        %v1329 = vrot.slane %v1328, 4
        %v1330 = vrot.slane %v266, 5
        %v1331 = vsel %vm1299, %v1329, %v1330
        %v1332 = vrot.slane %v1330, 4
        %v1333 = vrot.slane %v294, 5
        %v1334 = vsel %vm1299, %v1332, %v1333
        %v1335 = vrot.slane %v1254, 5
        %v1336 = vrot.slane %v1335, 4
        %v1337 = vrot.slane %v268, 5
        %v1338 = vsel %vm1299, %v1336, %v1337
        %v1339 = vrot.slane %v1337, 4
        %v1340 = vrot.slane %v295, 5
        %v1341 = vsel %vm1299, %v1339, %v1340
        %v1342 = vrot.slane %v1255, 5
        %v1343 = vrot.slane %v1342, 4
        %v1344 = vrot.slane %v270, 5
        %v1345 = vsel %vm1299, %v1343, %v1344
        %v1346 = vrot.slane %v1344, 4
        %v1347 = vrot.slane %v296, 5
        %v1348 = vsel %vm1299, %v1346, %v1347
        %v1349 = vrot.slane %v1256, 5
        %v1350 = vrot.slane %v1349, 4
        %v1351 = vrot.slane %v272, 5
        %v1352 = vsel %vm1299, %v1350, %v1351
        %v1353 = vrot.slane %v1351, 4
        %v1354 = vrot.slane %v297, 5
        %v1355 = vsel %vm1299, %v1353, %v1354
        %v1356 = vrot.slane %v1257, 5
        %v1357 = vrot.slane %v1356, 4
        %v1358 = vrot.slane %v274, 5
        %v1359 = vsel %vm1299, %v1357, %v1358
        %v1360 = vrot.slane %v1358, 4
        %v1361 = vrot.slane %v298, 5
        %v1362 = vsel %vm1299, %v1360, %v1361
        %v1363 = vrot.slane %v1258, 5
        %v1364 = vrot.slane %v1363, 4
        %v1365 = vrot.slane %v276, 5
        %v1366 = vsel %vm1299, %v1364, %v1365
        %v1367 = vrot.slane %v1365, 4
        %v1368 = vrot.slane %v299, 5
        %v1369 = vsel %vm1299, %v1367, %v1368
        %v1370 = vrot.slane %v1259, 5
        %v1371 = vrot.slane %v1370, 4
        %v1372 = vrot.slane %v278, 5
        %v1373 = vsel %vm1299, %v1371, %v1372
        %v1374 = vrot.slane %v1372, 4
        %v1375 = vrot.slane %v300, 5
        %v1376 = vsel %vm1299, %v1374, %v1375
        %v1377 = vrot.slane %v1260, 5
        %v1378 = vrot.slane %v1377, 4
        %v1379 = vrot.slane %v280, 5
        %v1380 = vsel %vm1299, %v1378, %v1379
        %v1381 = vrot.slane %v1379, 4
        %v1382 = vrot.slane %v301, 5
        %v1383 = vsel %vm1299, %v1381, %v1382
        %v1384 = vrot.slane %v1261, 5
        %v1385 = vrot.slane %v1384, 4
        %v1386 = vrot.slane %v282, 5
        %v1387 = vsel %vm1299, %v1385, %v1386
        %v1388 = vrot.slane %v1386, 4
        %v1389 = vrot.slane %v302, 5
        %v1390 = vsel %vm1299, %v1388, %v1389
        %v1391 = vrot.slane %v1262, 5
        %v1392 = vrot.slane %v1391, 4
        %v1393 = vrot.slane %v284, 5
        %v1394 = vsel %vm1299, %v1392, %v1393
        %v1395 = vrot.slane %v1393, 4
        %v1396 = vrot.slane %v303, 5
        %v1397 = vsel %vm1299, %v1395, %v1396
        %v1398 = vrot.slane %v1263, 5
        %v1399 = vrot.slane %v1398, 4
        %v1400 = vrot.slane %v286, 5
        %v1401 = vsel %vm1299, %v1399, %v1400
        %v1402 = vrot.slane %v1400, 4
        %v1403 = vrot.slane %v304, 5
        %v1404 = vsel %vm1299, %v1402, %v1403
        %v1405 = vrot.slane %v1264, 5
        %v1406 = vrot.slane %v1405, 4
        %v1407 = vrot.slane %v288, 5
        %v1408 = vsel %vm1299, %v1406, %v1407
        %v1409 = vrot.slane %v1407, 4
        %v1410 = vrot.slane %v305, 5
        %v1411 = vsel %vm1299, %v1409, %v1410
        %s1412 = scalar_lea.vmem [#allocation5], 4
        %v1413 = vld [vmem:[%s1412] sm:$0x3]
        %v1414 = vunpack.c.l.b16 %v1303
        %v1415 = vunpack.c.l.b16 %v1306
        %v1416 = vunpack.c.l.b16 %v1310
        %v1417 = vunpack.c.l.b16 %v1313
        %v1418 = vunpack.c.l.b16 %v1317
        %v1419 = vunpack.c.l.b16 %v1320
        %v1420 = vunpack.c.l.b16 %v1324
        %v1421 = vunpack.c.l.b16 %v1327
        %v1422 = vunpack.c.l.b16 %v1331
        %v1423 = vunpack.c.l.b16 %v1334
        %v1424 = vunpack.c.l.b16 %v1338
        %v1425 = vunpack.c.l.b16 %v1341
        %v1426 = vunpack.c.l.b16 %v1345
        %v1427 = vunpack.c.l.b16 %v1348
        %v1428 = vunpack.c.l.b16 %v1352
        %v1429 = vunpack.c.l.b16 %v1355
        %v1430 = vunpack.c.l.b16 %v1359
        %v1431 = vunpack.c.l.b16 %v1362
        %v1432 = vunpack.c.l.b16 %v1366
        %v1433 = vunpack.c.l.b16 %v1369
        %v1434 = vunpack.c.l.b16 %v1373
        %v1435 = vunpack.c.l.b16 %v1376
        %v1436 = vunpack.c.l.b16 %v1380
        %v1437 = vunpack.c.l.b16 %v1383
        %v1438 = vunpack.c.l.b16 %v1387
        %v1439 = vunpack.c.l.b16 %v1390
        %v1440 = vunpack.c.l.b16 %v1394
        %v1441 = vunpack.c.l.b16 %v1397
        %v1442 = vunpack.c.l.b16 %v1401
        %v1443 = vunpack.c.l.b16 %v1404
        %v1444 = vunpack.c.l.b16 %v1408
        %v1445 = vunpack.c.l.b16 %v1411
        %v1446 = vpack.c.b16 %v1415, %v1414
        %v1447 = vpack.c.b16 %v1417, %v1416
        %v1448 = vpack.c.b16 %v1419, %v1418
        %v1449 = vpack.c.b16 %v1421, %v1420
        %v1450 = vpack.c.b16 %v1423, %v1422
        %v1451 = vpack.c.b16 %v1425, %v1424
        %v1452 = vpack.c.b16 %v1427, %v1426
        %v1453 = vpack.c.b16 %v1429, %v1428
        %v1454 = vpack.c.b16 %v1431, %v1430
        %v1455 = vpack.c.b16 %v1433, %v1432
        %v1456 = vpack.c.b16 %v1435, %v1434
        %v1457 = vpack.c.b16 %v1437, %v1436
        %v1458 = vpack.c.b16 %v1439, %v1438
        %v1459 = vpack.c.b16 %v1441, %v1440
        %v1460 = vpack.c.b16 %v1443, %v1442
        %v1461 = vpack.c.b16 %v1445, %v1444
        %v1463 = vsel %vm743, %v1446, 0
        %v1466 = vsel %vm743, %v1447, 0
        %v1469 = vsel %vm743, %v1448, 0
        %v1472 = vsel %vm743, %v1449, 0
        %v1475 = vsel %vm743, %v1450, 0
        %v1478 = vsel %vm743, %v1451, 0
        %v1481 = vsel %vm743, %v1452, 0
        %v1484 = vsel %vm743, %v1453, 0
        %v1487 = vsel %vm743, %v1454, 0
        %v1490 = vsel %vm743, %v1455, 0
        %v1493 = vsel %vm743, %v1456, 0
        %v1496 = vsel %vm743, %v1457, 0
        %v1499 = vsel %vm743, %v1458, 0
        %v1502 = vsel %vm743, %v1459, 0
        %v1505 = vsel %vm743, %v1460, 0
        %v1508 = vsel %vm743, %v1461, 0
        %v1511 = vsel %vm792, %v1413, 0
        %1513 = vmatprep.subr.bf16.mxu0 0
        %1514 = vmatpush1.bf16.msra.mxu0 %v1511
        %1515 = vmatprep.subr.bf16.mxu0 0
        %1516 = vmatpush1.bf16.msra.mxu0 0
        %1517 = vmatprep.subr.bf16.mxu0 0
        %1518 = vmatpush1.bf16.msra.mxu0 0
        %1519 = vmatprep.subr.bf16.mxu0 0
        %1520 = vmatpush1.bf16.msra.mxu0 0
        %1521 = vmatprep.subr.bf16.mxu0 0
        %1522 = vmatpush1.bf16.msra.mxu0 0
        %1523 = vmatprep.subr.bf16.mxu0 0
        %1524 = vmatpush1.bf16.msra.mxu0 0
        %1525 = vmatprep.subr.bf16.mxu0 0
        %1526 = vmatpush1.bf16.msra.mxu0 0
        %1527 = vmatprep.subr.bf16.mxu0 0
        %1528 = vmatpush1.bf16.msra.mxu0 0
        %1529 = vmatprep.subr.bf16.mxu0 0
        %1530 = vmatpush1.bf16.msra.mxu0 0
        %1531 = vmatprep.subr.bf16.mxu0 0
        %1532 = vmatpush1.bf16.msra.mxu0 0
        %1533 = vmatprep.subr.bf16.mxu0 0
        %1534 = vmatpush1.bf16.msra.mxu0 0
        %1535 = vmatprep.subr.bf16.mxu0 0
        %1536 = vmatpush1.bf16.msra.mxu0 0
        %1537 = vmatprep.subr.bf16.mxu0 0
        %1538 = vmatpush1.bf16.msra.mxu0 0
        %1539 = vmatprep.subr.bf16.mxu0 0
        %1540 = vmatpush1.bf16.msra.mxu0 0
        %1541 = vmatprep.subr.bf16.mxu0 0
        %1542 = vmatpush1.bf16.msra.mxu0 0
        %1543 = vmatprep.subr.bf16.mxu0 0
        %1544 = vmatpush1.bf16.msra.mxu0 0
        %1545 = vmatprep.mubr.bf16.mxu0 0
        %1546 = vmatmul.mubr.bf16.gmra.mrb[0].mxu0 %v1463
        %v1547 = vpop.f32.mrb[0].mxu0
        %v1548 = vadd.f32 0.0, %v1547
        %v1549 = vpop.f32.mrb[0].mxu0
        %v1550 = vpop.f32.mrb[0].mxu0
        %v1551 = vadd.f32 0.0, %v1550
        %v1552 = vpop.f32.mrb[0].mxu0
        %1553 = vmatprep.mubr.bf16.mxu0 0
        %1554 = vmatmul.mubr.bf16.gmra.mrb[0].mxu0 %v1466
        %v1555 = vpop.f32.mrb[0].mxu0
        %v1556 = vadd.f32 0.0, %v1555
        %v1557 = vpop.f32.mrb[0].mxu0
        %v1558 = vpop.f32.mrb[0].mxu0
        %v1559 = vadd.f32 0.0, %v1558
        %v1560 = vpop.f32.mrb[0].mxu0
        %1561 = vmatprep.mubr.bf16.mxu0 0
        %1562 = vmatmul.mubr.bf16.gmra.mrb[0].mxu0 %v1469
        %v1563 = vpop.f32.mrb[0].mxu0
        %v1564 = vadd.f32 0.0, %v1563
        %v1565 = vpop.f32.mrb[0].mxu0
        %v1566 = vpop.f32.mrb[0].mxu0
        %v1567 = vadd.f32 0.0, %v1566
        %v1568 = vpop.f32.mrb[0].mxu0
        %1569 = vmatprep.mubr.bf16.mxu0 0
        %1570 = vmatmul.mubr.bf16.gmra.mrb[0].mxu0 %v1472
        %v1571 = vpop.f32.mrb[0].mxu0
        %v1572 = vadd.f32 0.0, %v1571
        %v1573 = vpop.f32.mrb[0].mxu0
        %v1574 = vpop.f32.mrb[0].mxu0
        %v1575 = vadd.f32 0.0, %v1574
        %v1576 = vpop.f32.mrb[0].mxu0
        %1577 = vmatprep.mubr.bf16.mxu0 0
        %1578 = vmatmul.mubr.bf16.gmra.mrb[0].mxu0 %v1475
        %v1579 = vpop.f32.mrb[0].mxu0
        %v1580 = vadd.f32 0.0, %v1579
        %v1581 = vpop.f32.mrb[0].mxu0
        %v1582 = vpop.f32.mrb[0].mxu0
        %v1583 = vadd.f32 0.0, %v1582
        %v1584 = vpop.f32.mrb[0].mxu0
        %1585 = vmatprep.mubr.bf16.mxu0 0
        %1586 = vmatmul.mubr.bf16.gmra.mrb[0].mxu0 %v1478
        %v1587 = vpop.f32.mrb[0].mxu0
        %v1588 = vadd.f32 0.0, %v1587
        %v1589 = vpop.f32.mrb[0].mxu0
        %v1590 = vpop.f32.mrb[0].mxu0
        %v1591 = vadd.f32 0.0, %v1590
        %v1592 = vpop.f32.mrb[0].mxu0
        %1593 = vmatprep.mubr.bf16.mxu0 0
        %1594 = vmatmul.mubr.bf16.gmra.mrb[0].mxu0 %v1481
        %v1595 = vpop.f32.mrb[0].mxu0
        %v1596 = vadd.f32 0.0, %v1595
        %v1597 = vpop.f32.mrb[0].mxu0
        %v1598 = vpop.f32.mrb[0].mxu0
        %v1599 = vadd.f32 0.0, %v1598
        %v1600 = vpop.f32.mrb[0].mxu0
        %1601 = vmatprep.mubr.bf16.mxu0 0
        %1602 = vmatmul.mubr.bf16.gmra.mrb[0].mxu0 %v1484
        %v1603 = vpop.f32.mrb[0].mxu0
        %v1604 = vadd.f32 0.0, %v1603
        %v1605 = vpop.f32.mrb[0].mxu0
        %v1606 = vpop.f32.mrb[0].mxu0
        %v1607 = vadd.f32 0.0, %v1606
        %v1608 = vpop.f32.mrb[0].mxu0
        %1609 = vmatprep.mubr.bf16.mxu0 0
        %1610 = vmatmul.mubr.bf16.gmra.mrb[0].mxu0 %v1487
        %v1611 = vpop.f32.mrb[0].mxu0
        %v1612 = vadd.f32 0.0, %v1611
        %v1613 = vpop.f32.mrb[0].mxu0
        %v1614 = vpop.f32.mrb[0].mxu0
        %v1615 = vadd.f32 0.0, %v1614
        %v1616 = vpop.f32.mrb[0].mxu0
        %1617 = vmatprep.mubr.bf16.mxu0 0
        %1618 = vmatmul.mubr.bf16.gmra.mrb[0].mxu0 %v1490
        %v1619 = vpop.f32.mrb[0].mxu0
        %v1620 = vadd.f32 0.0, %v1619
        %v1621 = vpop.f32.mrb[0].mxu0
        %v1622 = vpop.f32.mrb[0].mxu0
        %v1623 = vadd.f32 0.0, %v1622
        %v1624 = vpop.f32.mrb[0].mxu0
        %1625 = vmatprep.mubr.bf16.mxu0 0
        %1626 = vmatmul.mubr.bf16.gmra.mrb[0].mxu0 %v1493
        %v1627 = vpop.f32.mrb[0].mxu0
        %v1628 = vadd.f32 0.0, %v1627
        %v1629 = vpop.f32.mrb[0].mxu0
        %v1630 = vpop.f32.mrb[0].mxu0
        %v1631 = vadd.f32 0.0, %v1630
        %v1632 = vpop.f32.mrb[0].mxu0
        %1633 = vmatprep.mubr.bf16.mxu0 0
        %1634 = vmatmul.mubr.bf16.gmra.mrb[0].mxu0 %v1496
        %v1635 = vpop.f32.mrb[0].mxu0
        %v1636 = vadd.f32 0.0, %v1635
        %v1637 = vpop.f32.mrb[0].mxu0
        %v1638 = vpop.f32.mrb[0].mxu0
        %v1639 = vadd.f32 0.0, %v1638
        %v1640 = vpop.f32.mrb[0].mxu0
        %1641 = vmatprep.mubr.bf16.mxu0 0
        %1642 = vmatmul.mubr.bf16.gmra.mrb[0].mxu0 %v1499
        %v1643 = vpop.f32.mrb[0].mxu0
        %v1644 = vadd.f32 0.0, %v1643
        %v1645 = vpop.f32.mrb[0].mxu0
        %v1646 = vpop.f32.mrb[0].mxu0
        %v1647 = vadd.f32 0.0, %v1646
        %v1648 = vpop.f32.mrb[0].mxu0
        %1649 = vmatprep.mubr.bf16.mxu0 0
        %1650 = vmatmul.mubr.bf16.gmra.mrb[0].mxu0 %v1502
        %v1651 = vpop.f32.mrb[0].mxu0
        %v1652 = vadd.f32 0.0, %v1651
        %v1653 = vpop.f32.mrb[0].mxu0
        %v1654 = vpop.f32.mrb[0].mxu0
        %v1655 = vadd.f32 0.0, %v1654
        %v1656 = vpop.f32.mrb[0].mxu0
        %1657 = vmatprep.mubr.bf16.mxu0 0
        %1658 = vmatmul.mubr.bf16.gmra.mrb[0].mxu0 %v1505
        %v1659 = vpop.f32.mrb[0].mxu0
        %v1660 = vadd.f32 0.0, %v1659
        %v1661 = vpop.f32.mrb[0].mxu0
        %v1662 = vpop.f32.mrb[0].mxu0
        %v1663 = vadd.f32 0.0, %v1662
        %v1664 = vpop.f32.mrb[0].mxu0
        %1665 = vmatprep.mubr.bf16.mxu0 0
        %1666 = vmatmul.mubr.bf16.gmra.mrb[0].mxu0 %v1508
        %v1667 = vpop.f32.mrb[0].mxu0
        %v1668 = vadd.f32 0.0, %v1667
        %v1669 = vpop.f32.mrb[0].mxu0
        %v1670 = vpop.f32.mrb[0].mxu0
        %v1671 = vadd.f32 0.0, %v1670
        %v1672 = vpop.f32.mrb[0].mxu0
        %1673 = vdwg.mxu0
        %v1674 = vadd.f32 %v1123, %v1548
        %v1675 = vadd.f32 %v1126, %v1551
        %v1676 = vadd.f32 %v1131, %v1556
        %v1677 = vadd.f32 %v1134, %v1559
        %v1678 = vadd.f32 %v1139, %v1564
        %v1679 = vadd.f32 %v1142, %v1567
        %v1680 = vadd.f32 %v1147, %v1572
        %v1681 = vadd.f32 %v1150, %v1575
        %v1682 = vadd.f32 %v1155, %v1580
        %v1683 = vadd.f32 %v1158, %v1583
        %v1684 = vadd.f32 %v1163, %v1588
        %v1685 = vadd.f32 %v1166, %v1591
        %v1686 = vadd.f32 %v1171, %v1596
        %v1687 = vadd.f32 %v1174, %v1599
        %v1688 = vadd.f32 %v1179, %v1604
        %v1689 = vadd.f32 %v1182, %v1607
        %v1690 = vadd.f32 %v1187, %v1612
        %v1691 = vadd.f32 %v1190, %v1615
        %v1692 = vadd.f32 %v1195, %v1620
        %v1693 = vadd.f32 %v1198, %v1623
        %v1694 = vadd.f32 %v1203, %v1628
        %v1695 = vadd.f32 %v1206, %v1631
        %v1696 = vadd.f32 %v1211, %v1636
        %v1697 = vadd.f32 %v1214, %v1639
        %v1698 = vadd.f32 %v1219, %v1644
        %v1699 = vadd.f32 %v1222, %v1647
        %v1700 = vadd.f32 %v1227, %v1652
        %v1701 = vadd.f32 %v1230, %v1655
        %v1702 = vadd.f32 %v1235, %v1660
        %v1703 = vadd.f32 %v1238, %v1663
        %v1704 = vadd.f32 %v1243, %v1668
        %v1705 = vadd.f32 %v1246, %v1671
        %s1706 = scalar_lea.vmem %s219, 12 [#allocation2]
        %v1707 = vld [vmem:[%s1706] sm:$0xf]
        %v1708 = vld [vmem:[%s1706 + $0x4] sm:$0xf]
        %v1709 = vld [vmem:[%s1706 + $0xc] sm:$0xf]
        %v1710 = vld [vmem:[%s1706 + $0x10] sm:$0xf]
        %v1711 = vld [vmem:[%s1706 + $0x18] sm:$0xf]
        %v1712 = vld [vmem:[%s1706 + $0x1c] sm:$0xf]
        %v1713 = vld [vmem:[%s1706 + $0x24] sm:$0xf]
        %v1714 = vld [vmem:[%s1706 + $0x28] sm:$0xf]
        %v1715 = vld [vmem:[%s1706 + $0x30] sm:$0xf]
        %v1716 = vld [vmem:[%s1706 + $0x34] sm:$0xf]
        %v1717 = vld [vmem:[%s1706 + $0x3c] sm:$0xf]
        %v1718 = vld [vmem:[%s1706 + $0x40] sm:$0xf]
        %v1719 = vld [vmem:[%s1706 + $0x48] sm:$0xf]
        %v1720 = vld [vmem:[%s1706 + $0x4c] sm:$0xf]
        %v1721 = vld [vmem:[%s1706 + $0x54] sm:$0xf]
        %v1722 = vld [vmem:[%s1706 + $0x58] sm:$0xf]
        %v1723 = vld [vmem:[%s1706 + $0x60] sm:$0xf]
        %v1724 = vld [vmem:[%s1706 + $0x64] sm:$0xf]
        %v1725 = vld [vmem:[%s1706 + $0x6c] sm:$0xf]
        %v1726 = vld [vmem:[%s1706 + $0x70] sm:$0xf]
        %v1727 = vld [vmem:[%s1706 + $0x78] sm:$0xf]
        %v1728 = vld [vmem:[%s1706 + $0x7c] sm:$0xf]
        %v1729 = vld [vmem:[%s1706 + $0x84] sm:$0xf]
        %v1730 = vld [vmem:[%s1706 + $0x88] sm:$0xf]
        %v1731 = vld [vmem:[%s1706 + $0x90] sm:$0xf]
        %v1732 = vld [vmem:[%s1706 + $0x94] sm:$0xf]
        %v1733 = vld [vmem:[%s1706 + $0x9c] sm:$0xf]
        %v1734 = vld [vmem:[%s1706 + $0xa0] sm:$0xf]
        %v1735 = vld [vmem:[%s1706 + $0xa8] sm:$0xf]
        %v1736 = vld [vmem:[%s1706 + $0xac] sm:$0xf]
        %v1737 = vld [vmem:[%s1706 + $0xb4] sm:$0xf]
        %v1738 = vld [vmem:[%s1706 + $0xb8] sm:$0xf]
        %s1739 = scalar_lea.vmem [#allocation5], 6
        %v1740 = vld [vmem:[%s1739] sm:$0x3]
        %v1773 = vunpack.c.l.b16 %v1707
        %v1774 = vunpack.c.l.b16 %v1708
        %v1775 = vunpack.c.l.b16 %v1709
        %v1776 = vunpack.c.l.b16 %v1710
        %v1777 = vunpack.c.l.b16 %v1711
        %v1778 = vunpack.c.l.b16 %v1712
        %v1779 = vunpack.c.l.b16 %v1713
        %v1780 = vunpack.c.l.b16 %v1714
        %v1781 = vunpack.c.l.b16 %v1715
        %v1782 = vunpack.c.l.b16 %v1716
        %v1783 = vunpack.c.l.b16 %v1717
        %v1784 = vunpack.c.l.b16 %v1718
        %v1785 = vunpack.c.l.b16 %v1719
        %v1786 = vunpack.c.l.b16 %v1720
        %v1787 = vunpack.c.l.b16 %v1721
        %v1788 = vunpack.c.l.b16 %v1722
        %v1789 = vunpack.c.l.b16 %v1723
        %v1790 = vunpack.c.l.b16 %v1724
        %v1791 = vunpack.c.l.b16 %v1725
        %v1792 = vunpack.c.l.b16 %v1726
        %v1793 = vunpack.c.l.b16 %v1727
        %v1794 = vunpack.c.l.b16 %v1728
        %v1795 = vunpack.c.l.b16 %v1729
        %v1796 = vunpack.c.l.b16 %v1730
        %v1797 = vunpack.c.l.b16 %v1731
        %v1798 = vunpack.c.l.b16 %v1732
        %v1799 = vunpack.c.l.b16 %v1733
        %v1800 = vunpack.c.l.b16 %v1734
        %v1801 = vunpack.c.l.b16 %v1735
        %v1802 = vunpack.c.l.b16 %v1736
        %v1803 = vunpack.c.l.b16 %v1737
        %v1804 = vunpack.c.l.b16 %v1738
        %v1805 = vpack.c.b16 %v1774, %v1773
        %v1806 = vpack.c.b16 %v1776, %v1775
        %v1807 = vpack.c.b16 %v1778, %v1777
        %v1808 = vpack.c.b16 %v1780, %v1779
        %v1809 = vpack.c.b16 %v1782, %v1781
        %v1810 = vpack.c.b16 %v1784, %v1783
        %v1811 = vpack.c.b16 %v1786, %v1785
        %v1812 = vpack.c.b16 %v1788, %v1787
        %v1813 = vpack.c.b16 %v1790, %v1789
        %v1814 = vpack.c.b16 %v1792, %v1791
        %v1815 = vpack.c.b16 %v1794, %v1793
        %v1816 = vpack.c.b16 %v1796, %v1795
        %v1817 = vpack.c.b16 %v1798, %v1797
        %v1818 = vpack.c.b16 %v1800, %v1799
        %v1819 = vpack.c.b16 %v1802, %v1801
        %v1820 = vpack.c.b16 %v1804, %v1803
        %v1822 = vsel %vm743, %v1805, 0
        %v1825 = vsel %vm743, %v1806, 0
        %v1828 = vsel %vm743, %v1807, 0
        %v1831 = vsel %vm743, %v1808, 0
        %v1834 = vsel %vm743, %v1809, 0
        %v1837 = vsel %vm743, %v1810, 0
        %v1840 = vsel %vm743, %v1811, 0
        %v1843 = vsel %vm743, %v1812, 0
        %v1846 = vsel %vm743, %v1813, 0
        %v1849 = vsel %vm743, %v1814, 0
        %v1852 = vsel %vm743, %v1815, 0
        %v1855 = vsel %vm743, %v1816, 0
        %v1858 = vsel %vm743, %v1817, 0
        %v1861 = vsel %vm743, %v1818, 0
        %v1864 = vsel %vm743, %v1819, 0
        %v1867 = vsel %vm743, %v1820, 0
        %v1870 = vsel %vm792, %v1740, 0
        %1872 = vmatprep.subr.bf16.mxu0 0
        %1873 = vmatpush1.bf16.msra.mxu0 %v1870
        %1874 = vmatprep.subr.bf16.mxu0 0
        %1875 = vmatpush1.bf16.msra.mxu0 0
        %1876 = vmatprep.subr.bf16.mxu0 0
        %1877 = vmatpush1.bf16.msra.mxu0 0
        %1878 = vmatprep.subr.bf16.mxu0 0
        %1879 = vmatpush1.bf16.msra.mxu0 0
        %1880 = vmatprep.subr.bf16.mxu0 0
        %1881 = vmatpush1.bf16.msra.mxu0 0
        %1882 = vmatprep.subr.bf16.mxu0 0
        %1883 = vmatpush1.bf16.msra.mxu0 0
        %1884 = vmatprep.subr.bf16.mxu0 0
        %1885 = vmatpush1.bf16.msra.mxu0 0
        %1886 = vmatprep.subr.bf16.mxu0 0
        %1887 = vmatpush1.bf16.msra.mxu0 0
        %1888 = vmatprep.subr.bf16.mxu0 0
        %1889 = vmatpush1.bf16.msra.mxu0 0
        %1890 = vmatprep.subr.bf16.mxu0 0
        %1891 = vmatpush1.bf16.msra.mxu0 0
        %1892 = vmatprep.subr.bf16.mxu0 0
        %1893 = vmatpush1.bf16.msra.mxu0 0
        %1894 = vmatprep.subr.bf16.mxu0 0
        %1895 = vmatpush1.bf16.msra.mxu0 0
        %1896 = vmatprep.subr.bf16.mxu0 0
        %1897 = vmatpush1.bf16.msra.mxu0 0
        %1898 = vmatprep.subr.bf16.mxu0 0
        %1899 = vmatpush1.bf16.msra.mxu0 0
        %1900 = vmatprep.subr.bf16.mxu0 0
        %1901 = vmatpush1.bf16.msra.mxu0 0
        %1902 = vmatprep.subr.bf16.mxu0 0
        %1903 = vmatpush1.bf16.msra.mxu0 0
        %1904 = vmatprep.mubr.bf16.mxu0 0
        %1905 = vmatmul.mubr.bf16.gmra.mrb[0].mxu0 %v1822
        %v1906 = vpop.f32.mrb[0].mxu0
        %v1907 = vadd.f32 0.0, %v1906
        %v1908 = vpop.f32.mrb[0].mxu0
        %v1909 = vpop.f32.mrb[0].mxu0
        %v1910 = vadd.f32 0.0, %v1909
        %v1911 = vpop.f32.mrb[0].mxu0
        %1912 = vmatprep.mubr.bf16.mxu0 0
        %1913 = vmatmul.mubr.bf16.gmra.mrb[0].mxu0 %v1825
        %v1914 = vpop.f32.mrb[0].mxu0
        %v1915 = vadd.f32 0.0, %v1914
        %v1916 = vpop.f32.mrb[0].mxu0
        %v1917 = vpop.f32.mrb[0].mxu0
        %v1918 = vadd.f32 0.0, %v1917
        %v1919 = vpop.f32.mrb[0].mxu0
        %1920 = vmatprep.mubr.bf16.mxu0 0
        %1921 = vmatmul.mubr.bf16.gmra.mrb[0].mxu0 %v1828
        %v1922 = vpop.f32.mrb[0].mxu0
        %v1923 = vadd.f32 0.0, %v1922
        %v1924 = vpop.f32.mrb[0].mxu0
        %v1925 = vpop.f32.mrb[0].mxu0
        %v1926 = vadd.f32 0.0, %v1925
        %v1927 = vpop.f32.mrb[0].mxu0
        %1928 = vmatprep.mubr.bf16.mxu0 0
        %1929 = vmatmul.mubr.bf16.gmra.mrb[0].mxu0 %v1831
        %v1930 = vpop.f32.mrb[0].mxu0
        %v1931 = vadd.f32 0.0, %v1930
        %v1932 = vpop.f32.mrb[0].mxu0
        %v1933 = vpop.f32.mrb[0].mxu0
        %v1934 = vadd.f32 0.0, %v1933
        %v1935 = vpop.f32.mrb[0].mxu0
        %1936 = vmatprep.mubr.bf16.mxu0 0
        %1937 = vmatmul.mubr.bf16.gmra.mrb[0].mxu0 %v1834
        %v1938 = vpop.f32.mrb[0].mxu0
        %v1939 = vadd.f32 0.0, %v1938
        %v1940 = vpop.f32.mrb[0].mxu0
        %v1941 = vpop.f32.mrb[0].mxu0
        %v1942 = vadd.f32 0.0, %v1941
        %v1943 = vpop.f32.mrb[0].mxu0
        %1944 = vmatprep.mubr.bf16.mxu0 0
        %1945 = vmatmul.mubr.bf16.gmra.mrb[0].mxu0 %v1837
        %v1946 = vpop.f32.mrb[0].mxu0
        %v1947 = vadd.f32 0.0, %v1946
        %v1948 = vpop.f32.mrb[0].mxu0
        %v1949 = vpop.f32.mrb[0].mxu0
        %v1950 = vadd.f32 0.0, %v1949
        %v1951 = vpop.f32.mrb[0].mxu0
        %1952 = vmatprep.mubr.bf16.mxu0 0
        %1953 = vmatmul.mubr.bf16.gmra.mrb[0].mxu0 %v1840
        %v1954 = vpop.f32.mrb[0].mxu0
        %v1955 = vadd.f32 0.0, %v1954
        %v1956 = vpop.f32.mrb[0].mxu0
        %v1957 = vpop.f32.mrb[0].mxu0
        %v1958 = vadd.f32 0.0, %v1957
        %v1959 = vpop.f32.mrb[0].mxu0
        %1960 = vmatprep.mubr.bf16.mxu0 0
        %1961 = vmatmul.mubr.bf16.gmra.mrb[0].mxu0 %v1843
        %v1962 = vpop.f32.mrb[0].mxu0
        %v1963 = vadd.f32 0.0, %v1962
        %v1964 = vpop.f32.mrb[0].mxu0
        %v1965 = vpop.f32.mrb[0].mxu0
        %v1966 = vadd.f32 0.0, %v1965
        %v1967 = vpop.f32.mrb[0].mxu0
        %1968 = vmatprep.mubr.bf16.mxu0 0
        %1969 = vmatmul.mubr.bf16.gmra.mrb[0].mxu0 %v1846
        %v1970 = vpop.f32.mrb[0].mxu0
        %v1971 = vadd.f32 0.0, %v1970
        %v1972 = vpop.f32.mrb[0].mxu0
        %v1973 = vpop.f32.mrb[0].mxu0
        %v1974 = vadd.f32 0.0, %v1973
        %v1975 = vpop.f32.mrb[0].mxu0
        %1976 = vmatprep.mubr.bf16.mxu0 0
        %1977 = vmatmul.mubr.bf16.gmra.mrb[0].mxu0 %v1849
        %v1978 = vpop.f32.mrb[0].mxu0
        %v1979 = vadd.f32 0.0, %v1978
        %v1980 = vpop.f32.mrb[0].mxu0
        %v1981 = vpop.f32.mrb[0].mxu0
        %v1982 = vadd.f32 0.0, %v1981
        %v1983 = vpop.f32.mrb[0].mxu0
        %1984 = vmatprep.mubr.bf16.mxu0 0
        %1985 = vmatmul.mubr.bf16.gmra.mrb[0].mxu0 %v1852
        %v1986 = vpop.f32.mrb[0].mxu0
        %v1987 = vadd.f32 0.0, %v1986
        %v1988 = vpop.f32.mrb[0].mxu0
        %v1989 = vpop.f32.mrb[0].mxu0
        %v1990 = vadd.f32 0.0, %v1989
        %v1991 = vpop.f32.mrb[0].mxu0
        %1992 = vmatprep.mubr.bf16.mxu0 0
        %1993 = vmatmul.mubr.bf16.gmra.mrb[0].mxu0 %v1855
        %v1994 = vpop.f32.mrb[0].mxu0
        %v1995 = vadd.f32 0.0, %v1994
        %v1996 = vpop.f32.mrb[0].mxu0
        %v1997 = vpop.f32.mrb[0].mxu0
        %v1998 = vadd.f32 0.0, %v1997
        %v1999 = vpop.f32.mrb[0].mxu0
        %2000 = vmatprep.mubr.bf16.mxu0 0
        %2001 = vmatmul.mubr.bf16.gmra.mrb[0].mxu0 %v1858
        %v2002 = vpop.f32.mrb[0].mxu0
        %v2003 = vadd.f32 0.0, %v2002
        %v2004 = vpop.f32.mrb[0].mxu0
        %v2005 = vpop.f32.mrb[0].mxu0
        %v2006 = vadd.f32 0.0, %v2005
        %v2007 = vpop.f32.mrb[0].mxu0
        %2008 = vmatprep.mubr.bf16.mxu0 0
        %2009 = vmatmul.mubr.bf16.gmra.mrb[0].mxu0 %v1861
        %v2010 = vpop.f32.mrb[0].mxu0
        %v2011 = vadd.f32 0.0, %v2010
        %v2012 = vpop.f32.mrb[0].mxu0
        %v2013 = vpop.f32.mrb[0].mxu0
        %v2014 = vadd.f32 0.0, %v2013
        %v2015 = vpop.f32.mrb[0].mxu0
        %2016 = vmatprep.mubr.bf16.mxu0 0
        %2017 = vmatmul.mubr.bf16.gmra.mrb[0].mxu0 %v1864
        %v2018 = vpop.f32.mrb[0].mxu0
        %v2019 = vadd.f32 0.0, %v2018
        %v2020 = vpop.f32.mrb[0].mxu0
        %v2021 = vpop.f32.mrb[0].mxu0
        %v2022 = vadd.f32 0.0, %v2021
        %v2023 = vpop.f32.mrb[0].mxu0
        %2024 = vmatprep.mubr.bf16.mxu0 0
        %2025 = vmatmul.mubr.bf16.gmra.mrb[0].mxu0 %v1867
        %v2026 = vpop.f32.mrb[0].mxu0
        %v2027 = vadd.f32 0.0, %v2026
        %v2028 = vpop.f32.mrb[0].mxu0
        %v2029 = vpop.f32.mrb[0].mxu0
        %v2030 = vadd.f32 0.0, %v2029
        %v2031 = vpop.f32.mrb[0].mxu0
        %2032 = vdwg.mxu0
        %v2033 = vadd.f32 %v1674, %v1907
        %v2034 = vadd.f32 %v1675, %v1910
        %v2035 = vadd.f32 %v1676, %v1915
        %v2036 = vadd.f32 %v1677, %v1918
        %v2037 = vadd.f32 %v1678, %v1923
        %v2038 = vadd.f32 %v1679, %v1926
        %v2039 = vadd.f32 %v1680, %v1931
        %v2040 = vadd.f32 %v1681, %v1934
        %v2041 = vadd.f32 %v1682, %v1939
        %v2042 = vadd.f32 %v1683, %v1942
        %v2043 = vadd.f32 %v1684, %v1947
        %v2044 = vadd.f32 %v1685, %v1950
        %v2045 = vadd.f32 %v1686, %v1955
        %v2046 = vadd.f32 %v1687, %v1958
        %v2047 = vadd.f32 %v1688, %v1963
        %v2048 = vadd.f32 %v1689, %v1966
        %v2049 = vadd.f32 %v1690, %v1971
        %v2050 = vadd.f32 %v1691, %v1974
        %v2051 = vadd.f32 %v1692, %v1979
        %v2052 = vadd.f32 %v1693, %v1982
        %v2053 = vadd.f32 %v1694, %v1987
        %v2054 = vadd.f32 %v1695, %v1990
        %v2055 = vadd.f32 %v1696, %v1995
        %v2056 = vadd.f32 %v1697, %v1998
        %v2057 = vadd.f32 %v1698, %v2003
        %v2058 = vadd.f32 %v1699, %v2006
        %v2059 = vadd.f32 %v1700, %v2011
        %v2060 = vadd.f32 %v1701, %v2014
        %v2061 = vadd.f32 %v1702, %v2019
        %v2062 = vadd.f32 %v1703, %v2022
        %v2063 = vadd.f32 %v1704, %v2027
        %v2064 = vadd.f32 %v1705, %v2030
        %v2065 = vld [vmem:[%s1706] sm:$0xf]
        %v2066 = vld [vmem:[%s1706 + $0x4] sm:$0xf]
        %v2067 = vld [vmem:[%s1706 + $0x8] sm:$0x1]
        %v2068 = vld [vmem:[%s1706 + $0xc] sm:$0xf]
        %v2069 = vld [vmem:[%s1706 + $0x10] sm:$0xf]
        %v2070 = vld [vmem:[%s1706 + $0x14] sm:$0x1]
        %v2071 = vld [vmem:[%s1706 + $0x18] sm:$0xf]
        %v2072 = vld [vmem:[%s1706 + $0x1c] sm:$0xf]
        %v2073 = vld [vmem:[%s1706 + $0x20] sm:$0x1]
        %v2074 = vld [vmem:[%s1706 + $0x24] sm:$0xf]
        %v2075 = vld [vmem:[%s1706 + $0x28] sm:$0xf]
        %v2076 = vld [vmem:[%s1706 + $0x2c] sm:$0x1]
        %v2077 = vld [vmem:[%s1706 + $0x30] sm:$0xf]
        %v2078 = vld [vmem:[%s1706 + $0x34] sm:$0xf]
        %v2079 = vld [vmem:[%s1706 + $0x38] sm:$0x1]
        %v2080 = vld [vmem:[%s1706 + $0x3c] sm:$0xf]
        %v2081 = vld [vmem:[%s1706 + $0x40] sm:$0xf]
        %v2082 = vld [vmem:[%s1706 + $0x44] sm:$0x1]
        %v2083 = vld [vmem:[%s1706 + $0x48] sm:$0xf]
        %v2084 = vld [vmem:[%s1706 + $0x4c] sm:$0xf]
        %v2085 = vld [vmem:[%s1706 + $0x50] sm:$0x1]
        %v2086 = vld [vmem:[%s1706 + $0x54] sm:$0xf]
        %v2087 = vld [vmem:[%s1706 + $0x58] sm:$0xf]
        %v2088 = vld [vmem:[%s1706 + $0x5c] sm:$0x1]
        %v2089 = vld [vmem:[%s1706 + $0x60] sm:$0xf]
        %v2090 = vld [vmem:[%s1706 + $0x64] sm:$0xf]
        %v2091 = vld [vmem:[%s1706 + $0x68] sm:$0x1]
        %v2092 = vld [vmem:[%s1706 + $0x6c] sm:$0xf]
        %v2093 = vld [vmem:[%s1706 + $0x70] sm:$0xf]
        %v2094 = vld [vmem:[%s1706 + $0x74] sm:$0x1]
        %v2095 = vld [vmem:[%s1706 + $0x78] sm:$0xf]
        %v2096 = vld [vmem:[%s1706 + $0x7c] sm:$0xf]
        %v2097 = vld [vmem:[%s1706 + $0x80] sm:$0x1]
        %v2098 = vld [vmem:[%s1706 + $0x84] sm:$0xf]
        %v2099 = vld [vmem:[%s1706 + $0x88] sm:$0xf]
        %v2100 = vld [vmem:[%s1706 + $0x8c] sm:$0x1]
        %v2101 = vld [vmem:[%s1706 + $0x90] sm:$0xf]
        %v2102 = vld [vmem:[%s1706 + $0x94] sm:$0xf]
        %v2103 = vld [vmem:[%s1706 + $0x98] sm:$0x1]
        %v2104 = vld [vmem:[%s1706 + $0x9c] sm:$0xf]
        %v2105 = vld [vmem:[%s1706 + $0xa0] sm:$0xf]
        %v2106 = vld [vmem:[%s1706 + $0xa4] sm:$0x1]
        %v2107 = vld [vmem:[%s1706 + $0xa8] sm:$0xf]
        %v2108 = vld [vmem:[%s1706 + $0xac] sm:$0xf]
        %v2109 = vld [vmem:[%s1706 + $0xb0] sm:$0x1]
        %v2110 = vld [vmem:[%s1706 + $0xb4] sm:$0xf]
        %v2111 = vld [vmem:[%s1706 + $0xb8] sm:$0xf]
        %v2112 = vld [vmem:[%s1706 + $0xbc] sm:$0x1]
        %v2114 = vshrl.u32 %v2065, 16
        %v2116 = vrot.slane %v2114, 4
        %v2117 = vshll.u32 %v2065, 16
        %v2119 = vrot.slane %v2117, 5
        %v2120 = vor.u32 %v2116, %v2119
        %v2121 = vrot.slane %v2120, 4
        %v2123 = vshll.u32 %v2066, 16
        %v2125 = vrot.slane %v2123, 5
        %v2126 = vsel %vm308, %v2121, %v2125
        %v2127 = vshrl.u32 %v2066, 16
        %v2129 = vrot.slane %v2127, 4
        %v2130 = vor.u32 %v2129, %v2125
        %v2131 = vrot.slane %v2130, 4
        %v2133 = vshll.u32 %v2067, 16
        %v2135 = vrot.slane %v2133, 5
        %v2136 = vsel %vm308, %v2131, %v2135
        %v2138 = vshrl.u32 %v2068, 16
        %v2140 = vrot.slane %v2138, 4
        %v2141 = vshll.u32 %v2068, 16
        %v2143 = vrot.slane %v2141, 5
        %v2144 = vor.u32 %v2140, %v2143
        %v2145 = vrot.slane %v2144, 4
        %v2147 = vshll.u32 %v2069, 16
        %v2149 = vrot.slane %v2147, 5
        %v2150 = vsel %vm308, %v2145, %v2149
        %v2151 = vshrl.u32 %v2069, 16
        %v2153 = vrot.slane %v2151, 4
        %v2154 = vor.u32 %v2153, %v2149
        %v2155 = vrot.slane %v2154, 4
        %v2157 = vshll.u32 %v2070, 16
        %v2159 = vrot.slane %v2157, 5
        %v2160 = vsel %vm308, %v2155, %v2159
        %v2162 = vshrl.u32 %v2071, 16
        %v2164 = vrot.slane %v2162, 4
        %v2165 = vshll.u32 %v2071, 16
        %v2167 = vrot.slane %v2165, 5
        %v2168 = vor.u32 %v2164, %v2167
        %v2169 = vrot.slane %v2168, 4
        %v2171 = vshll.u32 %v2072, 16
        %v2173 = vrot.slane %v2171, 5
        %v2174 = vsel %vm308, %v2169, %v2173
        %v2175 = vshrl.u32 %v2072, 16
        %v2177 = vrot.slane %v2175, 4
        %v2178 = vor.u32 %v2177, %v2173
        %v2179 = vrot.slane %v2178, 4
        %v2181 = vshll.u32 %v2073, 16
        %v2183 = vrot.slane %v2181, 5
        %v2184 = vsel %vm308, %v2179, %v2183
        %v2186 = vshrl.u32 %v2074, 16
        %v2188 = vrot.slane %v2186, 4
        %v2189 = vshll.u32 %v2074, 16
        %v2191 = vrot.slane %v2189, 5
        %v2192 = vor.u32 %v2188, %v2191
        %v2193 = vrot.slane %v2192, 4
        %v2195 = vshll.u32 %v2075, 16
        %v2197 = vrot.slane %v2195, 5
        %v2198 = vsel %vm308, %v2193, %v2197
        %v2199 = vshrl.u32 %v2075, 16
        %v2201 = vrot.slane %v2199, 4
        %v2202 = vor.u32 %v2201, %v2197
        %v2203 = vrot.slane %v2202, 4
        %v2205 = vshll.u32 %v2076, 16
        %v2207 = vrot.slane %v2205, 5
        %v2208 = vsel %vm308, %v2203, %v2207
        %v2210 = vshrl.u32 %v2077, 16
        %v2212 = vrot.slane %v2210, 4
        %v2213 = vshll.u32 %v2077, 16
        %v2215 = vrot.slane %v2213, 5
        %v2216 = vor.u32 %v2212, %v2215
        %v2217 = vrot.slane %v2216, 4
        %v2219 = vshll.u32 %v2078, 16
        %v2221 = vrot.slane %v2219, 5
        %v2222 = vsel %vm308, %v2217, %v2221
        %v2223 = vshrl.u32 %v2078, 16
        %v2225 = vrot.slane %v2223, 4
        %v2226 = vor.u32 %v2225, %v2221
        %v2227 = vrot.slane %v2226, 4
        %v2229 = vshll.u32 %v2079, 16
        %v2231 = vrot.slane %v2229, 5
        %v2232 = vsel %vm308, %v2227, %v2231
        %v2234 = vshrl.u32 %v2080, 16
        %v2236 = vrot.slane %v2234, 4
        %v2237 = vshll.u32 %v2080, 16
        %v2239 = vrot.slane %v2237, 5
        %v2240 = vor.u32 %v2236, %v2239
        %v2241 = vrot.slane %v2240, 4
        %v2243 = vshll.u32 %v2081, 16
        %v2245 = vrot.slane %v2243, 5
        %v2246 = vsel %vm308, %v2241, %v2245
        %v2247 = vshrl.u32 %v2081, 16
        %v2249 = vrot.slane %v2247, 4
        %v2250 = vor.u32 %v2249, %v2245
        %v2251 = vrot.slane %v2250, 4
        %v2253 = vshll.u32 %v2082, 16
        %v2255 = vrot.slane %v2253, 5
        %v2256 = vsel %vm308, %v2251, %v2255
        %v2258 = vshrl.u32 %v2083, 16
        %v2260 = vrot.slane %v2258, 4
        %v2261 = vshll.u32 %v2083, 16
        %v2263 = vrot.slane %v2261, 5
        %v2264 = vor.u32 %v2260, %v2263
        %v2265 = vrot.slane %v2264, 4
        %v2267 = vshll.u32 %v2084, 16
        %v2269 = vrot.slane %v2267, 5
        %v2270 = vsel %vm308, %v2265, %v2269
        %v2271 = vshrl.u32 %v2084, 16
        %v2273 = vrot.slane %v2271, 4
        %v2274 = vor.u32 %v2273, %v2269
        %v2275 = vrot.slane %v2274, 4
        %v2277 = vshll.u32 %v2085, 16
        %v2279 = vrot.slane %v2277, 5
        %v2280 = vsel %vm308, %v2275, %v2279
        %v2282 = vshrl.u32 %v2086, 16
        %v2284 = vrot.slane %v2282, 4
        %v2285 = vshll.u32 %v2086, 16
        %v2287 = vrot.slane %v2285, 5
        %v2288 = vor.u32 %v2284, %v2287
        %v2289 = vrot.slane %v2288, 4
        %v2291 = vshll.u32 %v2087, 16
        %v2293 = vrot.slane %v2291, 5
        %v2294 = vsel %vm308, %v2289, %v2293
        %v2295 = vshrl.u32 %v2087, 16
        %v2297 = vrot.slane %v2295, 4
        %v2298 = vor.u32 %v2297, %v2293
        %v2299 = vrot.slane %v2298, 4
        %v2301 = vshll.u32 %v2088, 16
        %v2303 = vrot.slane %v2301, 5
        %v2304 = vsel %vm308, %v2299, %v2303
        %v2306 = vshrl.u32 %v2089, 16
        %v2308 = vrot.slane %v2306, 4
        %v2309 = vshll.u32 %v2089, 16
        %v2311 = vrot.slane %v2309, 5
        %v2312 = vor.u32 %v2308, %v2311
        %v2313 = vrot.slane %v2312, 4
        %v2315 = vshll.u32 %v2090, 16
        %v2317 = vrot.slane %v2315, 5
        %v2318 = vsel %vm308, %v2313, %v2317
        %v2319 = vshrl.u32 %v2090, 16
        %v2321 = vrot.slane %v2319, 4
        %v2322 = vor.u32 %v2321, %v2317
        %v2323 = vrot.slane %v2322, 4
        %v2325 = vshll.u32 %v2091, 16
        %v2327 = vrot.slane %v2325, 5
        %v2328 = vsel %vm308, %v2323, %v2327
        %v2330 = vshrl.u32 %v2092, 16
        %v2332 = vrot.slane %v2330, 4
        %v2333 = vshll.u32 %v2092, 16
        %v2335 = vrot.slane %v2333, 5
        %v2336 = vor.u32 %v2332, %v2335
        %v2337 = vrot.slane %v2336, 4
        %v2339 = vshll.u32 %v2093, 16
        %v2341 = vrot.slane %v2339, 5
        %v2342 = vsel %vm308, %v2337, %v2341
        %v2343 = vshrl.u32 %v2093, 16
        %v2345 = vrot.slane %v2343, 4
        %v2346 = vor.u32 %v2345, %v2341
        %v2347 = vrot.slane %v2346, 4
        %v2349 = vshll.u32 %v2094, 16
        %v2351 = vrot.slane %v2349, 5
        %v2352 = vsel %vm308, %v2347, %v2351
        %v2354 = vshrl.u32 %v2095, 16
        %v2356 = vrot.slane %v2354, 4
        %v2357 = vshll.u32 %v2095, 16
        %v2359 = vrot.slane %v2357, 5
        %v2360 = vor.u32 %v2356, %v2359
        %v2361 = vrot.slane %v2360, 4
        %v2363 = vshll.u32 %v2096, 16
        %v2365 = vrot.slane %v2363, 5
        %v2366 = vsel %vm308, %v2361, %v2365
        %v2367 = vshrl.u32 %v2096, 16
        %v2369 = vrot.slane %v2367, 4
        %v2370 = vor.u32 %v2369, %v2365
        %v2371 = vrot.slane %v2370, 4
        %v2373 = vshll.u32 %v2097, 16
        %v2375 = vrot.slane %v2373, 5
        %v2376 = vsel %vm308, %v2371, %v2375
        %v2378 = vshrl.u32 %v2098, 16
        %v2380 = vrot.slane %v2378, 4
        %v2381 = vshll.u32 %v2098, 16
        %v2383 = vrot.slane %v2381, 5
        %v2384 = vor.u32 %v2380, %v2383
        %v2385 = vrot.slane %v2384, 4
        %v2387 = vshll.u32 %v2099, 16
        %v2389 = vrot.slane %v2387, 5
        %v2390 = vsel %vm308, %v2385, %v2389
        %v2391 = vshrl.u32 %v2099, 16
        %v2393 = vrot.slane %v2391, 4
        %v2394 = vor.u32 %v2393, %v2389
        %v2395 = vrot.slane %v2394, 4
        %v2397 = vshll.u32 %v2100, 16
        %v2399 = vrot.slane %v2397, 5
        %v2400 = vsel %vm308, %v2395, %v2399
        %v2402 = vshrl.u32 %v2101, 16
        %v2404 = vrot.slane %v2402, 4
        %v2405 = vshll.u32 %v2101, 16
        %v2407 = vrot.slane %v2405, 5
        %v2408 = vor.u32 %v2404, %v2407
        %v2409 = vrot.slane %v2408, 4
        %v2411 = vshll.u32 %v2102, 16
        %v2413 = vrot.slane %v2411, 5
        %v2414 = vsel %vm308, %v2409, %v2413
        %v2415 = vshrl.u32 %v2102, 16
        %v2417 = vrot.slane %v2415, 4
        %v2418 = vor.u32 %v2417, %v2413
        %v2419 = vrot.slane %v2418, 4
        %v2421 = vshll.u32 %v2103, 16
        %v2423 = vrot.slane %v2421, 5
        %v2424 = vsel %vm308, %v2419, %v2423
        %v2426 = vshrl.u32 %v2104, 16
        %v2428 = vrot.slane %v2426, 4
        %v2429 = vshll.u32 %v2104, 16
        %v2431 = vrot.slane %v2429, 5
        %v2432 = vor.u32 %v2428, %v2431
        %v2433 = vrot.slane %v2432, 4
        %v2435 = vshll.u32 %v2105, 16
        %v2437 = vrot.slane %v2435, 5
        %v2438 = vsel %vm308, %v2433, %v2437
        %v2439 = vshrl.u32 %v2105, 16
        %v2441 = vrot.slane %v2439, 4
        %v2442 = vor.u32 %v2441, %v2437
        %v2443 = vrot.slane %v2442, 4
        %v2445 = vshll.u32 %v2106, 16
        %v2447 = vrot.slane %v2445, 5
        %v2448 = vsel %vm308, %v2443, %v2447
        %v2450 = vshrl.u32 %v2107, 16
        %v2452 = vrot.slane %v2450, 4
        %v2453 = vshll.u32 %v2107, 16
        %v2455 = vrot.slane %v2453, 5
        %v2456 = vor.u32 %v2452, %v2455
        %v2457 = vrot.slane %v2456, 4
        %v2459 = vshll.u32 %v2108, 16
        %v2461 = vrot.slane %v2459, 5
        %v2462 = vsel %vm308, %v2457, %v2461
        %v2463 = vshrl.u32 %v2108, 16
        %v2465 = vrot.slane %v2463, 4
        %v2466 = vor.u32 %v2465, %v2461
        %v2467 = vrot.slane %v2466, 4
        %v2469 = vshll.u32 %v2109, 16
        %v2471 = vrot.slane %v2469, 5
        %v2472 = vsel %vm308, %v2467, %v2471
        %v2474 = vshrl.u32 %v2110, 16
        %v2476 = vrot.slane %v2474, 4
        %v2477 = vshll.u32 %v2110, 16
        %v2479 = vrot.slane %v2477, 5
        %v2480 = vor.u32 %v2476, %v2479
        %v2481 = vrot.slane %v2480, 4
        %v2483 = vshll.u32 %v2111, 16
        %v2485 = vrot.slane %v2483, 5
        %v2486 = vsel %vm308, %v2481, %v2485
        %v2487 = vshrl.u32 %v2111, 16
        %v2489 = vrot.slane %v2487, 4
        %v2490 = vor.u32 %v2489, %v2485
        %v2491 = vrot.slane %v2490, 4
        %v2493 = vshll.u32 %v2112, 16
        %v2495 = vrot.slane %v2493, 5
        %v2496 = vsel %vm308, %v2491, %v2495
        %s2497 = scalar_lea.vmem [#allocation5], 8
        %v2498 = vld [vmem:[%s2497] sm:$0x3]
        %v2499 = vunpack.c.l.b16 %v2126
        %v2500 = vunpack.c.l.b16 %v2136
        %v2501 = vunpack.c.l.b16 %v2150
        %v2502 = vunpack.c.l.b16 %v2160
        %v2503 = vunpack.c.l.b16 %v2174
        %v2504 = vunpack.c.l.b16 %v2184
        %v2505 = vunpack.c.l.b16 %v2198
        %v2506 = vunpack.c.l.b16 %v2208
        %v2507 = vunpack.c.l.b16 %v2222
        %v2508 = vunpack.c.l.b16 %v2232
        %v2509 = vunpack.c.l.b16 %v2246
        %v2510 = vunpack.c.l.b16 %v2256
        %v2511 = vunpack.c.l.b16 %v2270
        %v2512 = vunpack.c.l.b16 %v2280
        %v2513 = vunpack.c.l.b16 %v2294
        %v2514 = vunpack.c.l.b16 %v2304
        %v2515 = vunpack.c.l.b16 %v2318
        %v2516 = vunpack.c.l.b16 %v2328
        %v2517 = vunpack.c.l.b16 %v2342
        %v2518 = vunpack.c.l.b16 %v2352
        %v2519 = vunpack.c.l.b16 %v2366
        %v2520 = vunpack.c.l.b16 %v2376
        %v2521 = vunpack.c.l.b16 %v2390
        %v2522 = vunpack.c.l.b16 %v2400
        %v2523 = vunpack.c.l.b16 %v2414
        %v2524 = vunpack.c.l.b16 %v2424
        %v2525 = vunpack.c.l.b16 %v2438
        %v2526 = vunpack.c.l.b16 %v2448
        %v2527 = vunpack.c.l.b16 %v2462
        %v2528 = vunpack.c.l.b16 %v2472
        %v2529 = vunpack.c.l.b16 %v2486
        %v2530 = vunpack.c.l.b16 %v2496
        %v2531 = vpack.c.b16 %v2500, %v2499
        %v2532 = vpack.c.b16 %v2502, %v2501
        %v2533 = vpack.c.b16 %v2504, %v2503
        %v2534 = vpack.c.b16 %v2506, %v2505
        %v2535 = vpack.c.b16 %v2508, %v2507
        %v2536 = vpack.c.b16 %v2510, %v2509
        %v2537 = vpack.c.b16 %v2512, %v2511
        %v2538 = vpack.c.b16 %v2514, %v2513
        %v2539 = vpack.c.b16 %v2516, %v2515
        %v2540 = vpack.c.b16 %v2518, %v2517
        %v2541 = vpack.c.b16 %v2520, %v2519
        %v2542 = vpack.c.b16 %v2522, %v2521
        %v2543 = vpack.c.b16 %v2524, %v2523
        %v2544 = vpack.c.b16 %v2526, %v2525
        %v2545 = vpack.c.b16 %v2528, %v2527
        %v2546 = vpack.c.b16 %v2530, %v2529
        %v2548 = vsel %vm743, %v2531, 0
        %v2551 = vsel %vm743, %v2532, 0
        %v2554 = vsel %vm743, %v2533, 0
        %v2557 = vsel %vm743, %v2534, 0
        %v2560 = vsel %vm743, %v2535, 0
        %v2563 = vsel %vm743, %v2536, 0
        %v2566 = vsel %vm743, %v2537, 0
        %v2569 = vsel %vm743, %v2538, 0
        %v2572 = vsel %vm743, %v2539, 0
        %v2575 = vsel %vm743, %v2540, 0
        %v2578 = vsel %vm743, %v2541, 0
        %v2581 = vsel %vm743, %v2542, 0
        %v2584 = vsel %vm743, %v2543, 0
        %v2587 = vsel %vm743, %v2544, 0
        %v2590 = vsel %vm743, %v2545, 0
        %v2593 = vsel %vm743, %v2546, 0
        %v2596 = vsel %vm792, %v2498, 0
        %2598 = vmatprep.subr.bf16.mxu0 0
        %2599 = vmatpush1.bf16.msra.mxu0 %v2596
        %2600 = vmatprep.subr.bf16.mxu0 0
        %2601 = vmatpush1.bf16.msra.mxu0 0
        %2602 = vmatprep.subr.bf16.mxu0 0
        %2603 = vmatpush1.bf16.msra.mxu0 0
        %2604 = vmatprep.subr.bf16.mxu0 0
        %2605 = vmatpush1.bf16.msra.mxu0 0
        %2606 = vmatprep.subr.bf16.mxu0 0
        %2607 = vmatpush1.bf16.msra.mxu0 0
        %2608 = vmatprep.subr.bf16.mxu0 0
        %2609 = vmatpush1.bf16.msra.mxu0 0
        %2610 = vmatprep.subr.bf16.mxu0 0
        %2611 = vmatpush1.bf16.msra.mxu0 0
        %2612 = vmatprep.subr.bf16.mxu0 0
        %2613 = vmatpush1.bf16.msra.mxu0 0
        %2614 = vmatprep.subr.bf16.mxu0 0
        %2615 = vmatpush1.bf16.msra.mxu0 0
        %2616 = vmatprep.subr.bf16.mxu0 0
        %2617 = vmatpush1.bf16.msra.mxu0 0
        %2618 = vmatprep.subr.bf16.mxu0 0
        %2619 = vmatpush1.bf16.msra.mxu0 0
        %2620 = vmatprep.subr.bf16.mxu0 0
        %2621 = vmatpush1.bf16.msra.mxu0 0
        %2622 = vmatprep.subr.bf16.mxu0 0
        %2623 = vmatpush1.bf16.msra.mxu0 0
        %2624 = vmatprep.subr.bf16.mxu0 0
        %2625 = vmatpush1.bf16.msra.mxu0 0
        %2626 = vmatprep.subr.bf16.mxu0 0
        %2627 = vmatpush1.bf16.msra.mxu0 0
        %2628 = vmatprep.subr.bf16.mxu0 0
        %2629 = vmatpush1.bf16.msra.mxu0 0
        %2630 = vmatprep.mubr.bf16.mxu0 0
        %2631 = vmatmul.mubr.bf16.gmra.mrb[0].mxu0 %v2548
        %v2632 = vpop.f32.mrb[0].mxu0
        %v2633 = vadd.f32 0.0, %v2632
        %v2634 = vpop.f32.mrb[0].mxu0
        %v2635 = vpop.f32.mrb[0].mxu0
        %v2636 = vadd.f32 0.0, %v2635
        %v2637 = vpop.f32.mrb[0].mxu0
        %2638 = vmatprep.mubr.bf16.mxu0 0
        %2639 = vmatmul.mubr.bf16.gmra.mrb[0].mxu0 %v2551
        %v2640 = vpop.f32.mrb[0].mxu0
        %v2641 = vadd.f32 0.0, %v2640
        %v2642 = vpop.f32.mrb[0].mxu0
        %v2643 = vpop.f32.mrb[0].mxu0
        %v2644 = vadd.f32 0.0, %v2643
        %v2645 = vpop.f32.mrb[0].mxu0
        %2646 = vmatprep.mubr.bf16.mxu0 0
        %2647 = vmatmul.mubr.bf16.gmra.mrb[0].mxu0 %v2554
        %v2648 = vpop.f32.mrb[0].mxu0
        %v2649 = vadd.f32 0.0, %v2648
        %v2650 = vpop.f32.mrb[0].mxu0
        %v2651 = vpop.f32.mrb[0].mxu0
        %v2652 = vadd.f32 0.0, %v2651
        %v2653 = vpop.f32.mrb[0].mxu0
        %2654 = vmatprep.mubr.bf16.mxu0 0
        %2655 = vmatmul.mubr.bf16.gmra.mrb[0].mxu0 %v2557
        %v2656 = vpop.f32.mrb[0].mxu0
        %v2657 = vadd.f32 0.0, %v2656
        %v2658 = vpop.f32.mrb[0].mxu0
        %v2659 = vpop.f32.mrb[0].mxu0
        %v2660 = vadd.f32 0.0, %v2659
        %v2661 = vpop.f32.mrb[0].mxu0
        %2662 = vmatprep.mubr.bf16.mxu0 0
        %2663 = vmatmul.mubr.bf16.gmra.mrb[0].mxu0 %v2560
        %v2664 = vpop.f32.mrb[0].mxu0
        %v2665 = vadd.f32 0.0, %v2664
        %v2666 = vpop.f32.mrb[0].mxu0
        %v2667 = vpop.f32.mrb[0].mxu0
        %v2668 = vadd.f32 0.0, %v2667
        %v2669 = vpop.f32.mrb[0].mxu0
        %2670 = vmatprep.mubr.bf16.mxu0 0
        %2671 = vmatmul.mubr.bf16.gmra.mrb[0].mxu0 %v2563
        %v2672 = vpop.f32.mrb[0].mxu0
        %v2673 = vadd.f32 0.0, %v2672
        %v2674 = vpop.f32.mrb[0].mxu0
        %v2675 = vpop.f32.mrb[0].mxu0
        %v2676 = vadd.f32 0.0, %v2675
        %v2677 = vpop.f32.mrb[0].mxu0
        %2678 = vmatprep.mubr.bf16.mxu0 0
        %2679 = vmatmul.mubr.bf16.gmra.mrb[0].mxu0 %v2566
        %v2680 = vpop.f32.mrb[0].mxu0
        %v2681 = vadd.f32 0.0, %v2680
        %v2682 = vpop.f32.mrb[0].mxu0
        %v2683 = vpop.f32.mrb[0].mxu0
        %v2684 = vadd.f32 0.0, %v2683
        %v2685 = vpop.f32.mrb[0].mxu0
        %2686 = vmatprep.mubr.bf16.mxu0 0
        %2687 = vmatmul.mubr.bf16.gmra.mrb[0].mxu0 %v2569
        %v2688 = vpop.f32.mrb[0].mxu0
        %v2689 = vadd.f32 0.0, %v2688
        %v2690 = vpop.f32.mrb[0].mxu0
        %v2691 = vpop.f32.mrb[0].mxu0
        %v2692 = vadd.f32 0.0, %v2691
        %v2693 = vpop.f32.mrb[0].mxu0
        %2694 = vmatprep.mubr.bf16.mxu0 0
        %2695 = vmatmul.mubr.bf16.gmra.mrb[0].mxu0 %v2572
        %v2696 = vpop.f32.mrb[0].mxu0
        %v2697 = vadd.f32 0.0, %v2696
        %v2698 = vpop.f32.mrb[0].mxu0
        %v2699 = vpop.f32.mrb[0].mxu0
        %v2700 = vadd.f32 0.0, %v2699
        %v2701 = vpop.f32.mrb[0].mxu0
        %2702 = vmatprep.mubr.bf16.mxu0 0
        %2703 = vmatmul.mubr.bf16.gmra.mrb[0].mxu0 %v2575
        %v2704 = vpop.f32.mrb[0].mxu0
        %v2705 = vadd.f32 0.0, %v2704
        %v2706 = vpop.f32.mrb[0].mxu0
        %v2707 = vpop.f32.mrb[0].mxu0
        %v2708 = vadd.f32 0.0, %v2707
        %v2709 = vpop.f32.mrb[0].mxu0
        %2710 = vmatprep.mubr.bf16.mxu0 0
        %2711 = vmatmul.mubr.bf16.gmra.mrb[0].mxu0 %v2578
        %v2712 = vpop.f32.mrb[0].mxu0
        %v2713 = vadd.f32 0.0, %v2712
        %v2714 = vpop.f32.mrb[0].mxu0
        %v2715 = vpop.f32.mrb[0].mxu0
        %v2716 = vadd.f32 0.0, %v2715
        %v2717 = vpop.f32.mrb[0].mxu0
        %2718 = vmatprep.mubr.bf16.mxu0 0
        %2719 = vmatmul.mubr.bf16.gmra.mrb[0].mxu0 %v2581
        %v2720 = vpop.f32.mrb[0].mxu0
        %v2721 = vadd.f32 0.0, %v2720
        %v2722 = vpop.f32.mrb[0].mxu0
        %v2723 = vpop.f32.mrb[0].mxu0
        %v2724 = vadd.f32 0.0, %v2723
        %v2725 = vpop.f32.mrb[0].mxu0
        %2726 = vmatprep.mubr.bf16.mxu0 0
        %2727 = vmatmul.mubr.bf16.gmra.mrb[0].mxu0 %v2584
        %v2728 = vpop.f32.mrb[0].mxu0
        %v2729 = vadd.f32 0.0, %v2728
        %v2730 = vpop.f32.mrb[0].mxu0
        %v2731 = vpop.f32.mrb[0].mxu0
        %v2732 = vadd.f32 0.0, %v2731
        %v2733 = vpop.f32.mrb[0].mxu0
        %2734 = vmatprep.mubr.bf16.mxu0 0
        %2735 = vmatmul.mubr.bf16.gmra.mrb[0].mxu0 %v2587
        %v2736 = vpop.f32.mrb[0].mxu0
        %v2737 = vadd.f32 0.0, %v2736
        %v2738 = vpop.f32.mrb[0].mxu0
        %v2739 = vpop.f32.mrb[0].mxu0
        %v2740 = vadd.f32 0.0, %v2739
        %v2741 = vpop.f32.mrb[0].mxu0
        %2742 = vmatprep.mubr.bf16.mxu0 0
        %2743 = vmatmul.mubr.bf16.gmra.mrb[0].mxu0 %v2590
        %v2744 = vpop.f32.mrb[0].mxu0
        %v2745 = vadd.f32 0.0, %v2744
        %v2746 = vpop.f32.mrb[0].mxu0
        %v2747 = vpop.f32.mrb[0].mxu0
        %v2748 = vadd.f32 0.0, %v2747
        %v2749 = vpop.f32.mrb[0].mxu0
        %2750 = vmatprep.mubr.bf16.mxu0 0
        %2751 = vmatmul.mubr.bf16.gmra.mrb[0].mxu0 %v2593
        %v2752 = vpop.f32.mrb[0].mxu0
        %v2753 = vadd.f32 0.0, %v2752
        %v2754 = vpop.f32.mrb[0].mxu0
        %v2755 = vpop.f32.mrb[0].mxu0
        %v2756 = vadd.f32 0.0, %v2755
        %v2757 = vpop.f32.mrb[0].mxu0
        %2758 = vdwg.mxu0
        %v2759 = vadd.f32 %v2033, %v2633
        %v2760 = vadd.f32 %v2034, %v2636
        %v2761 = vadd.f32 %v2035, %v2641
        %v2762 = vadd.f32 %v2036, %v2644
        %v2763 = vadd.f32 %v2037, %v2649
        %v2764 = vadd.f32 %v2038, %v2652
        %v2765 = vadd.f32 %v2039, %v2657
        %v2766 = vadd.f32 %v2040, %v2660
        %v2767 = vadd.f32 %v2041, %v2665
        %v2768 = vadd.f32 %v2042, %v2668
        %v2769 = vadd.f32 %v2043, %v2673
        %v2770 = vadd.f32 %v2044, %v2676
        %v2771 = vadd.f32 %v2045, %v2681
        %v2772 = vadd.f32 %v2046, %v2684
        %v2773 = vadd.f32 %v2047, %v2689
        %v2774 = vadd.f32 %v2048, %v2692
        %v2775 = vadd.f32 %v2049, %v2697
        %v2776 = vadd.f32 %v2050, %v2700
        %v2777 = vadd.f32 %v2051, %v2705
        %v2778 = vadd.f32 %v2052, %v2708
        %v2779 = vadd.f32 %v2053, %v2713
        %v2780 = vadd.f32 %v2054, %v2716
        %v2781 = vadd.f32 %v2055, %v2721
        %v2782 = vadd.f32 %v2056, %v2724
        %v2783 = vadd.f32 %v2057, %v2729
        %v2784 = vadd.f32 %v2058, %v2732
        %v2785 = vadd.f32 %v2059, %v2737
        %v2786 = vadd.f32 %v2060, %v2740
        %v2787 = vadd.f32 %v2061, %v2745
        %v2788 = vadd.f32 %v2062, %v2748
        %v2789 = vadd.f32 %v2063, %v2753
        %v2790 = vadd.f32 %v2064, %v2756
        %v2791 = vld [vmem:[%s1706] sm:$0xe]
        %v2792 = vld [vmem:[%s1706 + $0xc] sm:$0xe]
        %v2793 = vld [vmem:[%s1706 + $0x18] sm:$0xe]
        %v2794 = vld [vmem:[%s1706 + $0x24] sm:$0xe]
        %v2795 = vld [vmem:[%s1706 + $0x30] sm:$0xe]
        %v2796 = vld [vmem:[%s1706 + $0x3c] sm:$0xe]
        %v2797 = vld [vmem:[%s1706 + $0x48] sm:$0xe]
        %v2798 = vld [vmem:[%s1706 + $0x54] sm:$0xe]
        %v2799 = vld [vmem:[%s1706 + $0x60] sm:$0xe]
        %v2800 = vld [vmem:[%s1706 + $0x6c] sm:$0xe]
        %v2801 = vld [vmem:[%s1706 + $0x78] sm:$0xe]
        %v2802 = vld [vmem:[%s1706 + $0x84] sm:$0xe]
        %v2803 = vld [vmem:[%s1706 + $0x90] sm:$0xe]
        %v2804 = vld [vmem:[%s1706 + $0x9c] sm:$0xe]
        %v2805 = vld [vmem:[%s1706 + $0xa8] sm:$0xe]
        %v2806 = vld [vmem:[%s1706 + $0xb4] sm:$0xe]
        %v2855 = vrot.slane %v2791, 5
        %v2856 = vrot.slane %v2855, 4
        %v2857 = vrot.slane %v2066, 5
        %v2858 = vsel %vm1299, %v2856, %v2857
        %v2859 = vrot.slane %v2857, 4
        %v2860 = vrot.slane %v2067, 5
        %v2861 = vsel %vm1299, %v2859, %v2860
        %v2862 = vrot.slane %v2792, 5
        %v2863 = vrot.slane %v2862, 4
        %v2864 = vrot.slane %v2069, 5
        %v2865 = vsel %vm1299, %v2863, %v2864
        %v2866 = vrot.slane %v2864, 4
        %v2867 = vrot.slane %v2070, 5
        %v2868 = vsel %vm1299, %v2866, %v2867
        %v2869 = vrot.slane %v2793, 5
        %v2870 = vrot.slane %v2869, 4
        %v2871 = vrot.slane %v2072, 5
        %v2872 = vsel %vm1299, %v2870, %v2871
        %v2873 = vrot.slane %v2871, 4
        %v2874 = vrot.slane %v2073, 5
        %v2875 = vsel %vm1299, %v2873, %v2874
        %v2876 = vrot.slane %v2794, 5
        %v2877 = vrot.slane %v2876, 4
        %v2878 = vrot.slane %v2075, 5
        %v2879 = vsel %vm1299, %v2877, %v2878
        %v2880 = vrot.slane %v2878, 4
        %v2881 = vrot.slane %v2076, 5
        %v2882 = vsel %vm1299, %v2880, %v2881
        %v2883 = vrot.slane %v2795, 5
        %v2884 = vrot.slane %v2883, 4
        %v2885 = vrot.slane %v2078, 5
        %v2886 = vsel %vm1299, %v2884, %v2885
        %v2887 = vrot.slane %v2885, 4
        %v2888 = vrot.slane %v2079, 5
        %v2889 = vsel %vm1299, %v2887, %v2888
        %v2890 = vrot.slane %v2796, 5
        %v2891 = vrot.slane %v2890, 4
        %v2892 = vrot.slane %v2081, 5
        %v2893 = vsel %vm1299, %v2891, %v2892
        %v2894 = vrot.slane %v2892, 4
        %v2895 = vrot.slane %v2082, 5
        %v2896 = vsel %vm1299, %v2894, %v2895
        %v2897 = vrot.slane %v2797, 5
        %v2898 = vrot.slane %v2897, 4
        %v2899 = vrot.slane %v2084, 5
        %v2900 = vsel %vm1299, %v2898, %v2899
        %v2901 = vrot.slane %v2899, 4
        %v2902 = vrot.slane %v2085, 5
        %v2903 = vsel %vm1299, %v2901, %v2902
        %v2904 = vrot.slane %v2798, 5
        %v2905 = vrot.slane %v2904, 4
        %v2906 = vrot.slane %v2087, 5
        %v2907 = vsel %vm1299, %v2905, %v2906
        %v2908 = vrot.slane %v2906, 4
        %v2909 = vrot.slane %v2088, 5
        %v2910 = vsel %vm1299, %v2908, %v2909
        %v2911 = vrot.slane %v2799, 5
        %v2912 = vrot.slane %v2911, 4
        %v2913 = vrot.slane %v2090, 5
        %v2914 = vsel %vm1299, %v2912, %v2913
        %v2915 = vrot.slane %v2913, 4
        %v2916 = vrot.slane %v2091, 5
        %v2917 = vsel %vm1299, %v2915, %v2916
        %v2918 = vrot.slane %v2800, 5
        %v2919 = vrot.slane %v2918, 4
        %v2920 = vrot.slane %v2093, 5
        %v2921 = vsel %vm1299, %v2919, %v2920
        %v2922 = vrot.slane %v2920, 4
        %v2923 = vrot.slane %v2094, 5
        %v2924 = vsel %vm1299, %v2922, %v2923
        %v2925 = vrot.slane %v2801, 5
        %v2926 = vrot.slane %v2925, 4
        %v2927 = vrot.slane %v2096, 5
        %v2928 = vsel %vm1299, %v2926, %v2927
        %v2929 = vrot.slane %v2927, 4
        %v2930 = vrot.slane %v2097, 5
        %v2931 = vsel %vm1299, %v2929, %v2930
        %v2932 = vrot.slane %v2802, 5
        %v2933 = vrot.slane %v2932, 4
        %v2934 = vrot.slane %v2099, 5
        %v2935 = vsel %vm1299, %v2933, %v2934
        %v2936 = vrot.slane %v2934, 4
        %v2937 = vrot.slane %v2100, 5
        %v2938 = vsel %vm1299, %v2936, %v2937
        %v2939 = vrot.slane %v2803, 5
        %v2940 = vrot.slane %v2939, 4
        %v2941 = vrot.slane %v2102, 5
        %v2942 = vsel %vm1299, %v2940, %v2941
        %v2943 = vrot.slane %v2941, 4
        %v2944 = vrot.slane %v2103, 5
        %v2945 = vsel %vm1299, %v2943, %v2944
        %v2946 = vrot.slane %v2804, 5
        %v2947 = vrot.slane %v2946, 4
        %v2948 = vrot.slane %v2105, 5
        %v2949 = vsel %vm1299, %v2947, %v2948
        %v2950 = vrot.slane %v2948, 4
        %v2951 = vrot.slane %v2106, 5
        %v2952 = vsel %vm1299, %v2950, %v2951
        %v2953 = vrot.slane %v2805, 5
        %v2954 = vrot.slane %v2953, 4
        %v2955 = vrot.slane %v2108, 5
        %v2956 = vsel %vm1299, %v2954, %v2955
        %v2957 = vrot.slane %v2955, 4
        %v2958 = vrot.slane %v2109, 5
        %v2959 = vsel %vm1299, %v2957, %v2958
        %v2960 = vrot.slane %v2806, 5
        %v2961 = vrot.slane %v2960, 4
        %v2962 = vrot.slane %v2111, 5
        %v2963 = vsel %vm1299, %v2961, %v2962
        %v2964 = vrot.slane %v2962, 4
        %v2965 = vrot.slane %v2112, 5
        %v2966 = vsel %vm1299, %v2964, %v2965
        %s2967 = scalar_lea.vmem [#allocation5], 10
        %v2968 = vld [vmem:[%s2967] sm:$0x3]
        %v2969 = vunpack.c.l.b16 %v2858
        %v2970 = vunpack.c.l.b16 %v2861
        %v2971 = vunpack.c.l.b16 %v2865
        %v2972 = vunpack.c.l.b16 %v2868
        %v2973 = vunpack.c.l.b16 %v2872
        %v2974 = vunpack.c.l.b16 %v2875
        %v2975 = vunpack.c.l.b16 %v2879
        %v2976 = vunpack.c.l.b16 %v2882
        %v2977 = vunpack.c.l.b16 %v2886
        %v2978 = vunpack.c.l.b16 %v2889
        %v2979 = vunpack.c.l.b16 %v2893
        %v2980 = vunpack.c.l.b16 %v2896
        %v2981 = vunpack.c.l.b16 %v2900
        %v2982 = vunpack.c.l.b16 %v2903
        %v2983 = vunpack.c.l.b16 %v2907
        %v2984 = vunpack.c.l.b16 %v2910
        %v2985 = vunpack.c.l.b16 %v2914
        %v2986 = vunpack.c.l.b16 %v2917
        %v2987 = vunpack.c.l.b16 %v2921
        %v2988 = vunpack.c.l.b16 %v2924
        %v2989 = vunpack.c.l.b16 %v2928
        %v2990 = vunpack.c.l.b16 %v2931
        %v2991 = vunpack.c.l.b16 %v2935
        %v2992 = vunpack.c.l.b16 %v2938
        %v2993 = vunpack.c.l.b16 %v2942
        %v2994 = vunpack.c.l.b16 %v2945
        %v2995 = vunpack.c.l.b16 %v2949
        %v2996 = vunpack.c.l.b16 %v2952
        %v2997 = vunpack.c.l.b16 %v2956
        %v2998 = vunpack.c.l.b16 %v2959
        %v2999 = vunpack.c.l.b16 %v2963
        %v3000 = vunpack.c.l.b16 %v2966
        %v3001 = vpack.c.b16 %v2970, %v2969
        %v3002 = vpack.c.b16 %v2972, %v2971
        %v3003 = vpack.c.b16 %v2974, %v2973
        %v3004 = vpack.c.b16 %v2976, %v2975
        %v3005 = vpack.c.b16 %v2978, %v2977
        %v3006 = vpack.c.b16 %v2980, %v2979
        %v3007 = vpack.c.b16 %v2982, %v2981
        %v3008 = vpack.c.b16 %v2984, %v2983
        %v3009 = vpack.c.b16 %v2986, %v2985
        %v3010 = vpack.c.b16 %v2988, %v2987
        %v3011 = vpack.c.b16 %v2990, %v2989
        %v3012 = vpack.c.b16 %v2992, %v2991
        %v3013 = vpack.c.b16 %v2994, %v2993
        %v3014 = vpack.c.b16 %v2996, %v2995
        %v3015 = vpack.c.b16 %v2998, %v2997
        %v3016 = vpack.c.b16 %v3000, %v2999
        %v3018 = vsel %vm743, %v3001, 0
        %v3021 = vsel %vm743, %v3002, 0
        %v3024 = vsel %vm743, %v3003, 0
        %v3027 = vsel %vm743, %v3004, 0
        %v3030 = vsel %vm743, %v3005, 0
        %v3033 = vsel %vm743, %v3006, 0
        %v3036 = vsel %vm743, %v3007, 0
        %v3039 = vsel %vm743, %v3008, 0
        %v3042 = vsel %vm743, %v3009, 0
        %v3045 = vsel %vm743, %v3010, 0
        %v3048 = vsel %vm743, %v3011, 0
        %v3051 = vsel %vm743, %v3012, 0
        %v3054 = vsel %vm743, %v3013, 0
        %v3057 = vsel %vm743, %v3014, 0
        %v3060 = vsel %vm743, %v3015, 0
        %v3063 = vsel %vm743, %v3016, 0
        %v3066 = vsel %vm792, %v2968, 0
        %3068 = vmatprep.subr.bf16.mxu0 0
        %3069 = vmatpush1.bf16.msra.mxu0 %v3066
        %3070 = vmatprep.subr.bf16.mxu0 0
        %3071 = vmatpush1.bf16.msra.mxu0 0
        %3072 = vmatprep.subr.bf16.mxu0 0
        %3073 = vmatpush1.bf16.msra.mxu0 0
        %3074 = vmatprep.subr.bf16.mxu0 0
        %3075 = vmatpush1.bf16.msra.mxu0 0
        %3076 = vmatprep.subr.bf16.mxu0 0
        %3077 = vmatpush1.bf16.msra.mxu0 0
        %3078 = vmatprep.subr.bf16.mxu0 0
        %3079 = vmatpush1.bf16.msra.mxu0 0
        %3080 = vmatprep.subr.bf16.mxu0 0
        %3081 = vmatpush1.bf16.msra.mxu0 0
        %3082 = vmatprep.subr.bf16.mxu0 0
        %3083 = vmatpush1.bf16.msra.mxu0 0
        %3084 = vmatprep.subr.bf16.mxu0 0
        %3085 = vmatpush1.bf16.msra.mxu0 0
        %3086 = vmatprep.subr.bf16.mxu0 0
        %3087 = vmatpush1.bf16.msra.mxu0 0
        %3088 = vmatprep.subr.bf16.mxu0 0
        %3089 = vmatpush1.bf16.msra.mxu0 0
        %3090 = vmatprep.subr.bf16.mxu0 0
        %3091 = vmatpush1.bf16.msra.mxu0 0
        %3092 = vmatprep.subr.bf16.mxu0 0
        %3093 = vmatpush1.bf16.msra.mxu0 0
        %3094 = vmatprep.subr.bf16.mxu0 0
        %3095 = vmatpush1.bf16.msra.mxu0 0
        %3096 = vmatprep.subr.bf16.mxu0 0
        %3097 = vmatpush1.bf16.msra.mxu0 0
        %3098 = vmatprep.subr.bf16.mxu0 0
        %3099 = vmatpush1.bf16.msra.mxu0 0
        %3100 = vmatprep.mubr.bf16.mxu0 0
        %3101 = vmatmul.mubr.bf16.gmra.mrb[0].mxu0 %v3018
        %v3102 = vpop.f32.mrb[0].mxu0
        %v3103 = vadd.f32 0.0, %v3102
        %v3104 = vpop.f32.mrb[0].mxu0
        %v3105 = vpop.f32.mrb[0].mxu0
        %v3106 = vadd.f32 0.0, %v3105
        %v3107 = vpop.f32.mrb[0].mxu0
        %3108 = vmatprep.mubr.bf16.mxu0 0
        %3109 = vmatmul.mubr.bf16.gmra.mrb[0].mxu0 %v3021
        %v3110 = vpop.f32.mrb[0].mxu0
        %v3111 = vadd.f32 0.0, %v3110
        %v3112 = vpop.f32.mrb[0].mxu0
        %v3113 = vpop.f32.mrb[0].mxu0
        %v3114 = vadd.f32 0.0, %v3113
        %v3115 = vpop.f32.mrb[0].mxu0
        %3116 = vmatprep.mubr.bf16.mxu0 0
        %3117 = vmatmul.mubr.bf16.gmra.mrb[0].mxu0 %v3024
        %v3118 = vpop.f32.mrb[0].mxu0
        %v3119 = vadd.f32 0.0, %v3118
        %v3120 = vpop.f32.mrb[0].mxu0
        %v3121 = vpop.f32.mrb[0].mxu0
        %v3122 = vadd.f32 0.0, %v3121
        %v3123 = vpop.f32.mrb[0].mxu0
        %3124 = vmatprep.mubr.bf16.mxu0 0
        %3125 = vmatmul.mubr.bf16.gmra.mrb[0].mxu0 %v3027
        %v3126 = vpop.f32.mrb[0].mxu0
        %v3127 = vadd.f32 0.0, %v3126
        %v3128 = vpop.f32.mrb[0].mxu0
        %v3129 = vpop.f32.mrb[0].mxu0
        %v3130 = vadd.f32 0.0, %v3129
        %v3131 = vpop.f32.mrb[0].mxu0
        %3132 = vmatprep.mubr.bf16.mxu0 0
        %3133 = vmatmul.mubr.bf16.gmra.mrb[0].mxu0 %v3030
        %v3134 = vpop.f32.mrb[0].mxu0
        %v3135 = vadd.f32 0.0, %v3134
        %v3136 = vpop.f32.mrb[0].mxu0
        %v3137 = vpop.f32.mrb[0].mxu0
        %v3138 = vadd.f32 0.0, %v3137
        %v3139 = vpop.f32.mrb[0].mxu0
        %3140 = vmatprep.mubr.bf16.mxu0 0
        %3141 = vmatmul.mubr.bf16.gmra.mrb[0].mxu0 %v3033
        %v3142 = vpop.f32.mrb[0].mxu0
        %v3143 = vadd.f32 0.0, %v3142
        %v3144 = vpop.f32.mrb[0].mxu0
        %v3145 = vpop.f32.mrb[0].mxu0
        %v3146 = vadd.f32 0.0, %v3145
        %v3147 = vpop.f32.mrb[0].mxu0
        %3148 = vmatprep.mubr.bf16.mxu0 0
        %3149 = vmatmul.mubr.bf16.gmra.mrb[0].mxu0 %v3036
        %v3150 = vpop.f32.mrb[0].mxu0
        %v3151 = vadd.f32 0.0, %v3150
        %v3152 = vpop.f32.mrb[0].mxu0
        %v3153 = vpop.f32.mrb[0].mxu0
        %v3154 = vadd.f32 0.0, %v3153
        %v3155 = vpop.f32.mrb[0].mxu0
        %3156 = vmatprep.mubr.bf16.mxu0 0
        %3157 = vmatmul.mubr.bf16.gmra.mrb[0].mxu0 %v3039
        %v3158 = vpop.f32.mrb[0].mxu0
        %v3159 = vadd.f32 0.0, %v3158
        %v3160 = vpop.f32.mrb[0].mxu0
        %v3161 = vpop.f32.mrb[0].mxu0
        %v3162 = vadd.f32 0.0, %v3161
        %v3163 = vpop.f32.mrb[0].mxu0
        %3164 = vmatprep.mubr.bf16.mxu0 0
        %3165 = vmatmul.mubr.bf16.gmra.mrb[0].mxu0 %v3042
        %v3166 = vpop.f32.mrb[0].mxu0
        %v3167 = vadd.f32 0.0, %v3166
        %v3168 = vpop.f32.mrb[0].mxu0
        %v3169 = vpop.f32.mrb[0].mxu0
        %v3170 = vadd.f32 0.0, %v3169
        %v3171 = vpop.f32.mrb[0].mxu0
        %3172 = vmatprep.mubr.bf16.mxu0 0
        %3173 = vmatmul.mubr.bf16.gmra.mrb[0].mxu0 %v3045
        %v3174 = vpop.f32.mrb[0].mxu0
        %v3175 = vadd.f32 0.0, %v3174
        %v3176 = vpop.f32.mrb[0].mxu0
        %v3177 = vpop.f32.mrb[0].mxu0
        %v3178 = vadd.f32 0.0, %v3177
        %v3179 = vpop.f32.mrb[0].mxu0
        %3180 = vmatprep.mubr.bf16.mxu0 0
        %3181 = vmatmul.mubr.bf16.gmra.mrb[0].mxu0 %v3048
        %v3182 = vpop.f32.mrb[0].mxu0
        %v3183 = vadd.f32 0.0, %v3182
        %v3184 = vpop.f32.mrb[0].mxu0
        %v3185 = vpop.f32.mrb[0].mxu0
        %v3186 = vadd.f32 0.0, %v3185
        %v3187 = vpop.f32.mrb[0].mxu0
        %3188 = vmatprep.mubr.bf16.mxu0 0
        %3189 = vmatmul.mubr.bf16.gmra.mrb[0].mxu0 %v3051
        %v3190 = vpop.f32.mrb[0].mxu0
        %v3191 = vadd.f32 0.0, %v3190
        %v3192 = vpop.f32.mrb[0].mxu0
        %v3193 = vpop.f32.mrb[0].mxu0
        %v3194 = vadd.f32 0.0, %v3193
        %v3195 = vpop.f32.mrb[0].mxu0
        %3196 = vmatprep.mubr.bf16.mxu0 0
        %3197 = vmatmul.mubr.bf16.gmra.mrb[0].mxu0 %v3054
        %v3198 = vpop.f32.mrb[0].mxu0
        %v3199 = vadd.f32 0.0, %v3198
        %v3200 = vpop.f32.mrb[0].mxu0
        %v3201 = vpop.f32.mrb[0].mxu0
        %v3202 = vadd.f32 0.0, %v3201
        %v3203 = vpop.f32.mrb[0].mxu0
        %3204 = vmatprep.mubr.bf16.mxu0 0
        %3205 = vmatmul.mubr.bf16.gmra.mrb[0].mxu0 %v3057
        %v3206 = vpop.f32.mrb[0].mxu0
        %v3207 = vadd.f32 0.0, %v3206
        %v3208 = vpop.f32.mrb[0].mxu0
        %v3209 = vpop.f32.mrb[0].mxu0
        %v3210 = vadd.f32 0.0, %v3209
        %v3211 = vpop.f32.mrb[0].mxu0
        %3212 = vmatprep.mubr.bf16.mxu0 0
        %3213 = vmatmul.mubr.bf16.gmra.mrb[0].mxu0 %v3060
        %v3214 = vpop.f32.mrb[0].mxu0
        %v3215 = vadd.f32 0.0, %v3214
        %v3216 = vpop.f32.mrb[0].mxu0
        %v3217 = vpop.f32.mrb[0].mxu0
        %v3218 = vadd.f32 0.0, %v3217
        %v3219 = vpop.f32.mrb[0].mxu0
        %3220 = vmatprep.mubr.bf16.mxu0 0
        %3221 = vmatmul.mubr.bf16.gmra.mrb[0].mxu0 %v3063
        %v3222 = vpop.f32.mrb[0].mxu0
        %v3223 = vadd.f32 0.0, %v3222
        %v3224 = vpop.f32.mrb[0].mxu0
        %v3225 = vpop.f32.mrb[0].mxu0
        %v3226 = vadd.f32 0.0, %v3225
        %v3227 = vpop.f32.mrb[0].mxu0
        %3228 = vdwg.mxu0
        %v3229 = vadd.f32 %v2759, %v3103
        %v3230 = vadd.f32 %v2760, %v3106
        %v3231 = vadd.f32 %v2761, %v3111
        %v3232 = vadd.f32 %v2762, %v3114
        %v3233 = vadd.f32 %v2763, %v3119
        %v3234 = vadd.f32 %v2764, %v3122
        %v3235 = vadd.f32 %v2765, %v3127
        %v3236 = vadd.f32 %v2766, %v3130
        %v3237 = vadd.f32 %v2767, %v3135
        %v3238 = vadd.f32 %v2768, %v3138
        %v3239 = vadd.f32 %v2769, %v3143
        %v3240 = vadd.f32 %v2770, %v3146
        %v3241 = vadd.f32 %v2771, %v3151
        %v3242 = vadd.f32 %v2772, %v3154
        %v3243 = vadd.f32 %v2773, %v3159
        %v3244 = vadd.f32 %v2774, %v3162
        %v3245 = vadd.f32 %v2775, %v3167
        %v3246 = vadd.f32 %v2776, %v3170
        %v3247 = vadd.f32 %v2777, %v3175
        %v3248 = vadd.f32 %v2778, %v3178
        %v3249 = vadd.f32 %v2779, %v3183
        %v3250 = vadd.f32 %v2780, %v3186
        %v3251 = vadd.f32 %v2781, %v3191
        %v3252 = vadd.f32 %v2782, %v3194
        %v3253 = vadd.f32 %v2783, %v3199
        %v3254 = vadd.f32 %v2784, %v3202
        %v3255 = vadd.f32 %v2785, %v3207
        %v3256 = vadd.f32 %v2786, %v3210
        %v3257 = vadd.f32 %v2787, %v3215
        %v3258 = vadd.f32 %v2788, %v3218
        %v3259 = vadd.f32 %v2789, %v3223
        %v3260 = vadd.f32 %v2790, %v3226
        %s3261 = scalar_lea.vmem %s219, 24 [#allocation2]
        %v3262 = vld [vmem:[%s3261] sm:$0xf]
        %v3263 = vld [vmem:[%s3261 + $0x4] sm:$0xf]
        %v3264 = vld [vmem:[%s3261 + $0xc] sm:$0xf]
        %v3265 = vld [vmem:[%s3261 + $0x10] sm:$0xf]
        %v3266 = vld [vmem:[%s3261 + $0x18] sm:$0xf]
        %v3267 = vld [vmem:[%s3261 + $0x1c] sm:$0xf]
        %v3268 = vld [vmem:[%s3261 + $0x24] sm:$0xf]
        %v3269 = vld [vmem:[%s3261 + $0x28] sm:$0xf]
        %v3270 = vld [vmem:[%s3261 + $0x30] sm:$0xf]
        %v3271 = vld [vmem:[%s3261 + $0x34] sm:$0xf]
        %v3272 = vld [vmem:[%s3261 + $0x3c] sm:$0xf]
        %v3273 = vld [vmem:[%s3261 + $0x40] sm:$0xf]
        %v3274 = vld [vmem:[%s3261 + $0x48] sm:$0xf]
        %v3275 = vld [vmem:[%s3261 + $0x4c] sm:$0xf]
        %v3276 = vld [vmem:[%s3261 + $0x54] sm:$0xf]
        %v3277 = vld [vmem:[%s3261 + $0x58] sm:$0xf]
        %v3278 = vld [vmem:[%s3261 + $0x60] sm:$0xf]
        %v3279 = vld [vmem:[%s3261 + $0x64] sm:$0xf]
        %v3280 = vld [vmem:[%s3261 + $0x6c] sm:$0xf]
        %v3281 = vld [vmem:[%s3261 + $0x70] sm:$0xf]
        %v3282 = vld [vmem:[%s3261 + $0x78] sm:$0xf]
        %v3283 = vld [vmem:[%s3261 + $0x7c] sm:$0xf]
        %v3284 = vld [vmem:[%s3261 + $0x84] sm:$0xf]
        %v3285 = vld [vmem:[%s3261 + $0x88] sm:$0xf]
        %v3286 = vld [vmem:[%s3261 + $0x90] sm:$0xf]
        %v3287 = vld [vmem:[%s3261 + $0x94] sm:$0xf]
        %v3288 = vld [vmem:[%s3261 + $0x9c] sm:$0xf]
        %v3289 = vld [vmem:[%s3261 + $0xa0] sm:$0xf]
        %v3290 = vld [vmem:[%s3261 + $0xa8] sm:$0xf]
        %v3291 = vld [vmem:[%s3261 + $0xac] sm:$0xf]
        %v3292 = vld [vmem:[%s3261 + $0xb4] sm:$0xf]
        %v3293 = vld [vmem:[%s3261 + $0xb8] sm:$0xf]
        %s3294 = scalar_lea.vmem [#allocation5], 12
        %v3295 = vld [vmem:[%s3294] sm:$0x3]
        %v3328 = vunpack.c.l.b16 %v3262
        %v3329 = vunpack.c.l.b16 %v3263
        %v3330 = vunpack.c.l.b16 %v3264
        %v3331 = vunpack.c.l.b16 %v3265
        %v3332 = vunpack.c.l.b16 %v3266
        %v3333 = vunpack.c.l.b16 %v3267
        %v3334 = vunpack.c.l.b16 %v3268
        %v3335 = vunpack.c.l.b16 %v3269
        %v3336 = vunpack.c.l.b16 %v3270
        %v3337 = vunpack.c.l.b16 %v3271
        %v3338 = vunpack.c.l.b16 %v3272
        %v3339 = vunpack.c.l.b16 %v3273
        %v3340 = vunpack.c.l.b16 %v3274
        %v3341 = vunpack.c.l.b16 %v3275
        %v3342 = vunpack.c.l.b16 %v3276
        %v3343 = vunpack.c.l.b16 %v3277
        %v3344 = vunpack.c.l.b16 %v3278
        %v3345 = vunpack.c.l.b16 %v3279
        %v3346 = vunpack.c.l.b16 %v3280
        %v3347 = vunpack.c.l.b16 %v3281
        %v3348 = vunpack.c.l.b16 %v3282
        %v3349 = vunpack.c.l.b16 %v3283
        %v3350 = vunpack.c.l.b16 %v3284
        %v3351 = vunpack.c.l.b16 %v3285
        %v3352 = vunpack.c.l.b16 %v3286
        %v3353 = vunpack.c.l.b16 %v3287
        %v3354 = vunpack.c.l.b16 %v3288
        %v3355 = vunpack.c.l.b16 %v3289
        %v3356 = vunpack.c.l.b16 %v3290
        %v3357 = vunpack.c.l.b16 %v3291
        %v3358 = vunpack.c.l.b16 %v3292
        %v3359 = vunpack.c.l.b16 %v3293
        %v3360 = vpack.c.b16 %v3329, %v3328
        %v3361 = vpack.c.b16 %v3331, %v3330
        %v3362 = vpack.c.b16 %v3333, %v3332
        %v3363 = vpack.c.b16 %v3335, %v3334
        %v3364 = vpack.c.b16 %v3337, %v3336
        %v3365 = vpack.c.b16 %v3339, %v3338
        %v3366 = vpack.c.b16 %v3341, %v3340
        %v3367 = vpack.c.b16 %v3343, %v3342
        %v3368 = vpack.c.b16 %v3345, %v3344
        %v3369 = vpack.c.b16 %v3347, %v3346
        %v3370 = vpack.c.b16 %v3349, %v3348
        %v3371 = vpack.c.b16 %v3351, %v3350
        %v3372 = vpack.c.b16 %v3353, %v3352
        %v3373 = vpack.c.b16 %v3355, %v3354
        %v3374 = vpack.c.b16 %v3357, %v3356
        %v3375 = vpack.c.b16 %v3359, %v3358
        %v3377 = vsel %vm743, %v3360, 0
        %v3380 = vsel %vm743, %v3361, 0
        %v3383 = vsel %vm743, %v3362, 0
        %v3386 = vsel %vm743, %v3363, 0
        %v3389 = vsel %vm743, %v3364, 0
        %v3392 = vsel %vm743, %v3365, 0
        %v3395 = vsel %vm743, %v3366, 0
        %v3398 = vsel %vm743, %v3367, 0
        %v3401 = vsel %vm743, %v3368, 0
        %v3404 = vsel %vm743, %v3369, 0
        %v3407 = vsel %vm743, %v3370, 0
        %v3410 = vsel %vm743, %v3371, 0
        %v3413 = vsel %vm743, %v3372, 0
        %v3416 = vsel %vm743, %v3373, 0
        %v3419 = vsel %vm743, %v3374, 0
        %v3422 = vsel %vm743, %v3375, 0
        %v3425 = vsel %vm792, %v3295, 0
        %3427 = vmatprep.subr.bf16.mxu0 0
        %3428 = vmatpush1.bf16.msra.mxu0 %v3425
        %3429 = vmatprep.subr.bf16.mxu0 0
        %3430 = vmatpush1.bf16.msra.mxu0 0
        %3431 = vmatprep.subr.bf16.mxu0 0
        %3432 = vmatpush1.bf16.msra.mxu0 0
        %3433 = vmatprep.subr.bf16.mxu0 0
        %3434 = vmatpush1.bf16.msra.mxu0 0
        %3435 = vmatprep.subr.bf16.mxu0 0
        %3436 = vmatpush1.bf16.msra.mxu0 0
        %3437 = vmatprep.subr.bf16.mxu0 0
        %3438 = vmatpush1.bf16.msra.mxu0 0
        %3439 = vmatprep.subr.bf16.mxu0 0
        %3440 = vmatpush1.bf16.msra.mxu0 0
        %3441 = vmatprep.subr.bf16.mxu0 0
        %3442 = vmatpush1.bf16.msra.mxu0 0
        %3443 = vmatprep.subr.bf16.mxu0 0
        %3444 = vmatpush1.bf16.msra.mxu0 0
        %3445 = vmatprep.subr.bf16.mxu0 0
        %3446 = vmatpush1.bf16.msra.mxu0 0
        %3447 = vmatprep.subr.bf16.mxu0 0
        %3448 = vmatpush1.bf16.msra.mxu0 0
        %3449 = vmatprep.subr.bf16.mxu0 0
        %3450 = vmatpush1.bf16.msra.mxu0 0
        %3451 = vmatprep.subr.bf16.mxu0 0
        %3452 = vmatpush1.bf16.msra.mxu0 0
        %3453 = vmatprep.subr.bf16.mxu0 0
        %3454 = vmatpush1.bf16.msra.mxu0 0
        %3455 = vmatprep.subr.bf16.mxu0 0
        %3456 = vmatpush1.bf16.msra.mxu0 0
        %3457 = vmatprep.subr.bf16.mxu0 0
        %3458 = vmatpush1.bf16.msra.mxu0 0
        %3459 = vmatprep.mubr.bf16.mxu0 0
        %3460 = vmatmul.mubr.bf16.gmra.mrb[0].mxu0 %v3377
        %v3461 = vpop.f32.mrb[0].mxu0
        %v3462 = vadd.f32 0.0, %v3461
        %v3463 = vpop.f32.mrb[0].mxu0
        %v3464 = vpop.f32.mrb[0].mxu0
        %v3465 = vadd.f32 0.0, %v3464
        %v3466 = vpop.f32.mrb[0].mxu0
        %3467 = vmatprep.mubr.bf16.mxu0 0
        %3468 = vmatmul.mubr.bf16.gmra.mrb[0].mxu0 %v3380
        %v3469 = vpop.f32.mrb[0].mxu0
        %v3470 = vadd.f32 0.0, %v3469
        %v3471 = vpop.f32.mrb[0].mxu0
        %v3472 = vpop.f32.mrb[0].mxu0
        %v3473 = vadd.f32 0.0, %v3472
        %v3474 = vpop.f32.mrb[0].mxu0
        %3475 = vmatprep.mubr.bf16.mxu0 0
        %3476 = vmatmul.mubr.bf16.gmra.mrb[0].mxu0 %v3383
        %v3477 = vpop.f32.mrb[0].mxu0
        %v3478 = vadd.f32 0.0, %v3477
        %v3479 = vpop.f32.mrb[0].mxu0
        %v3480 = vpop.f32.mrb[0].mxu0
        %v3481 = vadd.f32 0.0, %v3480
        %v3482 = vpop.f32.mrb[0].mxu0
        %3483 = vmatprep.mubr.bf16.mxu0 0
        %3484 = vmatmul.mubr.bf16.gmra.mrb[0].mxu0 %v3386
        %v3485 = vpop.f32.mrb[0].mxu0
        %v3486 = vadd.f32 0.0, %v3485
        %v3487 = vpop.f32.mrb[0].mxu0
        %v3488 = vpop.f32.mrb[0].mxu0
        %v3489 = vadd.f32 0.0, %v3488
        %v3490 = vpop.f32.mrb[0].mxu0
        %3491 = vmatprep.mubr.bf16.mxu0 0
        %3492 = vmatmul.mubr.bf16.gmra.mrb[0].mxu0 %v3389
        %v3493 = vpop.f32.mrb[0].mxu0
        %v3494 = vadd.f32 0.0, %v3493
        %v3495 = vpop.f32.mrb[0].mxu0
        %v3496 = vpop.f32.mrb[0].mxu0
        %v3497 = vadd.f32 0.0, %v3496
        %v3498 = vpop.f32.mrb[0].mxu0
        %3499 = vmatprep.mubr.bf16.mxu0 0
        %3500 = vmatmul.mubr.bf16.gmra.mrb[0].mxu0 %v3392
        %v3501 = vpop.f32.mrb[0].mxu0
        %v3502 = vadd.f32 0.0, %v3501
        %v3503 = vpop.f32.mrb[0].mxu0
        %v3504 = vpop.f32.mrb[0].mxu0
        %v3505 = vadd.f32 0.0, %v3504
        %v3506 = vpop.f32.mrb[0].mxu0
        %3507 = vmatprep.mubr.bf16.mxu0 0
        %3508 = vmatmul.mubr.bf16.gmra.mrb[0].mxu0 %v3395
        %v3509 = vpop.f32.mrb[0].mxu0
        %v3510 = vadd.f32 0.0, %v3509
        %v3511 = vpop.f32.mrb[0].mxu0
        %v3512 = vpop.f32.mrb[0].mxu0
        %v3513 = vadd.f32 0.0, %v3512
        %v3514 = vpop.f32.mrb[0].mxu0
        %3515 = vmatprep.mubr.bf16.mxu0 0
        %3516 = vmatmul.mubr.bf16.gmra.mrb[0].mxu0 %v3398
        %v3517 = vpop.f32.mrb[0].mxu0
        %v3518 = vadd.f32 0.0, %v3517
        %v3519 = vpop.f32.mrb[0].mxu0
        %v3520 = vpop.f32.mrb[0].mxu0
        %v3521 = vadd.f32 0.0, %v3520
        %v3522 = vpop.f32.mrb[0].mxu0
        %3523 = vmatprep.mubr.bf16.mxu0 0
        %3524 = vmatmul.mubr.bf16.gmra.mrb[0].mxu0 %v3401
        %v3525 = vpop.f32.mrb[0].mxu0
        %v3526 = vadd.f32 0.0, %v3525
        %v3527 = vpop.f32.mrb[0].mxu0
        %v3528 = vpop.f32.mrb[0].mxu0
        %v3529 = vadd.f32 0.0, %v3528
        %v3530 = vpop.f32.mrb[0].mxu0
        %3531 = vmatprep.mubr.bf16.mxu0 0
        %3532 = vmatmul.mubr.bf16.gmra.mrb[0].mxu0 %v3404
        %v3533 = vpop.f32.mrb[0].mxu0
        %v3534 = vadd.f32 0.0, %v3533
        %v3535 = vpop.f32.mrb[0].mxu0
        %v3536 = vpop.f32.mrb[0].mxu0
        %v3537 = vadd.f32 0.0, %v3536
        %v3538 = vpop.f32.mrb[0].mxu0
        %3539 = vmatprep.mubr.bf16.mxu0 0
        %3540 = vmatmul.mubr.bf16.gmra.mrb[0].mxu0 %v3407
        %v3541 = vpop.f32.mrb[0].mxu0
        %v3542 = vadd.f32 0.0, %v3541
        %v3543 = vpop.f32.mrb[0].mxu0
        %v3544 = vpop.f32.mrb[0].mxu0
        %v3545 = vadd.f32 0.0, %v3544
        %v3546 = vpop.f32.mrb[0].mxu0
        %3547 = vmatprep.mubr.bf16.mxu0 0
        %3548 = vmatmul.mubr.bf16.gmra.mrb[0].mxu0 %v3410
        %v3549 = vpop.f32.mrb[0].mxu0
        %v3550 = vadd.f32 0.0, %v3549
        %v3551 = vpop.f32.mrb[0].mxu0
        %v3552 = vpop.f32.mrb[0].mxu0
        %v3553 = vadd.f32 0.0, %v3552
        %v3554 = vpop.f32.mrb[0].mxu0
        %3555 = vmatprep.mubr.bf16.mxu0 0
        %3556 = vmatmul.mubr.bf16.gmra.mrb[0].mxu0 %v3413
        %v3557 = vpop.f32.mrb[0].mxu0
        %v3558 = vadd.f32 0.0, %v3557
        %v3559 = vpop.f32.mrb[0].mxu0
        %v3560 = vpop.f32.mrb[0].mxu0
        %v3561 = vadd.f32 0.0, %v3560
        %v3562 = vpop.f32.mrb[0].mxu0
        %3563 = vmatprep.mubr.bf16.mxu0 0
        %3564 = vmatmul.mubr.bf16.gmra.mrb[0].mxu0 %v3416
        %v3565 = vpop.f32.mrb[0].mxu0
        %v3566 = vadd.f32 0.0, %v3565
        %v3567 = vpop.f32.mrb[0].mxu0
        %v3568 = vpop.f32.mrb[0].mxu0
        %v3569 = vadd.f32 0.0, %v3568
        %v3570 = vpop.f32.mrb[0].mxu0
        %3571 = vmatprep.mubr.bf16.mxu0 0
        %3572 = vmatmul.mubr.bf16.gmra.mrb[0].mxu0 %v3419
        %v3573 = vpop.f32.mrb[0].mxu0
        %v3574 = vadd.f32 0.0, %v3573
        %v3575 = vpop.f32.mrb[0].mxu0
        %v3576 = vpop.f32.mrb[0].mxu0
        %v3577 = vadd.f32 0.0, %v3576
        %v3578 = vpop.f32.mrb[0].mxu0
        %3579 = vmatprep.mubr.bf16.mxu0 0
        %3580 = vmatmul.mubr.bf16.gmra.mrb[0].mxu0 %v3422
        %v3581 = vpop.f32.mrb[0].mxu0
        %v3582 = vadd.f32 0.0, %v3581
        %v3583 = vpop.f32.mrb[0].mxu0
        %v3584 = vpop.f32.mrb[0].mxu0
        %v3585 = vadd.f32 0.0, %v3584
        %v3586 = vpop.f32.mrb[0].mxu0
        %3587 = vdwg.mxu0
        %v3588 = vadd.f32 %v3229, %v3462
        %v3589 = vadd.f32 %v3230, %v3465
        %v3590 = vadd.f32 %v3231, %v3470
        %v3591 = vadd.f32 %v3232, %v3473
        %v3592 = vadd.f32 %v3233, %v3478
        %v3593 = vadd.f32 %v3234, %v3481
        %v3594 = vadd.f32 %v3235, %v3486
        %v3595 = vadd.f32 %v3236, %v3489
        %v3596 = vadd.f32 %v3237, %v3494
        %v3597 = vadd.f32 %v3238, %v3497
        %v3598 = vadd.f32 %v3239, %v3502
        %v3599 = vadd.f32 %v3240, %v3505
        %v3600 = vadd.f32 %v3241, %v3510
        %v3601 = vadd.f32 %v3242, %v3513
        %v3602 = vadd.f32 %v3243, %v3518
        %v3603 = vadd.f32 %v3244, %v3521
        %v3604 = vadd.f32 %v3245, %v3526
        %v3605 = vadd.f32 %v3246, %v3529
        %v3606 = vadd.f32 %v3247, %v3534
        %v3607 = vadd.f32 %v3248, %v3537
        %v3608 = vadd.f32 %v3249, %v3542
        %v3609 = vadd.f32 %v3250, %v3545
        %v3610 = vadd.f32 %v3251, %v3550
        %v3611 = vadd.f32 %v3252, %v3553
        %v3612 = vadd.f32 %v3253, %v3558
        %v3613 = vadd.f32 %v3254, %v3561
        %v3614 = vadd.f32 %v3255, %v3566
        %v3615 = vadd.f32 %v3256, %v3569
        %v3616 = vadd.f32 %v3257, %v3574
        %v3617 = vadd.f32 %v3258, %v3577
        %v3618 = vadd.f32 %v3259, %v3582
        %v3619 = vadd.f32 %v3260, %v3585
        %v3620 = vld [vmem:[%s3261] sm:$0xf]
        %v3621 = vld [vmem:[%s3261 + $0x4] sm:$0xf]
        %v3622 = vld [vmem:[%s3261 + $0x8] sm:$0x1]
        %v3623 = vld [vmem:[%s3261 + $0xc] sm:$0xf]
        %v3624 = vld [vmem:[%s3261 + $0x10] sm:$0xf]
        %v3625 = vld [vmem:[%s3261 + $0x14] sm:$0x1]
        %v3626 = vld [vmem:[%s3261 + $0x18] sm:$0xf]
        %v3627 = vld [vmem:[%s3261 + $0x1c] sm:$0xf]
        %v3628 = vld [vmem:[%s3261 + $0x20] sm:$0x1]
        %v3629 = vld [vmem:[%s3261 + $0x24] sm:$0xf]
        %v3630 = vld [vmem:[%s3261 + $0x28] sm:$0xf]
        %v3631 = vld [vmem:[%s3261 + $0x2c] sm:$0x1]
        %v3632 = vld [vmem:[%s3261 + $0x30] sm:$0xf]
        %v3633 = vld [vmem:[%s3261 + $0x34] sm:$0xf]
        %v3634 = vld [vmem:[%s3261 + $0x38] sm:$0x1]
        %v3635 = vld [vmem:[%s3261 + $0x3c] sm:$0xf]
        %v3636 = vld [vmem:[%s3261 + $0x40] sm:$0xf]
        %v3637 = vld [vmem:[%s3261 + $0x44] sm:$0x1]
        %v3638 = vld [vmem:[%s3261 + $0x48] sm:$0xf]
        %v3639 = vld [vmem:[%s3261 + $0x4c] sm:$0xf]
        %v3640 = vld [vmem:[%s3261 + $0x50] sm:$0x1]
        %v3641 = vld [vmem:[%s3261 + $0x54] sm:$0xf]
        %v3642 = vld [vmem:[%s3261 + $0x58] sm:$0xf]
        %v3643 = vld [vmem:[%s3261 + $0x5c] sm:$0x1]
        %v3644 = vld [vmem:[%s3261 + $0x60] sm:$0xf]
        %v3645 = vld [vmem:[%s3261 + $0x64] sm:$0xf]
        %v3646 = vld [vmem:[%s3261 + $0x68] sm:$0x1]
        %v3647 = vld [vmem:[%s3261 + $0x6c] sm:$0xf]
        %v3648 = vld [vmem:[%s3261 + $0x70] sm:$0xf]
        %v3649 = vld [vmem:[%s3261 + $0x74] sm:$0x1]
        %v3650 = vld [vmem:[%s3261 + $0x78] sm:$0xf]
        %v3651 = vld [vmem:[%s3261 + $0x7c] sm:$0xf]
        %v3652 = vld [vmem:[%s3261 + $0x80] sm:$0x1]
        %v3653 = vld [vmem:[%s3261 + $0x84] sm:$0xf]
        %v3654 = vld [vmem:[%s3261 + $0x88] sm:$0xf]
        %v3655 = vld [vmem:[%s3261 + $0x8c] sm:$0x1]
        %v3656 = vld [vmem:[%s3261 + $0x90] sm:$0xf]
        %v3657 = vld [vmem:[%s3261 + $0x94] sm:$0xf]
        %v3658 = vld [vmem:[%s3261 + $0x98] sm:$0x1]
        %v3659 = vld [vmem:[%s3261 + $0x9c] sm:$0xf]
        %v3660 = vld [vmem:[%s3261 + $0xa0] sm:$0xf]
        %v3661 = vld [vmem:[%s3261 + $0xa4] sm:$0x1]
        %v3662 = vld [vmem:[%s3261 + $0xa8] sm:$0xf]
        %v3663 = vld [vmem:[%s3261 + $0xac] sm:$0xf]
        %v3664 = vld [vmem:[%s3261 + $0xb0] sm:$0x1]
        %v3665 = vld [vmem:[%s3261 + $0xb4] sm:$0xf]
        %v3666 = vld [vmem:[%s3261 + $0xb8] sm:$0xf]
        %v3667 = vld [vmem:[%s3261 + $0xbc] sm:$0x1]
        %v3669 = vshrl.u32 %v3620, 16
        %v3671 = vrot.slane %v3669, 4
        %v3672 = vshll.u32 %v3620, 16
        %v3674 = vrot.slane %v3672, 5
        %v3675 = vor.u32 %v3671, %v3674
        %v3676 = vrot.slane %v3675, 4
        %v3678 = vshll.u32 %v3621, 16
        %v3680 = vrot.slane %v3678, 5
        %v3681 = vsel %vm308, %v3676, %v3680
        %v3682 = vshrl.u32 %v3621, 16
        %v3684 = vrot.slane %v3682, 4
        %v3685 = vor.u32 %v3684, %v3680
        %v3686 = vrot.slane %v3685, 4
        %v3688 = vshll.u32 %v3622, 16
        %v3690 = vrot.slane %v3688, 5
        %v3691 = vsel %vm308, %v3686, %v3690
        %v3693 = vshrl.u32 %v3623, 16
        %v3695 = vrot.slane %v3693, 4
        %v3696 = vshll.u32 %v3623, 16
        %v3698 = vrot.slane %v3696, 5
        %v3699 = vor.u32 %v3695, %v3698
        %v3700 = vrot.slane %v3699, 4
        %v3702 = vshll.u32 %v3624, 16
        %v3704 = vrot.slane %v3702, 5
        %v3705 = vsel %vm308, %v3700, %v3704
        %v3706 = vshrl.u32 %v3624, 16
        %v3708 = vrot.slane %v3706, 4
        %v3709 = vor.u32 %v3708, %v3704
        %v3710 = vrot.slane %v3709, 4
        %v3712 = vshll.u32 %v3625, 16
        %v3714 = vrot.slane %v3712, 5
        %v3715 = vsel %vm308, %v3710, %v3714
        %v3717 = vshrl.u32 %v3626, 16
        %v3719 = vrot.slane %v3717, 4
        %v3720 = vshll.u32 %v3626, 16
        %v3722 = vrot.slane %v3720, 5
        %v3723 = vor.u32 %v3719, %v3722
        %v3724 = vrot.slane %v3723, 4
        %v3726 = vshll.u32 %v3627, 16
        %v3728 = vrot.slane %v3726, 5
        %v3729 = vsel %vm308, %v3724, %v3728
        %v3730 = vshrl.u32 %v3627, 16
        %v3732 = vrot.slane %v3730, 4
        %v3733 = vor.u32 %v3732, %v3728
        %v3734 = vrot.slane %v3733, 4
        %v3736 = vshll.u32 %v3628, 16
        %v3738 = vrot.slane %v3736, 5
        %v3739 = vsel %vm308, %v3734, %v3738
        %v3741 = vshrl.u32 %v3629, 16
        %v3743 = vrot.slane %v3741, 4
        %v3744 = vshll.u32 %v3629, 16
        %v3746 = vrot.slane %v3744, 5
        %v3747 = vor.u32 %v3743, %v3746
        %v3748 = vrot.slane %v3747, 4
        %v3750 = vshll.u32 %v3630, 16
        %v3752 = vrot.slane %v3750, 5
        %v3753 = vsel %vm308, %v3748, %v3752
        %v3754 = vshrl.u32 %v3630, 16
        %v3756 = vrot.slane %v3754, 4
        %v3757 = vor.u32 %v3756, %v3752
        %v3758 = vrot.slane %v3757, 4
        %v3760 = vshll.u32 %v3631, 16
        %v3762 = vrot.slane %v3760, 5
        %v3763 = vsel %vm308, %v3758, %v3762
        %v3765 = vshrl.u32 %v3632, 16
        %v3767 = vrot.slane %v3765, 4
        %v3768 = vshll.u32 %v3632, 16
        %v3770 = vrot.slane %v3768, 5
        %v3771 = vor.u32 %v3767, %v3770
        %v3772 = vrot.slane %v3771, 4
        %v3774 = vshll.u32 %v3633, 16
        %v3776 = vrot.slane %v3774, 5
        %v3777 = vsel %vm308, %v3772, %v3776
        %v3778 = vshrl.u32 %v3633, 16
        %v3780 = vrot.slane %v3778, 4
        %v3781 = vor.u32 %v3780, %v3776
        %v3782 = vrot.slane %v3781, 4
        %v3784 = vshll.u32 %v3634, 16
        %v3786 = vrot.slane %v3784, 5
        %v3787 = vsel %vm308, %v3782, %v3786
        %v3789 = vshrl.u32 %v3635, 16
        %v3791 = vrot.slane %v3789, 4
        %v3792 = vshll.u32 %v3635, 16
        %v3794 = vrot.slane %v3792, 5
        %v3795 = vor.u32 %v3791, %v3794
        %v3796 = vrot.slane %v3795, 4
        %v3798 = vshll.u32 %v3636, 16
        %v3800 = vrot.slane %v3798, 5
        %v3801 = vsel %vm308, %v3796, %v3800
        %v3802 = vshrl.u32 %v3636, 16
        %v3804 = vrot.slane %v3802, 4
        %v3805 = vor.u32 %v3804, %v3800
        %v3806 = vrot.slane %v3805, 4
        %v3808 = vshll.u32 %v3637, 16
        %v3810 = vrot.slane %v3808, 5
        %v3811 = vsel %vm308, %v3806, %v3810
        %v3813 = vshrl.u32 %v3638, 16
        %v3815 = vrot.slane %v3813, 4
        %v3816 = vshll.u32 %v3638, 16
        %v3818 = vrot.slane %v3816, 5
        %v3819 = vor.u32 %v3815, %v3818
        %v3820 = vrot.slane %v3819, 4
        %v3822 = vshll.u32 %v3639, 16
        %v3824 = vrot.slane %v3822, 5
        %v3825 = vsel %vm308, %v3820, %v3824
        %v3826 = vshrl.u32 %v3639, 16
        %v3828 = vrot.slane %v3826, 4
        %v3829 = vor.u32 %v3828, %v3824
        %v3830 = vrot.slane %v3829, 4
        %v3832 = vshll.u32 %v3640, 16
        %v3834 = vrot.slane %v3832, 5
        %v3835 = vsel %vm308, %v3830, %v3834
        %v3837 = vshrl.u32 %v3641, 16
        %v3839 = vrot.slane %v3837, 4
        %v3840 = vshll.u32 %v3641, 16
        %v3842 = vrot.slane %v3840, 5
        %v3843 = vor.u32 %v3839, %v3842
        %v3844 = vrot.slane %v3843, 4
        %v3846 = vshll.u32 %v3642, 16
        %v3848 = vrot.slane %v3846, 5
        %v3849 = vsel %vm308, %v3844, %v3848
        %v3850 = vshrl.u32 %v3642, 16
        %v3852 = vrot.slane %v3850, 4
        %v3853 = vor.u32 %v3852, %v3848
        %v3854 = vrot.slane %v3853, 4
        %v3856 = vshll.u32 %v3643, 16
        %v3858 = vrot.slane %v3856, 5
        %v3859 = vsel %vm308, %v3854, %v3858
        %v3861 = vshrl.u32 %v3644, 16
        %v3863 = vrot.slane %v3861, 4
        %v3864 = vshll.u32 %v3644, 16
        %v3866 = vrot.slane %v3864, 5
        %v3867 = vor.u32 %v3863, %v3866
        %v3868 = vrot.slane %v3867, 4
        %v3870 = vshll.u32 %v3645, 16
        %v3872 = vrot.slane %v3870, 5
        %v3873 = vsel %vm308, %v3868, %v3872
        %v3874 = vshrl.u32 %v3645, 16
        %v3876 = vrot.slane %v3874, 4
        %v3877 = vor.u32 %v3876, %v3872
        %v3878 = vrot.slane %v3877, 4
        %v3880 = vshll.u32 %v3646, 16
        %v3882 = vrot.slane %v3880, 5
        %v3883 = vsel %vm308, %v3878, %v3882
        %v3885 = vshrl.u32 %v3647, 16
        %v3887 = vrot.slane %v3885, 4
        %v3888 = vshll.u32 %v3647, 16
        %v3890 = vrot.slane %v3888, 5
        %v3891 = vor.u32 %v3887, %v3890
        %v3892 = vrot.slane %v3891, 4
        %v3894 = vshll.u32 %v3648, 16
        %v3896 = vrot.slane %v3894, 5
        %v3897 = vsel %vm308, %v3892, %v3896
        %v3898 = vshrl.u32 %v3648, 16
        %v3900 = vrot.slane %v3898, 4
        %v3901 = vor.u32 %v3900, %v3896
        %v3902 = vrot.slane %v3901, 4
        %v3904 = vshll.u32 %v3649, 16
        %v3906 = vrot.slane %v3904, 5
        %v3907 = vsel %vm308, %v3902, %v3906
        %v3909 = vshrl.u32 %v3650, 16
        %v3911 = vrot.slane %v3909, 4
        %v3912 = vshll.u32 %v3650, 16
        %v3914 = vrot.slane %v3912, 5
        %v3915 = vor.u32 %v3911, %v3914
        %v3916 = vrot.slane %v3915, 4
        %v3918 = vshll.u32 %v3651, 16
        %v3920 = vrot.slane %v3918, 5
        %v3921 = vsel %vm308, %v3916, %v3920
        %v3922 = vshrl.u32 %v3651, 16
        %v3924 = vrot.slane %v3922, 4
        %v3925 = vor.u32 %v3924, %v3920
        %v3926 = vrot.slane %v3925, 4
        %v3928 = vshll.u32 %v3652, 16
        %v3930 = vrot.slane %v3928, 5
        %v3931 = vsel %vm308, %v3926, %v3930
        %v3933 = vshrl.u32 %v3653, 16
        %v3935 = vrot.slane %v3933, 4
        %v3936 = vshll.u32 %v3653, 16
        %v3938 = vrot.slane %v3936, 5
        %v3939 = vor.u32 %v3935, %v3938
        %v3940 = vrot.slane %v3939, 4
        %v3942 = vshll.u32 %v3654, 16
        %v3944 = vrot.slane %v3942, 5
        %v3945 = vsel %vm308, %v3940, %v3944
        %v3946 = vshrl.u32 %v3654, 16
        %v3948 = vrot.slane %v3946, 4
        %v3949 = vor.u32 %v3948, %v3944
        %v3950 = vrot.slane %v3949, 4
        %v3952 = vshll.u32 %v3655, 16
        %v3954 = vrot.slane %v3952, 5
        %v3955 = vsel %vm308, %v3950, %v3954
        %v3957 = vshrl.u32 %v3656, 16
        %v3959 = vrot.slane %v3957, 4
        %v3960 = vshll.u32 %v3656, 16
        %v3962 = vrot.slane %v3960, 5
        %v3963 = vor.u32 %v3959, %v3962
        %v3964 = vrot.slane %v3963, 4
        %v3966 = vshll.u32 %v3657, 16
        %v3968 = vrot.slane %v3966, 5
        %v3969 = vsel %vm308, %v3964, %v3968
        %v3970 = vshrl.u32 %v3657, 16
        %v3972 = vrot.slane %v3970, 4
        %v3973 = vor.u32 %v3972, %v3968
        %v3974 = vrot.slane %v3973, 4
        %v3976 = vshll.u32 %v3658, 16
        %v3978 = vrot.slane %v3976, 5
        %v3979 = vsel %vm308, %v3974, %v3978
        %v3981 = vshrl.u32 %v3659, 16
        %v3983 = vrot.slane %v3981, 4
        %v3984 = vshll.u32 %v3659, 16
        %v3986 = vrot.slane %v3984, 5
        %v3987 = vor.u32 %v3983, %v3986
        %v3988 = vrot.slane %v3987, 4
        %v3990 = vshll.u32 %v3660, 16
        %v3992 = vrot.slane %v3990, 5
        %v3993 = vsel %vm308, %v3988, %v3992
        %v3994 = vshrl.u32 %v3660, 16
        %v3996 = vrot.slane %v3994, 4
        %v3997 = vor.u32 %v3996, %v3992
        %v3998 = vrot.slane %v3997, 4
        %v4000 = vshll.u32 %v3661, 16
        %v4002 = vrot.slane %v4000, 5
        %v4003 = vsel %vm308, %v3998, %v4002
        %v4005 = vshrl.u32 %v3662, 16
        %v4007 = vrot.slane %v4005, 4
        %v4008 = vshll.u32 %v3662, 16
        %v4010 = vrot.slane %v4008, 5
        %v4011 = vor.u32 %v4007, %v4010
        %v4012 = vrot.slane %v4011, 4
        %v4014 = vshll.u32 %v3663, 16
        %v4016 = vrot.slane %v4014, 5
        %v4017 = vsel %vm308, %v4012, %v4016
        %v4018 = vshrl.u32 %v3663, 16
        %v4020 = vrot.slane %v4018, 4
        %v4021 = vor.u32 %v4020, %v4016
        %v4022 = vrot.slane %v4021, 4
        %v4024 = vshll.u32 %v3664, 16
        %v4026 = vrot.slane %v4024, 5
        %v4027 = vsel %vm308, %v4022, %v4026
        %v4029 = vshrl.u32 %v3665, 16
        %v4031 = vrot.slane %v4029, 4
        %v4032 = vshll.u32 %v3665, 16
        %v4034 = vrot.slane %v4032, 5
        %v4035 = vor.u32 %v4031, %v4034
        %v4036 = vrot.slane %v4035, 4
        %v4038 = vshll.u32 %v3666, 16
        %v4040 = vrot.slane %v4038, 5
        %v4041 = vsel %vm308, %v4036, %v4040
        %v4042 = vshrl.u32 %v3666, 16
        %v4044 = vrot.slane %v4042, 4
        %v4045 = vor.u32 %v4044, %v4040
        %v4046 = vrot.slane %v4045, 4
        %v4048 = vshll.u32 %v3667, 16
        %v4050 = vrot.slane %v4048, 5
        %v4051 = vsel %vm308, %v4046, %v4050
        %s4052 = scalar_lea.vmem [#allocation5], 14
        %v4053 = vld [vmem:[%s4052] sm:$0x3]
        %v4054 = vunpack.c.l.b16 %v3681
        %v4055 = vunpack.c.l.b16 %v3691
        %v4056 = vunpack.c.l.b16 %v3705
        %v4057 = vunpack.c.l.b16 %v3715
        %v4058 = vunpack.c.l.b16 %v3729
        %v4059 = vunpack.c.l.b16 %v3739
        %v4060 = vunpack.c.l.b16 %v3753
        %v4061 = vunpack.c.l.b16 %v3763
        %v4062 = vunpack.c.l.b16 %v3777
        %v4063 = vunpack.c.l.b16 %v3787
        %v4064 = vunpack.c.l.b16 %v3801
        %v4065 = vunpack.c.l.b16 %v3811
        %v4066 = vunpack.c.l.b16 %v3825
        %v4067 = vunpack.c.l.b16 %v3835
        %v4068 = vunpack.c.l.b16 %v3849
        %v4069 = vunpack.c.l.b16 %v3859
        %v4070 = vunpack.c.l.b16 %v3873
        %v4071 = vunpack.c.l.b16 %v3883
        %v4072 = vunpack.c.l.b16 %v3897
        %v4073 = vunpack.c.l.b16 %v3907
        %v4074 = vunpack.c.l.b16 %v3921
        %v4075 = vunpack.c.l.b16 %v3931
        %v4076 = vunpack.c.l.b16 %v3945
        %v4077 = vunpack.c.l.b16 %v3955
        %v4078 = vunpack.c.l.b16 %v3969
        %v4079 = vunpack.c.l.b16 %v3979
        %v4080 = vunpack.c.l.b16 %v3993
        %v4081 = vunpack.c.l.b16 %v4003
        %v4082 = vunpack.c.l.b16 %v4017
        %v4083 = vunpack.c.l.b16 %v4027
        %v4084 = vunpack.c.l.b16 %v4041
        %v4085 = vunpack.c.l.b16 %v4051
        %v4086 = vpack.c.b16 %v4055, %v4054
        %v4087 = vpack.c.b16 %v4057, %v4056
        %v4088 = vpack.c.b16 %v4059, %v4058
        %v4089 = vpack.c.b16 %v4061, %v4060
        %v4090 = vpack.c.b16 %v4063, %v4062
        %v4091 = vpack.c.b16 %v4065, %v4064
        %v4092 = vpack.c.b16 %v4067, %v4066
        %v4093 = vpack.c.b16 %v4069, %v4068
        %v4094 = vpack.c.b16 %v4071, %v4070
        %v4095 = vpack.c.b16 %v4073, %v4072
        %v4096 = vpack.c.b16 %v4075, %v4074
        %v4097 = vpack.c.b16 %v4077, %v4076
        %v4098 = vpack.c.b16 %v4079, %v4078
        %v4099 = vpack.c.b16 %v4081, %v4080
        %v4100 = vpack.c.b16 %v4083, %v4082
        %v4101 = vpack.c.b16 %v4085, %v4084
        %v4103 = vsel %vm743, %v4086, 0
        %v4106 = vsel %vm743, %v4087, 0
        %v4109 = vsel %vm743, %v4088, 0
        %v4112 = vsel %vm743, %v4089, 0
        %v4115 = vsel %vm743, %v4090, 0
        %v4118 = vsel %vm743, %v4091, 0
        %v4121 = vsel %vm743, %v4092, 0
        %v4124 = vsel %vm743, %v4093, 0
        %v4127 = vsel %vm743, %v4094, 0
        %v4130 = vsel %vm743, %v4095, 0
        %v4133 = vsel %vm743, %v4096, 0
        %v4136 = vsel %vm743, %v4097, 0
        %v4139 = vsel %vm743, %v4098, 0
        %v4142 = vsel %vm743, %v4099, 0
        %v4145 = vsel %vm743, %v4100, 0
        %v4148 = vsel %vm743, %v4101, 0
        %v4151 = vsel %vm792, %v4053, 0
        %4153 = vmatprep.subr.bf16.mxu0 0
        %4154 = vmatpush1.bf16.msra.mxu0 %v4151
        %4155 = vmatprep.subr.bf16.mxu0 0
        %4156 = vmatpush1.bf16.msra.mxu0 0
        %4157 = vmatprep.subr.bf16.mxu0 0
        %4158 = vmatpush1.bf16.msra.mxu0 0
        %4159 = vmatprep.subr.bf16.mxu0 0
        %4160 = vmatpush1.bf16.msra.mxu0 0
        %4161 = vmatprep.subr.bf16.mxu0 0
        %4162 = vmatpush1.bf16.msra.mxu0 0
        %4163 = vmatprep.subr.bf16.mxu0 0
        %4164 = vmatpush1.bf16.msra.mxu0 0
        %4165 = vmatprep.subr.bf16.mxu0 0
        %4166 = vmatpush1.bf16.msra.mxu0 0
        %4167 = vmatprep.subr.bf16.mxu0 0
        %4168 = vmatpush1.bf16.msra.mxu0 0
        %4169 = vmatprep.subr.bf16.mxu0 0
        %4170 = vmatpush1.bf16.msra.mxu0 0
        %4171 = vmatprep.subr.bf16.mxu0 0
        %4172 = vmatpush1.bf16.msra.mxu0 0
        %4173 = vmatprep.subr.bf16.mxu0 0
        %4174 = vmatpush1.bf16.msra.mxu0 0
        %4175 = vmatprep.subr.bf16.mxu0 0
        %4176 = vmatpush1.bf16.msra.mxu0 0
        %4177 = vmatprep.subr.bf16.mxu0 0
        %4178 = vmatpush1.bf16.msra.mxu0 0
        %4179 = vmatprep.subr.bf16.mxu0 0
        %4180 = vmatpush1.bf16.msra.mxu0 0
        %4181 = vmatprep.subr.bf16.mxu0 0
        %4182 = vmatpush1.bf16.msra.mxu0 0
        %4183 = vmatprep.subr.bf16.mxu0 0
        %4184 = vmatpush1.bf16.msra.mxu0 0
        %4185 = vmatprep.mubr.bf16.mxu0 0
        %4186 = vmatmul.mubr.bf16.gmra.mrb[0].mxu0 %v4103
        %v4187 = vpop.f32.mrb[0].mxu0
        %v4188 = vadd.f32 0.0, %v4187
        %v4189 = vpop.f32.mrb[0].mxu0
        %v4190 = vpop.f32.mrb[0].mxu0
        %v4191 = vadd.f32 0.0, %v4190
        %v4192 = vpop.f32.mrb[0].mxu0
        %4193 = vmatprep.mubr.bf16.mxu0 0
        %4194 = vmatmul.mubr.bf16.gmra.mrb[0].mxu0 %v4106
        %v4195 = vpop.f32.mrb[0].mxu0
        %v4196 = vadd.f32 0.0, %v4195
        %v4197 = vpop.f32.mrb[0].mxu0
        %v4198 = vpop.f32.mrb[0].mxu0
        %v4199 = vadd.f32 0.0, %v4198
        %v4200 = vpop.f32.mrb[0].mxu0
        %4201 = vmatprep.mubr.bf16.mxu0 0
        %4202 = vmatmul.mubr.bf16.gmra.mrb[0].mxu0 %v4109
        %v4203 = vpop.f32.mrb[0].mxu0
        %v4204 = vadd.f32 0.0, %v4203
        %v4205 = vpop.f32.mrb[0].mxu0
        %v4206 = vpop.f32.mrb[0].mxu0
        %v4207 = vadd.f32 0.0, %v4206
        %v4208 = vpop.f32.mrb[0].mxu0
        %4209 = vmatprep.mubr.bf16.mxu0 0
        %4210 = vmatmul.mubr.bf16.gmra.mrb[0].mxu0 %v4112
        %v4211 = vpop.f32.mrb[0].mxu0
        %v4212 = vadd.f32 0.0, %v4211
        %v4213 = vpop.f32.mrb[0].mxu0
        %v4214 = vpop.f32.mrb[0].mxu0
        %v4215 = vadd.f32 0.0, %v4214
        %v4216 = vpop.f32.mrb[0].mxu0
        %4217 = vmatprep.mubr.bf16.mxu0 0
        %4218 = vmatmul.mubr.bf16.gmra.mrb[0].mxu0 %v4115
        %v4219 = vpop.f32.mrb[0].mxu0
        %v4220 = vadd.f32 0.0, %v4219
        %v4221 = vpop.f32.mrb[0].mxu0
        %v4222 = vpop.f32.mrb[0].mxu0
        %v4223 = vadd.f32 0.0, %v4222
        %v4224 = vpop.f32.mrb[0].mxu0
        %4225 = vmatprep.mubr.bf16.mxu0 0
        %4226 = vmatmul.mubr.bf16.gmra.mrb[0].mxu0 %v4118
        %v4227 = vpop.f32.mrb[0].mxu0
        %v4228 = vadd.f32 0.0, %v4227
        %v4229 = vpop.f32.mrb[0].mxu0
        %v4230 = vpop.f32.mrb[0].mxu0
        %v4231 = vadd.f32 0.0, %v4230
        %v4232 = vpop.f32.mrb[0].mxu0
        %4233 = vmatprep.mubr.bf16.mxu0 0
        %4234 = vmatmul.mubr.bf16.gmra.mrb[0].mxu0 %v4121
        %v4235 = vpop.f32.mrb[0].mxu0
        %v4236 = vadd.f32 0.0, %v4235
        %v4237 = vpop.f32.mrb[0].mxu0
        %v4238 = vpop.f32.mrb[0].mxu0
        %v4239 = vadd.f32 0.0, %v4238
        %v4240 = vpop.f32.mrb[0].mxu0
        %4241 = vmatprep.mubr.bf16.mxu0 0
        %4242 = vmatmul.mubr.bf16.gmra.mrb[0].mxu0 %v4124
        %v4243 = vpop.f32.mrb[0].mxu0
        %v4244 = vadd.f32 0.0, %v4243
        %v4245 = vpop.f32.mrb[0].mxu0
        %v4246 = vpop.f32.mrb[0].mxu0
        %v4247 = vadd.f32 0.0, %v4246
        %v4248 = vpop.f32.mrb[0].mxu0
        %4249 = vmatprep.mubr.bf16.mxu0 0
        %4250 = vmatmul.mubr.bf16.gmra.mrb[0].mxu0 %v4127
        %v4251 = vpop.f32.mrb[0].mxu0
        %v4252 = vadd.f32 0.0, %v4251
        %v4253 = vpop.f32.mrb[0].mxu0
        %v4254 = vpop.f32.mrb[0].mxu0
        %v4255 = vadd.f32 0.0, %v4254
        %v4256 = vpop.f32.mrb[0].mxu0
        %4257 = vmatprep.mubr.bf16.mxu0 0
        %4258 = vmatmul.mubr.bf16.gmra.mrb[0].mxu0 %v4130
        %v4259 = vpop.f32.mrb[0].mxu0
        %v4260 = vadd.f32 0.0, %v4259
        %v4261 = vpop.f32.mrb[0].mxu0
        %v4262 = vpop.f32.mrb[0].mxu0
        %v4263 = vadd.f32 0.0, %v4262
        %v4264 = vpop.f32.mrb[0].mxu0
        %4265 = vmatprep.mubr.bf16.mxu0 0
        %4266 = vmatmul.mubr.bf16.gmra.mrb[0].mxu0 %v4133
        %v4267 = vpop.f32.mrb[0].mxu0
        %v4268 = vadd.f32 0.0, %v4267
        %v4269 = vpop.f32.mrb[0].mxu0
        %v4270 = vpop.f32.mrb[0].mxu0
        %v4271 = vadd.f32 0.0, %v4270
        %v4272 = vpop.f32.mrb[0].mxu0
        %4273 = vmatprep.mubr.bf16.mxu0 0
        %4274 = vmatmul.mubr.bf16.gmra.mrb[0].mxu0 %v4136
        %v4275 = vpop.f32.mrb[0].mxu0
        %v4276 = vadd.f32 0.0, %v4275
        %v4277 = vpop.f32.mrb[0].mxu0
        %v4278 = vpop.f32.mrb[0].mxu0
        %v4279 = vadd.f32 0.0, %v4278
        %v4280 = vpop.f32.mrb[0].mxu0
        %4281 = vmatprep.mubr.bf16.mxu0 0
        %4282 = vmatmul.mubr.bf16.gmra.mrb[0].mxu0 %v4139
        %v4283 = vpop.f32.mrb[0].mxu0
        %v4284 = vadd.f32 0.0, %v4283
        %v4285 = vpop.f32.mrb[0].mxu0
        %v4286 = vpop.f32.mrb[0].mxu0
        %v4287 = vadd.f32 0.0, %v4286
        %v4288 = vpop.f32.mrb[0].mxu0
        %4289 = vmatprep.mubr.bf16.mxu0 0
        %4290 = vmatmul.mubr.bf16.gmra.mrb[0].mxu0 %v4142
        %v4291 = vpop.f32.mrb[0].mxu0
        %v4292 = vadd.f32 0.0, %v4291
        %v4293 = vpop.f32.mrb[0].mxu0
        %v4294 = vpop.f32.mrb[0].mxu0
        %v4295 = vadd.f32 0.0, %v4294
        %v4296 = vpop.f32.mrb[0].mxu0
        %4297 = vmatprep.mubr.bf16.mxu0 0
        %4298 = vmatmul.mubr.bf16.gmra.mrb[0].mxu0 %v4145
        %v4299 = vpop.f32.mrb[0].mxu0
        %v4300 = vadd.f32 0.0, %v4299
        %v4301 = vpop.f32.mrb[0].mxu0
        %v4302 = vpop.f32.mrb[0].mxu0
        %v4303 = vadd.f32 0.0, %v4302
        %v4304 = vpop.f32.mrb[0].mxu0
        %4305 = vmatprep.mubr.bf16.mxu0 0
        %4306 = vmatmul.mubr.bf16.gmra.mrb[0].mxu0 %v4148
        %v4307 = vpop.f32.mrb[0].mxu0
        %v4308 = vadd.f32 0.0, %v4307
        %v4309 = vpop.f32.mrb[0].mxu0
        %v4310 = vpop.f32.mrb[0].mxu0
        %v4311 = vadd.f32 0.0, %v4310
        %v4312 = vpop.f32.mrb[0].mxu0
        %4313 = vdwg.mxu0
        %v4314 = vadd.f32 %v3588, %v4188
        %v4315 = vadd.f32 %v3589, %v4191
        %v4316 = vadd.f32 %v3590, %v4196
        %v4317 = vadd.f32 %v3591, %v4199
        %v4318 = vadd.f32 %v3592, %v4204
        %v4319 = vadd.f32 %v3593, %v4207
        %v4320 = vadd.f32 %v3594, %v4212
        %v4321 = vadd.f32 %v3595, %v4215
        %v4322 = vadd.f32 %v3596, %v4220
        %v4323 = vadd.f32 %v3597, %v4223
        %v4324 = vadd.f32 %v3598, %v4228
        %v4325 = vadd.f32 %v3599, %v4231
        %v4326 = vadd.f32 %v3600, %v4236
        %v4327 = vadd.f32 %v3601, %v4239
        %v4328 = vadd.f32 %v3602, %v4244
        %v4329 = vadd.f32 %v3603, %v4247
        %v4330 = vadd.f32 %v3604, %v4252
        %v4331 = vadd.f32 %v3605, %v4255
        %v4332 = vadd.f32 %v3606, %v4260
        %v4333 = vadd.f32 %v3607, %v4263
        %v4334 = vadd.f32 %v3608, %v4268
        %v4335 = vadd.f32 %v3609, %v4271
        %v4336 = vadd.f32 %v3610, %v4276
        %v4337 = vadd.f32 %v3611, %v4279
        %v4338 = vadd.f32 %v3612, %v4284
        %v4339 = vadd.f32 %v3613, %v4287
        %v4340 = vadd.f32 %v3614, %v4292
        %v4341 = vadd.f32 %v3615, %v4295
        %v4342 = vadd.f32 %v3616, %v4300
        %v4343 = vadd.f32 %v3617, %v4303
        %v4344 = vadd.f32 %v3618, %v4308
        %v4345 = vadd.f32 %v3619, %v4311
        %v4346 = vld [vmem:[%s3261] sm:$0xe]
        %v4347 = vld [vmem:[%s3261 + $0xc] sm:$0xe]
        %v4348 = vld [vmem:[%s3261 + $0x18] sm:$0xe]
        %v4349 = vld [vmem:[%s3261 + $0x24] sm:$0xe]
        %v4350 = vld [vmem:[%s3261 + $0x30] sm:$0xe]
        %v4351 = vld [vmem:[%s3261 + $0x3c] sm:$0xe]
        %v4352 = vld [vmem:[%s3261 + $0x48] sm:$0xe]
        %v4353 = vld [vmem:[%s3261 + $0x54] sm:$0xe]
        %v4354 = vld [vmem:[%s3261 + $0x60] sm:$0xe]
        %v4355 = vld [vmem:[%s3261 + $0x6c] sm:$0xe]
        %v4356 = vld [vmem:[%s3261 + $0x78] sm:$0xe]
        %v4357 = vld [vmem:[%s3261 + $0x84] sm:$0xe]
        %v4358 = vld [vmem:[%s3261 + $0x90] sm:$0xe]
        %v4359 = vld [vmem:[%s3261 + $0x9c] sm:$0xe]
        %v4360 = vld [vmem:[%s3261 + $0xa8] sm:$0xe]
        %v4361 = vld [vmem:[%s3261 + $0xb4] sm:$0xe]
        %v4410 = vrot.slane %v4346, 5
        %v4411 = vrot.slane %v4410, 4
        %v4412 = vrot.slane %v3621, 5
        %v4413 = vsel %vm1299, %v4411, %v4412
        %v4414 = vrot.slane %v4412, 4
        %v4415 = vrot.slane %v3622, 5
        %v4416 = vsel %vm1299, %v4414, %v4415
        %v4417 = vrot.slane %v4347, 5
        %v4418 = vrot.slane %v4417, 4
        %v4419 = vrot.slane %v3624, 5
        %v4420 = vsel %vm1299, %v4418, %v4419
        %v4421 = vrot.slane %v4419, 4
        %v4422 = vrot.slane %v3625, 5
        %v4423 = vsel %vm1299, %v4421, %v4422
        %v4424 = vrot.slane %v4348, 5
        %v4425 = vrot.slane %v4424, 4
        %v4426 = vrot.slane %v3627, 5
        %v4427 = vsel %vm1299, %v4425, %v4426
        %v4428 = vrot.slane %v4426, 4
        %v4429 = vrot.slane %v3628, 5
        %v4430 = vsel %vm1299, %v4428, %v4429
        %v4431 = vrot.slane %v4349, 5
        %v4432 = vrot.slane %v4431, 4
        %v4433 = vrot.slane %v3630, 5
        %v4434 = vsel %vm1299, %v4432, %v4433
        %v4435 = vrot.slane %v4433, 4
        %v4436 = vrot.slane %v3631, 5
        %v4437 = vsel %vm1299, %v4435, %v4436
        %v4438 = vrot.slane %v4350, 5
        %v4439 = vrot.slane %v4438, 4
        %v4440 = vrot.slane %v3633, 5
        %v4441 = vsel %vm1299, %v4439, %v4440
        %v4442 = vrot.slane %v4440, 4
        %v4443 = vrot.slane %v3634, 5
        %v4444 = vsel %vm1299, %v4442, %v4443
        %v4445 = vrot.slane %v4351, 5
        %v4446 = vrot.slane %v4445, 4
        %v4447 = vrot.slane %v3636, 5
        %v4448 = vsel %vm1299, %v4446, %v4447
        %v4449 = vrot.slane %v4447, 4
        %v4450 = vrot.slane %v3637, 5
        %v4451 = vsel %vm1299, %v4449, %v4450
        %v4452 = vrot.slane %v4352, 5
        %v4453 = vrot.slane %v4452, 4
        %v4454 = vrot.slane %v3639, 5
        %v4455 = vsel %vm1299, %v4453, %v4454
        %v4456 = vrot.slane %v4454, 4
        %v4457 = vrot.slane %v3640, 5
        %v4458 = vsel %vm1299, %v4456, %v4457
        %v4459 = vrot.slane %v4353, 5
        %v4460 = vrot.slane %v4459, 4
        %v4461 = vrot.slane %v3642, 5
        %v4462 = vsel %vm1299, %v4460, %v4461
        %v4463 = vrot.slane %v4461, 4
        %v4464 = vrot.slane %v3643, 5
        %v4465 = vsel %vm1299, %v4463, %v4464
        %v4466 = vrot.slane %v4354, 5
        %v4467 = vrot.slane %v4466, 4
        %v4468 = vrot.slane %v3645, 5
        %v4469 = vsel %vm1299, %v4467, %v4468
        %v4470 = vrot.slane %v4468, 4
        %v4471 = vrot.slane %v3646, 5
        %v4472 = vsel %vm1299, %v4470, %v4471
        %v4473 = vrot.slane %v4355, 5
        %v4474 = vrot.slane %v4473, 4
        %v4475 = vrot.slane %v3648, 5
        %v4476 = vsel %vm1299, %v4474, %v4475
        %v4477 = vrot.slane %v4475, 4
        %v4478 = vrot.slane %v3649, 5
        %v4479 = vsel %vm1299, %v4477, %v4478
        %v4480 = vrot.slane %v4356, 5
        %v4481 = vrot.slane %v4480, 4
        %v4482 = vrot.slane %v3651, 5
        %v4483 = vsel %vm1299, %v4481, %v4482
        %v4484 = vrot.slane %v4482, 4
        %v4485 = vrot.slane %v3652, 5
        %v4486 = vsel %vm1299, %v4484, %v4485
        %v4487 = vrot.slane %v4357, 5
        %v4488 = vrot.slane %v4487, 4
        %v4489 = vrot.slane %v3654, 5
        %v4490 = vsel %vm1299, %v4488, %v4489
        %v4491 = vrot.slane %v4489, 4
        %v4492 = vrot.slane %v3655, 5
        %v4493 = vsel %vm1299, %v4491, %v4492
        %v4494 = vrot.slane %v4358, 5
        %v4495 = vrot.slane %v4494, 4
        %v4496 = vrot.slane %v3657, 5
        %v4497 = vsel %vm1299, %v4495, %v4496
        %v4498 = vrot.slane %v4496, 4
        %v4499 = vrot.slane %v3658, 5
        %v4500 = vsel %vm1299, %v4498, %v4499
        %v4501 = vrot.slane %v4359, 5
        %v4502 = vrot.slane %v4501, 4
        %v4503 = vrot.slane %v3660, 5
        %v4504 = vsel %vm1299, %v4502, %v4503
        %v4505 = vrot.slane %v4503, 4
        %v4506 = vrot.slane %v3661, 5
        %v4507 = vsel %vm1299, %v4505, %v4506
        %v4508 = vrot.slane %v4360, 5
        %v4509 = vrot.slane %v4508, 4
        %v4510 = vrot.slane %v3663, 5
        %v4511 = vsel %vm1299, %v4509, %v4510
        %v4512 = vrot.slane %v4510, 4
        %v4513 = vrot.slane %v3664, 5
        %v4514 = vsel %vm1299, %v4512, %v4513
        %v4515 = vrot.slane %v4361, 5
        %v4516 = vrot.slane %v4515, 4
        %v4517 = vrot.slane %v3666, 5
        %v4518 = vsel %vm1299, %v4516, %v4517
        %v4519 = vrot.slane %v4517, 4
        %v4520 = vrot.slane %v3667, 5
        %v4521 = vsel %vm1299, %v4519, %v4520
        %s4522 = scalar_lea.vmem [#allocation5], 16
        %v4523 = vld [vmem:[%s4522] sm:$0x3]
        %v4524 = vunpack.c.l.b16 %v4413
        %v4525 = vunpack.c.l.b16 %v4416
        %v4526 = vunpack.c.l.b16 %v4420
        %v4527 = vunpack.c.l.b16 %v4423
        %v4528 = vunpack.c.l.b16 %v4427
        %v4529 = vunpack.c.l.b16 %v4430
        %v4530 = vunpack.c.l.b16 %v4434
        %v4531 = vunpack.c.l.b16 %v4437
        %v4532 = vunpack.c.l.b16 %v4441
        %v4533 = vunpack.c.l.b16 %v4444
        %v4534 = vunpack.c.l.b16 %v4448
        %v4535 = vunpack.c.l.b16 %v4451
        %v4536 = vunpack.c.l.b16 %v4455
        %v4537 = vunpack.c.l.b16 %v4458
        %v4538 = vunpack.c.l.b16 %v4462
        %v4539 = vunpack.c.l.b16 %v4465
        %v4540 = vunpack.c.l.b16 %v4469
        %v4541 = vunpack.c.l.b16 %v4472
        %v4542 = vunpack.c.l.b16 %v4476
        %v4543 = vunpack.c.l.b16 %v4479
        %v4544 = vunpack.c.l.b16 %v4483
        %v4545 = vunpack.c.l.b16 %v4486
        %v4546 = vunpack.c.l.b16 %v4490
        %v4547 = vunpack.c.l.b16 %v4493
        %v4548 = vunpack.c.l.b16 %v4497
        %v4549 = vunpack.c.l.b16 %v4500
        %v4550 = vunpack.c.l.b16 %v4504
        %v4551 = vunpack.c.l.b16 %v4507
        %v4552 = vunpack.c.l.b16 %v4511
        %v4553 = vunpack.c.l.b16 %v4514
        %v4554 = vunpack.c.l.b16 %v4518
        %v4555 = vunpack.c.l.b16 %v4521
        %v4556 = vpack.c.b16 %v4525, %v4524
        %v4557 = vpack.c.b16 %v4527, %v4526
        %v4558 = vpack.c.b16 %v4529, %v4528
        %v4559 = vpack.c.b16 %v4531, %v4530
        %v4560 = vpack.c.b16 %v4533, %v4532
        %v4561 = vpack.c.b16 %v4535, %v4534
        %v4562 = vpack.c.b16 %v4537, %v4536
        %v4563 = vpack.c.b16 %v4539, %v4538
        %v4564 = vpack.c.b16 %v4541, %v4540
        %v4565 = vpack.c.b16 %v4543, %v4542
        %v4566 = vpack.c.b16 %v4545, %v4544
        %v4567 = vpack.c.b16 %v4547, %v4546
        %v4568 = vpack.c.b16 %v4549, %v4548
        %v4569 = vpack.c.b16 %v4551, %v4550
        %v4570 = vpack.c.b16 %v4553, %v4552
        %v4571 = vpack.c.b16 %v4555, %v4554
        %v4573 = vsel %vm743, %v4556, 0
        %v4576 = vsel %vm743, %v4557, 0
        %v4579 = vsel %vm743, %v4558, 0
        %v4582 = vsel %vm743, %v4559, 0
        %v4585 = vsel %vm743, %v4560, 0
        %v4588 = vsel %vm743, %v4561, 0
        %v4591 = vsel %vm743, %v4562, 0
        %v4594 = vsel %vm743, %v4563, 0
        %v4597 = vsel %vm743, %v4564, 0
        %v4600 = vsel %vm743, %v4565, 0
        %v4603 = vsel %vm743, %v4566, 0
        %v4606 = vsel %vm743, %v4567, 0
        %v4609 = vsel %vm743, %v4568, 0
        %v4612 = vsel %vm743, %v4569, 0
        %v4615 = vsel %vm743, %v4570, 0
        %v4618 = vsel %vm743, %v4571, 0
        %v4621 = vsel %vm792, %v4523, 0
        %4623 = vmatprep.subr.bf16.mxu0 0
        %4624 = vmatpush1.bf16.msra.mxu0 %v4621
        %4625 = vmatprep.subr.bf16.mxu0 0
        %4626 = vmatpush1.bf16.msra.mxu0 0
        %4627 = vmatprep.subr.bf16.mxu0 0
        %4628 = vmatpush1.bf16.msra.mxu0 0
        %4629 = vmatprep.subr.bf16.mxu0 0
        %4630 = vmatpush1.bf16.msra.mxu0 0
        %4631 = vmatprep.subr.bf16.mxu0 0
        %4632 = vmatpush1.bf16.msra.mxu0 0
        %4633 = vmatprep.subr.bf16.mxu0 0
        %4634 = vmatpush1.bf16.msra.mxu0 0
        %4635 = vmatprep.subr.bf16.mxu0 0
        %4636 = vmatpush1.bf16.msra.mxu0 0
        %4637 = vmatprep.subr.bf16.mxu0 0
        %4638 = vmatpush1.bf16.msra.mxu0 0
        %4639 = vmatprep.subr.bf16.mxu0 0
        %4640 = vmatpush1.bf16.msra.mxu0 0
        %4641 = vmatprep.subr.bf16.mxu0 0
        %4642 = vmatpush1.bf16.msra.mxu0 0
        %4643 = vmatprep.subr.bf16.mxu0 0
        %4644 = vmatpush1.bf16.msra.mxu0 0
        %4645 = vmatprep.subr.bf16.mxu0 0
        %4646 = vmatpush1.bf16.msra.mxu0 0
        %4647 = vmatprep.subr.bf16.mxu0 0
        %4648 = vmatpush1.bf16.msra.mxu0 0
        %4649 = vmatprep.subr.bf16.mxu0 0
        %4650 = vmatpush1.bf16.msra.mxu0 0
        %4651 = vmatprep.subr.bf16.mxu0 0
        %4652 = vmatpush1.bf16.msra.mxu0 0
        %4653 = vmatprep.subr.bf16.mxu0 0
        %4654 = vmatpush1.bf16.msra.mxu0 0
        %4655 = vmatprep.mubr.bf16.mxu0 0
        %4656 = vmatmul.mubr.bf16.gmra.mrb[0].mxu0 %v4573
        %v4657 = vpop.f32.mrb[0].mxu0
        %v4658 = vadd.f32 0.0, %v4657
        %v4659 = vpop.f32.mrb[0].mxu0
        %v4660 = vpop.f32.mrb[0].mxu0
        %v4661 = vadd.f32 0.0, %v4660
        %v4662 = vpop.f32.mrb[0].mxu0
        %4663 = vmatprep.mubr.bf16.mxu0 0
        %4664 = vmatmul.mubr.bf16.gmra.mrb[0].mxu0 %v4576
        %v4665 = vpop.f32.mrb[0].mxu0
        %v4666 = vadd.f32 0.0, %v4665
        %v4667 = vpop.f32.mrb[0].mxu0
        %v4668 = vpop.f32.mrb[0].mxu0
        %v4669 = vadd.f32 0.0, %v4668
        %v4670 = vpop.f32.mrb[0].mxu0
        %4671 = vmatprep.mubr.bf16.mxu0 0
        %4672 = vmatmul.mubr.bf16.gmra.mrb[0].mxu0 %v4579
        %v4673 = vpop.f32.mrb[0].mxu0
        %v4674 = vadd.f32 0.0, %v4673
        %v4675 = vpop.f32.mrb[0].mxu0
        %v4676 = vpop.f32.mrb[0].mxu0
        %v4677 = vadd.f32 0.0, %v4676
        %v4678 = vpop.f32.mrb[0].mxu0
        %4679 = vmatprep.mubr.bf16.mxu0 0
        %4680 = vmatmul.mubr.bf16.gmra.mrb[0].mxu0 %v4582
        %v4681 = vpop.f32.mrb[0].mxu0
        %v4682 = vadd.f32 0.0, %v4681
        %v4683 = vpop.f32.mrb[0].mxu0
        %v4684 = vpop.f32.mrb[0].mxu0
        %v4685 = vadd.f32 0.0, %v4684
        %v4686 = vpop.f32.mrb[0].mxu0
        %4687 = vmatprep.mubr.bf16.mxu0 0
        %4688 = vmatmul.mubr.bf16.gmra.mrb[0].mxu0 %v4585
        %v4689 = vpop.f32.mrb[0].mxu0
        %v4690 = vadd.f32 0.0, %v4689
        %v4691 = vpop.f32.mrb[0].mxu0
        %v4692 = vpop.f32.mrb[0].mxu0
        %v4693 = vadd.f32 0.0, %v4692
        %v4694 = vpop.f32.mrb[0].mxu0
        %4695 = vmatprep.mubr.bf16.mxu0 0
        %4696 = vmatmul.mubr.bf16.gmra.mrb[0].mxu0 %v4588
        %v4697 = vpop.f32.mrb[0].mxu0
        %v4698 = vadd.f32 0.0, %v4697
        %v4699 = vpop.f32.mrb[0].mxu0
        %v4700 = vpop.f32.mrb[0].mxu0
        %v4701 = vadd.f32 0.0, %v4700
        %v4702 = vpop.f32.mrb[0].mxu0
        %4703 = vmatprep.mubr.bf16.mxu0 0
        %4704 = vmatmul.mubr.bf16.gmra.mrb[0].mxu0 %v4591
        %v4705 = vpop.f32.mrb[0].mxu0
        %v4706 = vadd.f32 0.0, %v4705
        %v4707 = vpop.f32.mrb[0].mxu0
        %v4708 = vpop.f32.mrb[0].mxu0
        %v4709 = vadd.f32 0.0, %v4708
        %v4710 = vpop.f32.mrb[0].mxu0
        %4711 = vmatprep.mubr.bf16.mxu0 0
        %4712 = vmatmul.mubr.bf16.gmra.mrb[0].mxu0 %v4594
        %v4713 = vpop.f32.mrb[0].mxu0
        %v4714 = vadd.f32 0.0, %v4713
        %v4715 = vpop.f32.mrb[0].mxu0
        %v4716 = vpop.f32.mrb[0].mxu0
        %v4717 = vadd.f32 0.0, %v4716
        %v4718 = vpop.f32.mrb[0].mxu0
        %4719 = vmatprep.mubr.bf16.mxu0 0
        %4720 = vmatmul.mubr.bf16.gmra.mrb[0].mxu0 %v4597
        %v4721 = vpop.f32.mrb[0].mxu0
        %v4722 = vadd.f32 0.0, %v4721
        %v4723 = vpop.f32.mrb[0].mxu0
        %v4724 = vpop.f32.mrb[0].mxu0
        %v4725 = vadd.f32 0.0, %v4724
        %v4726 = vpop.f32.mrb[0].mxu0
        %4727 = vmatprep.mubr.bf16.mxu0 0
        %4728 = vmatmul.mubr.bf16.gmra.mrb[0].mxu0 %v4600
        %v4729 = vpop.f32.mrb[0].mxu0
        %v4730 = vadd.f32 0.0, %v4729
        %v4731 = vpop.f32.mrb[0].mxu0
        %v4732 = vpop.f32.mrb[0].mxu0
        %v4733 = vadd.f32 0.0, %v4732
        %v4734 = vpop.f32.mrb[0].mxu0
        %4735 = vmatprep.mubr.bf16.mxu0 0
        %4736 = vmatmul.mubr.bf16.gmra.mrb[0].mxu0 %v4603
        %v4737 = vpop.f32.mrb[0].mxu0
        %v4738 = vadd.f32 0.0, %v4737
        %v4739 = vpop.f32.mrb[0].mxu0
        %v4740 = vpop.f32.mrb[0].mxu0
        %v4741 = vadd.f32 0.0, %v4740
        %v4742 = vpop.f32.mrb[0].mxu0
        %4743 = vmatprep.mubr.bf16.mxu0 0
        %4744 = vmatmul.mubr.bf16.gmra.mrb[0].mxu0 %v4606
        %v4745 = vpop.f32.mrb[0].mxu0
        %v4746 = vadd.f32 0.0, %v4745
        %v4747 = vpop.f32.mrb[0].mxu0
        %v4748 = vpop.f32.mrb[0].mxu0
        %v4749 = vadd.f32 0.0, %v4748
        %v4750 = vpop.f32.mrb[0].mxu0
        %4751 = vmatprep.mubr.bf16.mxu0 0
        %4752 = vmatmul.mubr.bf16.gmra.mrb[0].mxu0 %v4609
        %v4753 = vpop.f32.mrb[0].mxu0
        %v4754 = vadd.f32 0.0, %v4753
        %v4755 = vpop.f32.mrb[0].mxu0
        %v4756 = vpop.f32.mrb[0].mxu0
        %v4757 = vadd.f32 0.0, %v4756
        %v4758 = vpop.f32.mrb[0].mxu0
        %4759 = vmatprep.mubr.bf16.mxu0 0
        %4760 = vmatmul.mubr.bf16.gmra.mrb[0].mxu0 %v4612
        %v4761 = vpop.f32.mrb[0].mxu0
        %v4762 = vadd.f32 0.0, %v4761
        %v4763 = vpop.f32.mrb[0].mxu0
        %v4764 = vpop.f32.mrb[0].mxu0
        %v4765 = vadd.f32 0.0, %v4764
        %v4766 = vpop.f32.mrb[0].mxu0
        %4767 = vmatprep.mubr.bf16.mxu0 0
        %4768 = vmatmul.mubr.bf16.gmra.mrb[0].mxu0 %v4615
        %v4769 = vpop.f32.mrb[0].mxu0
        %v4770 = vadd.f32 0.0, %v4769
        %v4771 = vpop.f32.mrb[0].mxu0
        %v4772 = vpop.f32.mrb[0].mxu0
        %v4773 = vadd.f32 0.0, %v4772
        %v4774 = vpop.f32.mrb[0].mxu0
        %4775 = vmatprep.mubr.bf16.mxu0 0
        %4776 = vmatmul.mubr.bf16.gmra.mrb[0].mxu0 %v4618
        %v4777 = vpop.f32.mrb[0].mxu0
        %v4778 = vadd.f32 0.0, %v4777
        %v4779 = vpop.f32.mrb[0].mxu0
        %v4780 = vpop.f32.mrb[0].mxu0
        %v4781 = vadd.f32 0.0, %v4780
        %v4782 = vpop.f32.mrb[0].mxu0
        %4783 = vdwg.mxu0
        %v4784 = vadd.f32 %v4314, %v4658
        %v4785 = vadd.f32 %v4315, %v4661
        %v4786 = vadd.f32 %v4316, %v4666
        %v4787 = vadd.f32 %v4317, %v4669
        %v4788 = vadd.f32 %v4318, %v4674
        %v4789 = vadd.f32 %v4319, %v4677
        %v4790 = vadd.f32 %v4320, %v4682
        %v4791 = vadd.f32 %v4321, %v4685
        %v4792 = vadd.f32 %v4322, %v4690
        %v4793 = vadd.f32 %v4323, %v4693
        %v4794 = vadd.f32 %v4324, %v4698
        %v4795 = vadd.f32 %v4325, %v4701
        %v4796 = vadd.f32 %v4326, %v4706
        %v4797 = vadd.f32 %v4327, %v4709
        %v4798 = vadd.f32 %v4328, %v4714
        %v4799 = vadd.f32 %v4329, %v4717
        %v4800 = vadd.f32 %v4330, %v4722
        %v4801 = vadd.f32 %v4331, %v4725
        %v4802 = vadd.f32 %v4332, %v4730
        %v4803 = vadd.f32 %v4333, %v4733
        %v4804 = vadd.f32 %v4334, %v4738
        %v4805 = vadd.f32 %v4335, %v4741
        %v4806 = vadd.f32 %v4336, %v4746
        %v4807 = vadd.f32 %v4337, %v4749
        %v4808 = vadd.f32 %v4338, %v4754
        %v4809 = vadd.f32 %v4339, %v4757
        %v4810 = vadd.f32 %v4340, %v4762
        %v4811 = vadd.f32 %v4341, %v4765
        %v4812 = vadd.f32 %v4342, %v4770
        %v4813 = vadd.f32 %v4343, %v4773
        %v4814 = vadd.f32 %v4344, %v4778
        %v4815 = vadd.f32 %v4345, %v4781
        %v4816 = vld [vmem:[#allocation7] sm:$0x1]
        %v4818 = vlaneseq
        %v4819 = vshrl.u32 %v4818, 7
        %v4820 = vsub.s32 0, %v4819
        %v4821 = vrot.slane %v4816, %v4820
        %v4823 = vmul.f32 %v4784, %v4821
        %v4824 = vmul.f32 %v4785, %v4821
        %v4825 = vmul.f32 %v4786, %v4821
        %v4826 = vmul.f32 %v4787, %v4821
        %v4827 = vmul.f32 %v4788, %v4821
        %v4828 = vmul.f32 %v4789, %v4821
        %v4829 = vmul.f32 %v4790, %v4821
        %v4830 = vmul.f32 %v4791, %v4821
        %v4831 = vmul.f32 %v4792, %v4821
        %v4832 = vmul.f32 %v4793, %v4821
        %v4833 = vmul.f32 %v4794, %v4821
        %v4834 = vmul.f32 %v4795, %v4821
        %v4835 = vmul.f32 %v4796, %v4821
        %v4836 = vmul.f32 %v4797, %v4821
        %v4837 = vmul.f32 %v4798, %v4821
        %v4838 = vmul.f32 %v4799, %v4821
        %v4839 = vmul.f32 %v4800, %v4821
        %v4840 = vmul.f32 %v4801, %v4821
        %v4841 = vmul.f32 %v4802, %v4821
        %v4842 = vmul.f32 %v4803, %v4821
        %v4843 = vmul.f32 %v4804, %v4821
        %v4844 = vmul.f32 %v4805, %v4821
        %v4845 = vmul.f32 %v4806, %v4821
        %v4846 = vmul.f32 %v4807, %v4821
        %v4847 = vmul.f32 %v4808, %v4821
        %v4848 = vmul.f32 %v4809, %v4821
        %v4849 = vmul.f32 %v4810, %v4821
        %v4850 = vmul.f32 %v4811, %v4821
        %v4851 = vmul.f32 %v4812, %v4821
        %v4852 = vmul.f32 %v4813, %v4821
        %v4853 = vmul.f32 %v4814, %v4821
        %v4854 = vmul.f32 %v4815, %v4821
        %v4855 = vld [vmem:[#allocation8] sm:$0x1]
        %v4857 = vlaneseq
        %v4858 = vshrl.u32 %v4857, 7
        %v4859 = vsub.s32 0, %v4858
        %v4860 = vrot.slane %v4855, %v4859
        %v4862 = vadd.f32 %v4823, %v4860
        %v4863 = vadd.f32 %v4824, %v4860
        %v4864 = vadd.f32 %v4825, %v4860
        %v4865 = vadd.f32 %v4826, %v4860
        %v4866 = vadd.f32 %v4827, %v4860
        %v4867 = vadd.f32 %v4828, %v4860
        %v4868 = vadd.f32 %v4829, %v4860
        %v4869 = vadd.f32 %v4830, %v4860
        %v4870 = vadd.f32 %v4831, %v4860
        %v4871 = vadd.f32 %v4832, %v4860
        %v4872 = vadd.f32 %v4833, %v4860
        %v4873 = vadd.f32 %v4834, %v4860
        %v4874 = vadd.f32 %v4835, %v4860
        %v4875 = vadd.f32 %v4836, %v4860
        %v4876 = vadd.f32 %v4837, %v4860
        %v4877 = vadd.f32 %v4838, %v4860
        %v4878 = vadd.f32 %v4839, %v4860
        %v4879 = vadd.f32 %v4840, %v4860
        %v4880 = vadd.f32 %v4841, %v4860
        %v4881 = vadd.f32 %v4842, %v4860
        %v4882 = vadd.f32 %v4843, %v4860
        %v4883 = vadd.f32 %v4844, %v4860
        %v4884 = vadd.f32 %v4845, %v4860
        %v4885 = vadd.f32 %v4846, %v4860
        %v4886 = vadd.f32 %v4847, %v4860
        %v4887 = vadd.f32 %v4848, %v4860
        %v4888 = vadd.f32 %v4849, %v4860
        %v4889 = vadd.f32 %v4850, %v4860
        %v4890 = vadd.f32 %v4851, %v4860
        %v4891 = vadd.f32 %v4852, %v4860
        %v4892 = vadd.f32 %v4853, %v4860
        %v4893 = vadd.f32 %v4854, %v4860
        %v4894 = vmax.f32 %v4862, 0.0
        %v4895 = vmax.f32 %v4863, 0.0
        %v4896 = vmax.f32 %v4864, 0.0
        %v4897 = vmax.f32 %v4865, 0.0
        %v4898 = vmax.f32 %v4866, 0.0
        %v4899 = vmax.f32 %v4867, 0.0
        %v4900 = vmax.f32 %v4868, 0.0
        %v4901 = vmax.f32 %v4869, 0.0
        %v4902 = vmax.f32 %v4870, 0.0
        %v4903 = vmax.f32 %v4871, 0.0
        %v4904 = vmax.f32 %v4872, 0.0
        %v4905 = vmax.f32 %v4873, 0.0
        %v4906 = vmax.f32 %v4874, 0.0
        %v4907 = vmax.f32 %v4875, 0.0
        %v4908 = vmax.f32 %v4876, 0.0
        %v4909 = vmax.f32 %v4877, 0.0
        %v4910 = vmax.f32 %v4878, 0.0
        %v4911 = vmax.f32 %v4879, 0.0
        %v4912 = vmax.f32 %v4880, 0.0
        %v4913 = vmax.f32 %v4881, 0.0
        %v4914 = vmax.f32 %v4882, 0.0
        %v4915 = vmax.f32 %v4883, 0.0
        %v4916 = vmax.f32 %v4884, 0.0
        %v4917 = vmax.f32 %v4885, 0.0
        %v4918 = vmax.f32 %v4886, 0.0
        %v4919 = vmax.f32 %v4887, 0.0
        %v4920 = vmax.f32 %v4888, 0.0
        %v4921 = vmax.f32 %v4889, 0.0
        %v4922 = vmax.f32 %v4890, 0.0
        %v4923 = vmax.f32 %v4891, 0.0
        %v4924 = vmax.f32 %v4892, 0.0
        %v4925 = vmax.f32 %v4893, 0.0
        %v4926 = vpack.c.bf16 %v4895, %v4894
        %v4927 = vpack.c.bf16 %v4897, %v4896
        %v4928 = vpack.c.bf16 %v4899, %v4898
        %v4929 = vpack.c.bf16 %v4901, %v4900
        %v4930 = vpack.c.bf16 %v4903, %v4902
        %v4931 = vpack.c.bf16 %v4905, %v4904
        %v4932 = vpack.c.bf16 %v4907, %v4906
        %v4933 = vpack.c.bf16 %v4909, %v4908
        %v4934 = vpack.c.bf16 %v4911, %v4910
        %v4935 = vpack.c.bf16 %v4913, %v4912
        %v4936 = vpack.c.bf16 %v4915, %v4914
        %v4937 = vpack.c.bf16 %v4917, %v4916
        %v4938 = vpack.c.bf16 %v4919, %v4918
        %v4939 = vpack.c.bf16 %v4921, %v4920
        %v4940 = vpack.c.bf16 %v4923, %v4922
        %v4941 = vpack.c.bf16 %v4925, %v4924
        %v4958 = vunpack.c.l.b16 %v4926
        %v4959 = vunpack.c.h.b16 %v4926
        %v4960 = vunpack.c.l.b16 %v4927
        %v4961 = vunpack.c.h.b16 %v4927
        %v4962 = vunpack.c.l.b16 %v4928
        %v4963 = vunpack.c.h.b16 %v4928
        %v4964 = vunpack.c.l.b16 %v4929
        %v4965 = vunpack.c.h.b16 %v4929
        %v4966 = vunpack.c.l.b16 %v4930
        %v4967 = vunpack.c.h.b16 %v4930
        %v4968 = vunpack.c.l.b16 %v4931
        %v4969 = vunpack.c.h.b16 %v4931
        %v4970 = vunpack.c.l.b16 %v4932
        %v4971 = vunpack.c.h.b16 %v4932
        %v4972 = vunpack.c.l.b16 %v4933
        %v4973 = vunpack.c.h.b16 %v4933
        %v4974 = vunpack.c.l.b16 %v4934
        %v4975 = vunpack.c.h.b16 %v4934
        %v4976 = vunpack.c.l.b16 %v4935
        %v4977 = vunpack.c.h.b16 %v4935
        %v4978 = vunpack.c.l.b16 %v4936
        %v4979 = vunpack.c.h.b16 %v4936
        %v4980 = vunpack.c.l.b16 %v4937
        %v4981 = vunpack.c.h.b16 %v4937
        %v4982 = vunpack.c.l.b16 %v4938
        %v4983 = vunpack.c.h.b16 %v4938
        %v4984 = vunpack.c.l.b16 %v4939
        %v4985 = vunpack.c.h.b16 %v4939
        %v4986 = vunpack.c.l.b16 %v4940
        %v4987 = vunpack.c.h.b16 %v4940
        %v4988 = vunpack.c.l.b16 %v4941
        %v4989 = vunpack.c.h.b16 %v4941
        %v4990 = vpack.c.b16 %v4958, %v4958
        %v4991 = vpack.c.b16 %v4959, %v4959
        %v4992 = vpack.c.b16 %v4960, %v4960
        %v4993 = vpack.c.b16 %v4961, %v4961
        %v4994 = vpack.c.b16 %v4962, %v4962
        %v4995 = vpack.c.b16 %v4963, %v4963
        %v4996 = vpack.c.b16 %v4964, %v4964
        %v4997 = vpack.c.b16 %v4965, %v4965
        %v4998 = vpack.c.b16 %v4966, %v4966
        %v4999 = vpack.c.b16 %v4967, %v4967
        %v5000 = vpack.c.b16 %v4968, %v4968
        %v5001 = vpack.c.b16 %v4969, %v4969
        %v5002 = vpack.c.b16 %v4970, %v4970
        %v5003 = vpack.c.b16 %v4971, %v4971
        %v5004 = vpack.c.b16 %v4972, %v4972
        %v5005 = vpack.c.b16 %v4973, %v4973
        %v5006 = vpack.c.b16 %v4974, %v4974
        %v5007 = vpack.c.b16 %v4975, %v4975
        %v5008 = vpack.c.b16 %v4976, %v4976
        %v5009 = vpack.c.b16 %v4977, %v4977
        %v5010 = vpack.c.b16 %v4978, %v4978
        %v5011 = vpack.c.b16 %v4979, %v4979
        %v5012 = vpack.c.b16 %v4980, %v4980
        %v5013 = vpack.c.b16 %v4981, %v4981
        %v5014 = vpack.c.b16 %v4982, %v4982
        %v5015 = vpack.c.b16 %v4983, %v4983
        %v5016 = vpack.c.b16 %v4984, %v4984
        %v5017 = vpack.c.b16 %v4985, %v4985
        %v5018 = vpack.c.b16 %v4986, %v4986
        %v5019 = vpack.c.b16 %v4987, %v4987
        %v5020 = vpack.c.b16 %v4988, %v4988
        %v5021 = vpack.c.b16 %v4989, %v4989
        %vm5054 = vcmask 27648
        %5055 = vst.msk [vmem:[%s255] sm:$0xf] %vm5054, %v4990
        %5056 = vst.msk [vmem:[%s255 + $0x4] sm:$0xf] %vm5054, %v4991
        %5057 = vst.msk [vmem:[%s255 + $0x8] sm:$0xf] %vm5054, %v4992
        %5058 = vst.msk [vmem:[%s255 + $0xc] sm:$0xf] %vm5054, %v4993
        %5059 = vst.msk [vmem:[%s255 + $0x10] sm:$0xf] %vm5054, %v4994
        %5060 = vst.msk [vmem:[%s255 + $0x14] sm:$0xf] %vm5054, %v4995
        %5061 = vst.msk [vmem:[%s255 + $0x18] sm:$0xf] %vm5054, %v4996
        %5062 = vst.msk [vmem:[%s255 + $0x1c] sm:$0xf] %vm5054, %v4997
        %5063 = vst.msk [vmem:[%s255 + $0x20] sm:$0xf] %vm5054, %v4998
        %5064 = vst.msk [vmem:[%s255 + $0x24] sm:$0xf] %vm5054, %v4999
        %5065 = vst.msk [vmem:[%s255 + $0x28] sm:$0xf] %vm5054, %v5000
        %5066 = vst.msk [vmem:[%s255 + $0x2c] sm:$0xf] %vm5054, %v5001
        %5067 = vst.msk [vmem:[%s255 + $0x30] sm:$0xf] %vm5054, %v5002
        %5068 = vst.msk [vmem:[%s255 + $0x34] sm:$0xf] %vm5054, %v5003
        %5069 = vst.msk [vmem:[%s255 + $0x38] sm:$0xf] %vm5054, %v5004
        %5070 = vst.msk [vmem:[%s255 + $0x3c] sm:$0xf] %vm5054, %v5005
        %5071 = vst.msk [vmem:[%s255 + $0x40] sm:$0xf] %vm5054, %v5006
        %5072 = vst.msk [vmem:[%s255 + $0x44] sm:$0xf] %vm5054, %v5007
        %5073 = vst.msk [vmem:[%s255 + $0x48] sm:$0xf] %vm5054, %v5008
        %5074 = vst.msk [vmem:[%s255 + $0x4c] sm:$0xf] %vm5054, %v5009
        %5075 = vst.msk [vmem:[%s255 + $0x50] sm:$0xf] %vm5054, %v5010
        %5076 = vst.msk [vmem:[%s255 + $0x54] sm:$0xf] %vm5054, %v5011
        %5077 = vst.msk [vmem:[%s255 + $0x58] sm:$0xf] %vm5054, %v5012
        %5078 = vst.msk [vmem:[%s255 + $0x5c] sm:$0xf] %vm5054, %v5013
        %5079 = vst.msk [vmem:[%s255 + $0x60] sm:$0xf] %vm5054, %v5014
        %5080 = vst.msk [vmem:[%s255 + $0x64] sm:$0xf] %vm5054, %v5015
        %5081 = vst.msk [vmem:[%s255 + $0x68] sm:$0xf] %vm5054, %v5016
        %5082 = vst.msk [vmem:[%s255 + $0x6c] sm:$0xf] %vm5054, %v5017
        %5083 = vst.msk [vmem:[%s255 + $0x70] sm:$0xf] %vm5054, %v5018
        %5084 = vst.msk [vmem:[%s255 + $0x74] sm:$0xf] %vm5054, %v5019
        %5085 = vst.msk [vmem:[%s255 + $0x78] sm:$0xf] %vm5054, %v5020
        %5086 = vst.msk [vmem:[%s255 + $0x7c] sm:$0xf] %vm5054, %v5021
        %s5087 = sand.u32 %s120, 1
        %s5088 = scalar_lea.sflag [#allocation4], %s5087
        %s5089 = sand.u32 %s120, 1
        %s5090 = smul.addr %s5089, 128
        %s5091 = scalar_lea.vmem [#allocation10], %s5090
        // Predicated region
        $region53: #{_bottleneck_forward_impl.5} parent=35 // pred_check
          %p5092 = pneg %p130
        $region54: #{_bottleneck_forward_impl.5} parent=35 // pred_check_branch
          %5094 = sbr.rel (%p5092) target = $region56
        $region55: #{_bottleneck_forward_impl.5} parent=35 // pred_region
          %s5096 = ssub.s32 2048, 2048
          %5097 = vsyncadd %s5088, %s5096
          %s5098 = smul.addr %s23, 32
          %s5099 = smul.addr %s5098, 64
          %s5100 = scalar_lea.hbm %s4, %s5099
          %s5101 = sshll.u32 %s5091, 4
          %s5102 = int_to_ptr.vmem [resolvable:$true] %s5101
          %5107 = dma.vmem_to_hbm [thread:$0]  %s5102, 2048, %s5100, %s5088, 64, 64, 4
        $region56: #{_bottleneck_forward_impl.5} parent=35 // pred_fallthru
          _
      $region36: #{_bottleneck_forward_impl.5} parent=5 // pred_fallthru
        _
      %p5108 = scmp.le.s32.totalorder 2, %s18
      // Predicated region
      $region57: #{_bottleneck_forward_impl.5} parent=5 // pred_check
        %p5109 = pneg %p5108
      $region58: #{_bottleneck_forward_impl.5} parent=5 // pred_check_branch
        %5111 = sbr.rel (%p5109) target = $region60
      $region59: #{_bottleneck_forward_impl.5} parent=5 // pred_region
        %s5112 = ssub.s32 %s18, 2
        // Predicated region
        $region61: #{_bottleneck_forward_impl.5} parent=59 // pred_check
          %p5113 = pneg %p136
        $region62: #{_bottleneck_forward_impl.5} parent=59 // pred_check_branch
          %5115 = sbr.rel (%p5113) target = $region64
        $region63: #{_bottleneck_forward_impl.5} parent=59 // pred_region
          %s5116 = sand.u32 %s121, 1
          %s5117 = scalar_lea.sflag [#allocation4], %s5116
          %s5118 = sand.u32 %s121, 1
          %s5119 = smul.addr %s5118, 128
          %s5120 = scalar_lea.vmem [#allocation10], %s5119
          %5121 = dma.done %s5117, 2048
        $region64: #{_bottleneck_forward_impl.5} parent=59 // pred_fallthru
          _
      $region60: #{_bottleneck_forward_impl.5} parent=5 // pred_fallthru
        _
    $region6: #{_bottleneck_forward_impl.5} parent=1 // loop_footer
      %s22 = sadd.s32 1, %s18
    $region7: #{_bottleneck_forward_impl.5} parent=1 // loop_footer_branch
      %17 = sbr.rel target = $region3
    $region8: #{_bottleneck_forward_impl.5} parent=1 // loop_exit
      _
    %5122 = vsyncpa [#allocation3], 1
    %s5123 = scalar_lea.sflag [#allocation3], 1
    %5124 = vsyncpa %s5123, 1
    %5125 = vsyncpa [#allocation6], 1
    %5126 = vsyncpa [#allocation9], 1
    %5127 = vsyncpa [#allocation4], 1
    %s5128 = scalar_lea.sflag [#allocation4], 1
    %5129 = vsyncpa %s5128, 1

</llo_original>
